<compile_context>
chip_gen: v6e
topology: v6e:2x2x1
jax: 0.10.0
libtpu: 0.0.40
codegen_flags: <defaults>
</compile_context>

<pallas_src>
import jax
import jax.numpy as jnp
from jax import lax
from jax.experimental import pallas as pl
from jax.experimental.pallas import tpu as pltpu

CPAD = 128          # every channel dim padded to a full 128-lane vreg
NUM_CLASSES = 10
H_IN = 32           # CIFAR-sized input; spatial plan below is specialized to it
EPS = 1e-5

# Padded scratch buffer shapes (interior + 1-pixel zero ring), kernel arg order.
_SCRATCH_SHAPES = (
    (H_IN + 2, H_IN + 2, CPAD),   # a0: init output, 32x32 interior
    (18, 18, CPAD),               # m1: block1 conv1 output, 16x16 interior
    (18, 18, CPAD),               # o1: block1 output
    (10, 10, CPAD),               # m2: block2 conv1 output, 8x8
    (10, 10, CPAD),               # o2: block2 output
    (6, 6, CPAD),                 # m3: block3 conv1 output, 4x4
    (6, 6, CPAD),                 # o3: block3 output
)

# Per-conv kernel sizes in packing / arg order:
# init, (b1: conv1, shortcut, conv2), (b2: ...), (b3: ...)
_CONV_KK = (3, 3, 1, 3, 3, 1, 3, 3, 1, 3)


# ---------------------------------------------------------------------------
# In-kernel convolution: row-by-row shift-and-accumulate matmuls
# ---------------------------------------------------------------------------
def _conv_rows(src, dst, w_ref, b_ref, *, ho_n, wo_n, kk, stride, off,
               relu, accumulate):
    """Conv (kk x kk, given stride) as kk*kk accumulated (Wo, C)@(C, C) dots.

    src: padded source ref, 3-D (H, W, CPAD) or 4-D (1, H, W, CPAD).
    dst: padded destination ref, 3-D; interior written at offset (1, 1).
    w_ref: (kk*kk, CPAD, CPAD) bf16 taps (BN scale folded in, channels padded).
    b_ref: (1, CPAD) f32 folded BN bias (zero on padded channels).
    Reads source rows stride*ho + di + off, cols off + dj + stride*wo.
    """
    src_is_4d = len(src.shape) == 4
    bias = b_ref[...]                                      # (1, CPAD) f32, hoisted

    def body(ho, carry):
        acc = jnp.zeros((wo_n, CPAD), jnp.float32)
        for di in range(kk):                               # static unroll (<=3)
            hi = stride * ho + di + off
            for dj in range(kk):
                c0 = dj + off
                col = pl.ds(c0, wo_n) if stride == 1 else pl.ds(c0, wo_n, stride)
                if src_is_4d:
                    lhs = src[0, hi, col, :]               # (wo_n, CPAD) f32
                else:
                    lhs = src[hi, col, :]
                acc = acc + jnp.dot(lhs.astype(jnp.bfloat16),
                                    w_ref[di * kk + dj],
                                    preferred_element_type=jnp.float32)
        acc = acc + bias
        if accumulate:                                      # residual add (shortcut
            acc = acc + dst[1 + ho, pl.ds(1, wo_n), :]      # already stored in dst)
        if relu:
            acc = jnp.maximum(acc, 0.0)
        dst[1 + ho, pl.ds(1, wo_n), :] = acc
        return carry

    lax.fori_loop(0, ho_n, body, 0)


# ---------------------------------------------------------------------------
# The fused network kernel (one batch element per grid step)
# ---------------------------------------------------------------------------
def _resnet_kernel(x_ref,
                   wi, bi,
                   w11, b11, ws1, bs1, w12, b12,
                   w21, b21, ws2, bs2, w22, b22,
                   w31, b31, ws3, bs3, w32, b32,
                   wd, bd,
                   out_ref,
                   a0, m1, o1, m2, o2, m3, o3):
    # Zero all scratch: the 1-pixel rings are the conv zero-padding and the
    # padded channel lanes must stay zero.  (~1 MiB of VMEM stores, trivial.)
    for r in (a0, m1, o1, m2, o2, m3, o3):
        r[...] = jnp.zeros(r.shape, r.dtype)

    # init: conv3x3 s1 (3 -> 32) + BN + ReLU, 32x32
    _conv_rows(x_ref, a0, wi, bi, ho_n=32, wo_n=32, kk=3, stride=1, off=0,
               relu=True, accumulate=False)

    # block 1 (32 -> 32, stride 2): 32x32 -> 16x16
    _conv_rows(a0, m1, w11, b11, ho_n=16, wo_n=16, kk=3, stride=2, off=0,
               relu=True, accumulate=False)
    _conv_rows(a0, o1, ws1, bs1, ho_n=16, wo_n=16, kk=1, stride=2, off=1,
               relu=False, accumulate=False)
    _conv_rows(m1, o1, w12, b12, ho_n=16, wo_n=16, kk=3, stride=1, off=0,
               relu=True, accumulate=True)

    # block 2 (32 -> 64, stride 2): 16x16 -> 8x8
    _conv_rows(o1, m2, w21, b21, ho_n=8, wo_n=8, kk=3, stride=2, off=0,
               relu=True, accumulate=False)
    _conv_rows(o1, o2, ws2, bs2, ho_n=8, wo_n=8, kk=1, stride=2, off=1,
               relu=False, accumulate=False)
    _conv_rows(m2, o2, w22, b22, ho_n=8, wo_n=8, kk=3, stride=1, off=0,
               relu=True, accumulate=True)

    # block 3 (64 -> 128, stride 2): 8x8 -> 4x4
    _conv_rows(o2, m3, w31, b31, ho_n=4, wo_n=4, kk=3, stride=2, off=0,
               relu=True, accumulate=False)
    _conv_rows(o2, o3, ws3, bs3, ho_n=4, wo_n=4, kk=1, stride=2, off=1,
               relu=False, accumulate=False)
    _conv_rows(m3, o3, w32, b32, ho_n=4, wo_n=4, kk=3, stride=1, off=0,
               relu=True, accumulate=True)

    # head: avg_pool2d(4) over the 4x4 interior == mean, then dense (fused)
    acc = jnp.zeros((1, CPAD), jnp.float32)
    for h in range(4):
        acc = acc + jnp.sum(o3[1 + h, pl.ds(1, 4), :], axis=0, keepdims=True)
    feat = acc * (1.0 / 16.0)
    logits = jnp.dot(feat.astype(jnp.bfloat16), wd[...],
                     preferred_element_type=jnp.float32) + bd[...]
    out_ref[0, :, :] = logits


# ---------------------------------------------------------------------------
# Parameter init, BN folding, channel padding (all host/XLA side, done once)
# ---------------------------------------------------------------------------
def _init_conv_bn(key, kh, kw, cin, cout):
    k1, k2, k3, k4, k5 = jax.random.split(key, 5)
    fan_in = kh * kw * cin
    w = jax.random.normal(k1, (kh, kw, cin, cout), jnp.float32) * (2.0 / fan_in) ** 0.5
    gamma = jax.random.uniform(k2, (cout,), jnp.float32, 0.5, 1.5)
    beta = jax.random.normal(k3, (cout,), jnp.float32) * 0.1
    mean = jax.random.normal(k4, (cout,), jnp.float32) * 0.1
    var = jax.random.uniform(k5, (cout,), jnp.float32, 0.5, 1.5)
    return dict(w=w, gamma=gamma, beta=beta, mean=mean, var=var)


def _pack_conv(p):
    """Fold BN scale into weights, zero-pad channels to CPAD, flatten taps, bf16."""
    w, gamma, beta, mean, var = p["w"], p["gamma"], p["beta"], p["mean"], p["var"]
    kh, kw, cin, cout = w.shape
    scale = gamma / jnp.sqrt(var + EPS)
    w_f = w * scale[None, None, None, :]
    bias = beta - mean * scale
    wp = jnp.zeros((kh * kw, CPAD, CPAD), jnp.float32)
    wp = wp.at[:, :cin, :cout].set(w_f.reshape(kh * kw, cin, cout))
    bp = jnp.zeros((1, CPAD), jnp.float32).at[0, :cout].set(bias)
    return wp.astype(jnp.bfloat16), bp


def init_model(key, num_classes=NUM_CLASSES):
    layer_channels = [32, 64, 128]            # smallest_version branch
    keys = jax.random.split(key, 12)
    params = {"init": _init_conv_bn(keys[0], 3, 3, 3, 32), "blocks": []}
    in_p, ki = 32, 1
    for ch in layer_channels:                 # one BasicBlock per layer, stride 2
        params["blocks"].append({
            "conv1": _init_conv_bn(keys[ki], 3, 3, in_p, ch),
            "shortcut": _init_conv_bn(keys[ki + 1], 1, 1, in_p, ch),
            "conv2": _init_conv_bn(keys[ki + 2], 3, 3, ch, ch),
        })
        ki += 3
        in_p = ch
    kd, kb = jax.random.split(keys[ki])
    bound = 1.0 / (layer_channels[-1] ** 0.5)
    params["dense_w"] = jax.random.uniform(kd, (layer_channels[-1], num_classes),
                                           jnp.float32, -bound, bound)
    params["dense_b"] = jax.random.uniform(kb, (num_classes,), jnp.float32,
                                           -bound, bound)
    return params


def pack_params(params):
    packed = list(_pack_conv(params["init"]))
    for blk in params["blocks"]:
        packed += list(_pack_conv(blk["conv1"]))
        packed += list(_pack_conv(blk["shortcut"]))
        packed += list(_pack_conv(blk["conv2"]))
    wd = jnp.zeros((CPAD, CPAD), jnp.float32)
    wd = wd.at[:params["dense_w"].shape[0], :params["dense_w"].shape[1]].set(
        params["dense_w"])
    bd = jnp.zeros((1, CPAD), jnp.float32).at[0, :params["dense_b"].shape[0]].set(
        params["dense_b"])
    packed += [wd.astype(jnp.bfloat16), bd]
    return tuple(packed)


# ---------------------------------------------------------------------------
# Forward wrapper
# ---------------------------------------------------------------------------
def _const_spec(shape):
    nd = len(shape)
    return pl.BlockSpec(shape, lambda b, _nd=nd: (0,) * _nd)


@jax.jit
def model_forward(packed, x_nchw):
    n, c, h, w = x_nchw.shape
    assert (c, h, w) == (3, H_IN, H_IN)
    x = jnp.transpose(x_nchw, (0, 2, 3, 1))                    # NCHW -> NHWC
    x = jnp.pad(x, ((0, 0), (1, 1), (1, 1), (0, CPAD - c)))    # spatial ring + lanes

    in_specs = [pl.BlockSpec((1, H_IN + 2, H_IN + 2, CPAD),
                             lambda b: (b, 0, 0, 0))]
    for kk in _CONV_KK:
        in_specs.append(_const_spec((kk * kk, CPAD, CPAD)))    # folded weights (bf16)
        in_specs.append(_const_spec((1, CPAD)))                # folded bias (f32)
    in_specs.append(_const_spec((CPAD, CPAD)))                 # dense weight
    in_specs.append(_const_spec((1, CPAD)))                    # dense bias

    out = pl.pallas_call(
        _resnet_kernel,
        out_shape=jax.ShapeDtypeStruct((n, 1, CPAD), jnp.float32),
        grid=(n,),
        in_specs=in_specs,
        out_specs=pl.BlockSpec((1, 1, CPAD), lambda b: (b, 0, 0)),
        scratch_shapes=[pltpu.VMEM(s, jnp.float32) for s in _SCRATCH_SHAPES],
        compiler_params=pltpu.CompilerParams(
            dimension_semantics=("parallel",)),                # batch across TCs (v7x)
    )(x, *packed)
    return out.reshape(n, CPAD)[:, :NUM_CLASSES]


if __name__ == "__main__":
    key = jax.random.PRNGKey(0)
    kp, kx = jax.random.split(key)
    params = init_model(kp)
    packed = pack_params(params)
    x = jax.random.normal(kx, (2, 3, 32, 32), jnp.float32)     # NCHW, CIFAR-sized
    out = model_forward(packed, x)
    out = jax.block_until_ready(out)
    assert out.shape == (2, NUM_CLASSES) and out.dtype == jnp.float32
    print("KERNEL_OK")
</pallas_src>

<mosaic_0001>
module attributes {stable_mosaic.version = 11 : i64} {
  func.func @_resnet_kernel(%arg0: i32, %arg1: memref<1x34x34x128xf32, #tpu.memory_space<vmem>>, %arg2: memref<9x128x128xbf16, #tpu.memory_space<vmem>>, %arg3: memref<1x128xf32, #tpu.memory_space<vmem>>, %arg4: memref<9x128x128xbf16, #tpu.memory_space<vmem>>, %arg5: memref<1x128xf32, #tpu.memory_space<vmem>>, %arg6: memref<1x128x128xbf16, #tpu.memory_space<vmem>>, %arg7: memref<1x128xf32, #tpu.memory_space<vmem>>, %arg8: memref<9x128x128xbf16, #tpu.memory_space<vmem>>, %arg9: memref<1x128xf32, #tpu.memory_space<vmem>>, %arg10: memref<9x128x128xbf16, #tpu.memory_space<vmem>>, %arg11: memref<1x128xf32, #tpu.memory_space<vmem>>, %arg12: memref<1x128x128xbf16, #tpu.memory_space<vmem>>, %arg13: memref<1x128xf32, #tpu.memory_space<vmem>>, %arg14: memref<9x128x128xbf16, #tpu.memory_space<vmem>>, %arg15: memref<1x128xf32, #tpu.memory_space<vmem>>, %arg16: memref<9x128x128xbf16, #tpu.memory_space<vmem>>, %arg17: memref<1x128xf32, #tpu.memory_space<vmem>>, %arg18: memref<1x128x128xbf16, #tpu.memory_space<vmem>>, %arg19: memref<1x128xf32, #tpu.memory_space<vmem>>, %arg20: memref<9x128x128xbf16, #tpu.memory_space<vmem>>, %arg21: memref<1x128xf32, #tpu.memory_space<vmem>>, %arg22: memref<128x128xbf16, #tpu.memory_space<vmem>>, %arg23: memref<1x128xf32, #tpu.memory_space<vmem>>, %arg24: memref<1x1x128xf32, #tpu.memory_space<vmem>>, %arg25: memref<34x34x128xf32, #tpu.memory_space<vmem>>, %arg26: memref<18x18x128xf32, #tpu.memory_space<vmem>>, %arg27: memref<18x18x128xf32, #tpu.memory_space<vmem>>, %arg28: memref<10x10x128xf32, #tpu.memory_space<vmem>>, %arg29: memref<10x10x128xf32, #tpu.memory_space<vmem>>, %arg30: memref<6x6x128xf32, #tpu.memory_space<vmem>>, %arg31: memref<6x6x128xf32, #tpu.memory_space<vmem>>) attributes {dimension_semantics = [#tpu.dimension_semantics<parallel>], iteration_bounds = array<i64: 2>, scalar_prefetch = 0 : i64, scratch_operands = 7 : i64, tpu.core_type = #tpu.core_type<tc>, window_params = [{transform_indices = @transform_0, window_bounds = array<i64: 1, 34, 34, 128>}, {pipeline_mode = #tpu.pipeline_mode<synchronous>, transform_indices = @transform_1, window_bounds = array<i64: 9, 128, 128>}, {pipeline_mode = #tpu.pipeline_mode<synchronous>, transform_indices = @transform_2, window_bounds = array<i64: 1, 128>}, {pipeline_mode = #tpu.pipeline_mode<synchronous>, transform_indices = @transform_3, window_bounds = array<i64: 9, 128, 128>}, {pipeline_mode = #tpu.pipeline_mode<synchronous>, transform_indices = @transform_4, window_bounds = array<i64: 1, 128>}, {pipeline_mode = #tpu.pipeline_mode<synchronous>, transform_indices = @transform_5, window_bounds = array<i64: 1, 128, 128>}, {pipeline_mode = #tpu.pipeline_mode<synchronous>, transform_indices = @transform_6, window_bounds = array<i64: 1, 128>}, {pipeline_mode = #tpu.pipeline_mode<synchronous>, transform_indices = @transform_7, window_bounds = array<i64: 9, 128, 128>}, {pipeline_mode = #tpu.pipeline_mode<synchronous>, transform_indices = @transform_8, window_bounds = array<i64: 1, 128>}, {pipeline_mode = #tpu.pipeline_mode<synchronous>, transform_indices = @transform_9, window_bounds = array<i64: 9, 128, 128>}, {pipeline_mode = #tpu.pipeline_mode<synchronous>, transform_indices = @transform_10, window_bounds = array<i64: 1, 128>}, {pipeline_mode = #tpu.pipeline_mode<synchronous>, transform_indices = @transform_11, window_bounds = array<i64: 1, 128, 128>}, {pipeline_mode = #tpu.pipeline_mode<synchronous>, transform_indices = @transform_12, window_bounds = array<i64: 1, 128>}, {pipeline_mode = #tpu.pipeline_mode<synchronous>, transform_indices = @transform_13, window_bounds = array<i64: 9, 128, 128>}, {pipeline_mode = #tpu.pipeline_mode<synchronous>, transform_indices = @transform_14, window_bounds = array<i64: 1, 128>}, {pipeline_mode = #tpu.pipeline_mode<synchronous>, transform_indices = @transform_15, window_bounds = array<i64: 9, 128, 128>}, {pipeline_mode = #tpu.pipeline_mode<synchronous>, transform_indices = @transform_16, window_bounds = array<i64: 1, 128>}, {pipeline_mode = #tpu.pipeline_mode<synchronous>, transform_indices = @transform_17, window_bounds = array<i64: 1, 128, 128>}, {pipeline_mode = #tpu.pipeline_mode<synchronous>, transform_indices = @transform_18, window_bounds = array<i64: 1, 128>}, {pipeline_mode = #tpu.pipeline_mode<synchronous>, transform_indices = @transform_19, window_bounds = array<i64: 9, 128, 128>}, {pipeline_mode = #tpu.pipeline_mode<synchronous>, transform_indices = @transform_20, window_bounds = array<i64: 1, 128>}, {pipeline_mode = #tpu.pipeline_mode<synchronous>, transform_indices = @transform_21, window_bounds = array<i64: 128, 128>}, {pipeline_mode = #tpu.pipeline_mode<synchronous>, transform_indices = @transform_22, window_bounds = array<i64: 1, 128>}, {transform_indices = @transform_23, window_bounds = array<i64: 1, 1, 128>}]} {
    %cst = arith.constant 0.000000e+00 : f32
    %0 = vector.broadcast %cst : f32 to vector<34x34x128xf32>
    %c0 = arith.constant 0 : index
    %c0_0 = arith.constant 0 : index
    %c0_1 = arith.constant 0 : index
    %1 = vector.load %arg25[%c0, %c0_0, %c0_1] : memref<34x34x128xf32, #tpu.memory_space<vmem>>, vector<34x34x128xf32>
    tpu.vector_store %arg25[%c0, %c0_0, %c0_1], %0 {strides = array<i32>} : memref<34x34x128xf32, #tpu.memory_space<vmem>>, vector<34x34x128xf32>,
    %cst_2 = arith.constant 0.000000e+00 : f32
    %2 = vector.broadcast %cst_2 : f32 to vector<18x18x128xf32>
    %c0_3 = arith.constant 0 : index
    %c0_4 = arith.constant 0 : index
    %c0_5 = arith.constant 0 : index
    %3 = vector.load %arg26[%c0_3, %c0_4, %c0_5] : memref<18x18x128xf32, #tpu.memory_space<vmem>>, vector<18x18x128xf32>
    tpu.vector_store %arg26[%c0_3, %c0_4, %c0_5], %2 {strides = array<i32>} : memref<18x18x128xf32, #tpu.memory_space<vmem>>, vector<18x18x128xf32>,
    %cst_6 = arith.constant 0.000000e+00 : f32
    %4 = vector.broadcast %cst_6 : f32 to vector<18x18x128xf32>
    %c0_7 = arith.constant 0 : index
    %c0_8 = arith.constant 0 : index
    %c0_9 = arith.constant 0 : index
    %5 = vector.load %arg27[%c0_7, %c0_8, %c0_9] : memref<18x18x128xf32, #tpu.memory_space<vmem>>, vector<18x18x128xf32>
    tpu.vector_store %arg27[%c0_7, %c0_8, %c0_9], %4 {strides = array<i32>} : memref<18x18x128xf32, #tpu.memory_space<vmem>>, vector<18x18x128xf32>,
    %cst_10 = arith.constant 0.000000e+00 : f32
    %6 = vector.broadcast %cst_10 : f32 to vector<10x10x128xf32>
    %c0_11 = arith.constant 0 : index
    %c0_12 = arith.constant 0 : index
    %c0_13 = arith.constant 0 : index
    %7 = vector.load %arg28[%c0_11, %c0_12, %c0_13] : memref<10x10x128xf32, #tpu.memory_space<vmem>>, vector<10x10x128xf32>
    tpu.vector_store %arg28[%c0_11, %c0_12, %c0_13], %6 {strides = array<i32>} : memref<10x10x128xf32, #tpu.memory_space<vmem>>, vector<10x10x128xf32>,
    %cst_14 = arith.constant 0.000000e+00 : f32
    %8 = vector.broadcast %cst_14 : f32 to vector<10x10x128xf32>
    %c0_15 = arith.constant 0 : index
    %c0_16 = arith.constant 0 : index
    %c0_17 = arith.constant 0 : index
    %9 = vector.load %arg29[%c0_15, %c0_16, %c0_17] : memref<10x10x128xf32, #tpu.memory_space<vmem>>, vector<10x10x128xf32>
    tpu.vector_store %arg29[%c0_15, %c0_16, %c0_17], %8 {strides = array<i32>} : memref<10x10x128xf32, #tpu.memory_space<vmem>>, vector<10x10x128xf32>,
    %cst_18 = arith.constant 0.000000e+00 : f32
    %10 = vector.broadcast %cst_18 : f32 to vector<6x6x128xf32>
    %c0_19 = arith.constant 0 : index
    %c0_20 = arith.constant 0 : index
    %c0_21 = arith.constant 0 : index
    %11 = vector.load %arg30[%c0_19, %c0_20, %c0_21] : memref<6x6x128xf32, #tpu.memory_space<vmem>>, vector<6x6x128xf32>
    tpu.vector_store %arg30[%c0_19, %c0_20, %c0_21], %10 {strides = array<i32>} : memref<6x6x128xf32, #tpu.memory_space<vmem>>, vector<6x6x128xf32>,
    %cst_22 = arith.constant 0.000000e+00 : f32
    %12 = vector.broadcast %cst_22 : f32 to vector<6x6x128xf32>
    %c0_23 = arith.constant 0 : index
    %c0_24 = arith.constant 0 : index
    %c0_25 = arith.constant 0 : index
    %13 = vector.load %arg31[%c0_23, %c0_24, %c0_25] : memref<6x6x128xf32, #tpu.memory_space<vmem>>, vector<6x6x128xf32>
    tpu.vector_store %arg31[%c0_23, %c0_24, %c0_25], %12 {strides = array<i32>} : memref<6x6x128xf32, #tpu.memory_space<vmem>>, vector<6x6x128xf32>,
    %c0_26 = arith.constant 0 : index
    %c0_27 = arith.constant 0 : index
    %14 = vector.load %arg3[%c0_26, %c0_27] : memref<1x128xf32, #tpu.memory_space<vmem>>, vector<1x128xf32>
    %c0_i32 = arith.constant 0 : i32
    %c32_i32 = arith.constant 32 : i32
    %15 = arith.addi %c0_i32, %c32_i32 : i32
    %c1_i32 = arith.constant 1 : i32
    scf.for %arg32 = %c0_i32 to %15 step %c1_i32  : i32 {
      %cst_102 = arith.constant 0.000000e+00 : f32
      %65 = vector.broadcast %cst_102 : f32 to vector<32x128xf32>
      %c1_i32_103 = arith.constant 1 : i32
      %66 = arith.muli %c1_i32_103, %arg32 : i32
      %c0_i32_104 = arith.constant 0 : i32
      %67 = arith.addi %66, %c0_i32_104 : i32
      %c0_i32_105 = arith.constant 0 : i32
      %68 = arith.addi %67, %c0_i32_105 : i32
      %c0_106 = arith.constant 0 : index
      %69 = arith.index_cast %68 : i32 to index
      %c0_107 = arith.constant 0 : index
      %c0_108 = arith.constant 0 : index
      %70 = vector.load %arg1[%c0_106, %69, %c0_107, %c0_108] : memref<1x34x34x128xf32, #tpu.memory_space<vmem>>, vector<1x1x32x128xf32>
      %71 = vector.shape_cast %70 : vector<1x1x32x128xf32> to vector<32x128xf32>
      %72 = arith.truncf %71 : vector<32x128xf32> to vector<32x128xbf16>
      %c0_109 = arith.constant 0 : index
      %c0_110 = arith.constant 0 : index
      %c0_111 = arith.constant 0 : index
      %73 = vector.load %arg2[%c0_109, %c0_110, %c0_111] : memref<9x128x128xbf16, #tpu.memory_space<vmem>>, vector<1x128x128xbf16>
      %74 = vector.shape_cast %73 : vector<1x128x128xbf16> to vector<128x128xbf16>
      %cst_112 = arith.constant dense<0.000000e+00> : vector<32x128xf32>
      %75 = tpu.matmul %72, %74, %cst_112 {dimension_numbers = #tpu.dot_dimension_numbers<[1], [0], [0], [1], [0, 0, 1, 1], [], []>} : vector<32x128xbf16>, vector<128x128xbf16>, vector<32x128xf32> -> vector<32x128xf32>
      %76 = arith.addf %65, %75 : vector<32x128xf32>
      %c0_113 = arith.constant 0 : index
      %77 = arith.index_cast %68 : i32 to index
      %c1_114 = arith.constant 1 : index
      %c0_115 = arith.constant 0 : index
      %78 = vector.load %arg1[%c0_113, %77, %c1_114, %c0_115] : memref<1x34x34x128xf32, #tpu.memory_space<vmem>>, vector<1x1x32x128xf32>
      %79 = vector.shape_cast %78 : vector<1x1x32x128xf32> to vector<32x128xf32>
      %80 = arith.truncf %79 : vector<32x128xf32> to vector<32x128xbf16>
      %c1_116 = arith.constant 1 : index
      %c0_117 = arith.constant 0 : index
      %c0_118 = arith.constant 0 : index
      %81 = vector.load %arg2[%c1_116, %c0_117, %c0_118] : memref<9x128x128xbf16, #tpu.memory_space<vmem>>, vector<1x128x128xbf16>
      %82 = vector.shape_cast %81 : vector<1x128x128xbf16> to vector<128x128xbf16>
      %cst_119 = arith.constant dense<0.000000e+00> : vector<32x128xf32>
      %83 = tpu.matmul %80, %82, %cst_119 {dimension_numbers = #tpu.dot_dimension_numbers<[1], [0], [0], [1], [0, 0, 1, 1], [], []>} : vector<32x128xbf16>, vector<128x128xbf16>, vector<32x128xf32> -> vector<32x128xf32>
      %84 = arith.addf %76, %83 : vector<32x128xf32>
      %c0_120 = arith.constant 0 : index
      %85 = arith.index_cast %68 : i32 to index
      %c2_121 = arith.constant 2 : index
      %c0_122 = arith.constant 0 : index
      %86 = vector.load %arg1[%c0_120, %85, %c2_121, %c0_122] : memref<1x34x34x128xf32, #tpu.memory_space<vmem>>, vector<1x1x32x128xf32>
      %87 = vector.shape_cast %86 : vector<1x1x32x128xf32> to vector<32x128xf32>
      %88 = arith.truncf %87 : vector<32x128xf32> to vector<32x128xbf16>
      %c2_123 = arith.constant 2 : index
      %c0_124 = arith.constant 0 : index
      %c0_125 = arith.constant 0 : index
      %89 = vector.load %arg2[%c2_123, %c0_124, %c0_125] : memref<9x128x128xbf16, #tpu.memory_space<vmem>>, vector<1x128x128xbf16>
      %90 = vector.shape_cast %89 : vector<1x128x128xbf16> to vector<128x128xbf16>
      %cst_126 = arith.constant dense<0.000000e+00> : vector<32x128xf32>
      %91 = tpu.matmul %88, %90, %cst_126 {dimension_numbers = #tpu.dot_dimension_numbers<[1], [0], [0], [1], [0, 0, 1, 1], [], []>} : vector<32x128xbf16>, vector<128x128xbf16>, vector<32x128xf32> -> vector<32x128xf32>
      %92 = arith.addf %84, %91 : vector<32x128xf32>
      %c1_i32_127 = arith.constant 1 : i32
      %93 = arith.muli %c1_i32_127, %arg32 : i32
      %c1_i32_128 = arith.constant 1 : i32
      %94 = arith.addi %93, %c1_i32_128 : i32
      %c0_i32_129 = arith.constant 0 : i32
      %95 = arith.addi %94, %c0_i32_129 : i32
      %c0_130 = arith.constant 0 : index
      %96 = arith.index_cast %95 : i32 to index
      %c0_131 = arith.constant 0 : index
      %c0_132 = arith.constant 0 : index
      %97 = vector.load %arg1[%c0_130, %96, %c0_131, %c0_132] : memref<1x34x34x128xf32, #tpu.memory_space<vmem>>, vector<1x1x32x128xf32>
      %98 = vector.shape_cast %97 : vector<1x1x32x128xf32> to vector<32x128xf32>
      %99 = arith.truncf %98 : vector<32x128xf32> to vector<32x128xbf16>
      %c3_133 = arith.constant 3 : index
      %c0_134 = arith.constant 0 : index
      %c0_135 = arith.constant 0 : index
      %100 = vector.load %arg2[%c3_133, %c0_134, %c0_135] : memref<9x128x128xbf16, #tpu.memory_space<vmem>>, vector<1x128x128xbf16>
      %101 = vector.shape_cast %100 : vector<1x128x128xbf16> to vector<128x128xbf16>
      %cst_136 = arith.constant dense<0.000000e+00> : vector<32x128xf32>
      %102 = tpu.matmul %99, %101, %cst_136 {dimension_numbers = #tpu.dot_dimension_numbers<[1], [0], [0], [1], [0, 0, 1, 1], [], []>} : vector<32x128xbf16>, vector<128x128xbf16>, vector<32x128xf32> -> vector<32x128xf32>
      %103 = arith.addf %92, %102 : vector<32x128xf32>
      %c0_137 = arith.constant 0 : index
      %104 = arith.index_cast %95 : i32 to index
      %c1_138 = arith.constant 1 : index
      %c0_139 = arith.constant 0 : index
      %105 = vector.load %arg1[%c0_137, %104, %c1_138, %c0_139] : memref<1x34x34x128xf32, #tpu.memory_space<vmem>>, vector<1x1x32x128xf32>
      %106 = vector.shape_cast %105 : vector<1x1x32x128xf32> to vector<32x128xf32>
      %107 = arith.truncf %106 : vector<32x128xf32> to vector<32x128xbf16>
      %c4_140 = arith.constant 4 : index
      %c0_141 = arith.constant 0 : index
      %c0_142 = arith.constant 0 : index
      %108 = vector.load %arg2[%c4_140, %c0_141, %c0_142] : memref<9x128x128xbf16, #tpu.memory_space<vmem>>, vector<1x128x128xbf16>
      %109 = vector.shape_cast %108 : vector<1x128x128xbf16> to vector<128x128xbf16>
      %cst_143 = arith.constant dense<0.000000e+00> : vector<32x128xf32>
      %110 = tpu.matmul %107, %109, %cst_143 {dimension_numbers = #tpu.dot_dimension_numbers<[1], [0], [0], [1], [0, 0, 1, 1], [], []>} : vector<32x128xbf16>, vector<128x128xbf16>, vector<32x128xf32> -> vector<32x128xf32>
      %111 = arith.addf %103, %110 : vector<32x128xf32>
      %c0_144 = arith.constant 0 : index
      %112 = arith.index_cast %95 : i32 to index
      %c2_145 = arith.constant 2 : index
      %c0_146 = arith.constant 0 : index
      %113 = vector.load %arg1[%c0_144, %112, %c2_145, %c0_146] : memref<1x34x34x128xf32, #tpu.memory_space<vmem>>, vector<1x1x32x128xf32>
      %114 = vector.shape_cast %113 : vector<1x1x32x128xf32> to vector<32x128xf32>
      %115 = arith.truncf %114 : vector<32x128xf32> to vector<32x128xbf16>
      %c5 = arith.constant 5 : index
      %c0_147 = arith.constant 0 : index
      %c0_148 = arith.constant 0 : index
      %116 = vector.load %arg2[%c5, %c0_147, %c0_148] : memref<9x128x128xbf16, #tpu.memory_space<vmem>>, vector<1x128x128xbf16>
      %117 = vector.shape_cast %116 : vector<1x128x128xbf16> to vector<128x128xbf16>
      %cst_149 = arith.constant dense<0.000000e+00> : vector<32x128xf32>
      %118 = tpu.matmul %115, %117, %cst_149 {dimension_numbers = #tpu.dot_dimension_numbers<[1], [0], [0], [1], [0, 0, 1, 1], [], []>} : vector<32x128xbf16>, vector<128x128xbf16>, vector<32x128xf32> -> vector<32x128xf32>
      %119 = arith.addf %111, %118 : vector<32x128xf32>
      %c1_i32_150 = arith.constant 1 : i32
      %120 = arith.muli %c1_i32_150, %arg32 : i32
      %c2_i32 = arith.constant 2 : i32
      %121 = arith.addi %120, %c2_i32 : i32
      %c0_i32_151 = arith.constant 0 : i32
      %122 = arith.addi %121, %c0_i32_151 : i32
      %c0_152 = arith.constant 0 : index
      %123 = arith.index_cast %122 : i32 to index
      %c0_153 = arith.constant 0 : index
      %c0_154 = arith.constant 0 : index
      %124 = vector.load %arg1[%c0_152, %123, %c0_153, %c0_154] : memref<1x34x34x128xf32, #tpu.memory_space<vmem>>, vector<1x1x32x128xf32>
      %125 = vector.shape_cast %124 : vector<1x1x32x128xf32> to vector<32x128xf32>
      %126 = arith.truncf %125 : vector<32x128xf32> to vector<32x128xbf16>
      %c6 = arith.constant 6 : index
      %c0_155 = arith.constant 0 : index
      %c0_156 = arith.constant 0 : index
      %127 = vector.load %arg2[%c6, %c0_155, %c0_156] : memref<9x128x128xbf16, #tpu.memory_space<vmem>>, vector<1x128x128xbf16>
      %128 = vector.shape_cast %127 : vector<1x128x128xbf16> to vector<128x128xbf16>
      %cst_157 = arith.constant dense<0.000000e+00> : vector<32x128xf32>
      %129 = tpu.matmul %126, %128, %cst_157 {dimension_numbers = #tpu.dot_dimension_numbers<[1], [0], [0], [1], [0, 0, 1, 1], [], []>} : vector<32x128xbf16>, vector<128x128xbf16>, vector<32x128xf32> -> vector<32x128xf32>
      %130 = arith.addf %119, %129 : vector<32x128xf32>
      %c0_158 = arith.constant 0 : index
      %131 = arith.index_cast %122 : i32 to index
      %c1_159 = arith.constant 1 : index
      %c0_160 = arith.constant 0 : index
      %132 = vector.load %arg1[%c0_158, %131, %c1_159, %c0_160] : memref<1x34x34x128xf32, #tpu.memory_space<vmem>>, vector<1x1x32x128xf32>
      %133 = vector.shape_cast %132 : vector<1x1x32x128xf32> to vector<32x128xf32>
      %134 = arith.truncf %133 : vector<32x128xf32> to vector<32x128xbf16>
      %c7 = arith.constant 7 : index
      %c0_161 = arith.constant 0 : index
      %c0_162 = arith.constant 0 : index
      %135 = vector.load %arg2[%c7, %c0_161, %c0_162] : memref<9x128x128xbf16, #tpu.memory_space<vmem>>, vector<1x128x128xbf16>
      %136 = vector.shape_cast %135 : vector<1x128x128xbf16> to vector<128x128xbf16>
      %cst_163 = arith.constant dense<0.000000e+00> : vector<32x128xf32>
      %137 = tpu.matmul %134, %136, %cst_163 {dimension_numbers = #tpu.dot_dimension_numbers<[1], [0], [0], [1], [0, 0, 1, 1], [], []>} : vector<32x128xbf16>, vector<128x128xbf16>, vector<32x128xf32> -> vector<32x128xf32>
      %138 = arith.addf %130, %137 : vector<32x128xf32>
      %c0_164 = arith.constant 0 : index
      %139 = arith.index_cast %122 : i32 to index
      %c2_165 = arith.constant 2 : index
      %c0_166 = arith.constant 0 : index
      %140 = vector.load %arg1[%c0_164, %139, %c2_165, %c0_166] : memref<1x34x34x128xf32, #tpu.memory_space<vmem>>, vector<1x1x32x128xf32>
      %141 = vector.shape_cast %140 : vector<1x1x32x128xf32> to vector<32x128xf32>
      %142 = arith.truncf %141 : vector<32x128xf32> to vector<32x128xbf16>
      %c8 = arith.constant 8 : index
      %c0_167 = arith.constant 0 : index
      %c0_168 = arith.constant 0 : index
      %143 = vector.load %arg2[%c8, %c0_167, %c0_168] : memref<9x128x128xbf16, #tpu.memory_space<vmem>>, vector<1x128x128xbf16>
      %144 = vector.shape_cast %143 : vector<1x128x128xbf16> to vector<128x128xbf16>
      %cst_169 = arith.constant dense<0.000000e+00> : vector<32x128xf32>
      %145 = tpu.matmul %142, %144, %cst_169 {dimension_numbers = #tpu.dot_dimension_numbers<[1], [0], [0], [1], [0, 0, 1, 1], [], []>} : vector<32x128xbf16>, vector<128x128xbf16>, vector<32x128xf32> -> vector<32x128xf32>
      %146 = arith.addf %138, %145 : vector<32x128xf32>
      %147 = vector.broadcast %14 : vector<1x128xf32> to vector<32x128xf32>
      %148 = arith.addf %146, %147 : vector<32x128xf32>
      %cst_170 = arith.constant 0.000000e+00 : f32
      %149 = vector.broadcast %cst_170 : f32 to vector<32x128xf32>
      %150 = arith.maximumf %148, %149 : vector<32x128xf32>
      %c1_i32_171 = arith.constant 1 : i32
      %151 = arith.addi %c1_i32_171, %arg32 : i32
      %152 = arith.index_cast %151 : i32 to index
      %c1_172 = arith.constant 1 : index
      %c0_173 = arith.constant 0 : index
      %153 = vector.load %arg25[%152, %c1_172, %c0_173] : memref<34x34x128xf32, #tpu.memory_space<vmem>>, vector<1x32x128xf32>
      %154 = vector.shape_cast %153 : vector<1x32x128xf32> to vector<32x128xf32>
      %155 = vector.shape_cast %150 : vector<32x128xf32> to vector<1x32x128xf32>
      tpu.vector_store %arg25[%152, %c1_172, %c0_173], %155 {strides = array<i32>} : memref<34x34x128xf32, #tpu.memory_space<vmem>>, vector<1x32x128xf32>,
    }
    %c32_i32_28 = arith.constant 32 : i32
    %c0_29 = arith.constant 0 : index
    %c0_30 = arith.constant 0 : index
    %16 = vector.load %arg5[%c0_29, %c0_30] : memref<1x128xf32, #tpu.memory_space<vmem>>, vector<1x128xf32>
    %c0_i32_31 = arith.constant 0 : i32
    %c16_i32 = arith.constant 16 : i32
    %17 = arith.addi %c0_i32_31, %c16_i32 : i32
    %c1_i32_32 = arith.constant 1 : i32
    scf.for %arg32 = %c0_i32_31 to %17 step %c1_i32_32  : i32 {
      %cst_102 = arith.constant 0.000000e+00 : f32
      %65 = vector.broadcast %cst_102 : f32 to vector<16x128xf32>
      %c2_i32 = arith.constant 2 : i32
      %66 = arith.muli %c2_i32, %arg32 : i32
      %c0_i32_103 = arith.constant 0 : i32
      %67 = arith.addi %66, %c0_i32_103 : i32
      %c0_i32_104 = arith.constant 0 : i32
      %68 = arith.addi %67, %c0_i32_104 : i32
      %69 = arith.index_cast %68 : i32 to index
      %c0_105 = arith.constant 0 : index
      %c0_106 = arith.constant 0 : index
      %70 = tpu.strided_load %arg25[%69, %c0_105, %c0_106] {strides = array<i32: 1, 2, 1>} : memref<34x34x128xf32, #tpu.memory_space<vmem>>, vector<1x16x128xf32>
      %71 = vector.shape_cast %70 : vector<1x16x128xf32> to vector<16x128xf32>
      %72 = arith.truncf %71 : vector<16x128xf32> to vector<16x128xbf16>
      %c0_107 = arith.constant 0 : index
      %c0_108 = arith.constant 0 : index
      %c0_109 = arith.constant 0 : index
      %73 = vector.load %arg4[%c0_107, %c0_108, %c0_109] : memref<9x128x128xbf16, #tpu.memory_space<vmem>>, vector<1x128x128xbf16>
      %74 = vector.shape_cast %73 : vector<1x128x128xbf16> to vector<128x128xbf16>
      %cst_110 = arith.constant dense<0.000000e+00> : vector<16x128xf32>
      %75 = tpu.matmul %72, %74, %cst_110 {dimension_numbers = #tpu.dot_dimension_numbers<[1], [0], [0], [1], [0, 0, 1, 1], [], []>} : vector<16x128xbf16>, vector<128x128xbf16>, vector<16x128xf32> -> vector<16x128xf32>
      %76 = arith.addf %65, %75 : vector<16x128xf32>
      %77 = arith.index_cast %68 : i32 to index
      %c1_111 = arith.constant 1 : index
      %c0_112 = arith.constant 0 : index
      %78 = tpu.strided_load %arg25[%77, %c1_111, %c0_112] {strides = array<i32: 1, 2, 1>} : memref<34x34x128xf32, #tpu.memory_space<vmem>>, vector<1x16x128xf32>
      %79 = vector.shape_cast %78 : vector<1x16x128xf32> to vector<16x128xf32>
      %80 = arith.truncf %79 : vector<16x128xf32> to vector<16x128xbf16>
      %c1_113 = arith.constant 1 : index
      %c0_114 = arith.constant 0 : index
      %c0_115 = arith.constant 0 : index
      %81 = vector.load %arg4[%c1_113, %c0_114, %c0_115] : memref<9x128x128xbf16, #tpu.memory_space<vmem>>, vector<1x128x128xbf16>
      %82 = vector.shape_cast %81 : vector<1x128x128xbf16> to vector<128x128xbf16>
      %cst_116 = arith.constant dense<0.000000e+00> : vector<16x128xf32>
      %83 = tpu.matmul %80, %82, %cst_116 {dimension_numbers = #tpu.dot_dimension_numbers<[1], [0], [0], [1], [0, 0, 1, 1], [], []>} : vector<16x128xbf16>, vector<128x128xbf16>, vector<16x128xf32> -> vector<16x128xf32>
      %84 = arith.addf %76, %83 : vector<16x128xf32>
      %85 = arith.index_cast %68 : i32 to index
      %c2_117 = arith.constant 2 : index
      %c0_118 = arith.constant 0 : index
      %86 = tpu.strided_load %arg25[%85, %c2_117, %c0_118] {strides = array<i32: 1, 2, 1>} : memref<34x34x128xf32, #tpu.memory_space<vmem>>, vector<1x16x128xf32>
      %87 = vector.shape_cast %86 : vector<1x16x128xf32> to vector<16x128xf32>
      %88 = arith.truncf %87 : vector<16x128xf32> to vector<16x128xbf16>
      %c2_119 = arith.constant 2 : index
      %c0_120 = arith.constant 0 : index
      %c0_121 = arith.constant 0 : index
      %89 = vector.load %arg4[%c2_119, %c0_120, %c0_121] : memref<9x128x128xbf16, #tpu.memory_space<vmem>>, vector<1x128x128xbf16>
      %90 = vector.shape_cast %89 : vector<1x128x128xbf16> to vector<128x128xbf16>
      %cst_122 = arith.constant dense<0.000000e+00> : vector<16x128xf32>
      %91 = tpu.matmul %88, %90, %cst_122 {dimension_numbers = #tpu.dot_dimension_numbers<[1], [0], [0], [1], [0, 0, 1, 1], [], []>} : vector<16x128xbf16>, vector<128x128xbf16>, vector<16x128xf32> -> vector<16x128xf32>
      %92 = arith.addf %84, %91 : vector<16x128xf32>
      %c2_i32_123 = arith.constant 2 : i32
      %93 = arith.muli %c2_i32_123, %arg32 : i32
      %c1_i32_124 = arith.constant 1 : i32
      %94 = arith.addi %93, %c1_i32_124 : i32
      %c0_i32_125 = arith.constant 0 : i32
      %95 = arith.addi %94, %c0_i32_125 : i32
      %96 = arith.index_cast %95 : i32 to index
      %c0_126 = arith.constant 0 : index
      %c0_127 = arith.constant 0 : index
      %97 = tpu.strided_load %arg25[%96, %c0_126, %c0_127] {strides = array<i32: 1, 2, 1>} : memref<34x34x128xf32, #tpu.memory_space<vmem>>, vector<1x16x128xf32>
      %98 = vector.shape_cast %97 : vector<1x16x128xf32> to vector<16x128xf32>
      %99 = arith.truncf %98 : vector<16x128xf32> to vector<16x128xbf16>
      %c3_128 = arith.constant 3 : index
      %c0_129 = arith.constant 0 : index
      %c0_130 = arith.constant 0 : index
      %100 = vector.load %arg4[%c3_128, %c0_129, %c0_130] : memref<9x128x128xbf16, #tpu.memory_space<vmem>>, vector<1x128x128xbf16>
      %101 = vector.shape_cast %100 : vector<1x128x128xbf16> to vector<128x128xbf16>
      %cst_131 = arith.constant dense<0.000000e+00> : vector<16x128xf32>
      %102 = tpu.matmul %99, %101, %cst_131 {dimension_numbers = #tpu.dot_dimension_numbers<[1], [0], [0], [1], [0, 0, 1, 1], [], []>} : vector<16x128xbf16>, vector<128x128xbf16>, vector<16x128xf32> -> vector<16x128xf32>
      %103 = arith.addf %92, %102 : vector<16x128xf32>
      %104 = arith.index_cast %95 : i32 to index
      %c1_132 = arith.constant 1 : index
      %c0_133 = arith.constant 0 : index
      %105 = tpu.strided_load %arg25[%104, %c1_132, %c0_133] {strides = array<i32: 1, 2, 1>} : memref<34x34x128xf32, #tpu.memory_space<vmem>>, vector<1x16x128xf32>
      %106 = vector.shape_cast %105 : vector<1x16x128xf32> to vector<16x128xf32>
      %107 = arith.truncf %106 : vector<16x128xf32> to vector<16x128xbf16>
      %c4_134 = arith.constant 4 : index
      %c0_135 = arith.constant 0 : index
      %c0_136 = arith.constant 0 : index
      %108 = vector.load %arg4[%c4_134, %c0_135, %c0_136] : memref<9x128x128xbf16, #tpu.memory_space<vmem>>, vector<1x128x128xbf16>
      %109 = vector.shape_cast %108 : vector<1x128x128xbf16> to vector<128x128xbf16>
      %cst_137 = arith.constant dense<0.000000e+00> : vector<16x128xf32>
      %110 = tpu.matmul %107, %109, %cst_137 {dimension_numbers = #tpu.dot_dimension_numbers<[1], [0], [0], [1], [0, 0, 1, 1], [], []>} : vector<16x128xbf16>, vector<128x128xbf16>, vector<16x128xf32> -> vector<16x128xf32>
      %111 = arith.addf %103, %110 : vector<16x128xf32>
      %112 = arith.index_cast %95 : i32 to index
      %c2_138 = arith.constant 2 : index
      %c0_139 = arith.constant 0 : index
      %113 = tpu.strided_load %arg25[%112, %c2_138, %c0_139] {strides = array<i32: 1, 2, 1>} : memref<34x34x128xf32, #tpu.memory_space<vmem>>, vector<1x16x128xf32>
      %114 = vector.shape_cast %113 : vector<1x16x128xf32> to vector<16x128xf32>
      %115 = arith.truncf %114 : vector<16x128xf32> to vector<16x128xbf16>
      %c5 = arith.constant 5 : index
      %c0_140 = arith.constant 0 : index
      %c0_141 = arith.constant 0 : index
      %116 = vector.load %arg4[%c5, %c0_140, %c0_141] : memref<9x128x128xbf16, #tpu.memory_space<vmem>>, vector<1x128x128xbf16>
      %117 = vector.shape_cast %116 : vector<1x128x128xbf16> to vector<128x128xbf16>
      %cst_142 = arith.constant dense<0.000000e+00> : vector<16x128xf32>
      %118 = tpu.matmul %115, %117, %cst_142 {dimension_numbers = #tpu.dot_dimension_numbers<[1], [0], [0], [1], [0, 0, 1, 1], [], []>} : vector<16x128xbf16>, vector<128x128xbf16>, vector<16x128xf32> -> vector<16x128xf32>
      %119 = arith.addf %111, %118 : vector<16x128xf32>
      %c2_i32_143 = arith.constant 2 : i32
      %120 = arith.muli %c2_i32_143, %arg32 : i32
      %c2_i32_144 = arith.constant 2 : i32
      %121 = arith.addi %120, %c2_i32_144 : i32
      %c0_i32_145 = arith.constant 0 : i32
      %122 = arith.addi %121, %c0_i32_145 : i32
      %123 = arith.index_cast %122 : i32 to index
      %c0_146 = arith.constant 0 : index
      %c0_147 = arith.constant 0 : index
      %124 = tpu.strided_load %arg25[%123, %c0_146, %c0_147] {strides = array<i32: 1, 2, 1>} : memref<34x34x128xf32, #tpu.memory_space<vmem>>, vector<1x16x128xf32>
      %125 = vector.shape_cast %124 : vector<1x16x128xf32> to vector<16x128xf32>
      %126 = arith.truncf %125 : vector<16x128xf32> to vector<16x128xbf16>
      %c6 = arith.constant 6 : index
      %c0_148 = arith.constant 0 : index
      %c0_149 = arith.constant 0 : index
      %127 = vector.load %arg4[%c6, %c0_148, %c0_149] : memref<9x128x128xbf16, #tpu.memory_space<vmem>>, vector<1x128x128xbf16>
      %128 = vector.shape_cast %127 : vector<1x128x128xbf16> to vector<128x128xbf16>
      %cst_150 = arith.constant dense<0.000000e+00> : vector<16x128xf32>
      %129 = tpu.matmul %126, %128, %cst_150 {dimension_numbers = #tpu.dot_dimension_numbers<[1], [0], [0], [1], [0, 0, 1, 1], [], []>} : vector<16x128xbf16>, vector<128x128xbf16>, vector<16x128xf32> -> vector<16x128xf32>
      %130 = arith.addf %119, %129 : vector<16x128xf32>
      %131 = arith.index_cast %122 : i32 to index
      %c1_151 = arith.constant 1 : index
      %c0_152 = arith.constant 0 : index
      %132 = tpu.strided_load %arg25[%131, %c1_151, %c0_152] {strides = array<i32: 1, 2, 1>} : memref<34x34x128xf32, #tpu.memory_space<vmem>>, vector<1x16x128xf32>
      %133 = vector.shape_cast %132 : vector<1x16x128xf32> to vector<16x128xf32>
      %134 = arith.truncf %133 : vector<16x128xf32> to vector<16x128xbf16>
      %c7 = arith.constant 7 : index
      %c0_153 = arith.constant 0 : index
      %c0_154 = arith.constant 0 : index
      %135 = vector.load %arg4[%c7, %c0_153, %c0_154] : memref<9x128x128xbf16, #tpu.memory_space<vmem>>, vector<1x128x128xbf16>
      %136 = vector.shape_cast %135 : vector<1x128x128xbf16> to vector<128x128xbf16>
      %cst_155 = arith.constant dense<0.000000e+00> : vector<16x128xf32>
      %137 = tpu.matmul %134, %136, %cst_155 {dimension_numbers = #tpu.dot_dimension_numbers<[1], [0], [0], [1], [0, 0, 1, 1], [], []>} : vector<16x128xbf16>, vector<128x128xbf16>, vector<16x128xf32> -> vector<16x128xf32>
      %138 = arith.addf %130, %137 : vector<16x128xf32>
      %139 = arith.index_cast %122 : i32 to index
      %c2_156 = arith.constant 2 : index
      %c0_157 = arith.constant 0 : index
      %140 = tpu.strided_load %arg25[%139, %c2_156, %c0_157] {strides = array<i32: 1, 2, 1>} : memref<34x34x128xf32, #tpu.memory_space<vmem>>, vector<1x16x128xf32>
      %141 = vector.shape_cast %140 : vector<1x16x128xf32> to vector<16x128xf32>
      %142 = arith.truncf %141 : vector<16x128xf32> to vector<16x128xbf16>
      %c8 = arith.constant 8 : index
      %c0_158 = arith.constant 0 : index
      %c0_159 = arith.constant 0 : index
      %143 = vector.load %arg4[%c8, %c0_158, %c0_159] : memref<9x128x128xbf16, #tpu.memory_space<vmem>>, vector<1x128x128xbf16>
      %144 = vector.shape_cast %143 : vector<1x128x128xbf16> to vector<128x128xbf16>
      %cst_160 = arith.constant dense<0.000000e+00> : vector<16x128xf32>
      %145 = tpu.matmul %142, %144, %cst_160 {dimension_numbers = #tpu.dot_dimension_numbers<[1], [0], [0], [1], [0, 0, 1, 1], [], []>} : vector<16x128xbf16>, vector<128x128xbf16>, vector<16x128xf32> -> vector<16x128xf32>
      %146 = arith.addf %138, %145 : vector<16x128xf32>
      %147 = vector.broadcast %16 : vector<1x128xf32> to vector<16x128xf32>
      %148 = arith.addf %146, %147 : vector<16x128xf32>
      %cst_161 = arith.constant 0.000000e+00 : f32
      %149 = vector.broadcast %cst_161 : f32 to vector<16x128xf32>
      %150 = arith.maximumf %148, %149 : vector<16x128xf32>
      %c1_i32_162 = arith.constant 1 : i32
      %151 = arith.addi %c1_i32_162, %arg32 : i32
      %152 = arith.index_cast %151 : i32 to index
      %c1_163 = arith.constant 1 : index
      %c0_164 = arith.constant 0 : index
      %153 = vector.load %arg26[%152, %c1_163, %c0_164] : memref<18x18x128xf32, #tpu.memory_space<vmem>>, vector<1x16x128xf32>
      %154 = vector.shape_cast %153 : vector<1x16x128xf32> to vector<16x128xf32>
      %155 = vector.shape_cast %150 : vector<16x128xf32> to vector<1x16x128xf32>
      tpu.vector_store %arg26[%152, %c1_163, %c0_164], %155 {strides = array<i32>} : memref<18x18x128xf32, #tpu.memory_space<vmem>>, vector<1x16x128xf32>,
    }
    %c16_i32_33 = arith.constant 16 : i32
    %c0_34 = arith.constant 0 : index
    %c0_35 = arith.constant 0 : index
    %18 = vector.load %arg7[%c0_34, %c0_35] : memref<1x128xf32, #tpu.memory_space<vmem>>, vector<1x128xf32>
    %c0_i32_36 = arith.constant 0 : i32
    %c16_i32_37 = arith.constant 16 : i32
    %19 = arith.addi %c0_i32_36, %c16_i32_37 : i32
    %c1_i32_38 = arith.constant 1 : i32
    scf.for %arg32 = %c0_i32_36 to %19 step %c1_i32_38  : i32 {
      %cst_102 = arith.constant 0.000000e+00 : f32
      %65 = vector.broadcast %cst_102 : f32 to vector<16x128xf32>
      %c2_i32 = arith.constant 2 : i32
      %66 = arith.muli %c2_i32, %arg32 : i32
      %c0_i32_103 = arith.constant 0 : i32
      %67 = arith.addi %66, %c0_i32_103 : i32
      %c1_i32_104 = arith.constant 1 : i32
      %68 = arith.addi %67, %c1_i32_104 : i32
      %69 = arith.index_cast %68 : i32 to index
      %c1_105 = arith.constant 1 : index
      %c0_106 = arith.constant 0 : index
      %70 = tpu.strided_load %arg25[%69, %c1_105, %c0_106] {strides = array<i32: 1, 2, 1>} : memref<34x34x128xf32, #tpu.memory_space<vmem>>, vector<1x16x128xf32>
      %71 = vector.shape_cast %70 : vector<1x16x128xf32> to vector<16x128xf32>
      %72 = arith.truncf %71 : vector<16x128xf32> to vector<16x128xbf16>
      %c0_107 = arith.constant 0 : index
      %c0_108 = arith.constant 0 : index
      %c0_109 = arith.constant 0 : index
      %73 = vector.load %arg6[%c0_107, %c0_108, %c0_109] : memref<1x128x128xbf16, #tpu.memory_space<vmem>>, vector<1x128x128xbf16>
      %74 = vector.shape_cast %73 : vector<1x128x128xbf16> to vector<128x128xbf16>
      %cst_110 = arith.constant dense<0.000000e+00> : vector<16x128xf32>
      %75 = tpu.matmul %72, %74, %cst_110 {dimension_numbers = #tpu.dot_dimension_numbers<[1], [0], [0], [1], [0, 0, 1, 1], [], []>} : vector<16x128xbf16>, vector<128x128xbf16>, vector<16x128xf32> -> vector<16x128xf32>
      %76 = arith.addf %65, %75 : vector<16x128xf32>
      %77 = vector.broadcast %18 : vector<1x128xf32> to vector<16x128xf32>
      %78 = arith.addf %76, %77 : vector<16x128xf32>
      %c1_i32_111 = arith.constant 1 : i32
      %79 = arith.addi %c1_i32_111, %arg32 : i32
      %80 = arith.index_cast %79 : i32 to index
      %c1_112 = arith.constant 1 : index
      %c0_113 = arith.constant 0 : index
      %81 = vector.load %arg27[%80, %c1_112, %c0_113] : memref<18x18x128xf32, #tpu.memory_space<vmem>>, vector<1x16x128xf32>
      %82 = vector.shape_cast %81 : vector<1x16x128xf32> to vector<16x128xf32>
      %83 = vector.shape_cast %78 : vector<16x128xf32> to vector<1x16x128xf32>
      tpu.vector_store %arg27[%80, %c1_112, %c0_113], %83 {strides = array<i32>} : memref<18x18x128xf32, #tpu.memory_space<vmem>>, vector<1x16x128xf32>,
    }
    %c16_i32_39 = arith.constant 16 : i32
    %c0_40 = arith.constant 0 : index
    %c0_41 = arith.constant 0 : index
    %20 = vector.load %arg9[%c0_40, %c0_41] : memref<1x128xf32, #tpu.memory_space<vmem>>, vector<1x128xf32>
    %c0_i32_42 = arith.constant 0 : i32
    %c16_i32_43 = arith.constant 16 : i32
    %21 = arith.addi %c0_i32_42, %c16_i32_43 : i32
    %c1_i32_44 = arith.constant 1 : i32
    scf.for %arg32 = %c0_i32_42 to %21 step %c1_i32_44  : i32 {
      %cst_102 = arith.constant 0.000000e+00 : f32
      %65 = vector.broadcast %cst_102 : f32 to vector<16x128xf32>
      %c1_i32_103 = arith.constant 1 : i32
      %66 = arith.muli %c1_i32_103, %arg32 : i32
      %c0_i32_104 = arith.constant 0 : i32
      %67 = arith.addi %66, %c0_i32_104 : i32
      %c0_i32_105 = arith.constant 0 : i32
      %68 = arith.addi %67, %c0_i32_105 : i32
      %69 = arith.index_cast %68 : i32 to index
      %c0_106 = arith.constant 0 : index
      %c0_107 = arith.constant 0 : index
      %70 = vector.load %arg26[%69, %c0_106, %c0_107] : memref<18x18x128xf32, #tpu.memory_space<vmem>>, vector<1x16x128xf32>
      %71 = vector.shape_cast %70 : vector<1x16x128xf32> to vector<16x128xf32>
      %72 = arith.truncf %71 : vector<16x128xf32> to vector<16x128xbf16>
      %c0_108 = arith.constant 0 : index
      %c0_109 = arith.constant 0 : index
      %c0_110 = arith.constant 0 : index
      %73 = vector.load %arg8[%c0_108, %c0_109, %c0_110] : memref<9x128x128xbf16, #tpu.memory_space<vmem>>, vector<1x128x128xbf16>
      %74 = vector.shape_cast %73 : vector<1x128x128xbf16> to vector<128x128xbf16>
      %cst_111 = arith.constant dense<0.000000e+00> : vector<16x128xf32>
      %75 = tpu.matmul %72, %74, %cst_111 {dimension_numbers = #tpu.dot_dimension_numbers<[1], [0], [0], [1], [0, 0, 1, 1], [], []>} : vector<16x128xbf16>, vector<128x128xbf16>, vector<16x128xf32> -> vector<16x128xf32>
      %76 = arith.addf %65, %75 : vector<16x128xf32>
      %77 = arith.index_cast %68 : i32 to index
      %c1_112 = arith.constant 1 : index
      %c0_113 = arith.constant 0 : index
      %78 = vector.load %arg26[%77, %c1_112, %c0_113] : memref<18x18x128xf32, #tpu.memory_space<vmem>>, vector<1x16x128xf32>
      %79 = vector.shape_cast %78 : vector<1x16x128xf32> to vector<16x128xf32>
      %80 = arith.truncf %79 : vector<16x128xf32> to vector<16x128xbf16>
      %c1_114 = arith.constant 1 : index
      %c0_115 = arith.constant 0 : index
      %c0_116 = arith.constant 0 : index
      %81 = vector.load %arg8[%c1_114, %c0_115, %c0_116] : memref<9x128x128xbf16, #tpu.memory_space<vmem>>, vector<1x128x128xbf16>
      %82 = vector.shape_cast %81 : vector<1x128x128xbf16> to vector<128x128xbf16>
      %cst_117 = arith.constant dense<0.000000e+00> : vector<16x128xf32>
      %83 = tpu.matmul %80, %82, %cst_117 {dimension_numbers = #tpu.dot_dimension_numbers<[1], [0], [0], [1], [0, 0, 1, 1], [], []>} : vector<16x128xbf16>, vector<128x128xbf16>, vector<16x128xf32> -> vector<16x128xf32>
      %84 = arith.addf %76, %83 : vector<16x128xf32>
      %85 = arith.index_cast %68 : i32 to index
      %c2_118 = arith.constant 2 : index
      %c0_119 = arith.constant 0 : index
      %86 = vector.load %arg26[%85, %c2_118, %c0_119] : memref<18x18x128xf32, #tpu.memory_space<vmem>>, vector<1x16x128xf32>
      %87 = vector.shape_cast %86 : vector<1x16x128xf32> to vector<16x128xf32>
      %88 = arith.truncf %87 : vector<16x128xf32> to vector<16x128xbf16>
      %c2_120 = arith.constant 2 : index
      %c0_121 = arith.constant 0 : index
      %c0_122 = arith.constant 0 : index
      %89 = vector.load %arg8[%c2_120, %c0_121, %c0_122] : memref<9x128x128xbf16, #tpu.memory_space<vmem>>, vector<1x128x128xbf16>
      %90 = vector.shape_cast %89 : vector<1x128x128xbf16> to vector<128x128xbf16>
      %cst_123 = arith.constant dense<0.000000e+00> : vector<16x128xf32>
      %91 = tpu.matmul %88, %90, %cst_123 {dimension_numbers = #tpu.dot_dimension_numbers<[1], [0], [0], [1], [0, 0, 1, 1], [], []>} : vector<16x128xbf16>, vector<128x128xbf16>, vector<16x128xf32> -> vector<16x128xf32>
      %92 = arith.addf %84, %91 : vector<16x128xf32>
      %c1_i32_124 = arith.constant 1 : i32
      %93 = arith.muli %c1_i32_124, %arg32 : i32
      %c1_i32_125 = arith.constant 1 : i32
      %94 = arith.addi %93, %c1_i32_125 : i32
      %c0_i32_126 = arith.constant 0 : i32
      %95 = arith.addi %94, %c0_i32_126 : i32
      %96 = arith.index_cast %95 : i32 to index
      %c0_127 = arith.constant 0 : index
      %c0_128 = arith.constant 0 : index
      %97 = vector.load %arg26[%96, %c0_127, %c0_128] : memref<18x18x128xf32, #tpu.memory_space<vmem>>, vector<1x16x128xf32>
      %98 = vector.shape_cast %97 : vector<1x16x128xf32> to vector<16x128xf32>
      %99 = arith.truncf %98 : vector<16x128xf32> to vector<16x128xbf16>
      %c3_129 = arith.constant 3 : index
      %c0_130 = arith.constant 0 : index
      %c0_131 = arith.constant 0 : index
      %100 = vector.load %arg8[%c3_129, %c0_130, %c0_131] : memref<9x128x128xbf16, #tpu.memory_space<vmem>>, vector<1x128x128xbf16>
      %101 = vector.shape_cast %100 : vector<1x128x128xbf16> to vector<128x128xbf16>
      %cst_132 = arith.constant dense<0.000000e+00> : vector<16x128xf32>
      %102 = tpu.matmul %99, %101, %cst_132 {dimension_numbers = #tpu.dot_dimension_numbers<[1], [0], [0], [1], [0, 0, 1, 1], [], []>} : vector<16x128xbf16>, vector<128x128xbf16>, vector<16x128xf32> -> vector<16x128xf32>
      %103 = arith.addf %92, %102 : vector<16x128xf32>
      %104 = arith.index_cast %95 : i32 to index
      %c1_133 = arith.constant 1 : index
      %c0_134 = arith.constant 0 : index
      %105 = vector.load %arg26[%104, %c1_133, %c0_134] : memref<18x18x128xf32, #tpu.memory_space<vmem>>, vector<1x16x128xf32>
      %106 = vector.shape_cast %105 : vector<1x16x128xf32> to vector<16x128xf32>
      %107 = arith.truncf %106 : vector<16x128xf32> to vector<16x128xbf16>
      %c4_135 = arith.constant 4 : index
      %c0_136 = arith.constant 0 : index
      %c0_137 = arith.constant 0 : index
      %108 = vector.load %arg8[%c4_135, %c0_136, %c0_137] : memref<9x128x128xbf16, #tpu.memory_space<vmem>>, vector<1x128x128xbf16>
      %109 = vector.shape_cast %108 : vector<1x128x128xbf16> to vector<128x128xbf16>
      %cst_138 = arith.constant dense<0.000000e+00> : vector<16x128xf32>
      %110 = tpu.matmul %107, %109, %cst_138 {dimension_numbers = #tpu.dot_dimension_numbers<[1], [0], [0], [1], [0, 0, 1, 1], [], []>} : vector<16x128xbf16>, vector<128x128xbf16>, vector<16x128xf32> -> vector<16x128xf32>
      %111 = arith.addf %103, %110 : vector<16x128xf32>
      %112 = arith.index_cast %95 : i32 to index
      %c2_139 = arith.constant 2 : index
      %c0_140 = arith.constant 0 : index
      %113 = vector.load %arg26[%112, %c2_139, %c0_140] : memref<18x18x128xf32, #tpu.memory_space<vmem>>, vector<1x16x128xf32>
      %114 = vector.shape_cast %113 : vector<1x16x128xf32> to vector<16x128xf32>
      %115 = arith.truncf %114 : vector<16x128xf32> to vector<16x128xbf16>
      %c5 = arith.constant 5 : index
      %c0_141 = arith.constant 0 : index
      %c0_142 = arith.constant 0 : index
      %116 = vector.load %arg8[%c5, %c0_141, %c0_142] : memref<9x128x128xbf16, #tpu.memory_space<vmem>>, vector<1x128x128xbf16>
      %117 = vector.shape_cast %116 : vector<1x128x128xbf16> to vector<128x128xbf16>
      %cst_143 = arith.constant dense<0.000000e+00> : vector<16x128xf32>
      %118 = tpu.matmul %115, %117, %cst_143 {dimension_numbers = #tpu.dot_dimension_numbers<[1], [0], [0], [1], [0, 0, 1, 1], [], []>} : vector<16x128xbf16>, vector<128x128xbf16>, vector<16x128xf32> -> vector<16x128xf32>
      %119 = arith.addf %111, %118 : vector<16x128xf32>
      %c1_i32_144 = arith.constant 1 : i32
      %120 = arith.muli %c1_i32_144, %arg32 : i32
      %c2_i32 = arith.constant 2 : i32
      %121 = arith.addi %120, %c2_i32 : i32
      %c0_i32_145 = arith.constant 0 : i32
      %122 = arith.addi %121, %c0_i32_145 : i32
      %123 = arith.index_cast %122 : i32 to index
      %c0_146 = arith.constant 0 : index
      %c0_147 = arith.constant 0 : index
      %124 = vector.load %arg26[%123, %c0_146, %c0_147] : memref<18x18x128xf32, #tpu.memory_space<vmem>>, vector<1x16x128xf32>
      %125 = vector.shape_cast %124 : vector<1x16x128xf32> to vector<16x128xf32>
      %126 = arith.truncf %125 : vector<16x128xf32> to vector<16x128xbf16>
      %c6 = arith.constant 6 : index
      %c0_148 = arith.constant 0 : index
      %c0_149 = arith.constant 0 : index
      %127 = vector.load %arg8[%c6, %c0_148, %c0_149] : memref<9x128x128xbf16, #tpu.memory_space<vmem>>, vector<1x128x128xbf16>
      %128 = vector.shape_cast %127 : vector<1x128x128xbf16> to vector<128x128xbf16>
      %cst_150 = arith.constant dense<0.000000e+00> : vector<16x128xf32>
      %129 = tpu.matmul %126, %128, %cst_150 {dimension_numbers = #tpu.dot_dimension_numbers<[1], [0], [0], [1], [0, 0, 1, 1], [], []>} : vector<16x128xbf16>, vector<128x128xbf16>, vector<16x128xf32> -> vector<16x128xf32>
      %130 = arith.addf %119, %129 : vector<16x128xf32>
      %131 = arith.index_cast %122 : i32 to index
      %c1_151 = arith.constant 1 : index
      %c0_152 = arith.constant 0 : index
      %132 = vector.load %arg26[%131, %c1_151, %c0_152] : memref<18x18x128xf32, #tpu.memory_space<vmem>>, vector<1x16x128xf32>
      %133 = vector.shape_cast %132 : vector<1x16x128xf32> to vector<16x128xf32>
      %134 = arith.truncf %133 : vector<16x128xf32> to vector<16x128xbf16>
      %c7 = arith.constant 7 : index
      %c0_153 = arith.constant 0 : index
      %c0_154 = arith.constant 0 : index
      %135 = vector.load %arg8[%c7, %c0_153, %c0_154] : memref<9x128x128xbf16, #tpu.memory_space<vmem>>, vector<1x128x128xbf16>
      %136 = vector.shape_cast %135 : vector<1x128x128xbf16> to vector<128x128xbf16>
      %cst_155 = arith.constant dense<0.000000e+00> : vector<16x128xf32>
      %137 = tpu.matmul %134, %136, %cst_155 {dimension_numbers = #tpu.dot_dimension_numbers<[1], [0], [0], [1], [0, 0, 1, 1], [], []>} : vector<16x128xbf16>, vector<128x128xbf16>, vector<16x128xf32> -> vector<16x128xf32>
      %138 = arith.addf %130, %137 : vector<16x128xf32>
      %139 = arith.index_cast %122 : i32 to index
      %c2_156 = arith.constant 2 : index
      %c0_157 = arith.constant 0 : index
      %140 = vector.load %arg26[%139, %c2_156, %c0_157] : memref<18x18x128xf32, #tpu.memory_space<vmem>>, vector<1x16x128xf32>
      %141 = vector.shape_cast %140 : vector<1x16x128xf32> to vector<16x128xf32>
      %142 = arith.truncf %141 : vector<16x128xf32> to vector<16x128xbf16>
      %c8 = arith.constant 8 : index
      %c0_158 = arith.constant 0 : index
      %c0_159 = arith.constant 0 : index
      %143 = vector.load %arg8[%c8, %c0_158, %c0_159] : memref<9x128x128xbf16, #tpu.memory_space<vmem>>, vector<1x128x128xbf16>
      %144 = vector.shape_cast %143 : vector<1x128x128xbf16> to vector<128x128xbf16>
      %cst_160 = arith.constant dense<0.000000e+00> : vector<16x128xf32>
      %145 = tpu.matmul %142, %144, %cst_160 {dimension_numbers = #tpu.dot_dimension_numbers<[1], [0], [0], [1], [0, 0, 1, 1], [], []>} : vector<16x128xbf16>, vector<128x128xbf16>, vector<16x128xf32> -> vector<16x128xf32>
      %146 = arith.addf %138, %145 : vector<16x128xf32>
      %147 = vector.broadcast %20 : vector<1x128xf32> to vector<16x128xf32>
      %148 = arith.addf %146, %147 : vector<16x128xf32>
      %c1_i32_161 = arith.constant 1 : i32
      %149 = arith.addi %c1_i32_161, %arg32 : i32
      %150 = arith.index_cast %149 : i32 to index
      %c1_162 = arith.constant 1 : index
      %c0_163 = arith.constant 0 : index
      %151 = vector.load %arg27[%150, %c1_162, %c0_163] : memref<18x18x128xf32, #tpu.memory_space<vmem>>, vector<1x16x128xf32>
      %152 = vector.shape_cast %151 : vector<1x16x128xf32> to vector<16x128xf32>
      %153 = arith.addf %148, %152 : vector<16x128xf32>
      %cst_164 = arith.constant 0.000000e+00 : f32
      %154 = vector.broadcast %cst_164 : f32 to vector<16x128xf32>
      %155 = arith.maximumf %153, %154 : vector<16x128xf32>
      %c1_i32_165 = arith.constant 1 : i32
      %156 = arith.addi %c1_i32_165, %arg32 : i32
      %157 = arith.index_cast %156 : i32 to index
      %c1_166 = arith.constant 1 : index
      %c0_167 = arith.constant 0 : index
      %158 = vector.load %arg27[%157, %c1_166, %c0_167] : memref<18x18x128xf32, #tpu.memory_space<vmem>>, vector<1x16x128xf32>
      %159 = vector.shape_cast %158 : vector<1x16x128xf32> to vector<16x128xf32>
      %160 = vector.shape_cast %155 : vector<16x128xf32> to vector<1x16x128xf32>
      tpu.vector_store %arg27[%157, %c1_166, %c0_167], %160 {strides = array<i32>} : memref<18x18x128xf32, #tpu.memory_space<vmem>>, vector<1x16x128xf32>,
    }
    %c16_i32_45 = arith.constant 16 : i32
    %c0_46 = arith.constant 0 : index
    %c0_47 = arith.constant 0 : index
    %22 = vector.load %arg11[%c0_46, %c0_47] : memref<1x128xf32, #tpu.memory_space<vmem>>, vector<1x128xf32>
    %c0_i32_48 = arith.constant 0 : i32
    %c8_i32 = arith.constant 8 : i32
    %23 = arith.addi %c0_i32_48, %c8_i32 : i32
    %c1_i32_49 = arith.constant 1 : i32
    scf.for %arg32 = %c0_i32_48 to %23 step %c1_i32_49  : i32 {
      %cst_102 = arith.constant 0.000000e+00 : f32
      %65 = vector.broadcast %cst_102 : f32 to vector<8x128xf32>
      %c2_i32 = arith.constant 2 : i32
      %66 = arith.muli %c2_i32, %arg32 : i32
      %c0_i32_103 = arith.constant 0 : i32
      %67 = arith.addi %66, %c0_i32_103 : i32
      %c0_i32_104 = arith.constant 0 : i32
      %68 = arith.addi %67, %c0_i32_104 : i32
      %69 = arith.index_cast %68 : i32 to index
      %c0_105 = arith.constant 0 : index
      %c0_106 = arith.constant 0 : index
      %70 = tpu.strided_load %arg27[%69, %c0_105, %c0_106] {strides = array<i32: 1, 2, 1>} : memref<18x18x128xf32, #tpu.memory_space<vmem>>, vector<1x8x128xf32>
      %71 = vector.shape_cast %70 : vector<1x8x128xf32> to vector<8x128xf32>
      %72 = arith.truncf %71 : vector<8x128xf32> to vector<8x128xbf16>
      %c0_107 = arith.constant 0 : index
      %c0_108 = arith.constant 0 : index
      %c0_109 = arith.constant 0 : index
      %73 = vector.load %arg10[%c0_107, %c0_108, %c0_109] : memref<9x128x128xbf16, #tpu.memory_space<vmem>>, vector<1x128x128xbf16>
      %74 = vector.shape_cast %73 : vector<1x128x128xbf16> to vector<128x128xbf16>
      %cst_110 = arith.constant dense<0.000000e+00> : vector<8x128xf32>
      %75 = tpu.matmul %72, %74, %cst_110 {dimension_numbers = #tpu.dot_dimension_numbers<[1], [0], [0], [1], [0, 0, 1, 1], [], []>} : vector<8x128xbf16>, vector<128x128xbf16>, vector<8x128xf32> -> vector<8x128xf32>
      %76 = arith.addf %65, %75 : vector<8x128xf32>
      %77 = arith.index_cast %68 : i32 to index
      %c1_111 = arith.constant 1 : index
      %c0_112 = arith.constant 0 : index
      %78 = tpu.strided_load %arg27[%77, %c1_111, %c0_112] {strides = array<i32: 1, 2, 1>} : memref<18x18x128xf32, #tpu.memory_space<vmem>>, vector<1x8x128xf32>
      %79 = vector.shape_cast %78 : vector<1x8x128xf32> to vector<8x128xf32>
      %80 = arith.truncf %79 : vector<8x128xf32> to vector<8x128xbf16>
      %c1_113 = arith.constant 1 : index
      %c0_114 = arith.constant 0 : index
      %c0_115 = arith.constant 0 : index
      %81 = vector.load %arg10[%c1_113, %c0_114, %c0_115] : memref<9x128x128xbf16, #tpu.memory_space<vmem>>, vector<1x128x128xbf16>
      %82 = vector.shape_cast %81 : vector<1x128x128xbf16> to vector<128x128xbf16>
      %cst_116 = arith.constant dense<0.000000e+00> : vector<8x128xf32>
      %83 = tpu.matmul %80, %82, %cst_116 {dimension_numbers = #tpu.dot_dimension_numbers<[1], [0], [0], [1], [0, 0, 1, 1], [], []>} : vector<8x128xbf16>, vector<128x128xbf16>, vector<8x128xf32> -> vector<8x128xf32>
      %84 = arith.addf %76, %83 : vector<8x128xf32>
      %85 = arith.index_cast %68 : i32 to index
      %c2_117 = arith.constant 2 : index
      %c0_118 = arith.constant 0 : index
      %86 = tpu.strided_load %arg27[%85, %c2_117, %c0_118] {strides = array<i32: 1, 2, 1>} : memref<18x18x128xf32, #tpu.memory_space<vmem>>, vector<1x8x128xf32>
      %87 = vector.shape_cast %86 : vector<1x8x128xf32> to vector<8x128xf32>
      %88 = arith.truncf %87 : vector<8x128xf32> to vector<8x128xbf16>
      %c2_119 = arith.constant 2 : index
      %c0_120 = arith.constant 0 : index
      %c0_121 = arith.constant 0 : index
      %89 = vector.load %arg10[%c2_119, %c0_120, %c0_121] : memref<9x128x128xbf16, #tpu.memory_space<vmem>>, vector<1x128x128xbf16>
      %90 = vector.shape_cast %89 : vector<1x128x128xbf16> to vector<128x128xbf16>
      %cst_122 = arith.constant dense<0.000000e+00> : vector<8x128xf32>
      %91 = tpu.matmul %88, %90, %cst_122 {dimension_numbers = #tpu.dot_dimension_numbers<[1], [0], [0], [1], [0, 0, 1, 1], [], []>} : vector<8x128xbf16>, vector<128x128xbf16>, vector<8x128xf32> -> vector<8x128xf32>
      %92 = arith.addf %84, %91 : vector<8x128xf32>
      %c2_i32_123 = arith.constant 2 : i32
      %93 = arith.muli %c2_i32_123, %arg32 : i32
      %c1_i32_124 = arith.constant 1 : i32
      %94 = arith.addi %93, %c1_i32_124 : i32
      %c0_i32_125 = arith.constant 0 : i32
      %95 = arith.addi %94, %c0_i32_125 : i32
      %96 = arith.index_cast %95 : i32 to index
      %c0_126 = arith.constant 0 : index
      %c0_127 = arith.constant 0 : index
      %97 = tpu.strided_load %arg27[%96, %c0_126, %c0_127] {strides = array<i32: 1, 2, 1>} : memref<18x18x128xf32, #tpu.memory_space<vmem>>, vector<1x8x128xf32>
      %98 = vector.shape_cast %97 : vector<1x8x128xf32> to vector<8x128xf32>
      %99 = arith.truncf %98 : vector<8x128xf32> to vector<8x128xbf16>
      %c3_128 = arith.constant 3 : index
      %c0_129 = arith.constant 0 : index
      %c0_130 = arith.constant 0 : index
      %100 = vector.load %arg10[%c3_128, %c0_129, %c0_130] : memref<9x128x128xbf16, #tpu.memory_space<vmem>>, vector<1x128x128xbf16>
      %101 = vector.shape_cast %100 : vector<1x128x128xbf16> to vector<128x128xbf16>
      %cst_131 = arith.constant dense<0.000000e+00> : vector<8x128xf32>
      %102 = tpu.matmul %99, %101, %cst_131 {dimension_numbers = #tpu.dot_dimension_numbers<[1], [0], [0], [1], [0, 0, 1, 1], [], []>} : vector<8x128xbf16>, vector<128x128xbf16>, vector<8x128xf32> -> vector<8x128xf32>
      %103 = arith.addf %92, %102 : vector<8x128xf32>
      %104 = arith.index_cast %95 : i32 to index
      %c1_132 = arith.constant 1 : index
      %c0_133 = arith.constant 0 : index
      %105 = tpu.strided_load %arg27[%104, %c1_132, %c0_133] {strides = array<i32: 1, 2, 1>} : memref<18x18x128xf32, #tpu.memory_space<vmem>>, vector<1x8x128xf32>
      %106 = vector.shape_cast %105 : vector<1x8x128xf32> to vector<8x128xf32>
      %107 = arith.truncf %106 : vector<8x128xf32> to vector<8x128xbf16>
      %c4_134 = arith.constant 4 : index
      %c0_135 = arith.constant 0 : index
      %c0_136 = arith.constant 0 : index
      %108 = vector.load %arg10[%c4_134, %c0_135, %c0_136] : memref<9x128x128xbf16, #tpu.memory_space<vmem>>, vector<1x128x128xbf16>
      %109 = vector.shape_cast %108 : vector<1x128x128xbf16> to vector<128x128xbf16>
      %cst_137 = arith.constant dense<0.000000e+00> : vector<8x128xf32>
      %110 = tpu.matmul %107, %109, %cst_137 {dimension_numbers = #tpu.dot_dimension_numbers<[1], [0], [0], [1], [0, 0, 1, 1], [], []>} : vector<8x128xbf16>, vector<128x128xbf16>, vector<8x128xf32> -> vector<8x128xf32>
      %111 = arith.addf %103, %110 : vector<8x128xf32>
      %112 = arith.index_cast %95 : i32 to index
      %c2_138 = arith.constant 2 : index
      %c0_139 = arith.constant 0 : index
      %113 = tpu.strided_load %arg27[%112, %c2_138, %c0_139] {strides = array<i32: 1, 2, 1>} : memref<18x18x128xf32, #tpu.memory_space<vmem>>, vector<1x8x128xf32>
      %114 = vector.shape_cast %113 : vector<1x8x128xf32> to vector<8x128xf32>
      %115 = arith.truncf %114 : vector<8x128xf32> to vector<8x128xbf16>
      %c5 = arith.constant 5 : index
      %c0_140 = arith.constant 0 : index
      %c0_141 = arith.constant 0 : index
      %116 = vector.load %arg10[%c5, %c0_140, %c0_141] : memref<9x128x128xbf16, #tpu.memory_space<vmem>>, vector<1x128x128xbf16>
      %117 = vector.shape_cast %116 : vector<1x128x128xbf16> to vector<128x128xbf16>
      %cst_142 = arith.constant dense<0.000000e+00> : vector<8x128xf32>
      %118 = tpu.matmul %115, %117, %cst_142 {dimension_numbers = #tpu.dot_dimension_numbers<[1], [0], [0], [1], [0, 0, 1, 1], [], []>} : vector<8x128xbf16>, vector<128x128xbf16>, vector<8x128xf32> -> vector<8x128xf32>
      %119 = arith.addf %111, %118 : vector<8x128xf32>
      %c2_i32_143 = arith.constant 2 : i32
      %120 = arith.muli %c2_i32_143, %arg32 : i32
      %c2_i32_144 = arith.constant 2 : i32
      %121 = arith.addi %120, %c2_i32_144 : i32
      %c0_i32_145 = arith.constant 0 : i32
      %122 = arith.addi %121, %c0_i32_145 : i32
      %123 = arith.index_cast %122 : i32 to index
      %c0_146 = arith.constant 0 : index
      %c0_147 = arith.constant 0 : index
      %124 = tpu.strided_load %arg27[%123, %c0_146, %c0_147] {strides = array<i32: 1, 2, 1>} : memref<18x18x128xf32, #tpu.memory_space<vmem>>, vector<1x8x128xf32>
      %125 = vector.shape_cast %124 : vector<1x8x128xf32> to vector<8x128xf32>
      %126 = arith.truncf %125 : vector<8x128xf32> to vector<8x128xbf16>
      %c6 = arith.constant 6 : index
      %c0_148 = arith.constant 0 : index
      %c0_149 = arith.constant 0 : index
      %127 = vector.load %arg10[%c6, %c0_148, %c0_149] : memref<9x128x128xbf16, #tpu.memory_space<vmem>>, vector<1x128x128xbf16>
      %128 = vector.shape_cast %127 : vector<1x128x128xbf16> to vector<128x128xbf16>
      %cst_150 = arith.constant dense<0.000000e+00> : vector<8x128xf32>
      %129 = tpu.matmul %126, %128, %cst_150 {dimension_numbers = #tpu.dot_dimension_numbers<[1], [0], [0], [1], [0, 0, 1, 1], [], []>} : vector<8x128xbf16>, vector<128x128xbf16>, vector<8x128xf32> -> vector<8x128xf32>
      %130 = arith.addf %119, %129 : vector<8x128xf32>
      %131 = arith.index_cast %122 : i32 to index
      %c1_151 = arith.constant 1 : index
      %c0_152 = arith.constant 0 : index
      %132 = tpu.strided_load %arg27[%131, %c1_151, %c0_152] {strides = array<i32: 1, 2, 1>} : memref<18x18x128xf32, #tpu.memory_space<vmem>>, vector<1x8x128xf32>
      %133 = vector.shape_cast %132 : vector<1x8x128xf32> to vector<8x128xf32>
      %134 = arith.truncf %133 : vector<8x128xf32> to vector<8x128xbf16>
      %c7 = arith.constant 7 : index
      %c0_153 = arith.constant 0 : index
      %c0_154 = arith.constant 0 : index
      %135 = vector.load %arg10[%c7, %c0_153, %c0_154] : memref<9x128x128xbf16, #tpu.memory_space<vmem>>, vector<1x128x128xbf16>
      %136 = vector.shape_cast %135 : vector<1x128x128xbf16> to vector<128x128xbf16>
      %cst_155 = arith.constant dense<0.000000e+00> : vector<8x128xf32>
      %137 = tpu.matmul %134, %136, %cst_155 {dimension_numbers = #tpu.dot_dimension_numbers<[1], [0], [0], [1], [0, 0, 1, 1], [], []>} : vector<8x128xbf16>, vector<128x128xbf16>, vector<8x128xf32> -> vector<8x128xf32>
      %138 = arith.addf %130, %137 : vector<8x128xf32>
      %139 = arith.index_cast %122 : i32 to index
      %c2_156 = arith.constant 2 : index
      %c0_157 = arith.constant 0 : index
      %140 = tpu.strided_load %arg27[%139, %c2_156, %c0_157] {strides = array<i32: 1, 2, 1>} : memref<18x18x128xf32, #tpu.memory_space<vmem>>, vector<1x8x128xf32>
      %141 = vector.shape_cast %140 : vector<1x8x128xf32> to vector<8x128xf32>
      %142 = arith.truncf %141 : vector<8x128xf32> to vector<8x128xbf16>
      %c8 = arith.constant 8 : index
      %c0_158 = arith.constant 0 : index
      %c0_159 = arith.constant 0 : index
      %143 = vector.load %arg10[%c8, %c0_158, %c0_159] : memref<9x128x128xbf16, #tpu.memory_space<vmem>>, vector<1x128x128xbf16>
      %144 = vector.shape_cast %143 : vector<1x128x128xbf16> to vector<128x128xbf16>
      %cst_160 = arith.constant dense<0.000000e+00> : vector<8x128xf32>
      %145 = tpu.matmul %142, %144, %cst_160 {dimension_numbers = #tpu.dot_dimension_numbers<[1], [0], [0], [1], [0, 0, 1, 1], [], []>} : vector<8x128xbf16>, vector<128x128xbf16>, vector<8x128xf32> -> vector<8x128xf32>
      %146 = arith.addf %138, %145 : vector<8x128xf32>
      %147 = vector.broadcast %22 : vector<1x128xf32> to vector<8x128xf32>
      %148 = arith.addf %146, %147 : vector<8x128xf32>
      %cst_161 = arith.constant 0.000000e+00 : f32
      %149 = vector.broadcast %cst_161 : f32 to vector<8x128xf32>
      %150 = arith.maximumf %148, %149 : vector<8x128xf32>
      %c1_i32_162 = arith.constant 1 : i32
      %151 = arith.addi %c1_i32_162, %arg32 : i32
      %152 = arith.index_cast %151 : i32 to index
      %c1_163 = arith.constant 1 : index
      %c0_164 = arith.constant 0 : index
      %153 = vector.load %arg28[%152, %c1_163, %c0_164] : memref<10x10x128xf32, #tpu.memory_space<vmem>>, vector<1x8x128xf32>
      %154 = vector.shape_cast %153 : vector<1x8x128xf32> to vector<8x128xf32>
      %155 = vector.shape_cast %150 : vector<8x128xf32> to vector<1x8x128xf32>
      tpu.vector_store %arg28[%152, %c1_163, %c0_164], %155 {strides = array<i32>} : memref<10x10x128xf32, #tpu.memory_space<vmem>>, vector<1x8x128xf32>,
    }
    %c8_i32_50 = arith.constant 8 : i32
    %c0_51 = arith.constant 0 : index
    %c0_52 = arith.constant 0 : index
    %24 = vector.load %arg13[%c0_51, %c0_52] : memref<1x128xf32, #tpu.memory_space<vmem>>, vector<1x128xf32>
    %c0_i32_53 = arith.constant 0 : i32
    %c8_i32_54 = arith.constant 8 : i32
    %25 = arith.addi %c0_i32_53, %c8_i32_54 : i32
    %c1_i32_55 = arith.constant 1 : i32
    scf.for %arg32 = %c0_i32_53 to %25 step %c1_i32_55  : i32 {
      %cst_102 = arith.constant 0.000000e+00 : f32
      %65 = vector.broadcast %cst_102 : f32 to vector<8x128xf32>
      %c2_i32 = arith.constant 2 : i32
      %66 = arith.muli %c2_i32, %arg32 : i32
      %c0_i32_103 = arith.constant 0 : i32
      %67 = arith.addi %66, %c0_i32_103 : i32
      %c1_i32_104 = arith.constant 1 : i32
      %68 = arith.addi %67, %c1_i32_104 : i32
      %69 = arith.index_cast %68 : i32 to index
      %c1_105 = arith.constant 1 : index
      %c0_106 = arith.constant 0 : index
      %70 = tpu.strided_load %arg27[%69, %c1_105, %c0_106] {strides = array<i32: 1, 2, 1>} : memref<18x18x128xf32, #tpu.memory_space<vmem>>, vector<1x8x128xf32>
      %71 = vector.shape_cast %70 : vector<1x8x128xf32> to vector<8x128xf32>
      %72 = arith.truncf %71 : vector<8x128xf32> to vector<8x128xbf16>
      %c0_107 = arith.constant 0 : index
      %c0_108 = arith.constant 0 : index
      %c0_109 = arith.constant 0 : index
      %73 = vector.load %arg12[%c0_107, %c0_108, %c0_109] : memref<1x128x128xbf16, #tpu.memory_space<vmem>>, vector<1x128x128xbf16>
      %74 = vector.shape_cast %73 : vector<1x128x128xbf16> to vector<128x128xbf16>
      %cst_110 = arith.constant dense<0.000000e+00> : vector<8x128xf32>
      %75 = tpu.matmul %72, %74, %cst_110 {dimension_numbers = #tpu.dot_dimension_numbers<[1], [0], [0], [1], [0, 0, 1, 1], [], []>} : vector<8x128xbf16>, vector<128x128xbf16>, vector<8x128xf32> -> vector<8x128xf32>
      %76 = arith.addf %65, %75 : vector<8x128xf32>
      %77 = vector.broadcast %24 : vector<1x128xf32> to vector<8x128xf32>
      %78 = arith.addf %76, %77 : vector<8x128xf32>
      %c1_i32_111 = arith.constant 1 : i32
      %79 = arith.addi %c1_i32_111, %arg32 : i32
      %80 = arith.index_cast %79 : i32 to index
      %c1_112 = arith.constant 1 : index
      %c0_113 = arith.constant 0 : index
      %81 = vector.load %arg29[%80, %c1_112, %c0_113] : memref<10x10x128xf32, #tpu.memory_space<vmem>>, vector<1x8x128xf32>
      %82 = vector.shape_cast %81 : vector<1x8x128xf32> to vector<8x128xf32>
      %83 = vector.shape_cast %78 : vector<8x128xf32> to vector<1x8x128xf32>
      tpu.vector_store %arg29[%80, %c1_112, %c0_113], %83 {strides = array<i32>} : memref<10x10x128xf32, #tpu.memory_space<vmem>>, vector<1x8x128xf32>,
    }
    %c8_i32_56 = arith.constant 8 : i32
    %c0_57 = arith.constant 0 : index
    %c0_58 = arith.constant 0 : index
    %26 = vector.load %arg15[%c0_57, %c0_58] : memref<1x128xf32, #tpu.memory_space<vmem>>, vector<1x128xf32>
    %c0_i32_59 = arith.constant 0 : i32
    %c8_i32_60 = arith.constant 8 : i32
    %27 = arith.addi %c0_i32_59, %c8_i32_60 : i32
    %c1_i32_61 = arith.constant 1 : i32
    scf.for %arg32 = %c0_i32_59 to %27 step %c1_i32_61  : i32 {
      %cst_102 = arith.constant 0.000000e+00 : f32
      %65 = vector.broadcast %cst_102 : f32 to vector<8x128xf32>
      %c1_i32_103 = arith.constant 1 : i32
      %66 = arith.muli %c1_i32_103, %arg32 : i32
      %c0_i32_104 = arith.constant 0 : i32
      %67 = arith.addi %66, %c0_i32_104 : i32
      %c0_i32_105 = arith.constant 0 : i32
      %68 = arith.addi %67, %c0_i32_105 : i32
      %69 = arith.index_cast %68 : i32 to index
      %c0_106 = arith.constant 0 : index
      %c0_107 = arith.constant 0 : index
      %70 = vector.load %arg28[%69, %c0_106, %c0_107] : memref<10x10x128xf32, #tpu.memory_space<vmem>>, vector<1x8x128xf32>
      %71 = vector.shape_cast %70 : vector<1x8x128xf32> to vector<8x128xf32>
      %72 = arith.truncf %71 : vector<8x128xf32> to vector<8x128xbf16>
      %c0_108 = arith.constant 0 : index
      %c0_109 = arith.constant 0 : index
      %c0_110 = arith.constant 0 : index
      %73 = vector.load %arg14[%c0_108, %c0_109, %c0_110] : memref<9x128x128xbf16, #tpu.memory_space<vmem>>, vector<1x128x128xbf16>
      %74 = vector.shape_cast %73 : vector<1x128x128xbf16> to vector<128x128xbf16>
      %cst_111 = arith.constant dense<0.000000e+00> : vector<8x128xf32>
      %75 = tpu.matmul %72, %74, %cst_111 {dimension_numbers = #tpu.dot_dimension_numbers<[1], [0], [0], [1], [0, 0, 1, 1], [], []>} : vector<8x128xbf16>, vector<128x128xbf16>, vector<8x128xf32> -> vector<8x128xf32>
      %76 = arith.addf %65, %75 : vector<8x128xf32>
      %77 = arith.index_cast %68 : i32 to index
      %c1_112 = arith.constant 1 : index
      %c0_113 = arith.constant 0 : index
      %78 = vector.load %arg28[%77, %c1_112, %c0_113] : memref<10x10x128xf32, #tpu.memory_space<vmem>>, vector<1x8x128xf32>
      %79 = vector.shape_cast %78 : vector<1x8x128xf32> to vector<8x128xf32>
      %80 = arith.truncf %79 : vector<8x128xf32> to vector<8x128xbf16>
      %c1_114 = arith.constant 1 : index
      %c0_115 = arith.constant 0 : index
      %c0_116 = arith.constant 0 : index
      %81 = vector.load %arg14[%c1_114, %c0_115, %c0_116] : memref<9x128x128xbf16, #tpu.memory_space<vmem>>, vector<1x128x128xbf16>
      %82 = vector.shape_cast %81 : vector<1x128x128xbf16> to vector<128x128xbf16>
      %cst_117 = arith.constant dense<0.000000e+00> : vector<8x128xf32>
      %83 = tpu.matmul %80, %82, %cst_117 {dimension_numbers = #tpu.dot_dimension_numbers<[1], [0], [0], [1], [0, 0, 1, 1], [], []>} : vector<8x128xbf16>, vector<128x128xbf16>, vector<8x128xf32> -> vector<8x128xf32>
      %84 = arith.addf %76, %83 : vector<8x128xf32>
      %85 = arith.index_cast %68 : i32 to index
      %c2_118 = arith.constant 2 : index
      %c0_119 = arith.constant 0 : index
      %86 = vector.load %arg28[%85, %c2_118, %c0_119] : memref<10x10x128xf32, #tpu.memory_space<vmem>>, vector<1x8x128xf32>
      %87 = vector.shape_cast %86 : vector<1x8x128xf32> to vector<8x128xf32>
      %88 = arith.truncf %87 : vector<8x128xf32> to vector<8x128xbf16>
      %c2_120 = arith.constant 2 : index
      %c0_121 = arith.constant 0 : index
      %c0_122 = arith.constant 0 : index
      %89 = vector.load %arg14[%c2_120, %c0_121, %c0_122] : memref<9x128x128xbf16, #tpu.memory_space<vmem>>, vector<1x128x128xbf16>
      %90 = vector.shape_cast %89 : vector<1x128x128xbf16> to vector<128x128xbf16>
      %cst_123 = arith.constant dense<0.000000e+00> : vector<8x128xf32>
      %91 = tpu.matmul %88, %90, %cst_123 {dimension_numbers = #tpu.dot_dimension_numbers<[1], [0], [0], [1], [0, 0, 1, 1], [], []>} : vector<8x128xbf16>, vector<128x128xbf16>, vector<8x128xf32> -> vector<8x128xf32>
      %92 = arith.addf %84, %91 : vector<8x128xf32>
      %c1_i32_124 = arith.constant 1 : i32
      %93 = arith.muli %c1_i32_124, %arg32 : i32
      %c1_i32_125 = arith.constant 1 : i32
      %94 = arith.addi %93, %c1_i32_125 : i32
      %c0_i32_126 = arith.constant 0 : i32
      %95 = arith.addi %94, %c0_i32_126 : i32
      %96 = arith.index_cast %95 : i32 to index
      %c0_127 = arith.constant 0 : index
      %c0_128 = arith.constant 0 : index
      %97 = vector.load %arg28[%96, %c0_127, %c0_128] : memref<10x10x128xf32, #tpu.memory_space<vmem>>, vector<1x8x128xf32>
      %98 = vector.shape_cast %97 : vector<1x8x128xf32> to vector<8x128xf32>
      %99 = arith.truncf %98 : vector<8x128xf32> to vector<8x128xbf16>
      %c3_129 = arith.constant 3 : index
      %c0_130 = arith.constant 0 : index
      %c0_131 = arith.constant 0 : index
      %100 = vector.load %arg14[%c3_129, %c0_130, %c0_131] : memref<9x128x128xbf16, #tpu.memory_space<vmem>>, vector<1x128x128xbf16>
      %101 = vector.shape_cast %100 : vector<1x128x128xbf16> to vector<128x128xbf16>
      %cst_132 = arith.constant dense<0.000000e+00> : vector<8x128xf32>
      %102 = tpu.matmul %99, %101, %cst_132 {dimension_numbers = #tpu.dot_dimension_numbers<[1], [0], [0], [1], [0, 0, 1, 1], [], []>} : vector<8x128xbf16>, vector<128x128xbf16>, vector<8x128xf32> -> vector<8x128xf32>
      %103 = arith.addf %92, %102 : vector<8x128xf32>
      %104 = arith.index_cast %95 : i32 to index
      %c1_133 = arith.constant 1 : index
      %c0_134 = arith.constant 0 : index
      %105 = vector.load %arg28[%104, %c1_133, %c0_134] : memref<10x10x128xf32, #tpu.memory_space<vmem>>, vector<1x8x128xf32>
      %106 = vector.shape_cast %105 : vector<1x8x128xf32> to vector<8x128xf32>
      %107 = arith.truncf %106 : vector<8x128xf32> to vector<8x128xbf16>
      %c4_135 = arith.constant 4 : index
      %c0_136 = arith.constant 0 : index
      %c0_137 = arith.constant 0 : index
      %108 = vector.load %arg14[%c4_135, %c0_136, %c0_137] : memref<9x128x128xbf16, #tpu.memory_space<vmem>>, vector<1x128x128xbf16>
      %109 = vector.shape_cast %108 : vector<1x128x128xbf16> to vector<128x128xbf16>
      %cst_138 = arith.constant dense<0.000000e+00> : vector<8x128xf32>
      %110 = tpu.matmul %107, %109, %cst_138 {dimension_numbers = #tpu.dot_dimension_numbers<[1], [0], [0], [1], [0, 0, 1, 1], [], []>} : vector<8x128xbf16>, vector<128x128xbf16>, vector<8x128xf32> -> vector<8x128xf32>
      %111 = arith.addf %103, %110 : vector<8x128xf32>
      %112 = arith.index_cast %95 : i32 to index
      %c2_139 = arith.constant 2 : index
      %c0_140 = arith.constant 0 : index
      %113 = vector.load %arg28[%112, %c2_139, %c0_140] : memref<10x10x128xf32, #tpu.memory_space<vmem>>, vector<1x8x128xf32>
      %114 = vector.shape_cast %113 : vector<1x8x128xf32> to vector<8x128xf32>
      %115 = arith.truncf %114 : vector<8x128xf32> to vector<8x128xbf16>
      %c5 = arith.constant 5 : index
      %c0_141 = arith.constant 0 : index
      %c0_142 = arith.constant 0 : index
      %116 = vector.load %arg14[%c5, %c0_141, %c0_142] : memref<9x128x128xbf16, #tpu.memory_space<vmem>>, vector<1x128x128xbf16>
      %117 = vector.shape_cast %116 : vector<1x128x128xbf16> to vector<128x128xbf16>
      %cst_143 = arith.constant dense<0.000000e+00> : vector<8x128xf32>
      %118 = tpu.matmul %115, %117, %cst_143 {dimension_numbers = #tpu.dot_dimension_numbers<[1], [0], [0], [1], [0, 0, 1, 1], [], []>} : vector<8x128xbf16>, vector<128x128xbf16>, vector<8x128xf32> -> vector<8x128xf32>
      %119 = arith.addf %111, %118 : vector<8x128xf32>
      %c1_i32_144 = arith.constant 1 : i32
      %120 = arith.muli %c1_i32_144, %arg32 : i32
      %c2_i32 = arith.constant 2 : i32
      %121 = arith.addi %120, %c2_i32 : i32
      %c0_i32_145 = arith.constant 0 : i32
      %122 = arith.addi %121, %c0_i32_145 : i32
      %123 = arith.index_cast %122 : i32 to index
      %c0_146 = arith.constant 0 : index
      %c0_147 = arith.constant 0 : index
      %124 = vector.load %arg28[%123, %c0_146, %c0_147] : memref<10x10x128xf32, #tpu.memory_space<vmem>>, vector<1x8x128xf32>
      %125 = vector.shape_cast %124 : vector<1x8x128xf32> to vector<8x128xf32>
      %126 = arith.truncf %125 : vector<8x128xf32> to vector<8x128xbf16>
      %c6 = arith.constant 6 : index
      %c0_148 = arith.constant 0 : index
      %c0_149 = arith.constant 0 : index
      %127 = vector.load %arg14[%c6, %c0_148, %c0_149] : memref<9x128x128xbf16, #tpu.memory_space<vmem>>, vector<1x128x128xbf16>
      %128 = vector.shape_cast %127 : vector<1x128x128xbf16> to vector<128x128xbf16>
      %cst_150 = arith.constant dense<0.000000e+00> : vector<8x128xf32>
      %129 = tpu.matmul %126, %128, %cst_150 {dimension_numbers = #tpu.dot_dimension_numbers<[1], [0], [0], [1], [0, 0, 1, 1], [], []>} : vector<8x128xbf16>, vector<128x128xbf16>, vector<8x128xf32> -> vector<8x128xf32>
      %130 = arith.addf %119, %129 : vector<8x128xf32>
      %131 = arith.index_cast %122 : i32 to index
      %c1_151 = arith.constant 1 : index
      %c0_152 = arith.constant 0 : index
      %132 = vector.load %arg28[%131, %c1_151, %c0_152] : memref<10x10x128xf32, #tpu.memory_space<vmem>>, vector<1x8x128xf32>
      %133 = vector.shape_cast %132 : vector<1x8x128xf32> to vector<8x128xf32>
      %134 = arith.truncf %133 : vector<8x128xf32> to vector<8x128xbf16>
      %c7 = arith.constant 7 : index
      %c0_153 = arith.constant 0 : index
      %c0_154 = arith.constant 0 : index
      %135 = vector.load %arg14[%c7, %c0_153, %c0_154] : memref<9x128x128xbf16, #tpu.memory_space<vmem>>, vector<1x128x128xbf16>
      %136 = vector.shape_cast %135 : vector<1x128x128xbf16> to vector<128x128xbf16>
      %cst_155 = arith.constant dense<0.000000e+00> : vector<8x128xf32>
      %137 = tpu.matmul %134, %136, %cst_155 {dimension_numbers = #tpu.dot_dimension_numbers<[1], [0], [0], [1], [0, 0, 1, 1], [], []>} : vector<8x128xbf16>, vector<128x128xbf16>, vector<8x128xf32> -> vector<8x128xf32>
      %138 = arith.addf %130, %137 : vector<8x128xf32>
      %139 = arith.index_cast %122 : i32 to index
      %c2_156 = arith.constant 2 : index
      %c0_157 = arith.constant 0 : index
      %140 = vector.load %arg28[%139, %c2_156, %c0_157] : memref<10x10x128xf32, #tpu.memory_space<vmem>>, vector<1x8x128xf32>
      %141 = vector.shape_cast %140 : vector<1x8x128xf32> to vector<8x128xf32>
      %142 = arith.truncf %141 : vector<8x128xf32> to vector<8x128xbf16>
      %c8 = arith.constant 8 : index
      %c0_158 = arith.constant 0 : index
      %c0_159 = arith.constant 0 : index
      %143 = vector.load %arg14[%c8, %c0_158, %c0_159] : memref<9x128x128xbf16, #tpu.memory_space<vmem>>, vector<1x128x128xbf16>
      %144 = vector.shape_cast %143 : vector<1x128x128xbf16> to vector<128x128xbf16>
      %cst_160 = arith.constant dense<0.000000e+00> : vector<8x128xf32>
      %145 = tpu.matmul %142, %144, %cst_160 {dimension_numbers = #tpu.dot_dimension_numbers<[1], [0], [0], [1], [0, 0, 1, 1], [], []>} : vector<8x128xbf16>, vector<128x128xbf16>, vector<8x128xf32> -> vector<8x128xf32>
      %146 = arith.addf %138, %145 : vector<8x128xf32>
      %147 = vector.broadcast %26 : vector<1x128xf32> to vector<8x128xf32>
      %148 = arith.addf %146, %147 : vector<8x128xf32>
      %c1_i32_161 = arith.constant 1 : i32
      %149 = arith.addi %c1_i32_161, %arg32 : i32
      %150 = arith.index_cast %149 : i32 to index
      %c1_162 = arith.constant 1 : index
      %c0_163 = arith.constant 0 : index
      %151 = vector.load %arg29[%150, %c1_162, %c0_163] : memref<10x10x128xf32, #tpu.memory_space<vmem>>, vector<1x8x128xf32>
      %152 = vector.shape_cast %151 : vector<1x8x128xf32> to vector<8x128xf32>
      %153 = arith.addf %148, %152 : vector<8x128xf32>
      %cst_164 = arith.constant 0.000000e+00 : f32
      %154 = vector.broadcast %cst_164 : f32 to vector<8x128xf32>
      %155 = arith.maximumf %153, %154 : vector<8x128xf32>
      %c1_i32_165 = arith.constant 1 : i32
      %156 = arith.addi %c1_i32_165, %arg32 : i32
      %157 = arith.index_cast %156 : i32 to index
      %c1_166 = arith.constant 1 : index
      %c0_167 = arith.constant 0 : index
      %158 = vector.load %arg29[%157, %c1_166, %c0_167] : memref<10x10x128xf32, #tpu.memory_space<vmem>>, vector<1x8x128xf32>
      %159 = vector.shape_cast %158 : vector<1x8x128xf32> to vector<8x128xf32>
      %160 = vector.shape_cast %155 : vector<8x128xf32> to vector<1x8x128xf32>
      tpu.vector_store %arg29[%157, %c1_166, %c0_167], %160 {strides = array<i32>} : memref<10x10x128xf32, #tpu.memory_space<vmem>>, vector<1x8x128xf32>,
    }
    %c8_i32_62 = arith.constant 8 : i32
    %c0_63 = arith.constant 0 : index
    %c0_64 = arith.constant 0 : index
    %28 = vector.load %arg17[%c0_63, %c0_64] : memref<1x128xf32, #tpu.memory_space<vmem>>, vector<1x128xf32>
    %c0_i32_65 = arith.constant 0 : i32
    %c4_i32 = arith.constant 4 : i32
    %29 = arith.addi %c0_i32_65, %c4_i32 : i32
    %c1_i32_66 = arith.constant 1 : i32
    scf.for %arg32 = %c0_i32_65 to %29 step %c1_i32_66  : i32 {
      %cst_102 = arith.constant 0.000000e+00 : f32
      %65 = vector.broadcast %cst_102 : f32 to vector<4x128xf32>
      %c2_i32 = arith.constant 2 : i32
      %66 = arith.muli %c2_i32, %arg32 : i32
      %c0_i32_103 = arith.constant 0 : i32
      %67 = arith.addi %66, %c0_i32_103 : i32
      %c0_i32_104 = arith.constant 0 : i32
      %68 = arith.addi %67, %c0_i32_104 : i32
      %69 = arith.index_cast %68 : i32 to index
      %c0_105 = arith.constant 0 : index
      %c0_106 = arith.constant 0 : index
      %70 = tpu.strided_load %arg29[%69, %c0_105, %c0_106] {strides = array<i32: 1, 2, 1>} : memref<10x10x128xf32, #tpu.memory_space<vmem>>, vector<1x4x128xf32>
      %71 = vector.shape_cast %70 : vector<1x4x128xf32> to vector<4x128xf32>
      %72 = arith.truncf %71 : vector<4x128xf32> to vector<4x128xbf16>
      %c0_107 = arith.constant 0 : index
      %c0_108 = arith.constant 0 : index
      %c0_109 = arith.constant 0 : index
      %73 = vector.load %arg16[%c0_107, %c0_108, %c0_109] : memref<9x128x128xbf16, #tpu.memory_space<vmem>>, vector<1x128x128xbf16>
      %74 = vector.shape_cast %73 : vector<1x128x128xbf16> to vector<128x128xbf16>
      %cst_110 = arith.constant dense<0.000000e+00> : vector<4x128xf32>
      %75 = tpu.matmul %72, %74, %cst_110 {dimension_numbers = #tpu.dot_dimension_numbers<[1], [0], [0], [1], [0, 0, 1, 1], [], []>} : vector<4x128xbf16>, vector<128x128xbf16>, vector<4x128xf32> -> vector<4x128xf32>
      %76 = arith.addf %65, %75 : vector<4x128xf32>
      %77 = arith.index_cast %68 : i32 to index
      %c1_111 = arith.constant 1 : index
      %c0_112 = arith.constant 0 : index
      %78 = tpu.strided_load %arg29[%77, %c1_111, %c0_112] {strides = array<i32: 1, 2, 1>} : memref<10x10x128xf32, #tpu.memory_space<vmem>>, vector<1x4x128xf32>
      %79 = vector.shape_cast %78 : vector<1x4x128xf32> to vector<4x128xf32>
      %80 = arith.truncf %79 : vector<4x128xf32> to vector<4x128xbf16>
      %c1_113 = arith.constant 1 : index
      %c0_114 = arith.constant 0 : index
      %c0_115 = arith.constant 0 : index
      %81 = vector.load %arg16[%c1_113, %c0_114, %c0_115] : memref<9x128x128xbf16, #tpu.memory_space<vmem>>, vector<1x128x128xbf16>
      %82 = vector.shape_cast %81 : vector<1x128x128xbf16> to vector<128x128xbf16>
      %cst_116 = arith.constant dense<0.000000e+00> : vector<4x128xf32>
      %83 = tpu.matmul %80, %82, %cst_116 {dimension_numbers = #tpu.dot_dimension_numbers<[1], [0], [0], [1], [0, 0, 1, 1], [], []>} : vector<4x128xbf16>, vector<128x128xbf16>, vector<4x128xf32> -> vector<4x128xf32>
      %84 = arith.addf %76, %83 : vector<4x128xf32>
      %85 = arith.index_cast %68 : i32 to index
      %c2_117 = arith.constant 2 : index
      %c0_118 = arith.constant 0 : index
      %86 = tpu.strided_load %arg29[%85, %c2_117, %c0_118] {strides = array<i32: 1, 2, 1>} : memref<10x10x128xf32, #tpu.memory_space<vmem>>, vector<1x4x128xf32>
      %87 = vector.shape_cast %86 : vector<1x4x128xf32> to vector<4x128xf32>
      %88 = arith.truncf %87 : vector<4x128xf32> to vector<4x128xbf16>
      %c2_119 = arith.constant 2 : index
      %c0_120 = arith.constant 0 : index
      %c0_121 = arith.constant 0 : index
      %89 = vector.load %arg16[%c2_119, %c0_120, %c0_121] : memref<9x128x128xbf16, #tpu.memory_space<vmem>>, vector<1x128x128xbf16>
      %90 = vector.shape_cast %89 : vector<1x128x128xbf16> to vector<128x128xbf16>
      %cst_122 = arith.constant dense<0.000000e+00> : vector<4x128xf32>
      %91 = tpu.matmul %88, %90, %cst_122 {dimension_numbers = #tpu.dot_dimension_numbers<[1], [0], [0], [1], [0, 0, 1, 1], [], []>} : vector<4x128xbf16>, vector<128x128xbf16>, vector<4x128xf32> -> vector<4x128xf32>
      %92 = arith.addf %84, %91 : vector<4x128xf32>
      %c2_i32_123 = arith.constant 2 : i32
      %93 = arith.muli %c2_i32_123, %arg32 : i32
      %c1_i32_124 = arith.constant 1 : i32
      %94 = arith.addi %93, %c1_i32_124 : i32
      %c0_i32_125 = arith.constant 0 : i32
      %95 = arith.addi %94, %c0_i32_125 : i32
      %96 = arith.index_cast %95 : i32 to index
      %c0_126 = arith.constant 0 : index
      %c0_127 = arith.constant 0 : index
      %97 = tpu.strided_load %arg29[%96, %c0_126, %c0_127] {strides = array<i32: 1, 2, 1>} : memref<10x10x128xf32, #tpu.memory_space<vmem>>, vector<1x4x128xf32>
      %98 = vector.shape_cast %97 : vector<1x4x128xf32> to vector<4x128xf32>
      %99 = arith.truncf %98 : vector<4x128xf32> to vector<4x128xbf16>
      %c3_128 = arith.constant 3 : index
      %c0_129 = arith.constant 0 : index
      %c0_130 = arith.constant 0 : index
      %100 = vector.load %arg16[%c3_128, %c0_129, %c0_130] : memref<9x128x128xbf16, #tpu.memory_space<vmem>>, vector<1x128x128xbf16>
      %101 = vector.shape_cast %100 : vector<1x128x128xbf16> to vector<128x128xbf16>
      %cst_131 = arith.constant dense<0.000000e+00> : vector<4x128xf32>
      %102 = tpu.matmul %99, %101, %cst_131 {dimension_numbers = #tpu.dot_dimension_numbers<[1], [0], [0], [1], [0, 0, 1, 1], [], []>} : vector<4x128xbf16>, vector<128x128xbf16>, vector<4x128xf32> -> vector<4x128xf32>
      %103 = arith.addf %92, %102 : vector<4x128xf32>
      %104 = arith.index_cast %95 : i32 to index
      %c1_132 = arith.constant 1 : index
      %c0_133 = arith.constant 0 : index
      %105 = tpu.strided_load %arg29[%104, %c1_132, %c0_133] {strides = array<i32: 1, 2, 1>} : memref<10x10x128xf32, #tpu.memory_space<vmem>>, vector<1x4x128xf32>
      %106 = vector.shape_cast %105 : vector<1x4x128xf32> to vector<4x128xf32>
      %107 = arith.truncf %106 : vector<4x128xf32> to vector<4x128xbf16>
      %c4_134 = arith.constant 4 : index
      %c0_135 = arith.constant 0 : index
      %c0_136 = arith.constant 0 : index
      %108 = vector.load %arg16[%c4_134, %c0_135, %c0_136] : memref<9x128x128xbf16, #tpu.memory_space<vmem>>, vector<1x128x128xbf16>
      %109 = vector.shape_cast %108 : vector<1x128x128xbf16> to vector<128x128xbf16>
      %cst_137 = arith.constant dense<0.000000e+00> : vector<4x128xf32>
      %110 = tpu.matmul %107, %109, %cst_137 {dimension_numbers = #tpu.dot_dimension_numbers<[1], [0], [0], [1], [0, 0, 1, 1], [], []>} : vector<4x128xbf16>, vector<128x128xbf16>, vector<4x128xf32> -> vector<4x128xf32>
      %111 = arith.addf %103, %110 : vector<4x128xf32>
      %112 = arith.index_cast %95 : i32 to index
      %c2_138 = arith.constant 2 : index
      %c0_139 = arith.constant 0 : index
      %113 = tpu.strided_load %arg29[%112, %c2_138, %c0_139] {strides = array<i32: 1, 2, 1>} : memref<10x10x128xf32, #tpu.memory_space<vmem>>, vector<1x4x128xf32>
      %114 = vector.shape_cast %113 : vector<1x4x128xf32> to vector<4x128xf32>
      %115 = arith.truncf %114 : vector<4x128xf32> to vector<4x128xbf16>
      %c5 = arith.constant 5 : index
      %c0_140 = arith.constant 0 : index
      %c0_141 = arith.constant 0 : index
      %116 = vector.load %arg16[%c5, %c0_140, %c0_141] : memref<9x128x128xbf16, #tpu.memory_space<vmem>>, vector<1x128x128xbf16>
      %117 = vector.shape_cast %116 : vector<1x128x128xbf16> to vector<128x128xbf16>
      %cst_142 = arith.constant dense<0.000000e+00> : vector<4x128xf32>
      %118 = tpu.matmul %115, %117, %cst_142 {dimension_numbers = #tpu.dot_dimension_numbers<[1], [0], [0], [1], [0, 0, 1, 1], [], []>} : vector<4x128xbf16>, vector<128x128xbf16>, vector<4x128xf32> -> vector<4x128xf32>
      %119 = arith.addf %111, %118 : vector<4x128xf32>
      %c2_i32_143 = arith.constant 2 : i32
      %120 = arith.muli %c2_i32_143, %arg32 : i32
      %c2_i32_144 = arith.constant 2 : i32
      %121 = arith.addi %120, %c2_i32_144 : i32
      %c0_i32_145 = arith.constant 0 : i32
      %122 = arith.addi %121, %c0_i32_145 : i32
      %123 = arith.index_cast %122 : i32 to index
      %c0_146 = arith.constant 0 : index
      %c0_147 = arith.constant 0 : index
      %124 = tpu.strided_load %arg29[%123, %c0_146, %c0_147] {strides = array<i32: 1, 2, 1>} : memref<10x10x128xf32, #tpu.memory_space<vmem>>, vector<1x4x128xf32>
      %125 = vector.shape_cast %124 : vector<1x4x128xf32> to vector<4x128xf32>
      %126 = arith.truncf %125 : vector<4x128xf32> to vector<4x128xbf16>
      %c6 = arith.constant 6 : index
      %c0_148 = arith.constant 0 : index
      %c0_149 = arith.constant 0 : index
      %127 = vector.load %arg16[%c6, %c0_148, %c0_149] : memref<9x128x128xbf16, #tpu.memory_space<vmem>>, vector<1x128x128xbf16>
      %128 = vector.shape_cast %127 : vector<1x128x128xbf16> to vector<128x128xbf16>
      %cst_150 = arith.constant dense<0.000000e+00> : vector<4x128xf32>
      %129 = tpu.matmul %126, %128, %cst_150 {dimension_numbers = #tpu.dot_dimension_numbers<[1], [0], [0], [1], [0, 0, 1, 1], [], []>} : vector<4x128xbf16>, vector<128x128xbf16>, vector<4x128xf32> -> vector<4x128xf32>
      %130 = arith.addf %119, %129 : vector<4x128xf32>
      %131 = arith.index_cast %122 : i32 to index
      %c1_151 = arith.constant 1 : index
      %c0_152 = arith.constant 0 : index
      %132 = tpu.strided_load %arg29[%131, %c1_151, %c0_152] {strides = array<i32: 1, 2, 1>} : memref<10x10x128xf32, #tpu.memory_space<vmem>>, vector<1x4x128xf32>
      %133 = vector.shape_cast %132 : vector<1x4x128xf32> to vector<4x128xf32>
      %134 = arith.truncf %133 : vector<4x128xf32> to vector<4x128xbf16>
      %c7 = arith.constant 7 : index
      %c0_153 = arith.constant 0 : index
      %c0_154 = arith.constant 0 : index
      %135 = vector.load %arg16[%c7, %c0_153, %c0_154] : memref<9x128x128xbf16, #tpu.memory_space<vmem>>, vector<1x128x128xbf16>
      %136 = vector.shape_cast %135 : vector<1x128x128xbf16> to vector<128x128xbf16>
      %cst_155 = arith.constant dense<0.000000e+00> : vector<4x128xf32>
      %137 = tpu.matmul %134, %136, %cst_155 {dimension_numbers = #tpu.dot_dimension_numbers<[1], [0], [0], [1], [0, 0, 1, 1], [], []>} : vector<4x128xbf16>, vector<128x128xbf16>, vector<4x128xf32> -> vector<4x128xf32>
      %138 = arith.addf %130, %137 : vector<4x128xf32>
      %139 = arith.index_cast %122 : i32 to index
      %c2_156 = arith.constant 2 : index
      %c0_157 = arith.constant 0 : index
      %140 = tpu.strided_load %arg29[%139, %c2_156, %c0_157] {strides = array<i32: 1, 2, 1>} : memref<10x10x128xf32, #tpu.memory_space<vmem>>, vector<1x4x128xf32>
      %141 = vector.shape_cast %140 : vector<1x4x128xf32> to vector<4x128xf32>
      %142 = arith.truncf %141 : vector<4x128xf32> to vector<4x128xbf16>
      %c8 = arith.constant 8 : index
      %c0_158 = arith.constant 0 : index
      %c0_159 = arith.constant 0 : index
      %143 = vector.load %arg16[%c8, %c0_158, %c0_159] : memref<9x128x128xbf16, #tpu.memory_space<vmem>>, vector<1x128x128xbf16>
      %144 = vector.shape_cast %143 : vector<1x128x128xbf16> to vector<128x128xbf16>
      %cst_160 = arith.constant dense<0.000000e+00> : vector<4x128xf32>
      %145 = tpu.matmul %142, %144, %cst_160 {dimension_numbers = #tpu.dot_dimension_numbers<[1], [0], [0], [1], [0, 0, 1, 1], [], []>} : vector<4x128xbf16>, vector<128x128xbf16>, vector<4x128xf32> -> vector<4x128xf32>
      %146 = arith.addf %138, %145 : vector<4x128xf32>
      %147 = vector.broadcast %28 : vector<1x128xf32> to vector<4x128xf32>
      %148 = arith.addf %146, %147 : vector<4x128xf32>
      %cst_161 = arith.constant 0.000000e+00 : f32
      %149 = vector.broadcast %cst_161 : f32 to vector<4x128xf32>
      %150 = arith.maximumf %148, %149 : vector<4x128xf32>
      %c1_i32_162 = arith.constant 1 : i32
      %151 = arith.addi %c1_i32_162, %arg32 : i32
      %152 = arith.index_cast %151 : i32 to index
      %c1_163 = arith.constant 1 : index
      %c0_164 = arith.constant 0 : index
      %153 = vector.load %arg30[%152, %c1_163, %c0_164] : memref<6x6x128xf32, #tpu.memory_space<vmem>>, vector<1x4x128xf32>
      %154 = vector.shape_cast %153 : vector<1x4x128xf32> to vector<4x128xf32>
      %155 = vector.shape_cast %150 : vector<4x128xf32> to vector<1x4x128xf32>
      tpu.vector_store %arg30[%152, %c1_163, %c0_164], %155 {strides = array<i32>} : memref<6x6x128xf32, #tpu.memory_space<vmem>>, vector<1x4x128xf32>,
    }
    %c4_i32_67 = arith.constant 4 : i32
    %c0_68 = arith.constant 0 : index
    %c0_69 = arith.constant 0 : index
    %30 = vector.load %arg19[%c0_68, %c0_69] : memref<1x128xf32, #tpu.memory_space<vmem>>, vector<1x128xf32>
    %c0_i32_70 = arith.constant 0 : i32
    %c4_i32_71 = arith.constant 4 : i32
    %31 = arith.addi %c0_i32_70, %c4_i32_71 : i32
    %c1_i32_72 = arith.constant 1 : i32
    scf.for %arg32 = %c0_i32_70 to %31 step %c1_i32_72  : i32 {
      %cst_102 = arith.constant 0.000000e+00 : f32
      %65 = vector.broadcast %cst_102 : f32 to vector<4x128xf32>
      %c2_i32 = arith.constant 2 : i32
      %66 = arith.muli %c2_i32, %arg32 : i32
      %c0_i32_103 = arith.constant 0 : i32
      %67 = arith.addi %66, %c0_i32_103 : i32
      %c1_i32_104 = arith.constant 1 : i32
      %68 = arith.addi %67, %c1_i32_104 : i32
      %69 = arith.index_cast %68 : i32 to index
      %c1_105 = arith.constant 1 : index
      %c0_106 = arith.constant 0 : index
      %70 = tpu.strided_load %arg29[%69, %c1_105, %c0_106] {strides = array<i32: 1, 2, 1>} : memref<10x10x128xf32, #tpu.memory_space<vmem>>, vector<1x4x128xf32>
      %71 = vector.shape_cast %70 : vector<1x4x128xf32> to vector<4x128xf32>
      %72 = arith.truncf %71 : vector<4x128xf32> to vector<4x128xbf16>
      %c0_107 = arith.constant 0 : index
      %c0_108 = arith.constant 0 : index
      %c0_109 = arith.constant 0 : index
      %73 = vector.load %arg18[%c0_107, %c0_108, %c0_109] : memref<1x128x128xbf16, #tpu.memory_space<vmem>>, vector<1x128x128xbf16>
      %74 = vector.shape_cast %73 : vector<1x128x128xbf16> to vector<128x128xbf16>
      %cst_110 = arith.constant dense<0.000000e+00> : vector<4x128xf32>
      %75 = tpu.matmul %72, %74, %cst_110 {dimension_numbers = #tpu.dot_dimension_numbers<[1], [0], [0], [1], [0, 0, 1, 1], [], []>} : vector<4x128xbf16>, vector<128x128xbf16>, vector<4x128xf32> -> vector<4x128xf32>
      %76 = arith.addf %65, %75 : vector<4x128xf32>
      %77 = vector.broadcast %30 : vector<1x128xf32> to vector<4x128xf32>
      %78 = arith.addf %76, %77 : vector<4x128xf32>
      %c1_i32_111 = arith.constant 1 : i32
      %79 = arith.addi %c1_i32_111, %arg32 : i32
      %80 = arith.index_cast %79 : i32 to index
      %c1_112 = arith.constant 1 : index
      %c0_113 = arith.constant 0 : index
      %81 = vector.load %arg31[%80, %c1_112, %c0_113] : memref<6x6x128xf32, #tpu.memory_space<vmem>>, vector<1x4x128xf32>
      %82 = vector.shape_cast %81 : vector<1x4x128xf32> to vector<4x128xf32>
      %83 = vector.shape_cast %78 : vector<4x128xf32> to vector<1x4x128xf32>
      tpu.vector_store %arg31[%80, %c1_112, %c0_113], %83 {strides = array<i32>} : memref<6x6x128xf32, #tpu.memory_space<vmem>>, vector<1x4x128xf32>,
    }
    %c4_i32_73 = arith.constant 4 : i32
    %c0_74 = arith.constant 0 : index
    %c0_75 = arith.constant 0 : index
    %32 = vector.load %arg21[%c0_74, %c0_75] : memref<1x128xf32, #tpu.memory_space<vmem>>, vector<1x128xf32>
    %c0_i32_76 = arith.constant 0 : i32
    %c4_i32_77 = arith.constant 4 : i32
    %33 = arith.addi %c0_i32_76, %c4_i32_77 : i32
    %c1_i32_78 = arith.constant 1 : i32
    scf.for %arg32 = %c0_i32_76 to %33 step %c1_i32_78  : i32 {
      %cst_102 = arith.constant 0.000000e+00 : f32
      %65 = vector.broadcast %cst_102 : f32 to vector<4x128xf32>
      %c1_i32_103 = arith.constant 1 : i32
      %66 = arith.muli %c1_i32_103, %arg32 : i32
      %c0_i32_104 = arith.constant 0 : i32
      %67 = arith.addi %66, %c0_i32_104 : i32
      %c0_i32_105 = arith.constant 0 : i32
      %68 = arith.addi %67, %c0_i32_105 : i32
      %69 = arith.index_cast %68 : i32 to index
      %c0_106 = arith.constant 0 : index
      %c0_107 = arith.constant 0 : index
      %70 = vector.load %arg30[%69, %c0_106, %c0_107] : memref<6x6x128xf32, #tpu.memory_space<vmem>>, vector<1x4x128xf32>
      %71 = vector.shape_cast %70 : vector<1x4x128xf32> to vector<4x128xf32>
      %72 = arith.truncf %71 : vector<4x128xf32> to vector<4x128xbf16>
      %c0_108 = arith.constant 0 : index
      %c0_109 = arith.constant 0 : index
      %c0_110 = arith.constant 0 : index
      %73 = vector.load %arg20[%c0_108, %c0_109, %c0_110] : memref<9x128x128xbf16, #tpu.memory_space<vmem>>, vector<1x128x128xbf16>
      %74 = vector.shape_cast %73 : vector<1x128x128xbf16> to vector<128x128xbf16>
      %cst_111 = arith.constant dense<0.000000e+00> : vector<4x128xf32>
      %75 = tpu.matmul %72, %74, %cst_111 {dimension_numbers = #tpu.dot_dimension_numbers<[1], [0], [0], [1], [0, 0, 1, 1], [], []>} : vector<4x128xbf16>, vector<128x128xbf16>, vector<4x128xf32> -> vector<4x128xf32>
      %76 = arith.addf %65, %75 : vector<4x128xf32>
      %77 = arith.index_cast %68 : i32 to index
      %c1_112 = arith.constant 1 : index
      %c0_113 = arith.constant 0 : index
      %78 = vector.load %arg30[%77, %c1_112, %c0_113] : memref<6x6x128xf32, #tpu.memory_space<vmem>>, vector<1x4x128xf32>
      %79 = vector.shape_cast %78 : vector<1x4x128xf32> to vector<4x128xf32>
      %80 = arith.truncf %79 : vector<4x128xf32> to vector<4x128xbf16>
      %c1_114 = arith.constant 1 : index
      %c0_115 = arith.constant 0 : index
      %c0_116 = arith.constant 0 : index
      %81 = vector.load %arg20[%c1_114, %c0_115, %c0_116] : memref<9x128x128xbf16, #tpu.memory_space<vmem>>, vector<1x128x128xbf16>
      %82 = vector.shape_cast %81 : vector<1x128x128xbf16> to vector<128x128xbf16>
      %cst_117 = arith.constant dense<0.000000e+00> : vector<4x128xf32>
      %83 = tpu.matmul %80, %82, %cst_117 {dimension_numbers = #tpu.dot_dimension_numbers<[1], [0], [0], [1], [0, 0, 1, 1], [], []>} : vector<4x128xbf16>, vector<128x128xbf16>, vector<4x128xf32> -> vector<4x128xf32>
      %84 = arith.addf %76, %83 : vector<4x128xf32>
      %85 = arith.index_cast %68 : i32 to index
      %c2_118 = arith.constant 2 : index
      %c0_119 = arith.constant 0 : index
      %86 = vector.load %arg30[%85, %c2_118, %c0_119] : memref<6x6x128xf32, #tpu.memory_space<vmem>>, vector<1x4x128xf32>
      %87 = vector.shape_cast %86 : vector<1x4x128xf32> to vector<4x128xf32>
      %88 = arith.truncf %87 : vector<4x128xf32> to vector<4x128xbf16>
      %c2_120 = arith.constant 2 : index
      %c0_121 = arith.constant 0 : index
      %c0_122 = arith.constant 0 : index
      %89 = vector.load %arg20[%c2_120, %c0_121, %c0_122] : memref<9x128x128xbf16, #tpu.memory_space<vmem>>, vector<1x128x128xbf16>
      %90 = vector.shape_cast %89 : vector<1x128x128xbf16> to vector<128x128xbf16>
      %cst_123 = arith.constant dense<0.000000e+00> : vector<4x128xf32>
      %91 = tpu.matmul %88, %90, %cst_123 {dimension_numbers = #tpu.dot_dimension_numbers<[1], [0], [0], [1], [0, 0, 1, 1], [], []>} : vector<4x128xbf16>, vector<128x128xbf16>, vector<4x128xf32> -> vector<4x128xf32>
      %92 = arith.addf %84, %91 : vector<4x128xf32>
      %c1_i32_124 = arith.constant 1 : i32
      %93 = arith.muli %c1_i32_124, %arg32 : i32
      %c1_i32_125 = arith.constant 1 : i32
      %94 = arith.addi %93, %c1_i32_125 : i32
      %c0_i32_126 = arith.constant 0 : i32
      %95 = arith.addi %94, %c0_i32_126 : i32
      %96 = arith.index_cast %95 : i32 to index
      %c0_127 = arith.constant 0 : index
      %c0_128 = arith.constant 0 : index
      %97 = vector.load %arg30[%96, %c0_127, %c0_128] : memref<6x6x128xf32, #tpu.memory_space<vmem>>, vector<1x4x128xf32>
      %98 = vector.shape_cast %97 : vector<1x4x128xf32> to vector<4x128xf32>
      %99 = arith.truncf %98 : vector<4x128xf32> to vector<4x128xbf16>
      %c3_129 = arith.constant 3 : index
      %c0_130 = arith.constant 0 : index
      %c0_131 = arith.constant 0 : index
      %100 = vector.load %arg20[%c3_129, %c0_130, %c0_131] : memref<9x128x128xbf16, #tpu.memory_space<vmem>>, vector<1x128x128xbf16>
      %101 = vector.shape_cast %100 : vector<1x128x128xbf16> to vector<128x128xbf16>
      %cst_132 = arith.constant dense<0.000000e+00> : vector<4x128xf32>
      %102 = tpu.matmul %99, %101, %cst_132 {dimension_numbers = #tpu.dot_dimension_numbers<[1], [0], [0], [1], [0, 0, 1, 1], [], []>} : vector<4x128xbf16>, vector<128x128xbf16>, vector<4x128xf32> -> vector<4x128xf32>
      %103 = arith.addf %92, %102 : vector<4x128xf32>
      %104 = arith.index_cast %95 : i32 to index
      %c1_133 = arith.constant 1 : index
      %c0_134 = arith.constant 0 : index
      %105 = vector.load %arg30[%104, %c1_133, %c0_134] : memref<6x6x128xf32, #tpu.memory_space<vmem>>, vector<1x4x128xf32>
      %106 = vector.shape_cast %105 : vector<1x4x128xf32> to vector<4x128xf32>
      %107 = arith.truncf %106 : vector<4x128xf32> to vector<4x128xbf16>
      %c4_135 = arith.constant 4 : index
      %c0_136 = arith.constant 0 : index
      %c0_137 = arith.constant 0 : index
      %108 = vector.load %arg20[%c4_135, %c0_136, %c0_137] : memref<9x128x128xbf16, #tpu.memory_space<vmem>>, vector<1x128x128xbf16>
      %109 = vector.shape_cast %108 : vector<1x128x128xbf16> to vector<128x128xbf16>
      %cst_138 = arith.constant dense<0.000000e+00> : vector<4x128xf32>
      %110 = tpu.matmul %107, %109, %cst_138 {dimension_numbers = #tpu.dot_dimension_numbers<[1], [0], [0], [1], [0, 0, 1, 1], [], []>} : vector<4x128xbf16>, vector<128x128xbf16>, vector<4x128xf32> -> vector<4x128xf32>
      %111 = arith.addf %103, %110 : vector<4x128xf32>
      %112 = arith.index_cast %95 : i32 to index
      %c2_139 = arith.constant 2 : index
      %c0_140 = arith.constant 0 : index
      %113 = vector.load %arg30[%112, %c2_139, %c0_140] : memref<6x6x128xf32, #tpu.memory_space<vmem>>, vector<1x4x128xf32>
      %114 = vector.shape_cast %113 : vector<1x4x128xf32> to vector<4x128xf32>
      %115 = arith.truncf %114 : vector<4x128xf32> to vector<4x128xbf16>
      %c5 = arith.constant 5 : index
      %c0_141 = arith.constant 0 : index
      %c0_142 = arith.constant 0 : index
      %116 = vector.load %arg20[%c5, %c0_141, %c0_142] : memref<9x128x128xbf16, #tpu.memory_space<vmem>>, vector<1x128x128xbf16>
      %117 = vector.shape_cast %116 : vector<1x128x128xbf16> to vector<128x128xbf16>
      %cst_143 = arith.constant dense<0.000000e+00> : vector<4x128xf32>
      %118 = tpu.matmul %115, %117, %cst_143 {dimension_numbers = #tpu.dot_dimension_numbers<[1], [0], [0], [1], [0, 0, 1, 1], [], []>} : vector<4x128xbf16>, vector<128x128xbf16>, vector<4x128xf32> -> vector<4x128xf32>
      %119 = arith.addf %111, %118 : vector<4x128xf32>
      %c1_i32_144 = arith.constant 1 : i32
      %120 = arith.muli %c1_i32_144, %arg32 : i32
      %c2_i32 = arith.constant 2 : i32
      %121 = arith.addi %120, %c2_i32 : i32
      %c0_i32_145 = arith.constant 0 : i32
      %122 = arith.addi %121, %c0_i32_145 : i32
      %123 = arith.index_cast %122 : i32 to index
      %c0_146 = arith.constant 0 : index
      %c0_147 = arith.constant 0 : index
      %124 = vector.load %arg30[%123, %c0_146, %c0_147] : memref<6x6x128xf32, #tpu.memory_space<vmem>>, vector<1x4x128xf32>
      %125 = vector.shape_cast %124 : vector<1x4x128xf32> to vector<4x128xf32>
      %126 = arith.truncf %125 : vector<4x128xf32> to vector<4x128xbf16>
      %c6 = arith.constant 6 : index
      %c0_148 = arith.constant 0 : index
      %c0_149 = arith.constant 0 : index
      %127 = vector.load %arg20[%c6, %c0_148, %c0_149] : memref<9x128x128xbf16, #tpu.memory_space<vmem>>, vector<1x128x128xbf16>
      %128 = vector.shape_cast %127 : vector<1x128x128xbf16> to vector<128x128xbf16>
      %cst_150 = arith.constant dense<0.000000e+00> : vector<4x128xf32>
      %129 = tpu.matmul %126, %128, %cst_150 {dimension_numbers = #tpu.dot_dimension_numbers<[1], [0], [0], [1], [0, 0, 1, 1], [], []>} : vector<4x128xbf16>, vector<128x128xbf16>, vector<4x128xf32> -> vector<4x128xf32>
      %130 = arith.addf %119, %129 : vector<4x128xf32>
      %131 = arith.index_cast %122 : i32 to index
      %c1_151 = arith.constant 1 : index
      %c0_152 = arith.constant 0 : index
      %132 = vector.load %arg30[%131, %c1_151, %c0_152] : memref<6x6x128xf32, #tpu.memory_space<vmem>>, vector<1x4x128xf32>
      %133 = vector.shape_cast %132 : vector<1x4x128xf32> to vector<4x128xf32>
      %134 = arith.truncf %133 : vector<4x128xf32> to vector<4x128xbf16>
      %c7 = arith.constant 7 : index
      %c0_153 = arith.constant 0 : index
      %c0_154 = arith.constant 0 : index
      %135 = vector.load %arg20[%c7, %c0_153, %c0_154] : memref<9x128x128xbf16, #tpu.memory_space<vmem>>, vector<1x128x128xbf16>
      %136 = vector.shape_cast %135 : vector<1x128x128xbf16> to vector<128x128xbf16>
      %cst_155 = arith.constant dense<0.000000e+00> : vector<4x128xf32>
      %137 = tpu.matmul %134, %136, %cst_155 {dimension_numbers = #tpu.dot_dimension_numbers<[1], [0], [0], [1], [0, 0, 1, 1], [], []>} : vector<4x128xbf16>, vector<128x128xbf16>, vector<4x128xf32> -> vector<4x128xf32>
      %138 = arith.addf %130, %137 : vector<4x128xf32>
      %139 = arith.index_cast %122 : i32 to index
      %c2_156 = arith.constant 2 : index
      %c0_157 = arith.constant 0 : index
      %140 = vector.load %arg30[%139, %c2_156, %c0_157] : memref<6x6x128xf32, #tpu.memory_space<vmem>>, vector<1x4x128xf32>
      %141 = vector.shape_cast %140 : vector<1x4x128xf32> to vector<4x128xf32>
      %142 = arith.truncf %141 : vector<4x128xf32> to vector<4x128xbf16>
      %c8 = arith.constant 8 : index
      %c0_158 = arith.constant 0 : index
      %c0_159 = arith.constant 0 : index
      %143 = vector.load %arg20[%c8, %c0_158, %c0_159] : memref<9x128x128xbf16, #tpu.memory_space<vmem>>, vector<1x128x128xbf16>
      %144 = vector.shape_cast %143 : vector<1x128x128xbf16> to vector<128x128xbf16>
      %cst_160 = arith.constant dense<0.000000e+00> : vector<4x128xf32>
      %145 = tpu.matmul %142, %144, %cst_160 {dimension_numbers = #tpu.dot_dimension_numbers<[1], [0], [0], [1], [0, 0, 1, 1], [], []>} : vector<4x128xbf16>, vector<128x128xbf16>, vector<4x128xf32> -> vector<4x128xf32>
      %146 = arith.addf %138, %145 : vector<4x128xf32>
      %147 = vector.broadcast %32 : vector<1x128xf32> to vector<4x128xf32>
      %148 = arith.addf %146, %147 : vector<4x128xf32>
      %c1_i32_161 = arith.constant 1 : i32
      %149 = arith.addi %c1_i32_161, %arg32 : i32
      %150 = arith.index_cast %149 : i32 to index
      %c1_162 = arith.constant 1 : index
      %c0_163 = arith.constant 0 : index
      %151 = vector.load %arg31[%150, %c1_162, %c0_163] : memref<6x6x128xf32, #tpu.memory_space<vmem>>, vector<1x4x128xf32>
      %152 = vector.shape_cast %151 : vector<1x4x128xf32> to vector<4x128xf32>
      %153 = arith.addf %148, %152 : vector<4x128xf32>
      %cst_164 = arith.constant 0.000000e+00 : f32
      %154 = vector.broadcast %cst_164 : f32 to vector<4x128xf32>
      %155 = arith.maximumf %153, %154 : vector<4x128xf32>
      %c1_i32_165 = arith.constant 1 : i32
      %156 = arith.addi %c1_i32_165, %arg32 : i32
      %157 = arith.index_cast %156 : i32 to index
      %c1_166 = arith.constant 1 : index
      %c0_167 = arith.constant 0 : index
      %158 = vector.load %arg31[%157, %c1_166, %c0_167] : memref<6x6x128xf32, #tpu.memory_space<vmem>>, vector<1x4x128xf32>
      %159 = vector.shape_cast %158 : vector<1x4x128xf32> to vector<4x128xf32>
      %160 = vector.shape_cast %155 : vector<4x128xf32> to vector<1x4x128xf32>
      tpu.vector_store %arg31[%157, %c1_166, %c0_167], %160 {strides = array<i32>} : memref<6x6x128xf32, #tpu.memory_space<vmem>>, vector<1x4x128xf32>,
    }
    %c4_i32_79 = arith.constant 4 : i32
    %cst_80 = arith.constant 0.000000e+00 : f32
    %34 = vector.broadcast %cst_80 : f32 to vector<1x128xf32>
    %c1 = arith.constant 1 : index
    %c1_81 = arith.constant 1 : index
    %c0_82 = arith.constant 0 : index
    %35 = vector.load %arg31[%c1, %c1_81, %c0_82] : memref<6x6x128xf32, #tpu.memory_space<vmem>>, vector<1x4x128xf32>
    %36 = vector.shape_cast %35 : vector<1x4x128xf32> to vector<4x128xf32>
    %cst_83 = arith.constant dense<0.000000e+00> : vector<128xf32>
    %37 = vector.multi_reduction <add>, %36, %cst_83 [0] : vector<4x128xf32> to vector<128xf32>
    %38 = vector.shape_cast %37 : vector<128xf32> to vector<1x128xf32>
    %39 = arith.addf %34, %38 : vector<1x128xf32>
    %c2 = arith.constant 2 : index
    %c1_84 = arith.constant 1 : index
    %c0_85 = arith.constant 0 : index
    %40 = vector.load %arg31[%c2, %c1_84, %c0_85] : memref<6x6x128xf32, #tpu.memory_space<vmem>>, vector<1x4x128xf32>
    %41 = vector.shape_cast %40 : vector<1x4x128xf32> to vector<4x128xf32>
    %cst_86 = arith.constant dense<0.000000e+00> : vector<128xf32>
    %42 = vector.multi_reduction <add>, %41, %cst_86 [0] : vector<4x128xf32> to vector<128xf32>
    %43 = vector.shape_cast %42 : vector<128xf32> to vector<1x128xf32>
    %44 = arith.addf %39, %43 : vector<1x128xf32>
    %c3 = arith.constant 3 : index
    %c1_87 = arith.constant 1 : index
    %c0_88 = arith.constant 0 : index
    %45 = vector.load %arg31[%c3, %c1_87, %c0_88] : memref<6x6x128xf32, #tpu.memory_space<vmem>>, vector<1x4x128xf32>
    %46 = vector.shape_cast %45 : vector<1x4x128xf32> to vector<4x128xf32>
    %cst_89 = arith.constant dense<0.000000e+00> : vector<128xf32>
    %47 = vector.multi_reduction <add>, %46, %cst_89 [0] : vector<4x128xf32> to vector<128xf32>
    %48 = vector.shape_cast %47 : vector<128xf32> to vector<1x128xf32>
    %49 = arith.addf %44, %48 : vector<1x128xf32>
    %c4 = arith.constant 4 : index
    %c1_90 = arith.constant 1 : index
    %c0_91 = arith.constant 0 : index
    %50 = vector.load %arg31[%c4, %c1_90, %c0_91] : memref<6x6x128xf32, #tpu.memory_space<vmem>>, vector<1x4x128xf32>
    %51 = vector.shape_cast %50 : vector<1x4x128xf32> to vector<4x128xf32>
    %cst_92 = arith.constant dense<0.000000e+00> : vector<128xf32>
    %52 = vector.multi_reduction <add>, %51, %cst_92 [0] : vector<4x128xf32> to vector<128xf32>
    %53 = vector.shape_cast %52 : vector<128xf32> to vector<1x128xf32>
    %54 = arith.addf %49, %53 : vector<1x128xf32>
    %cst_93 = arith.constant 6.250000e-02 : f32
    %55 = vector.broadcast %cst_93 : f32 to vector<1x128xf32>
    %56 = arith.mulf %54, %55 : vector<1x128xf32>
    %57 = arith.truncf %56 : vector<1x128xf32> to vector<1x128xbf16>
    %c0_94 = arith.constant 0 : index
    %c0_95 = arith.constant 0 : index
    %58 = vector.load %arg22[%c0_94, %c0_95] : memref<128x128xbf16, #tpu.memory_space<vmem>>, vector<128x128xbf16>
    %cst_96 = arith.constant dense<0.000000e+00> : vector<1x128xf32>
    %59 = tpu.matmul %57, %58, %cst_96 {dimension_numbers = #tpu.dot_dimension_numbers<[1], [0], [0], [1], [0, 0, 1, 1], [], []>} : vector<1x128xbf16>, vector<128x128xbf16>, vector<1x128xf32> -> vector<1x128xf32>
    %c0_97 = arith.constant 0 : index
    %c0_98 = arith.constant 0 : index
    %60 = vector.load %arg23[%c0_97, %c0_98] : memref<1x128xf32, #tpu.memory_space<vmem>>, vector<1x128xf32>
    %61 = arith.addf %59, %60 : vector<1x128xf32>
    %c0_99 = arith.constant 0 : index
    %c0_100 = arith.constant 0 : index
    %c0_101 = arith.constant 0 : index
    %62 = vector.load %arg24[%c0_99, %c0_100, %c0_101] : memref<1x1x128xf32, #tpu.memory_space<vmem>>, vector<1x1x128xf32>
    %63 = vector.shape_cast %62 : vector<1x1x128xf32> to vector<1x128xf32>
    %64 = vector.shape_cast %61 : vector<1x128xf32> to vector<1x1x128xf32>
    tpu.vector_store %arg24[%c0_99, %c0_100, %c0_101], %64 {strides = array<i32>} : memref<1x1x128xf32, #tpu.memory_space<vmem>>, vector<1x1x128xf32>,
    return
  }
  func.func @transform_0(%arg0: i32) -> (i32, i32, i32, i32) {
    %c0_i32 = arith.constant 0 : i32
    %c0_i32_0 = arith.constant 0 : i32
    %c0_i32_1 = arith.constant 0 : i32
    %c0_i32_2 = arith.constant 0 : i32
    return %arg0, %c0_i32, %c0_i32_0, %c0_i32_1 : i32, i32, i32, i32
  }
  func.func @transform_1(%arg0: i32) -> (i32, i32, i32) {
    %c0_i32 = arith.constant 0 : i32
    %c0_i32_0 = arith.constant 0 : i32
    %c0_i32_1 = arith.constant 0 : i32
    %c0_i32_2 = arith.constant 0 : i32
    return %c0_i32, %c0_i32_0, %c0_i32_1 : i32, i32, i32
  }
  func.func @transform_2(%arg0: i32) -> (i32, i32) {
    %c0_i32 = arith.constant 0 : i32
    %c0_i32_0 = arith.constant 0 : i32
    %c0_i32_1 = arith.constant 0 : i32
    return %c0_i32, %c0_i32_0 : i32, i32
  }
  func.func @transform_3(%arg0: i32) -> (i32, i32, i32) {
    %c0_i32 = arith.constant 0 : i32
    %c0_i32_0 = arith.constant 0 : i32
    %c0_i32_1 = arith.constant 0 : i32
    %c0_i32_2 = arith.constant 0 : i32
    return %c0_i32, %c0_i32_0, %c0_i32_1 : i32, i32, i32
  }
  func.func @transform_4(%arg0: i32) -> (i32, i32) {
    %c0_i32 = arith.constant 0 : i32
    %c0_i32_0 = arith.constant 0 : i32
    %c0_i32_1 = arith.constant 0 : i32
    return %c0_i32, %c0_i32_0 : i32, i32
  }
  func.func @transform_5(%arg0: i32) -> (i32, i32, i32) {
    %c0_i32 = arith.constant 0 : i32
    %c0_i32_0 = arith.constant 0 : i32
    %c0_i32_1 = arith.constant 0 : i32
    %c0_i32_2 = arith.constant 0 : i32
    return %c0_i32, %c0_i32_0, %c0_i32_1 : i32, i32, i32
  }
  func.func @transform_6(%arg0: i32) -> (i32, i32) {
    %c0_i32 = arith.constant 0 : i32
    %c0_i32_0 = arith.constant 0 : i32
    %c0_i32_1 = arith.constant 0 : i32
    return %c0_i32, %c0_i32_0 : i32, i32
  }
  func.func @transform_7(%arg0: i32) -> (i32, i32, i32) {
    %c0_i32 = arith.constant 0 : i32
    %c0_i32_0 = arith.constant 0 : i32
    %c0_i32_1 = arith.constant 0 : i32
    %c0_i32_2 = arith.constant 0 : i32
    return %c0_i32, %c0_i32_0, %c0_i32_1 : i32, i32, i32
  }
  func.func @transform_8(%arg0: i32) -> (i32, i32) {
    %c0_i32 = arith.constant 0 : i32
    %c0_i32_0 = arith.constant 0 : i32
    %c0_i32_1 = arith.constant 0 : i32
    return %c0_i32, %c0_i32_0 : i32, i32
  }
  func.func @transform_9(%arg0: i32) -> (i32, i32, i32) {
    %c0_i32 = arith.constant 0 : i32
    %c0_i32_0 = arith.constant 0 : i32
    %c0_i32_1 = arith.constant 0 : i32
    %c0_i32_2 = arith.constant 0 : i32
    return %c0_i32, %c0_i32_0, %c0_i32_1 : i32, i32, i32
  }
  func.func @transform_10(%arg0: i32) -> (i32, i32) {
    %c0_i32 = arith.constant 0 : i32
    %c0_i32_0 = arith.constant 0 : i32
    %c0_i32_1 = arith.constant 0 : i32
    return %c0_i32, %c0_i32_0 : i32, i32
  }
  func.func @transform_11(%arg0: i32) -> (i32, i32, i32) {
    %c0_i32 = arith.constant 0 : i32
    %c0_i32_0 = arith.constant 0 : i32
    %c0_i32_1 = arith.constant 0 : i32
    %c0_i32_2 = arith.constant 0 : i32
    return %c0_i32, %c0_i32_0, %c0_i32_1 : i32, i32, i32
  }
  func.func @transform_12(%arg0: i32) -> (i32, i32) {
    %c0_i32 = arith.constant 0 : i32
    %c0_i32_0 = arith.constant 0 : i32
    %c0_i32_1 = arith.constant 0 : i32
    return %c0_i32, %c0_i32_0 : i32, i32
  }
  func.func @transform_13(%arg0: i32) -> (i32, i32, i32) {
    %c0_i32 = arith.constant 0 : i32
    %c0_i32_0 = arith.constant 0 : i32
    %c0_i32_1 = arith.constant 0 : i32
    %c0_i32_2 = arith.constant 0 : i32
    return %c0_i32, %c0_i32_0, %c0_i32_1 : i32, i32, i32
  }
  func.func @transform_14(%arg0: i32) -> (i32, i32) {
    %c0_i32 = arith.constant 0 : i32
    %c0_i32_0 = arith.constant 0 : i32
    %c0_i32_1 = arith.constant 0 : i32
    return %c0_i32, %c0_i32_0 : i32, i32
  }
  func.func @transform_15(%arg0: i32) -> (i32, i32, i32) {
    %c0_i32 = arith.constant 0 : i32
    %c0_i32_0 = arith.constant 0 : i32
    %c0_i32_1 = arith.constant 0 : i32
    %c0_i32_2 = arith.constant 0 : i32
    return %c0_i32, %c0_i32_0, %c0_i32_1 : i32, i32, i32
  }
  func.func @transform_16(%arg0: i32) -> (i32, i32) {
    %c0_i32 = arith.constant 0 : i32
    %c0_i32_0 = arith.constant 0 : i32
    %c0_i32_1 = arith.constant 0 : i32
    return %c0_i32, %c0_i32_0 : i32, i32
  }
  func.func @transform_17(%arg0: i32) -> (i32, i32, i32) {
    %c0_i32 = arith.constant 0 : i32
    %c0_i32_0 = arith.constant 0 : i32
    %c0_i32_1 = arith.constant 0 : i32
    %c0_i32_2 = arith.constant 0 : i32
    return %c0_i32, %c0_i32_0, %c0_i32_1 : i32, i32, i32
  }
  func.func @transform_18(%arg0: i32) -> (i32, i32) {
    %c0_i32 = arith.constant 0 : i32
    %c0_i32_0 = arith.constant 0 : i32
    %c0_i32_1 = arith.constant 0 : i32
    return %c0_i32, %c0_i32_0 : i32, i32
  }
  func.func @transform_19(%arg0: i32) -> (i32, i32, i32) {
    %c0_i32 = arith.constant 0 : i32
    %c0_i32_0 = arith.constant 0 : i32
    %c0_i32_1 = arith.constant 0 : i32
    %c0_i32_2 = arith.constant 0 : i32
    return %c0_i32, %c0_i32_0, %c0_i32_1 : i32, i32, i32
  }
  func.func @transform_20(%arg0: i32) -> (i32, i32) {
    %c0_i32 = arith.constant 0 : i32
    %c0_i32_0 = arith.constant 0 : i32
    %c0_i32_1 = arith.constant 0 : i32
    return %c0_i32, %c0_i32_0 : i32, i32
  }
  func.func @transform_21(%arg0: i32) -> (i32, i32) {
    %c0_i32 = arith.constant 0 : i32
    %c0_i32_0 = arith.constant 0 : i32
    %c0_i32_1 = arith.constant 0 : i32
    return %c0_i32, %c0_i32_0 : i32, i32
  }
  func.func @transform_22(%arg0: i32) -> (i32, i32) {
    %c0_i32 = arith.constant 0 : i32
    %c0_i32_0 = arith.constant 0 : i32
    %c0_i32_1 = arith.constant 0 : i32
    return %c0_i32, %c0_i32_0 : i32, i32
  }
  func.func @transform_23(%arg0: i32) -> (i32, i32, i32) {
    %c0_i32 = arith.constant 0 : i32
    %c0_i32_0 = arith.constant 0 : i32
    %c0_i32_1 = arith.constant 0 : i32
    return %arg0, %c0_i32, %c0_i32_0 : i32, i32, i32
  }
}

</mosaic_0001>

<llo_original>
// kernel: model_forward.1
$region0: #{model_forward.1}
  #allocation0 [shape = 'u32[]', space=smem, size = 0x4, offset = 0x4, fixed_abs, tag = 'smem constant byte address 0x4 - core index']
  #allocation1 [shape = 'u32[144,128]{1,0:T(1,128)}', space=vmem, size = 0x12000, scoped, tag = 'internal scratch']
  #allocation2 [shape = 'f32[34,34,128]{2,1,0:T(8,128)}', space=vmem, size = 0xaa000, scoped, tag = 'scratch operand']
  #allocation3 [shape = 'f32[18,18,128]{2,1,0:T(8,128)}', space=vmem, size = 0x36000, scoped, tag = 'scratch operand']
  #allocation4 [shape = 'f32[18,18,128]{2,1,0:T(8,128)}', space=vmem, size = 0x36000, scoped, tag = 'scratch operand']
  #allocation5 [shape = 'f32[10,10,128]{2,1,0:T(8,128)}', space=vmem, size = 0x14000, scoped, tag = 'scratch operand']
  #allocation6 [shape = 'f32[10,10,128]{2,1,0:T(8,128)}', space=vmem, size = 0x14000, scoped, tag = 'scratch operand']
  #allocation7 [shape = 'f32[6,6,128]{2,1,0:T(8,128)}', space=vmem, size = 0x6000, scoped, tag = 'scratch operand']
  #allocation8 [shape = 'f32[6,6,128]{2,1,0:T(8,128)}', space=vmem, size = 0x6000, scoped, tag = 'scratch operand']
  %s0 = inlined_call_operand.vmem [shape: f32[2,34,34,128], index: 0, kind: input, shape index: {}]
  %s1 = inlined_call_operand.vmem [shape: bf16[9,128,128], index: 1, kind: input, shape index: {}]
  %s2 = inlined_call_operand.vmem [shape: f32[1,128], index: 2, kind: input, shape index: {}]
  %s3 = inlined_call_operand.vmem [shape: bf16[9,128,128], index: 3, kind: input, shape index: {}]
  %s4 = inlined_call_operand.vmem [shape: f32[1,128], index: 4, kind: input, shape index: {}]
  %s5 = inlined_call_operand.vmem [shape: bf16[1,128,128], index: 5, kind: input, shape index: {}]
  %s6 = inlined_call_operand.vmem [shape: f32[1,128], index: 6, kind: input, shape index: {}]
  %s7 = inlined_call_operand.vmem [shape: bf16[9,128,128], index: 7, kind: input, shape index: {}]
  %s8 = inlined_call_operand.vmem [shape: f32[1,128], index: 8, kind: input, shape index: {}]
  %s9 = inlined_call_operand.vmem [shape: bf16[9,128,128], index: 9, kind: input, shape index: {}]
  %s10 = inlined_call_operand.vmem [shape: f32[1,128], index: 10, kind: input, shape index: {}]
  %s11 = inlined_call_operand.vmem [shape: bf16[1,128,128], index: 11, kind: input, shape index: {}]
  %s12 = inlined_call_operand.vmem [shape: f32[1,128], index: 12, kind: input, shape index: {}]
  %s13 = inlined_call_operand.vmem [shape: bf16[9,128,128], index: 13, kind: input, shape index: {}]
  %s14 = inlined_call_operand.vmem [shape: f32[1,128], index: 14, kind: input, shape index: {}]
  %s15 = inlined_call_operand.vmem [shape: bf16[9,128,128], index: 15, kind: input, shape index: {}]
  %s16 = inlined_call_operand.vmem [shape: f32[1,128], index: 16, kind: input, shape index: {}]
  %s17 = inlined_call_operand.vmem [shape: bf16[1,128,128], index: 17, kind: input, shape index: {}]
  %s18 = inlined_call_operand.vmem [shape: f32[1,128], index: 18, kind: input, shape index: {}]
  %s19 = inlined_call_operand.vmem [shape: bf16[9,128,128], index: 19, kind: input, shape index: {}]
  %s20 = inlined_call_operand.vmem [shape: f32[1,128], index: 20, kind: input, shape index: {}]
  %s21 = inlined_call_operand.vmem [shape: bf16[128,128], index: 21, kind: input, shape index: {}]
  %s22 = inlined_call_operand.vmem [shape: f32[1,128], index: 22, kind: input, shape index: {}]
  %s23 = inlined_call_operand.hbm [shape: f32[2,1,128], index: 23, kind: output, shape index: {}]
  %s24 = sld [smem:[#allocation0]]
  $region195: #{model_forward.1} parent=0
    _
  %s26 = ssub.s32 1, %s24
  %s27 = scalar_select 0, %s26, %s24
  $region1: #{model_forward.1} parent=0
    #allocation9 [shape = 'u8[1024]{0}', space=vmem, size = 0x400, scoped, tag = 'output window, operand 0']
    #allocation10 [shape = 's32[2]{0}', space=sflag, size = 0x8, scoped, tag = 'scoped memory for model_forward.1']
    %28 = vsyncpa [#allocation10], 0
    %s29 = scalar_lea.sflag [#allocation10], 1
    %30 = vsyncpa %s29, 0
    loop: start=0, step=1, limit=4
    $region2: #{model_forward.1} parent=1 // loop_pre_header
      _
    $region3: #{model_forward.1} parent=1 // loop_header
      %s32 = sphi 0, %s36
      %p33 = scmp.ge.s32.totalorder %s32, 4
      %s42 = sphi 0, %s44
      %s45 = sphi 0, %s42
      %s46 = sphi 0, %s45
      %s62 = sphi 0, %s46
      %s66 = sphi 0, %s66
      %s68 = sphi 0, %s66
      %s69 = sphi 0, %s68
      %s83 = sphi 0, %s69
      %s87 = sphi 0, %s87
      %s89 = sphi 0, %s87
      %s90 = sphi 0, %s89
      %s104 = sphi 0, %s90
      %s108 = sphi 0, %s108
      %s110 = sphi 0, %s108
      %s111 = sphi 0, %s110
      %s125 = sphi 0, %s111
      %s129 = sphi 0, %s129
      %s131 = sphi 0, %s129
      %s132 = sphi 0, %s131
      %s146 = sphi 0, %s132
      %s150 = sphi 0, %s150
      %s152 = sphi 0, %s150
      %s153 = sphi 0, %s152
      %s167 = sphi 0, %s153
      %s171 = sphi 0, %s171
      %s173 = sphi 0, %s171
      %s174 = sphi 0, %s173
      %s188 = sphi 0, %s174
      %s192 = sphi 0, %s192
      %s194 = sphi 0, %s192
      %s195 = sphi 0, %s194
      %s209 = sphi 0, %s195
      %s213 = sphi 0, %s213
      %s215 = sphi 0, %s213
      %s216 = sphi 0, %s215
      %s230 = sphi 0, %s216
      %s234 = sphi 0, %s234
      %s236 = sphi 0, %s234
      %s237 = sphi 0, %s236
      %s251 = sphi 0, %s237
      %s255 = sphi 0, %s255
      %s257 = sphi 0, %s255
      %s258 = sphi 0, %s257
      %s272 = sphi 0, %s258
      %s276 = sphi 0, %s276
      %s278 = sphi 0, %s276
      %s279 = sphi 0, %s278
      %s293 = sphi 0, %s279
      %s297 = sphi 0, %s297
      %s299 = sphi 0, %s297
      %s300 = sphi 0, %s299
      %s314 = sphi 0, %s300
      %s318 = sphi 0, %s318
      %s320 = sphi 0, %s318
      %s321 = sphi 0, %s320
      %s335 = sphi 0, %s321
      %s339 = sphi 0, %s339
      %s341 = sphi 0, %s339
      %s342 = sphi 0, %s341
      %s356 = sphi 0, %s342
      %s360 = sphi 0, %s360
      %s362 = sphi 0, %s360
      %s363 = sphi 0, %s362
      %s377 = sphi 0, %s363
      %s381 = sphi 0, %s381
      %s383 = sphi 0, %s381
      %s384 = sphi 0, %s383
      %s398 = sphi 0, %s384
      %s402 = sphi 0, %s402
      %s404 = sphi 0, %s402
      %s405 = sphi 0, %s404
      %s419 = sphi 0, %s405
      %s423 = sphi 0, %s423
      %s425 = sphi 0, %s423
      %s426 = sphi 0, %s425
      %s440 = sphi 0, %s426
      %s444 = sphi 0, %s444
      %s446 = sphi 0, %s444
      %s447 = sphi 0, %s446
      %s461 = sphi 0, %s447
      %s465 = sphi 0, %s465
      %s467 = sphi 0, %s465
      %s468 = sphi 0, %s467
      %s482 = sphi 0, %s468
      %s486 = sphi 0, %s486
      %s488 = sphi 0, %s486
      %s489 = sphi 0, %s488
      %s503 = sphi 0, %s489
      %s507 = sphi 0, %s507
      %s509 = sphi 0, %s507
      %s510 = sphi 0, %s509
      %s524 = sphi 0, %s510
      %s530 = sphi 0, %s532
      %s533 = sphi 0, %s530
      %s534 = sphi 0, %s533
      %s550 = sphi 0, %s534
    $region4: #{model_forward.1} parent=1 // loop_header_branch
      %35 = sbr.rel (%p33) target = $region8
    $region5: #{model_forward.1} parent=1 // loop_body
      %s37 = ssub.s32 %s32, 1
      %s38 = ssub.s32 %s32, 2
      %s39 = sadd.s32 %s32, 1
      %s40 = ssub.s32 %s32, %s39
      %p41 = scmp.eq.s32.totalorder %s40, 0
      %s43 = sadd.s32 %s42, 1
      %s44 = scalar_select %p41, %s42, %s43
      %p47 = pneg %p41
      %p48 = scmp.eq.s32.totalorder %s32, 1
      %p49 = por %p47, %p48
      %p50 = scmp.ne.s32.totalorder %s42, %s45
      %p51 = scmp.eq.s32.totalorder %s32, 0
      %p52 = por %p50, %p51
      %p53 = scmp.ne.s32.totalorder %s42, %s45
      %p54 = scmp.eq.s32.totalorder %s37, 1
      %p55 = por %p53, %p54
      %p56 = scmp.ne.s32.totalorder %s45, %s46
      %p57 = scmp.eq.s32.totalorder %s37, 0
      %p58 = por %p56, %p57
      %p59 = scmp.ne.s32.totalorder %s45, %s46
      %p60 = scmp.eq.s32.totalorder %s38, 1
      %p61 = por %p59, %p60
      %p63 = scmp.ne.s32.totalorder %s46, %s62
      %p64 = scmp.eq.s32.totalorder %s38, 0
      %p65 = por %p63, %p64
      %s67 = sadd.s32 %s66, 1
      %p70 = scmp.eq.s32.totalorder %s32, 1
      %p71 = scmp.ne.s32.totalorder %s66, %s68
      %p72 = scmp.eq.s32.totalorder %s32, 0
      %p73 = por %p71, %p72
      %p74 = scmp.ne.s32.totalorder %s66, %s68
      %p75 = scmp.eq.s32.totalorder %s37, 1
      %p76 = por %p74, %p75
      %p77 = scmp.ne.s32.totalorder %s68, %s69
      %p78 = scmp.eq.s32.totalorder %s37, 0
      %p79 = por %p77, %p78
      %p80 = scmp.ne.s32.totalorder %s68, %s69
      %p81 = scmp.eq.s32.totalorder %s38, 1
      %p82 = por %p80, %p81
      %p84 = scmp.ne.s32.totalorder %s69, %s83
      %p85 = scmp.eq.s32.totalorder %s38, 0
      %p86 = por %p84, %p85
      %s88 = sadd.s32 %s87, 1
      %p91 = scmp.eq.s32.totalorder %s32, 1
      %p92 = scmp.ne.s32.totalorder %s87, %s89
      %p93 = scmp.eq.s32.totalorder %s32, 0
      %p94 = por %p92, %p93
      %p95 = scmp.ne.s32.totalorder %s87, %s89
      %p96 = scmp.eq.s32.totalorder %s37, 1
      %p97 = por %p95, %p96
      %p98 = scmp.ne.s32.totalorder %s89, %s90
      %p99 = scmp.eq.s32.totalorder %s37, 0
      %p100 = por %p98, %p99
      %p101 = scmp.ne.s32.totalorder %s89, %s90
      %p102 = scmp.eq.s32.totalorder %s38, 1
      %p103 = por %p101, %p102
      %p105 = scmp.ne.s32.totalorder %s90, %s104
      %p106 = scmp.eq.s32.totalorder %s38, 0
      %p107 = por %p105, %p106
      %s109 = sadd.s32 %s108, 1
      %p112 = scmp.eq.s32.totalorder %s32, 1
      %p113 = scmp.ne.s32.totalorder %s108, %s110
      %p114 = scmp.eq.s32.totalorder %s32, 0
      %p115 = por %p113, %p114
      %p116 = scmp.ne.s32.totalorder %s108, %s110
      %p117 = scmp.eq.s32.totalorder %s37, 1
      %p118 = por %p116, %p117
      %p119 = scmp.ne.s32.totalorder %s110, %s111
      %p120 = scmp.eq.s32.totalorder %s37, 0
      %p121 = por %p119, %p120
      %p122 = scmp.ne.s32.totalorder %s110, %s111
      %p123 = scmp.eq.s32.totalorder %s38, 1
      %p124 = por %p122, %p123
      %p126 = scmp.ne.s32.totalorder %s111, %s125
      %p127 = scmp.eq.s32.totalorder %s38, 0
      %p128 = por %p126, %p127
      %s130 = sadd.s32 %s129, 1
      %p133 = scmp.eq.s32.totalorder %s32, 1
      %p134 = scmp.ne.s32.totalorder %s129, %s131
      %p135 = scmp.eq.s32.totalorder %s32, 0
      %p136 = por %p134, %p135
      %p137 = scmp.ne.s32.totalorder %s129, %s131
      %p138 = scmp.eq.s32.totalorder %s37, 1
      %p139 = por %p137, %p138
      %p140 = scmp.ne.s32.totalorder %s131, %s132
      %p141 = scmp.eq.s32.totalorder %s37, 0
      %p142 = por %p140, %p141
      %p143 = scmp.ne.s32.totalorder %s131, %s132
      %p144 = scmp.eq.s32.totalorder %s38, 1
      %p145 = por %p143, %p144
      %p147 = scmp.ne.s32.totalorder %s132, %s146
      %p148 = scmp.eq.s32.totalorder %s38, 0
      %p149 = por %p147, %p148
      %s151 = sadd.s32 %s150, 1
      %p154 = scmp.eq.s32.totalorder %s32, 1
      %p155 = scmp.ne.s32.totalorder %s150, %s152
      %p156 = scmp.eq.s32.totalorder %s32, 0
      %p157 = por %p155, %p156
      %p158 = scmp.ne.s32.totalorder %s150, %s152
      %p159 = scmp.eq.s32.totalorder %s37, 1
      %p160 = por %p158, %p159
      %p161 = scmp.ne.s32.totalorder %s152, %s153
      %p162 = scmp.eq.s32.totalorder %s37, 0
      %p163 = por %p161, %p162
      %p164 = scmp.ne.s32.totalorder %s152, %s153
      %p165 = scmp.eq.s32.totalorder %s38, 1
      %p166 = por %p164, %p165
      %p168 = scmp.ne.s32.totalorder %s153, %s167
      %p169 = scmp.eq.s32.totalorder %s38, 0
      %p170 = por %p168, %p169
      %s172 = sadd.s32 %s171, 1
      %p175 = scmp.eq.s32.totalorder %s32, 1
      %p176 = scmp.ne.s32.totalorder %s171, %s173
      %p177 = scmp.eq.s32.totalorder %s32, 0
      %p178 = por %p176, %p177
      %p179 = scmp.ne.s32.totalorder %s171, %s173
      %p180 = scmp.eq.s32.totalorder %s37, 1
      %p181 = por %p179, %p180
      %p182 = scmp.ne.s32.totalorder %s173, %s174
      %p183 = scmp.eq.s32.totalorder %s37, 0
      %p184 = por %p182, %p183
      %p185 = scmp.ne.s32.totalorder %s173, %s174
      %p186 = scmp.eq.s32.totalorder %s38, 1
      %p187 = por %p185, %p186
      %p189 = scmp.ne.s32.totalorder %s174, %s188
      %p190 = scmp.eq.s32.totalorder %s38, 0
      %p191 = por %p189, %p190
      %s193 = sadd.s32 %s192, 1
      %p196 = scmp.eq.s32.totalorder %s32, 1
      %p197 = scmp.ne.s32.totalorder %s192, %s194
      %p198 = scmp.eq.s32.totalorder %s32, 0
      %p199 = por %p197, %p198
      %p200 = scmp.ne.s32.totalorder %s192, %s194
      %p201 = scmp.eq.s32.totalorder %s37, 1
      %p202 = por %p200, %p201
      %p203 = scmp.ne.s32.totalorder %s194, %s195
      %p204 = scmp.eq.s32.totalorder %s37, 0
      %p205 = por %p203, %p204
      %p206 = scmp.ne.s32.totalorder %s194, %s195
      %p207 = scmp.eq.s32.totalorder %s38, 1
      %p208 = por %p206, %p207
      %p210 = scmp.ne.s32.totalorder %s195, %s209
      %p211 = scmp.eq.s32.totalorder %s38, 0
      %p212 = por %p210, %p211
      %s214 = sadd.s32 %s213, 1
      %p217 = scmp.eq.s32.totalorder %s32, 1
      %p218 = scmp.ne.s32.totalorder %s213, %s215
      %p219 = scmp.eq.s32.totalorder %s32, 0
      %p220 = por %p218, %p219
      %p221 = scmp.ne.s32.totalorder %s213, %s215
      %p222 = scmp.eq.s32.totalorder %s37, 1
      %p223 = por %p221, %p222
      %p224 = scmp.ne.s32.totalorder %s215, %s216
      %p225 = scmp.eq.s32.totalorder %s37, 0
      %p226 = por %p224, %p225
      %p227 = scmp.ne.s32.totalorder %s215, %s216
      %p228 = scmp.eq.s32.totalorder %s38, 1
      %p229 = por %p227, %p228
      %p231 = scmp.ne.s32.totalorder %s216, %s230
      %p232 = scmp.eq.s32.totalorder %s38, 0
      %p233 = por %p231, %p232
      %s235 = sadd.s32 %s234, 1
      %p238 = scmp.eq.s32.totalorder %s32, 1
      %p239 = scmp.ne.s32.totalorder %s234, %s236
      %p240 = scmp.eq.s32.totalorder %s32, 0
      %p241 = por %p239, %p240
      %p242 = scmp.ne.s32.totalorder %s234, %s236
      %p243 = scmp.eq.s32.totalorder %s37, 1
      %p244 = por %p242, %p243
      %p245 = scmp.ne.s32.totalorder %s236, %s237
      %p246 = scmp.eq.s32.totalorder %s37, 0
      %p247 = por %p245, %p246
      %p248 = scmp.ne.s32.totalorder %s236, %s237
      %p249 = scmp.eq.s32.totalorder %s38, 1
      %p250 = por %p248, %p249
      %p252 = scmp.ne.s32.totalorder %s237, %s251
      %p253 = scmp.eq.s32.totalorder %s38, 0
      %p254 = por %p252, %p253
      %s256 = sadd.s32 %s255, 1
      %p259 = scmp.eq.s32.totalorder %s32, 1
      %p260 = scmp.ne.s32.totalorder %s255, %s257
      %p261 = scmp.eq.s32.totalorder %s32, 0
      %p262 = por %p260, %p261
      %p263 = scmp.ne.s32.totalorder %s255, %s257
      %p264 = scmp.eq.s32.totalorder %s37, 1
      %p265 = por %p263, %p264
      %p266 = scmp.ne.s32.totalorder %s257, %s258
      %p267 = scmp.eq.s32.totalorder %s37, 0
      %p268 = por %p266, %p267
      %p269 = scmp.ne.s32.totalorder %s257, %s258
      %p270 = scmp.eq.s32.totalorder %s38, 1
      %p271 = por %p269, %p270
      %p273 = scmp.ne.s32.totalorder %s258, %s272
      %p274 = scmp.eq.s32.totalorder %s38, 0
      %p275 = por %p273, %p274
      %s277 = sadd.s32 %s276, 1
      %p280 = scmp.eq.s32.totalorder %s32, 1
      %p281 = scmp.ne.s32.totalorder %s276, %s278
      %p282 = scmp.eq.s32.totalorder %s32, 0
      %p283 = por %p281, %p282
      %p284 = scmp.ne.s32.totalorder %s276, %s278
      %p285 = scmp.eq.s32.totalorder %s37, 1
      %p286 = por %p284, %p285
      %p287 = scmp.ne.s32.totalorder %s278, %s279
      %p288 = scmp.eq.s32.totalorder %s37, 0
      %p289 = por %p287, %p288
      %p290 = scmp.ne.s32.totalorder %s278, %s279
      %p291 = scmp.eq.s32.totalorder %s38, 1
      %p292 = por %p290, %p291
      %p294 = scmp.ne.s32.totalorder %s279, %s293
      %p295 = scmp.eq.s32.totalorder %s38, 0
      %p296 = por %p294, %p295
      %s298 = sadd.s32 %s297, 1
      %p301 = scmp.eq.s32.totalorder %s32, 1
      %p302 = scmp.ne.s32.totalorder %s297, %s299
      %p303 = scmp.eq.s32.totalorder %s32, 0
      %p304 = por %p302, %p303
      %p305 = scmp.ne.s32.totalorder %s297, %s299
      %p306 = scmp.eq.s32.totalorder %s37, 1
      %p307 = por %p305, %p306
      %p308 = scmp.ne.s32.totalorder %s299, %s300
      %p309 = scmp.eq.s32.totalorder %s37, 0
      %p310 = por %p308, %p309
      %p311 = scmp.ne.s32.totalorder %s299, %s300
      %p312 = scmp.eq.s32.totalorder %s38, 1
      %p313 = por %p311, %p312
      %p315 = scmp.ne.s32.totalorder %s300, %s314
      %p316 = scmp.eq.s32.totalorder %s38, 0
      %p317 = por %p315, %p316
      %s319 = sadd.s32 %s318, 1
      %p322 = scmp.eq.s32.totalorder %s32, 1
      %p323 = scmp.ne.s32.totalorder %s318, %s320
      %p324 = scmp.eq.s32.totalorder %s32, 0
      %p325 = por %p323, %p324
      %p326 = scmp.ne.s32.totalorder %s318, %s320
      %p327 = scmp.eq.s32.totalorder %s37, 1
      %p328 = por %p326, %p327
      %p329 = scmp.ne.s32.totalorder %s320, %s321
      %p330 = scmp.eq.s32.totalorder %s37, 0
      %p331 = por %p329, %p330
      %p332 = scmp.ne.s32.totalorder %s320, %s321
      %p333 = scmp.eq.s32.totalorder %s38, 1
      %p334 = por %p332, %p333
      %p336 = scmp.ne.s32.totalorder %s321, %s335
      %p337 = scmp.eq.s32.totalorder %s38, 0
      %p338 = por %p336, %p337
      %s340 = sadd.s32 %s339, 1
      %p343 = scmp.eq.s32.totalorder %s32, 1
      %p344 = scmp.ne.s32.totalorder %s339, %s341
      %p345 = scmp.eq.s32.totalorder %s32, 0
      %p346 = por %p344, %p345
      %p347 = scmp.ne.s32.totalorder %s339, %s341
      %p348 = scmp.eq.s32.totalorder %s37, 1
      %p349 = por %p347, %p348
      %p350 = scmp.ne.s32.totalorder %s341, %s342
      %p351 = scmp.eq.s32.totalorder %s37, 0
      %p352 = por %p350, %p351
      %p353 = scmp.ne.s32.totalorder %s341, %s342
      %p354 = scmp.eq.s32.totalorder %s38, 1
      %p355 = por %p353, %p354
      %p357 = scmp.ne.s32.totalorder %s342, %s356
      %p358 = scmp.eq.s32.totalorder %s38, 0
      %p359 = por %p357, %p358
      %s361 = sadd.s32 %s360, 1
      %p364 = scmp.eq.s32.totalorder %s32, 1
      %p365 = scmp.ne.s32.totalorder %s360, %s362
      %p366 = scmp.eq.s32.totalorder %s32, 0
      %p367 = por %p365, %p366
      %p368 = scmp.ne.s32.totalorder %s360, %s362
      %p369 = scmp.eq.s32.totalorder %s37, 1
      %p370 = por %p368, %p369
      %p371 = scmp.ne.s32.totalorder %s362, %s363
      %p372 = scmp.eq.s32.totalorder %s37, 0
      %p373 = por %p371, %p372
      %p374 = scmp.ne.s32.totalorder %s362, %s363
      %p375 = scmp.eq.s32.totalorder %s38, 1
      %p376 = por %p374, %p375
      %p378 = scmp.ne.s32.totalorder %s363, %s377
      %p379 = scmp.eq.s32.totalorder %s38, 0
      %p380 = por %p378, %p379
      %s382 = sadd.s32 %s381, 1
      %p385 = scmp.eq.s32.totalorder %s32, 1
      %p386 = scmp.ne.s32.totalorder %s381, %s383
      %p387 = scmp.eq.s32.totalorder %s32, 0
      %p388 = por %p386, %p387
      %p389 = scmp.ne.s32.totalorder %s381, %s383
      %p390 = scmp.eq.s32.totalorder %s37, 1
      %p391 = por %p389, %p390
      %p392 = scmp.ne.s32.totalorder %s383, %s384
      %p393 = scmp.eq.s32.totalorder %s37, 0
      %p394 = por %p392, %p393
      %p395 = scmp.ne.s32.totalorder %s383, %s384
      %p396 = scmp.eq.s32.totalorder %s38, 1
      %p397 = por %p395, %p396
      %p399 = scmp.ne.s32.totalorder %s384, %s398
      %p400 = scmp.eq.s32.totalorder %s38, 0
      %p401 = por %p399, %p400
      %s403 = sadd.s32 %s402, 1
      %p406 = scmp.eq.s32.totalorder %s32, 1
      %p407 = scmp.ne.s32.totalorder %s402, %s404
      %p408 = scmp.eq.s32.totalorder %s32, 0
      %p409 = por %p407, %p408
      %p410 = scmp.ne.s32.totalorder %s402, %s404
      %p411 = scmp.eq.s32.totalorder %s37, 1
      %p412 = por %p410, %p411
      %p413 = scmp.ne.s32.totalorder %s404, %s405
      %p414 = scmp.eq.s32.totalorder %s37, 0
      %p415 = por %p413, %p414
      %p416 = scmp.ne.s32.totalorder %s404, %s405
      %p417 = scmp.eq.s32.totalorder %s38, 1
      %p418 = por %p416, %p417
      %p420 = scmp.ne.s32.totalorder %s405, %s419
      %p421 = scmp.eq.s32.totalorder %s38, 0
      %p422 = por %p420, %p421
      %s424 = sadd.s32 %s423, 1
      %p427 = scmp.eq.s32.totalorder %s32, 1
      %p428 = scmp.ne.s32.totalorder %s423, %s425
      %p429 = scmp.eq.s32.totalorder %s32, 0
      %p430 = por %p428, %p429
      %p431 = scmp.ne.s32.totalorder %s423, %s425
      %p432 = scmp.eq.s32.totalorder %s37, 1
      %p433 = por %p431, %p432
      %p434 = scmp.ne.s32.totalorder %s425, %s426
      %p435 = scmp.eq.s32.totalorder %s37, 0
      %p436 = por %p434, %p435
      %p437 = scmp.ne.s32.totalorder %s425, %s426
      %p438 = scmp.eq.s32.totalorder %s38, 1
      %p439 = por %p437, %p438
      %p441 = scmp.ne.s32.totalorder %s426, %s440
      %p442 = scmp.eq.s32.totalorder %s38, 0
      %p443 = por %p441, %p442
      %s445 = sadd.s32 %s444, 1
      %p448 = scmp.eq.s32.totalorder %s32, 1
      %p449 = scmp.ne.s32.totalorder %s444, %s446
      %p450 = scmp.eq.s32.totalorder %s32, 0
      %p451 = por %p449, %p450
      %p452 = scmp.ne.s32.totalorder %s444, %s446
      %p453 = scmp.eq.s32.totalorder %s37, 1
      %p454 = por %p452, %p453
      %p455 = scmp.ne.s32.totalorder %s446, %s447
      %p456 = scmp.eq.s32.totalorder %s37, 0
      %p457 = por %p455, %p456
      %p458 = scmp.ne.s32.totalorder %s446, %s447
      %p459 = scmp.eq.s32.totalorder %s38, 1
      %p460 = por %p458, %p459
      %p462 = scmp.ne.s32.totalorder %s447, %s461
      %p463 = scmp.eq.s32.totalorder %s38, 0
      %p464 = por %p462, %p463
      %s466 = sadd.s32 %s465, 1
      %p469 = scmp.eq.s32.totalorder %s32, 1
      %p470 = scmp.ne.s32.totalorder %s465, %s467
      %p471 = scmp.eq.s32.totalorder %s32, 0
      %p472 = por %p470, %p471
      %p473 = scmp.ne.s32.totalorder %s465, %s467
      %p474 = scmp.eq.s32.totalorder %s37, 1
      %p475 = por %p473, %p474
      %p476 = scmp.ne.s32.totalorder %s467, %s468
      %p477 = scmp.eq.s32.totalorder %s37, 0
      %p478 = por %p476, %p477
      %p479 = scmp.ne.s32.totalorder %s467, %s468
      %p480 = scmp.eq.s32.totalorder %s38, 1
      %p481 = por %p479, %p480
      %p483 = scmp.ne.s32.totalorder %s468, %s482
      %p484 = scmp.eq.s32.totalorder %s38, 0
      %p485 = por %p483, %p484
      %s487 = sadd.s32 %s486, 1
      %p490 = scmp.eq.s32.totalorder %s32, 1
      %p491 = scmp.ne.s32.totalorder %s486, %s488
      %p492 = scmp.eq.s32.totalorder %s32, 0
      %p493 = por %p491, %p492
      %p494 = scmp.ne.s32.totalorder %s486, %s488
      %p495 = scmp.eq.s32.totalorder %s37, 1
      %p496 = por %p494, %p495
      %p497 = scmp.ne.s32.totalorder %s488, %s489
      %p498 = scmp.eq.s32.totalorder %s37, 0
      %p499 = por %p497, %p498
      %p500 = scmp.ne.s32.totalorder %s488, %s489
      %p501 = scmp.eq.s32.totalorder %s38, 1
      %p502 = por %p500, %p501
      %p504 = scmp.ne.s32.totalorder %s489, %s503
      %p505 = scmp.eq.s32.totalorder %s38, 0
      %p506 = por %p504, %p505
      %s508 = sadd.s32 %s507, 1
      %p511 = scmp.eq.s32.totalorder %s32, 1
      %p512 = scmp.ne.s32.totalorder %s507, %s509
      %p513 = scmp.eq.s32.totalorder %s32, 0
      %p514 = por %p512, %p513
      %p515 = scmp.ne.s32.totalorder %s507, %s509
      %p516 = scmp.eq.s32.totalorder %s37, 1
      %p517 = por %p515, %p516
      %p518 = scmp.ne.s32.totalorder %s509, %s510
      %p519 = scmp.eq.s32.totalorder %s37, 0
      %p520 = por %p518, %p519
      %p521 = scmp.ne.s32.totalorder %s509, %s510
      %p522 = scmp.eq.s32.totalorder %s38, 1
      %p523 = por %p521, %p522
      %p525 = scmp.ne.s32.totalorder %s510, %s524
      %p526 = scmp.eq.s32.totalorder %s38, 0
      %p527 = por %p525, %p526
      %s528 = ssub.s32 %s32, %s39
      %p529 = scmp.eq.s32.totalorder %s528, 0
      %s531 = sadd.s32 %s530, 1
      %s532 = scalar_select %p529, %s530, %s531
      %p535 = pneg %p529
      %p536 = scmp.eq.s32.totalorder %s32, 1
      %p537 = por %p535, %p536
      %p538 = scmp.ne.s32.totalorder %s530, %s533
      %p539 = scmp.eq.s32.totalorder %s32, 0
      %p540 = por %p538, %p539
      %p541 = scmp.ne.s32.totalorder %s530, %s533
      %p542 = scmp.eq.s32.totalorder %s37, 1
      %p543 = por %p541, %p542
      %p544 = scmp.ne.s32.totalorder %s533, %s534
      %p545 = scmp.eq.s32.totalorder %s37, 0
      %p546 = por %p544, %p545
      %p547 = scmp.ne.s32.totalorder %s533, %s534
      %p548 = scmp.eq.s32.totalorder %s38, 1
      %p549 = por %p547, %p548
      %p551 = scmp.ne.s32.totalorder %s534, %s550
      %p552 = scmp.eq.s32.totalorder %s38, 0
      %p553 = por %p551, %p552
      %p554 = scmp.le.s32.totalorder 1, %s32
      %p555 = scmp.lt.s32.totalorder %s32, 3
      %p556 = pnand %p554, %p555
      %p557 = pneg %p556
      // Predicated region
      $region9: #{model_forward.1} parent=5 // pred_check
        _
      $region10: #{model_forward.1} parent=5 // pred_check_branch
        %559 = sbr.rel (%p556) target = $region12
      $region11: #{model_forward.1} parent=5 // pred_region
        %s560 = ssub.s32 %s32, 1
        // Predicated region
        $region13: #{model_forward.1} parent=11 // pred_check
          %p561 = pneg %p79
        $region14: #{model_forward.1} parent=11 // pred_check_branch
          %563 = sbr.rel (%p561) target = $region16
        $region15: #{model_forward.1} parent=11 // pred_region
          _
        $region16: #{model_forward.1} parent=11 // pred_fallthru
          _
        // Predicated region
        $region17: #{model_forward.1} parent=11 // pred_check
          %p564 = pneg %p100
        $region18: #{model_forward.1} parent=11 // pred_check_branch
          %566 = sbr.rel (%p564) target = $region20
        $region19: #{model_forward.1} parent=11 // pred_region
          _
        $region20: #{model_forward.1} parent=11 // pred_fallthru
          _
        // Predicated region
        $region21: #{model_forward.1} parent=11 // pred_check
          %p567 = pneg %p121
        $region22: #{model_forward.1} parent=11 // pred_check_branch
          %569 = sbr.rel (%p567) target = $region24
        $region23: #{model_forward.1} parent=11 // pred_region
          _
        $region24: #{model_forward.1} parent=11 // pred_fallthru
          _
        // Predicated region
        $region25: #{model_forward.1} parent=11 // pred_check
          %p570 = pneg %p142
        $region26: #{model_forward.1} parent=11 // pred_check_branch
          %572 = sbr.rel (%p570) target = $region28
        $region27: #{model_forward.1} parent=11 // pred_region
          _
        $region28: #{model_forward.1} parent=11 // pred_fallthru
          _
        // Predicated region
        $region29: #{model_forward.1} parent=11 // pred_check
          %p573 = pneg %p163
        $region30: #{model_forward.1} parent=11 // pred_check_branch
          %575 = sbr.rel (%p573) target = $region32
        $region31: #{model_forward.1} parent=11 // pred_region
          _
        $region32: #{model_forward.1} parent=11 // pred_fallthru
          _
        // Predicated region
        $region33: #{model_forward.1} parent=11 // pred_check
          %p576 = pneg %p184
        $region34: #{model_forward.1} parent=11 // pred_check_branch
          %578 = sbr.rel (%p576) target = $region36
        $region35: #{model_forward.1} parent=11 // pred_region
          _
        $region36: #{model_forward.1} parent=11 // pred_fallthru
          _
        // Predicated region
        $region37: #{model_forward.1} parent=11 // pred_check
          %p579 = pneg %p205
        $region38: #{model_forward.1} parent=11 // pred_check_branch
          %581 = sbr.rel (%p579) target = $region40
        $region39: #{model_forward.1} parent=11 // pred_region
          _
        $region40: #{model_forward.1} parent=11 // pred_fallthru
          _
        // Predicated region
        $region41: #{model_forward.1} parent=11 // pred_check
          %p582 = pneg %p226
        $region42: #{model_forward.1} parent=11 // pred_check_branch
          %584 = sbr.rel (%p582) target = $region44
        $region43: #{model_forward.1} parent=11 // pred_region
          _
        $region44: #{model_forward.1} parent=11 // pred_fallthru
          _
        // Predicated region
        $region45: #{model_forward.1} parent=11 // pred_check
          %p585 = pneg %p247
        $region46: #{model_forward.1} parent=11 // pred_check_branch
          %587 = sbr.rel (%p585) target = $region48
        $region47: #{model_forward.1} parent=11 // pred_region
          _
        $region48: #{model_forward.1} parent=11 // pred_fallthru
          _
        // Predicated region
        $region49: #{model_forward.1} parent=11 // pred_check
          %p588 = pneg %p268
        $region50: #{model_forward.1} parent=11 // pred_check_branch
          %590 = sbr.rel (%p588) target = $region52
        $region51: #{model_forward.1} parent=11 // pred_region
          _
        $region52: #{model_forward.1} parent=11 // pred_fallthru
          _
        // Predicated region
        $region53: #{model_forward.1} parent=11 // pred_check
          %p591 = pneg %p289
        $region54: #{model_forward.1} parent=11 // pred_check_branch
          %593 = sbr.rel (%p591) target = $region56
        $region55: #{model_forward.1} parent=11 // pred_region
          _
        $region56: #{model_forward.1} parent=11 // pred_fallthru
          _
        // Predicated region
        $region57: #{model_forward.1} parent=11 // pred_check
          %p594 = pneg %p310
        $region58: #{model_forward.1} parent=11 // pred_check_branch
          %596 = sbr.rel (%p594) target = $region60
        $region59: #{model_forward.1} parent=11 // pred_region
          _
        $region60: #{model_forward.1} parent=11 // pred_fallthru
          _
        // Predicated region
        $region61: #{model_forward.1} parent=11 // pred_check
          %p597 = pneg %p331
        $region62: #{model_forward.1} parent=11 // pred_check_branch
          %599 = sbr.rel (%p597) target = $region64
        $region63: #{model_forward.1} parent=11 // pred_region
          _
        $region64: #{model_forward.1} parent=11 // pred_fallthru
          _
        // Predicated region
        $region65: #{model_forward.1} parent=11 // pred_check
          %p600 = pneg %p352
        $region66: #{model_forward.1} parent=11 // pred_check_branch
          %602 = sbr.rel (%p600) target = $region68
        $region67: #{model_forward.1} parent=11 // pred_region
          _
        $region68: #{model_forward.1} parent=11 // pred_fallthru
          _
        // Predicated region
        $region69: #{model_forward.1} parent=11 // pred_check
          %p603 = pneg %p373
        $region70: #{model_forward.1} parent=11 // pred_check_branch
          %605 = sbr.rel (%p603) target = $region72
        $region71: #{model_forward.1} parent=11 // pred_region
          _
        $region72: #{model_forward.1} parent=11 // pred_fallthru
          _
        // Predicated region
        $region73: #{model_forward.1} parent=11 // pred_check
          %p606 = pneg %p394
        $region74: #{model_forward.1} parent=11 // pred_check_branch
          %608 = sbr.rel (%p606) target = $region76
        $region75: #{model_forward.1} parent=11 // pred_region
          _
        $region76: #{model_forward.1} parent=11 // pred_fallthru
          _
        // Predicated region
        $region77: #{model_forward.1} parent=11 // pred_check
          %p609 = pneg %p415
        $region78: #{model_forward.1} parent=11 // pred_check_branch
          %611 = sbr.rel (%p609) target = $region80
        $region79: #{model_forward.1} parent=11 // pred_region
          _
        $region80: #{model_forward.1} parent=11 // pred_fallthru
          _
        // Predicated region
        $region81: #{model_forward.1} parent=11 // pred_check
          %p612 = pneg %p436
        $region82: #{model_forward.1} parent=11 // pred_check_branch
          %614 = sbr.rel (%p612) target = $region84
        $region83: #{model_forward.1} parent=11 // pred_region
          _
        $region84: #{model_forward.1} parent=11 // pred_fallthru
          _
        // Predicated region
        $region85: #{model_forward.1} parent=11 // pred_check
          %p615 = pneg %p457
        $region86: #{model_forward.1} parent=11 // pred_check_branch
          %617 = sbr.rel (%p615) target = $region88
        $region87: #{model_forward.1} parent=11 // pred_region
          _
        $region88: #{model_forward.1} parent=11 // pred_fallthru
          _
        // Predicated region
        $region89: #{model_forward.1} parent=11 // pred_check
          %p618 = pneg %p478
        $region90: #{model_forward.1} parent=11 // pred_check_branch
          %620 = sbr.rel (%p618) target = $region92
        $region91: #{model_forward.1} parent=11 // pred_region
          _
        $region92: #{model_forward.1} parent=11 // pred_fallthru
          _
        // Predicated region
        $region93: #{model_forward.1} parent=11 // pred_check
          %p621 = pneg %p499
        $region94: #{model_forward.1} parent=11 // pred_check_branch
          %623 = sbr.rel (%p621) target = $region96
        $region95: #{model_forward.1} parent=11 // pred_region
          _
        $region96: #{model_forward.1} parent=11 // pred_fallthru
          _
        // Predicated region
        $region97: #{model_forward.1} parent=11 // pred_check
          %p624 = pneg %p520
        $region98: #{model_forward.1} parent=11 // pred_check_branch
          %626 = sbr.rel (%p624) target = $region100
        $region99: #{model_forward.1} parent=11 // pred_region
          _
        $region100: #{model_forward.1} parent=11 // pred_fallthru
          _
      $region12: #{model_forward.1} parent=5 // pred_fallthru
        _
      %p627 = scmp.lt.s32.totalorder %s32, 2
      // Predicated region
      $region101: #{model_forward.1} parent=5 // pred_check
        %p628 = pneg %p627
      $region102: #{model_forward.1} parent=5 // pred_check_branch
        %630 = sbr.rel (%p628) target = $region104
      $region103: #{model_forward.1} parent=5 // pred_region
        // Predicated region
        $region105: #{model_forward.1} parent=103 // pred_check
          %p631 = pneg %p52
        $region106: #{model_forward.1} parent=103 // pred_check_branch
          %633 = sbr.rel (%p631) target = $region108
        $region107: #{model_forward.1} parent=103 // pred_region
          %p634 = scmp.lt.s32.totalorder %s32, 1
          %s635 = scalar_select %p634, %s32, 1
          %s636 = smul.addr %s635, 170
          %s637 = smul.addr %s636, 8
          %s638 = scalar_lea.vmem %s0, %s637
        $region108: #{model_forward.1} parent=103 // pred_fallthru
          _
      $region104: #{model_forward.1} parent=5 // pred_fallthru
        _
      %p639 = scmp.le.s32.totalorder 1, %s32
      %p640 = scmp.lt.s32.totalorder %s32, 3
      %p641 = pnand %p639, %p640
      %p642 = pneg %p641
      // Predicated region
      $region109: #{model_forward.1} parent=5 // pred_check
        _
      $region110: #{model_forward.1} parent=5 // pred_check_branch
        %644 = sbr.rel (%p641) target = $region112
      $region111: #{model_forward.1} parent=5 // pred_region
        %s645 = ssub.s32 %s32, 1
        %p646 = scmp.lt.s32.totalorder %s37, 1
        %s647 = scalar_select %p646, %s37, 1
        %s648 = smul.addr %s647, 170
        %s649 = smul.addr %s648, 8
        %s650 = scalar_lea.vmem %s0, %s649
        %p651 = pneg %p58
        %p652 = pneg %p55
        %p653 = pneg %p79
        %p654 = pneg %p76
        %p655 = pneg %p100
        %p656 = pneg %p97
        %p657 = pneg %p121
        %p658 = pneg %p118
        %p659 = pneg %p142
        %p660 = pneg %p139
        %p661 = pneg %p163
        %p662 = pneg %p160
        %p663 = pneg %p184
        %p664 = pneg %p181
        %p665 = pneg %p205
        %p666 = pneg %p202
        %p667 = pneg %p226
        %p668 = pneg %p223
        %p669 = pneg %p247
        %p670 = pneg %p244
        %p671 = pneg %p268
        %p672 = pneg %p265
        %p673 = pneg %p289
        %p674 = pneg %p286
        %p675 = pneg %p310
        %p676 = pneg %p307
        %p677 = pneg %p331
        %p678 = pneg %p328
        %p679 = pneg %p352
        %p680 = pneg %p349
        %p681 = pneg %p373
        %p682 = pneg %p370
        %p683 = pneg %p394
        %p684 = pneg %p391
        %p685 = pneg %p415
        %p686 = pneg %p412
        %p687 = pneg %p436
        %p688 = pneg %p433
        %p689 = pneg %p457
        %p690 = pneg %p454
        %p691 = pneg %p478
        %p692 = pneg %p475
        %p693 = pneg %p499
        %p694 = pneg %p496
        %p695 = pneg %p520
        %p696 = pneg %p517
        %p697 = pneg %p546
        %p698 = pneg %p543
        %s699 = sand.u32 %s533, 1
        %s700 = scalar_lea.sflag [#allocation10], %s699
        %s701 = sand.u32 %s533, 1
        %s702 = scalar_lea.vmem [#allocation9], %s701
        %p703 = scmp.lt.s32.totalorder %s37, 1
        %s704 = scalar_select %p703, %s37, 1
        %s705 = smul.addr %s704, 170
        %s706 = smul.addr %s705, 8
        %s707 = scalar_lea.vmem %s0, %s706
        %709 = vst [vmem:[#allocation2] sm:$0xff] 0.0
        %710 = vst [vmem:[#allocation2 + $0x8] sm:$0xff] 0.0
        %711 = vst [vmem:[#allocation2 + $0x10] sm:$0xff] 0.0
        %712 = vst [vmem:[#allocation2 + $0x18] sm:$0xff] 0.0
        %713 = vst [vmem:[#allocation2 + $0x20] sm:$0x3] 0.0
        %714 = vst [vmem:[#allocation2 + $0x28] sm:$0xff] 0.0
        %715 = vst [vmem:[#allocation2 + $0x30] sm:$0xff] 0.0
        %716 = vst [vmem:[#allocation2 + $0x38] sm:$0xff] 0.0
        %717 = vst [vmem:[#allocation2 + $0x40] sm:$0xff] 0.0
        %718 = vst [vmem:[#allocation2 + $0x48] sm:$0x3] 0.0
        %719 = vst [vmem:[#allocation2 + $0x50] sm:$0xff] 0.0
        %720 = vst [vmem:[#allocation2 + $0x58] sm:$0xff] 0.0
        %721 = vst [vmem:[#allocation2 + $0x60] sm:$0xff] 0.0
        %722 = vst [vmem:[#allocation2 + $0x68] sm:$0xff] 0.0
        %723 = vst [vmem:[#allocation2 + $0x70] sm:$0x3] 0.0
        %724 = vst [vmem:[#allocation2 + $0x78] sm:$0xff] 0.0
        %725 = vst [vmem:[#allocation2 + $0x80] sm:$0xff] 0.0
        %726 = vst [vmem:[#allocation2 + $0x88] sm:$0xff] 0.0
        %727 = vst [vmem:[#allocation2 + $0x90] sm:$0xff] 0.0
        %728 = vst [vmem:[#allocation2 + $0x98] sm:$0x3] 0.0
        %729 = vst [vmem:[#allocation2 + $0xa0] sm:$0xff] 0.0
        %730 = vst [vmem:[#allocation2 + $0xa8] sm:$0xff] 0.0
        %731 = vst [vmem:[#allocation2 + $0xb0] sm:$0xff] 0.0
        %732 = vst [vmem:[#allocation2 + $0xb8] sm:$0xff] 0.0
        %733 = vst [vmem:[#allocation2 + $0xc0] sm:$0x3] 0.0
        %734 = vst [vmem:[#allocation2 + $0xc8] sm:$0xff] 0.0
        %735 = vst [vmem:[#allocation2 + $0xd0] sm:$0xff] 0.0
        %736 = vst [vmem:[#allocation2 + $0xd8] sm:$0xff] 0.0
        %737 = vst [vmem:[#allocation2 + $0xe0] sm:$0xff] 0.0
        %738 = vst [vmem:[#allocation2 + $0xe8] sm:$0x3] 0.0
        %739 = vst [vmem:[#allocation2 + $0xf0] sm:$0xff] 0.0
        %740 = vst [vmem:[#allocation2 + $0xf8] sm:$0xff] 0.0
        %741 = vst [vmem:[#allocation2 + $0x100] sm:$0xff] 0.0
        %742 = vst [vmem:[#allocation2 + $0x108] sm:$0xff] 0.0
        %743 = vst [vmem:[#allocation2 + $0x110] sm:$0x3] 0.0
        %744 = vst [vmem:[#allocation2 + $0x118] sm:$0xff] 0.0
        %745 = vst [vmem:[#allocation2 + $0x120] sm:$0xff] 0.0
        %746 = vst [vmem:[#allocation2 + $0x128] sm:$0xff] 0.0
        %747 = vst [vmem:[#allocation2 + $0x130] sm:$0xff] 0.0
        %748 = vst [vmem:[#allocation2 + $0x138] sm:$0x3] 0.0
        %749 = vst [vmem:[#allocation2 + $0x140] sm:$0xff] 0.0
        %750 = vst [vmem:[#allocation2 + $0x148] sm:$0xff] 0.0
        %751 = vst [vmem:[#allocation2 + $0x150] sm:$0xff] 0.0
        %752 = vst [vmem:[#allocation2 + $0x158] sm:$0xff] 0.0
        %753 = vst [vmem:[#allocation2 + $0x160] sm:$0x3] 0.0
        %754 = vst [vmem:[#allocation2 + $0x168] sm:$0xff] 0.0
        %755 = vst [vmem:[#allocation2 + $0x170] sm:$0xff] 0.0
        %756 = vst [vmem:[#allocation2 + $0x178] sm:$0xff] 0.0
        %757 = vst [vmem:[#allocation2 + $0x180] sm:$0xff] 0.0
        %758 = vst [vmem:[#allocation2 + $0x188] sm:$0x3] 0.0
        %759 = vst [vmem:[#allocation2 + $0x190] sm:$0xff] 0.0
        %760 = vst [vmem:[#allocation2 + $0x198] sm:$0xff] 0.0
        %761 = vst [vmem:[#allocation2 + $0x1a0] sm:$0xff] 0.0
        %762 = vst [vmem:[#allocation2 + $0x1a8] sm:$0xff] 0.0
        %763 = vst [vmem:[#allocation2 + $0x1b0] sm:$0x3] 0.0
        %764 = vst [vmem:[#allocation2 + $0x1b8] sm:$0xff] 0.0
        %765 = vst [vmem:[#allocation2 + $0x1c0] sm:$0xff] 0.0
        %766 = vst [vmem:[#allocation2 + $0x1c8] sm:$0xff] 0.0
        %767 = vst [vmem:[#allocation2 + $0x1d0] sm:$0xff] 0.0
        %768 = vst [vmem:[#allocation2 + $0x1d8] sm:$0x3] 0.0
        %769 = vst [vmem:[#allocation2 + $0x1e0] sm:$0xff] 0.0
        %770 = vst [vmem:[#allocation2 + $0x1e8] sm:$0xff] 0.0
        %771 = vst [vmem:[#allocation2 + $0x1f0] sm:$0xff] 0.0
        %772 = vst [vmem:[#allocation2 + $0x1f8] sm:$0xff] 0.0
        %773 = vst [vmem:[#allocation2 + $0x200] sm:$0x3] 0.0
        %774 = vst [vmem:[#allocation2 + $0x208] sm:$0xff] 0.0
        %775 = vst [vmem:[#allocation2 + $0x210] sm:$0xff] 0.0
        %776 = vst [vmem:[#allocation2 + $0x218] sm:$0xff] 0.0
        %777 = vst [vmem:[#allocation2 + $0x220] sm:$0xff] 0.0
        %778 = vst [vmem:[#allocation2 + $0x228] sm:$0x3] 0.0
        %779 = vst [vmem:[#allocation2 + $0x230] sm:$0xff] 0.0
        %780 = vst [vmem:[#allocation2 + $0x238] sm:$0xff] 0.0
        %781 = vst [vmem:[#allocation2 + $0x240] sm:$0xff] 0.0
        %782 = vst [vmem:[#allocation2 + $0x248] sm:$0xff] 0.0
        %783 = vst [vmem:[#allocation2 + $0x250] sm:$0x3] 0.0
        %784 = vst [vmem:[#allocation2 + $0x258] sm:$0xff] 0.0
        %785 = vst [vmem:[#allocation2 + $0x260] sm:$0xff] 0.0
        %786 = vst [vmem:[#allocation2 + $0x268] sm:$0xff] 0.0
        %787 = vst [vmem:[#allocation2 + $0x270] sm:$0xff] 0.0
        %788 = vst [vmem:[#allocation2 + $0x278] sm:$0x3] 0.0
        %789 = vst [vmem:[#allocation2 + $0x280] sm:$0xff] 0.0
        %790 = vst [vmem:[#allocation2 + $0x288] sm:$0xff] 0.0
        %791 = vst [vmem:[#allocation2 + $0x290] sm:$0xff] 0.0
        %792 = vst [vmem:[#allocation2 + $0x298] sm:$0xff] 0.0
        %793 = vst [vmem:[#allocation2 + $0x2a0] sm:$0x3] 0.0
        %794 = vst [vmem:[#allocation2 + $0x2a8] sm:$0xff] 0.0
        %795 = vst [vmem:[#allocation2 + $0x2b0] sm:$0xff] 0.0
        %796 = vst [vmem:[#allocation2 + $0x2b8] sm:$0xff] 0.0
        %797 = vst [vmem:[#allocation2 + $0x2c0] sm:$0xff] 0.0
        %798 = vst [vmem:[#allocation2 + $0x2c8] sm:$0x3] 0.0
        %799 = vst [vmem:[#allocation2 + $0x2d0] sm:$0xff] 0.0
        %800 = vst [vmem:[#allocation2 + $0x2d8] sm:$0xff] 0.0
        %801 = vst [vmem:[#allocation2 + $0x2e0] sm:$0xff] 0.0
        %802 = vst [vmem:[#allocation2 + $0x2e8] sm:$0xff] 0.0
        %803 = vst [vmem:[#allocation2 + $0x2f0] sm:$0x3] 0.0
        %804 = vst [vmem:[#allocation2 + $0x2f8] sm:$0xff] 0.0
        %805 = vst [vmem:[#allocation2 + $0x300] sm:$0xff] 0.0
        %806 = vst [vmem:[#allocation2 + $0x308] sm:$0xff] 0.0
        %807 = vst [vmem:[#allocation2 + $0x310] sm:$0xff] 0.0
        %808 = vst [vmem:[#allocation2 + $0x318] sm:$0x3] 0.0
        %809 = vst [vmem:[#allocation2 + $0x320] sm:$0xff] 0.0
        %810 = vst [vmem:[#allocation2 + $0x328] sm:$0xff] 0.0
        %811 = vst [vmem:[#allocation2 + $0x330] sm:$0xff] 0.0
        %812 = vst [vmem:[#allocation2 + $0x338] sm:$0xff] 0.0
        %813 = vst [vmem:[#allocation2 + $0x340] sm:$0x3] 0.0
        %814 = vst [vmem:[#allocation2 + $0x348] sm:$0xff] 0.0
        %815 = vst [vmem:[#allocation2 + $0x350] sm:$0xff] 0.0
        %816 = vst [vmem:[#allocation2 + $0x358] sm:$0xff] 0.0
        %817 = vst [vmem:[#allocation2 + $0x360] sm:$0xff] 0.0
        %818 = vst [vmem:[#allocation2 + $0x368] sm:$0x3] 0.0
        %819 = vst [vmem:[#allocation2 + $0x370] sm:$0xff] 0.0
        %820 = vst [vmem:[#allocation2 + $0x378] sm:$0xff] 0.0
        %821 = vst [vmem:[#allocation2 + $0x380] sm:$0xff] 0.0
        %822 = vst [vmem:[#allocation2 + $0x388] sm:$0xff] 0.0
        %823 = vst [vmem:[#allocation2 + $0x390] sm:$0x3] 0.0
        %824 = vst [vmem:[#allocation2 + $0x398] sm:$0xff] 0.0
        %825 = vst [vmem:[#allocation2 + $0x3a0] sm:$0xff] 0.0
        %826 = vst [vmem:[#allocation2 + $0x3a8] sm:$0xff] 0.0
        %827 = vst [vmem:[#allocation2 + $0x3b0] sm:$0xff] 0.0
        %828 = vst [vmem:[#allocation2 + $0x3b8] sm:$0x3] 0.0
        %829 = vst [vmem:[#allocation2 + $0x3c0] sm:$0xff] 0.0
        %830 = vst [vmem:[#allocation2 + $0x3c8] sm:$0xff] 0.0
        %831 = vst [vmem:[#allocation2 + $0x3d0] sm:$0xff] 0.0
        %832 = vst [vmem:[#allocation2 + $0x3d8] sm:$0xff] 0.0
        %833 = vst [vmem:[#allocation2 + $0x3e0] sm:$0x3] 0.0
        %834 = vst [vmem:[#allocation2 + $0x3e8] sm:$0xff] 0.0
        %835 = vst [vmem:[#allocation2 + $0x3f0] sm:$0xff] 0.0
        %836 = vst [vmem:[#allocation2 + $0x3f8] sm:$0xff] 0.0
        %837 = vst [vmem:[#allocation2 + $0x400] sm:$0xff] 0.0
        %838 = vst [vmem:[#allocation2 + $0x408] sm:$0x3] 0.0
        %839 = vst [vmem:[#allocation2 + $0x410] sm:$0xff] 0.0
        %840 = vst [vmem:[#allocation2 + $0x418] sm:$0xff] 0.0
        %841 = vst [vmem:[#allocation2 + $0x420] sm:$0xff] 0.0
        %842 = vst [vmem:[#allocation2 + $0x428] sm:$0xff] 0.0
        %843 = vst [vmem:[#allocation2 + $0x430] sm:$0x3] 0.0
        %844 = vst [vmem:[#allocation2 + $0x438] sm:$0xff] 0.0
        %845 = vst [vmem:[#allocation2 + $0x440] sm:$0xff] 0.0
        %846 = vst [vmem:[#allocation2 + $0x448] sm:$0xff] 0.0
        %847 = vst [vmem:[#allocation2 + $0x450] sm:$0xff] 0.0
        %848 = vst [vmem:[#allocation2 + $0x458] sm:$0x3] 0.0
        %849 = vst [vmem:[#allocation2 + $0x460] sm:$0xff] 0.0
        %850 = vst [vmem:[#allocation2 + $0x468] sm:$0xff] 0.0
        %851 = vst [vmem:[#allocation2 + $0x470] sm:$0xff] 0.0
        %852 = vst [vmem:[#allocation2 + $0x478] sm:$0xff] 0.0
        %853 = vst [vmem:[#allocation2 + $0x480] sm:$0x3] 0.0
        %854 = vst [vmem:[#allocation2 + $0x488] sm:$0xff] 0.0
        %855 = vst [vmem:[#allocation2 + $0x490] sm:$0xff] 0.0
        %856 = vst [vmem:[#allocation2 + $0x498] sm:$0xff] 0.0
        %857 = vst [vmem:[#allocation2 + $0x4a0] sm:$0xff] 0.0
        %858 = vst [vmem:[#allocation2 + $0x4a8] sm:$0x3] 0.0
        %859 = vst [vmem:[#allocation2 + $0x4b0] sm:$0xff] 0.0
        %860 = vst [vmem:[#allocation2 + $0x4b8] sm:$0xff] 0.0
        %861 = vst [vmem:[#allocation2 + $0x4c0] sm:$0xff] 0.0
        %862 = vst [vmem:[#allocation2 + $0x4c8] sm:$0xff] 0.0
        %863 = vst [vmem:[#allocation2 + $0x4d0] sm:$0x3] 0.0
        %864 = vst [vmem:[#allocation2 + $0x4d8] sm:$0xff] 0.0
        %865 = vst [vmem:[#allocation2 + $0x4e0] sm:$0xff] 0.0
        %866 = vst [vmem:[#allocation2 + $0x4e8] sm:$0xff] 0.0
        %867 = vst [vmem:[#allocation2 + $0x4f0] sm:$0xff] 0.0
        %868 = vst [vmem:[#allocation2 + $0x4f8] sm:$0x3] 0.0
        %869 = vst [vmem:[#allocation2 + $0x500] sm:$0xff] 0.0
        %870 = vst [vmem:[#allocation2 + $0x508] sm:$0xff] 0.0
        %871 = vst [vmem:[#allocation2 + $0x510] sm:$0xff] 0.0
        %872 = vst [vmem:[#allocation2 + $0x518] sm:$0xff] 0.0
        %873 = vst [vmem:[#allocation2 + $0x520] sm:$0x3] 0.0
        %874 = vst [vmem:[#allocation2 + $0x528] sm:$0xff] 0.0
        %875 = vst [vmem:[#allocation2 + $0x530] sm:$0xff] 0.0
        %876 = vst [vmem:[#allocation2 + $0x538] sm:$0xff] 0.0
        %877 = vst [vmem:[#allocation2 + $0x540] sm:$0xff] 0.0
        %878 = vst [vmem:[#allocation2 + $0x548] sm:$0x3] 0.0
        %879 = vst [vmem:[#allocation3] sm:$0xff] 0.0
        %880 = vst [vmem:[#allocation3 + $0x8] sm:$0xff] 0.0
        %881 = vst [vmem:[#allocation3 + $0x10] sm:$0x3] 0.0
        %882 = vst [vmem:[#allocation3 + $0x18] sm:$0xff] 0.0
        %883 = vst [vmem:[#allocation3 + $0x20] sm:$0xff] 0.0
        %884 = vst [vmem:[#allocation3 + $0x28] sm:$0x3] 0.0
        %885 = vst [vmem:[#allocation3 + $0x30] sm:$0xff] 0.0
        %886 = vst [vmem:[#allocation3 + $0x38] sm:$0xff] 0.0
        %887 = vst [vmem:[#allocation3 + $0x40] sm:$0x3] 0.0
        %888 = vst [vmem:[#allocation3 + $0x48] sm:$0xff] 0.0
        %889 = vst [vmem:[#allocation3 + $0x50] sm:$0xff] 0.0
        %890 = vst [vmem:[#allocation3 + $0x58] sm:$0x3] 0.0
        %891 = vst [vmem:[#allocation3 + $0x60] sm:$0xff] 0.0
        %892 = vst [vmem:[#allocation3 + $0x68] sm:$0xff] 0.0
        %893 = vst [vmem:[#allocation3 + $0x70] sm:$0x3] 0.0
        %894 = vst [vmem:[#allocation3 + $0x78] sm:$0xff] 0.0
        %895 = vst [vmem:[#allocation3 + $0x80] sm:$0xff] 0.0
        %896 = vst [vmem:[#allocation3 + $0x88] sm:$0x3] 0.0
        %897 = vst [vmem:[#allocation3 + $0x90] sm:$0xff] 0.0
        %898 = vst [vmem:[#allocation3 + $0x98] sm:$0xff] 0.0
        %899 = vst [vmem:[#allocation3 + $0xa0] sm:$0x3] 0.0
        %900 = vst [vmem:[#allocation3 + $0xa8] sm:$0xff] 0.0
        %901 = vst [vmem:[#allocation3 + $0xb0] sm:$0xff] 0.0
        %902 = vst [vmem:[#allocation3 + $0xb8] sm:$0x3] 0.0
        %903 = vst [vmem:[#allocation3 + $0xc0] sm:$0xff] 0.0
        %904 = vst [vmem:[#allocation3 + $0xc8] sm:$0xff] 0.0
        %905 = vst [vmem:[#allocation3 + $0xd0] sm:$0x3] 0.0
        %906 = vst [vmem:[#allocation3 + $0xd8] sm:$0xff] 0.0
        %907 = vst [vmem:[#allocation3 + $0xe0] sm:$0xff] 0.0
        %908 = vst [vmem:[#allocation3 + $0xe8] sm:$0x3] 0.0
        %909 = vst [vmem:[#allocation3 + $0xf0] sm:$0xff] 0.0
        %910 = vst [vmem:[#allocation3 + $0xf8] sm:$0xff] 0.0
        %911 = vst [vmem:[#allocation3 + $0x100] sm:$0x3] 0.0
        %912 = vst [vmem:[#allocation3 + $0x108] sm:$0xff] 0.0
        %913 = vst [vmem:[#allocation3 + $0x110] sm:$0xff] 0.0
        %914 = vst [vmem:[#allocation3 + $0x118] sm:$0x3] 0.0
        %915 = vst [vmem:[#allocation3 + $0x120] sm:$0xff] 0.0
        %916 = vst [vmem:[#allocation3 + $0x128] sm:$0xff] 0.0
        %917 = vst [vmem:[#allocation3 + $0x130] sm:$0x3] 0.0
        %918 = vst [vmem:[#allocation3 + $0x138] sm:$0xff] 0.0
        %919 = vst [vmem:[#allocation3 + $0x140] sm:$0xff] 0.0
        %920 = vst [vmem:[#allocation3 + $0x148] sm:$0x3] 0.0
        %921 = vst [vmem:[#allocation3 + $0x150] sm:$0xff] 0.0
        %922 = vst [vmem:[#allocation3 + $0x158] sm:$0xff] 0.0
        %923 = vst [vmem:[#allocation3 + $0x160] sm:$0x3] 0.0
        %924 = vst [vmem:[#allocation3 + $0x168] sm:$0xff] 0.0
        %925 = vst [vmem:[#allocation3 + $0x170] sm:$0xff] 0.0
        %926 = vst [vmem:[#allocation3 + $0x178] sm:$0x3] 0.0
        %927 = vst [vmem:[#allocation3 + $0x180] sm:$0xff] 0.0
        %928 = vst [vmem:[#allocation3 + $0x188] sm:$0xff] 0.0
        %929 = vst [vmem:[#allocation3 + $0x190] sm:$0x3] 0.0
        %930 = vst [vmem:[#allocation3 + $0x198] sm:$0xff] 0.0
        %931 = vst [vmem:[#allocation3 + $0x1a0] sm:$0xff] 0.0
        %932 = vst [vmem:[#allocation3 + $0x1a8] sm:$0x3] 0.0
        %933 = vst [vmem:[#allocation4] sm:$0xff] 0.0
        %934 = vst [vmem:[#allocation4 + $0x8] sm:$0xff] 0.0
        %935 = vst [vmem:[#allocation4 + $0x10] sm:$0x3] 0.0
        %936 = vst [vmem:[#allocation4 + $0x18] sm:$0xff] 0.0
        %937 = vst [vmem:[#allocation4 + $0x20] sm:$0xff] 0.0
        %938 = vst [vmem:[#allocation4 + $0x28] sm:$0x3] 0.0
        %939 = vst [vmem:[#allocation4 + $0x30] sm:$0xff] 0.0
        %940 = vst [vmem:[#allocation4 + $0x38] sm:$0xff] 0.0
        %941 = vst [vmem:[#allocation4 + $0x40] sm:$0x3] 0.0
        %942 = vst [vmem:[#allocation4 + $0x48] sm:$0xff] 0.0
        %943 = vst [vmem:[#allocation4 + $0x50] sm:$0xff] 0.0
        %944 = vst [vmem:[#allocation4 + $0x58] sm:$0x3] 0.0
        %945 = vst [vmem:[#allocation4 + $0x60] sm:$0xff] 0.0
        %946 = vst [vmem:[#allocation4 + $0x68] sm:$0xff] 0.0
        %947 = vst [vmem:[#allocation4 + $0x70] sm:$0x3] 0.0
        %948 = vst [vmem:[#allocation4 + $0x78] sm:$0xff] 0.0
        %949 = vst [vmem:[#allocation4 + $0x80] sm:$0xff] 0.0
        %950 = vst [vmem:[#allocation4 + $0x88] sm:$0x3] 0.0
        %951 = vst [vmem:[#allocation4 + $0x90] sm:$0xff] 0.0
        %952 = vst [vmem:[#allocation4 + $0x98] sm:$0xff] 0.0
        %953 = vst [vmem:[#allocation4 + $0xa0] sm:$0x3] 0.0
        %954 = vst [vmem:[#allocation4 + $0xa8] sm:$0xff] 0.0
        %955 = vst [vmem:[#allocation4 + $0xb0] sm:$0xff] 0.0
        %956 = vst [vmem:[#allocation4 + $0xb8] sm:$0x3] 0.0
        %957 = vst [vmem:[#allocation4 + $0xc0] sm:$0xff] 0.0
        %958 = vst [vmem:[#allocation4 + $0xc8] sm:$0xff] 0.0
        %959 = vst [vmem:[#allocation4 + $0xd0] sm:$0x3] 0.0
        %960 = vst [vmem:[#allocation4 + $0xd8] sm:$0xff] 0.0
        %961 = vst [vmem:[#allocation4 + $0xe0] sm:$0xff] 0.0
        %962 = vst [vmem:[#allocation4 + $0xe8] sm:$0x3] 0.0
        %963 = vst [vmem:[#allocation4 + $0xf0] sm:$0xff] 0.0
        %964 = vst [vmem:[#allocation4 + $0xf8] sm:$0xff] 0.0
        %965 = vst [vmem:[#allocation4 + $0x100] sm:$0x3] 0.0
        %966 = vst [vmem:[#allocation4 + $0x108] sm:$0xff] 0.0
        %967 = vst [vmem:[#allocation4 + $0x110] sm:$0xff] 0.0
        %968 = vst [vmem:[#allocation4 + $0x118] sm:$0x3] 0.0
        %969 = vst [vmem:[#allocation4 + $0x120] sm:$0xff] 0.0
        %970 = vst [vmem:[#allocation4 + $0x128] sm:$0xff] 0.0
        %971 = vst [vmem:[#allocation4 + $0x130] sm:$0x3] 0.0
        %972 = vst [vmem:[#allocation4 + $0x138] sm:$0xff] 0.0
        %973 = vst [vmem:[#allocation4 + $0x140] sm:$0xff] 0.0
        %974 = vst [vmem:[#allocation4 + $0x148] sm:$0x3] 0.0
        %975 = vst [vmem:[#allocation4 + $0x150] sm:$0xff] 0.0
        %976 = vst [vmem:[#allocation4 + $0x158] sm:$0xff] 0.0
        %977 = vst [vmem:[#allocation4 + $0x160] sm:$0x3] 0.0
        %978 = vst [vmem:[#allocation4 + $0x168] sm:$0xff] 0.0
        %979 = vst [vmem:[#allocation4 + $0x170] sm:$0xff] 0.0
        %980 = vst [vmem:[#allocation4 + $0x178] sm:$0x3] 0.0
        %981 = vst [vmem:[#allocation4 + $0x180] sm:$0xff] 0.0
        %982 = vst [vmem:[#allocation4 + $0x188] sm:$0xff] 0.0
        %983 = vst [vmem:[#allocation4 + $0x190] sm:$0x3] 0.0
        %984 = vst [vmem:[#allocation4 + $0x198] sm:$0xff] 0.0
        %985 = vst [vmem:[#allocation4 + $0x1a0] sm:$0xff] 0.0
        %986 = vst [vmem:[#allocation4 + $0x1a8] sm:$0x3] 0.0
        %987 = vst [vmem:[#allocation5] sm:$0xff] 0.0
        %988 = vst [vmem:[#allocation5 + $0x8] sm:$0x3] 0.0
        %989 = vst [vmem:[#allocation5 + $0x10] sm:$0xff] 0.0
        %990 = vst [vmem:[#allocation5 + $0x18] sm:$0x3] 0.0
        %991 = vst [vmem:[#allocation5 + $0x20] sm:$0xff] 0.0
        %992 = vst [vmem:[#allocation5 + $0x28] sm:$0x3] 0.0
        %993 = vst [vmem:[#allocation5 + $0x30] sm:$0xff] 0.0
        %994 = vst [vmem:[#allocation5 + $0x38] sm:$0x3] 0.0
        %995 = vst [vmem:[#allocation5 + $0x40] sm:$0xff] 0.0
        %996 = vst [vmem:[#allocation5 + $0x48] sm:$0x3] 0.0
        %997 = vst [vmem:[#allocation5 + $0x50] sm:$0xff] 0.0
        %998 = vst [vmem:[#allocation5 + $0x58] sm:$0x3] 0.0
        %999 = vst [vmem:[#allocation5 + $0x60] sm:$0xff] 0.0
        %1000 = vst [vmem:[#allocation5 + $0x68] sm:$0x3] 0.0
        %1001 = vst [vmem:[#allocation5 + $0x70] sm:$0xff] 0.0
        %1002 = vst [vmem:[#allocation5 + $0x78] sm:$0x3] 0.0
        %1003 = vst [vmem:[#allocation5 + $0x80] sm:$0xff] 0.0
        %1004 = vst [vmem:[#allocation5 + $0x88] sm:$0x3] 0.0
        %1005 = vst [vmem:[#allocation5 + $0x90] sm:$0xff] 0.0
        %1006 = vst [vmem:[#allocation5 + $0x98] sm:$0x3] 0.0
        %1007 = vst [vmem:[#allocation6] sm:$0xff] 0.0
        %1008 = vst [vmem:[#allocation6 + $0x8] sm:$0x3] 0.0
        %1009 = vst [vmem:[#allocation6 + $0x10] sm:$0xff] 0.0
        %1010 = vst [vmem:[#allocation6 + $0x18] sm:$0x3] 0.0
        %1011 = vst [vmem:[#allocation6 + $0x20] sm:$0xff] 0.0
        %1012 = vst [vmem:[#allocation6 + $0x28] sm:$0x3] 0.0
        %1013 = vst [vmem:[#allocation6 + $0x30] sm:$0xff] 0.0
        %1014 = vst [vmem:[#allocation6 + $0x38] sm:$0x3] 0.0
        %1015 = vst [vmem:[#allocation6 + $0x40] sm:$0xff] 0.0
        %1016 = vst [vmem:[#allocation6 + $0x48] sm:$0x3] 0.0
        %1017 = vst [vmem:[#allocation6 + $0x50] sm:$0xff] 0.0
        %1018 = vst [vmem:[#allocation6 + $0x58] sm:$0x3] 0.0
        %1019 = vst [vmem:[#allocation6 + $0x60] sm:$0xff] 0.0
        %1020 = vst [vmem:[#allocation6 + $0x68] sm:$0x3] 0.0
        %1021 = vst [vmem:[#allocation6 + $0x70] sm:$0xff] 0.0
        %1022 = vst [vmem:[#allocation6 + $0x78] sm:$0x3] 0.0
        %1023 = vst [vmem:[#allocation6 + $0x80] sm:$0xff] 0.0
        %1024 = vst [vmem:[#allocation6 + $0x88] sm:$0x3] 0.0
        %1025 = vst [vmem:[#allocation6 + $0x90] sm:$0xff] 0.0
        %1026 = vst [vmem:[#allocation6 + $0x98] sm:$0x3] 0.0
        %1027 = vst [vmem:[#allocation7] sm:$0x3f] 0.0
        %1028 = vst [vmem:[#allocation7 + $0x8] sm:$0x3f] 0.0
        %1029 = vst [vmem:[#allocation7 + $0x10] sm:$0x3f] 0.0
        %1030 = vst [vmem:[#allocation7 + $0x18] sm:$0x3f] 0.0
        %1031 = vst [vmem:[#allocation7 + $0x20] sm:$0x3f] 0.0
        %1032 = vst [vmem:[#allocation7 + $0x28] sm:$0x3f] 0.0
        %1033 = vst [vmem:[#allocation8] sm:$0x3f] 0.0
        %1034 = vst [vmem:[#allocation8 + $0x8] sm:$0x3f] 0.0
        %1035 = vst [vmem:[#allocation8 + $0x10] sm:$0x3f] 0.0
        %1036 = vst [vmem:[#allocation8 + $0x18] sm:$0x3f] 0.0
        %1037 = vst [vmem:[#allocation8 + $0x20] sm:$0x3f] 0.0
        %1038 = vst [vmem:[#allocation8 + $0x28] sm:$0x3f] 0.0
        %v1039 = vld [vmem:[%s2] sm:$0x1]
        loop: start=0, step=1, limit=32
        $region113: #{model_forward.1} parent=111 // loop_pre_header
          _
        $region114: #{model_forward.1} parent=111 // loop_header
          %s1041 = sphi 0, %s1045
          %p1042 = scmp.ge.s32.totalorder %s1041, 32
        $region115: #{model_forward.1} parent=111 // loop_header_branch
          %1044 = sbr.rel (%p1042) target = $region119
        $region116: #{model_forward.1} parent=111 // loop_body
          %s1046 = smul.u32 %s1041, 40
          %s1047 = scalar_lea.vmem %s707, %s1046
          %v1048 = vld [vmem:[%s1047] sm:$0xff]
          %v1049 = vld [vmem:[%s1047 + $0x8] sm:$0xff]
          %v1050 = vld [vmem:[%s1047 + $0x10] sm:$0xff]
          %v1051 = vld [vmem:[%s1047 + $0x18] sm:$0xff]
          %v1052 = vpack.c.bf16 %v1049, %v1048
          %v1053 = vpack.c.bf16 %v1051, %v1050
          %v1054 = vld [vmem:[%s1] sm:$0xf]
          %v1055 = vld [vmem:[%s1 + $0x4] sm:$0xf]
          %v1056 = vld [vmem:[%s1 + $0x8] sm:$0xf]
          %v1057 = vld [vmem:[%s1 + $0xc] sm:$0xf]
          %v1058 = vld [vmem:[%s1 + $0x10] sm:$0xf]
          %v1059 = vld [vmem:[%s1 + $0x14] sm:$0xf]
          %v1060 = vld [vmem:[%s1 + $0x18] sm:$0xf]
          %v1061 = vld [vmem:[%s1 + $0x1c] sm:$0xf]
          %v1062 = vld [vmem:[%s1 + $0x20] sm:$0xf]
          %v1063 = vld [vmem:[%s1 + $0x24] sm:$0xf]
          %v1064 = vld [vmem:[%s1 + $0x28] sm:$0xf]
          %v1065 = vld [vmem:[%s1 + $0x2c] sm:$0xf]
          %v1066 = vld [vmem:[%s1 + $0x30] sm:$0xf]
          %v1067 = vld [vmem:[%s1 + $0x34] sm:$0xf]
          %v1068 = vld [vmem:[%s1 + $0x38] sm:$0xf]
          %v1069 = vld [vmem:[%s1 + $0x3c] sm:$0xf]
          %v1070 = vld [vmem:[%s1047 + $0x1] sm:$0xff]
          %v1071 = vld [vmem:[%s1047 + $0x9] sm:$0xff]
          %v1072 = vld [vmem:[%s1047 + $0x11] sm:$0xff]
          %v1073 = vld [vmem:[%s1047 + $0x19] sm:$0xff]
          %v1074 = vpack.c.bf16 %v1071, %v1070
          %v1075 = vpack.c.bf16 %v1073, %v1072
          %s1076 = scalar_lea.vmem %s1, 64
          %v1077 = vld [vmem:[%s1076] sm:$0xf]
          %v1078 = vld [vmem:[%s1076 + $0x4] sm:$0xf]
          %v1079 = vld [vmem:[%s1076 + $0x8] sm:$0xf]
          %v1080 = vld [vmem:[%s1076 + $0xc] sm:$0xf]
          %v1081 = vld [vmem:[%s1076 + $0x10] sm:$0xf]
          %v1082 = vld [vmem:[%s1076 + $0x14] sm:$0xf]
          %v1083 = vld [vmem:[%s1076 + $0x18] sm:$0xf]
          %v1084 = vld [vmem:[%s1076 + $0x1c] sm:$0xf]
          %v1085 = vld [vmem:[%s1076 + $0x20] sm:$0xf]
          %v1086 = vld [vmem:[%s1076 + $0x24] sm:$0xf]
          %v1087 = vld [vmem:[%s1076 + $0x28] sm:$0xf]
          %v1088 = vld [vmem:[%s1076 + $0x2c] sm:$0xf]
          %v1089 = vld [vmem:[%s1076 + $0x30] sm:$0xf]
          %v1090 = vld [vmem:[%s1076 + $0x34] sm:$0xf]
          %v1091 = vld [vmem:[%s1076 + $0x38] sm:$0xf]
          %v1092 = vld [vmem:[%s1076 + $0x3c] sm:$0xf]
          %v1109 = vunpack.c.l.b16 %v1077
          %v1110 = vunpack.c.l.b16 %v1078
          %v1111 = vunpack.c.l.b16 %v1079
          %v1112 = vunpack.c.l.b16 %v1080
          %v1113 = vunpack.c.l.b16 %v1081
          %v1114 = vunpack.c.l.b16 %v1082
          %v1115 = vunpack.c.l.b16 %v1083
          %v1116 = vunpack.c.l.b16 %v1084
          %v1117 = vunpack.c.l.b16 %v1085
          %v1118 = vunpack.c.l.b16 %v1086
          %v1119 = vunpack.c.l.b16 %v1087
          %v1120 = vunpack.c.l.b16 %v1088
          %v1121 = vunpack.c.l.b16 %v1089
          %v1122 = vunpack.c.l.b16 %v1090
          %v1123 = vunpack.c.l.b16 %v1091
          %v1124 = vunpack.c.l.b16 %v1092
          %v1125 = vpack.c.b16 %v1110, %v1109
          %v1126 = vpack.c.b16 %v1112, %v1111
          %v1127 = vpack.c.b16 %v1114, %v1113
          %v1128 = vpack.c.b16 %v1116, %v1115
          %v1129 = vpack.c.b16 %v1118, %v1117
          %v1130 = vpack.c.b16 %v1120, %v1119
          %v1131 = vpack.c.b16 %v1122, %v1121
          %v1132 = vpack.c.b16 %v1124, %v1123
          %1141 = vmatprep.subr.bf16.mxu0 0
          %1142 = vmatpush1.bf16.msra.mxu0 %v1132
          %1143 = vmatprep.subr.bf16.mxu0 0
          %1144 = vmatpush1.bf16.msra.mxu0 %v1131
          %1145 = vmatprep.subr.bf16.mxu0 0
          %1146 = vmatpush1.bf16.msra.mxu0 %v1130
          %1147 = vmatprep.subr.bf16.mxu0 0
          %1148 = vmatpush1.bf16.msra.mxu0 %v1129
          %1149 = vmatprep.subr.bf16.mxu0 0
          %1150 = vmatpush1.bf16.msra.mxu0 %v1128
          %1151 = vmatprep.subr.bf16.mxu0 0
          %1152 = vmatpush1.bf16.msra.mxu0 %v1127
          %1153 = vmatprep.subr.bf16.mxu0 0
          %1154 = vmatpush1.bf16.msra.mxu0 %v1126
          %1155 = vmatprep.subr.bf16.mxu0 0
          %1156 = vmatpush1.bf16.msra.mxu0 %v1125
          %1157 = vmatprep.subr.bf16.mxu0 0
          %1158 = vmatpush2.bf16.msra.mxu0 0
          %1159 = vmatprep.subr.bf16.mxu0 0
          %1160 = vmatpush2.bf16.msra.mxu0 0
          %1161 = vmatprep.subr.bf16.mxu0 0
          %1162 = vmatpush2.bf16.msra.mxu0 0
          %1163 = vmatprep.subr.bf16.mxu0 0
          %1164 = vmatpush2.bf16.msra.mxu0 0
          %1165 = vmatprep.subr.bf16.mxu0 0
          %1166 = vmatpush2.bf16.msra.mxu0 0
          %1167 = vmatprep.subr.bf16.mxu0 0
          %1168 = vmatpush2.bf16.msra.mxu0 0
          %1169 = vmatprep.subr.bf16.mxu0 0
          %1170 = vmatpush2.bf16.msra.mxu0 0
          %1171 = vmatprep.subr.bf16.mxu0 0
          %1172 = vmatpush2.bf16.msra.mxu0 0
          %1173 = vmatprep.mubr.bf16.mxu0 0
          %1174 = vmatmul.mubr.bf16.gmra.mxu0 %v1074
          %v1175 = vpop.f32.mrf.mxu0
          %v1176 = vadd.f32 0.0, %v1175
          %v1177 = vpop.f32.mrf.mxu0
          %v1178 = vpop.f32.mrf.mxu0
          %v1179 = vadd.f32 0.0, %v1178
          %v1180 = vpop.f32.mrf.mxu0
          %1181 = vmatprep.mubr.bf16.mxu0 0
          %1182 = vmatmul.mubr.bf16.gmra.mxu0 %v1075
          %v1183 = vpop.f32.mrf.mxu0
          %v1184 = vadd.f32 0.0, %v1183
          %v1185 = vpop.f32.mrf.mxu0
          %v1186 = vpop.f32.mrf.mxu0
          %v1187 = vadd.f32 0.0, %v1186
          %v1188 = vpop.f32.mrf.mxu0
          %1189 = vdwg.mxu0
          %v1206 = vunpack.c.l.b16 %v1054
          %v1207 = vunpack.c.l.b16 %v1055
          %v1208 = vunpack.c.l.b16 %v1056
          %v1209 = vunpack.c.l.b16 %v1057
          %v1210 = vunpack.c.l.b16 %v1058
          %v1211 = vunpack.c.l.b16 %v1059
          %v1212 = vunpack.c.l.b16 %v1060
          %v1213 = vunpack.c.l.b16 %v1061
          %v1214 = vunpack.c.l.b16 %v1062
          %v1215 = vunpack.c.l.b16 %v1063
          %v1216 = vunpack.c.l.b16 %v1064
          %v1217 = vunpack.c.l.b16 %v1065
          %v1218 = vunpack.c.l.b16 %v1066
          %v1219 = vunpack.c.l.b16 %v1067
          %v1220 = vunpack.c.l.b16 %v1068
          %v1221 = vunpack.c.l.b16 %v1069
          %v1222 = vpack.c.b16 %v1207, %v1206
          %v1223 = vpack.c.b16 %v1209, %v1208
          %v1224 = vpack.c.b16 %v1211, %v1210
          %v1225 = vpack.c.b16 %v1213, %v1212
          %v1226 = vpack.c.b16 %v1215, %v1214
          %v1227 = vpack.c.b16 %v1217, %v1216
          %v1228 = vpack.c.b16 %v1219, %v1218
          %v1229 = vpack.c.b16 %v1221, %v1220
          %1238 = vmatprep.subr.bf16.mxu0 0
          %1239 = vmatpush1.bf16.msra.mxu0 %v1229
          %1240 = vmatprep.subr.bf16.mxu0 0
          %1241 = vmatpush1.bf16.msra.mxu0 %v1228
          %1242 = vmatprep.subr.bf16.mxu0 0
          %1243 = vmatpush1.bf16.msra.mxu0 %v1227
          %1244 = vmatprep.subr.bf16.mxu0 0
          %1245 = vmatpush1.bf16.msra.mxu0 %v1226
          %1246 = vmatprep.subr.bf16.mxu0 0
          %1247 = vmatpush1.bf16.msra.mxu0 %v1225
          %1248 = vmatprep.subr.bf16.mxu0 0
          %1249 = vmatpush1.bf16.msra.mxu0 %v1224
          %1250 = vmatprep.subr.bf16.mxu0 0
          %1251 = vmatpush1.bf16.msra.mxu0 %v1223
          %1252 = vmatprep.subr.bf16.mxu0 0
          %1253 = vmatpush1.bf16.msra.mxu0 %v1222
          %1254 = vmatprep.subr.bf16.mxu0 0
          %1255 = vmatpush2.bf16.msra.mxu0 0
          %1256 = vmatprep.subr.bf16.mxu0 0
          %1257 = vmatpush2.bf16.msra.mxu0 0
          %1258 = vmatprep.subr.bf16.mxu0 0
          %1259 = vmatpush2.bf16.msra.mxu0 0
          %1260 = vmatprep.subr.bf16.mxu0 0
          %1261 = vmatpush2.bf16.msra.mxu0 0
          %1262 = vmatprep.subr.bf16.mxu0 0
          %1263 = vmatpush2.bf16.msra.mxu0 0
          %1264 = vmatprep.subr.bf16.mxu0 0
          %1265 = vmatpush2.bf16.msra.mxu0 0
          %1266 = vmatprep.subr.bf16.mxu0 0
          %1267 = vmatpush2.bf16.msra.mxu0 0
          %1268 = vmatprep.subr.bf16.mxu0 0
          %1269 = vmatpush2.bf16.msra.mxu0 0
          %1270 = vmatprep.mubr.bf16.mxu0 0
          %1271 = vmatmul.mubr.bf16.gmra.mxu0 %v1052
          %v1272 = vpop.f32.mrf.mxu0
          %v1273 = vadd.f32 %v1176, %v1272
          %v1274 = vpop.f32.mrf.mxu0
          %v1275 = vpop.f32.mrf.mxu0
          %v1276 = vadd.f32 %v1179, %v1275
          %v1277 = vpop.f32.mrf.mxu0
          %1278 = vmatprep.mubr.bf16.mxu0 0
          %1279 = vmatmul.mubr.bf16.gmra.mxu0 %v1053
          %v1280 = vpop.f32.mrf.mxu0
          %v1281 = vadd.f32 %v1184, %v1280
          %v1282 = vpop.f32.mrf.mxu0
          %v1283 = vpop.f32.mrf.mxu0
          %v1284 = vadd.f32 %v1187, %v1283
          %v1285 = vpop.f32.mrf.mxu0
          %1286 = vdwg.mxu0
          %v1287 = vld [vmem:[%s1047 + $0x2] sm:$0xff]
          %v1288 = vld [vmem:[%s1047 + $0xa] sm:$0xff]
          %v1289 = vld [vmem:[%s1047 + $0x12] sm:$0xff]
          %v1290 = vld [vmem:[%s1047 + $0x1a] sm:$0xff]
          %v1291 = vpack.c.bf16 %v1288, %v1287
          %v1292 = vpack.c.bf16 %v1290, %v1289
          %s1293 = scalar_lea.vmem %s1, 128
          %v1294 = vld [vmem:[%s1293] sm:$0xf]
          %v1295 = vld [vmem:[%s1293 + $0x4] sm:$0xf]
          %v1296 = vld [vmem:[%s1293 + $0x8] sm:$0xf]
          %v1297 = vld [vmem:[%s1293 + $0xc] sm:$0xf]
          %v1298 = vld [vmem:[%s1293 + $0x10] sm:$0xf]
          %v1299 = vld [vmem:[%s1293 + $0x14] sm:$0xf]
          %v1300 = vld [vmem:[%s1293 + $0x18] sm:$0xf]
          %v1301 = vld [vmem:[%s1293 + $0x1c] sm:$0xf]
          %v1302 = vld [vmem:[%s1293 + $0x20] sm:$0xf]
          %v1303 = vld [vmem:[%s1293 + $0x24] sm:$0xf]
          %v1304 = vld [vmem:[%s1293 + $0x28] sm:$0xf]
          %v1305 = vld [vmem:[%s1293 + $0x2c] sm:$0xf]
          %v1306 = vld [vmem:[%s1293 + $0x30] sm:$0xf]
          %v1307 = vld [vmem:[%s1293 + $0x34] sm:$0xf]
          %v1308 = vld [vmem:[%s1293 + $0x38] sm:$0xf]
          %v1309 = vld [vmem:[%s1293 + $0x3c] sm:$0xf]
          %v1326 = vunpack.c.l.b16 %v1294
          %v1327 = vunpack.c.l.b16 %v1295
          %v1328 = vunpack.c.l.b16 %v1296
          %v1329 = vunpack.c.l.b16 %v1297
          %v1330 = vunpack.c.l.b16 %v1298
          %v1331 = vunpack.c.l.b16 %v1299
          %v1332 = vunpack.c.l.b16 %v1300
          %v1333 = vunpack.c.l.b16 %v1301
          %v1334 = vunpack.c.l.b16 %v1302
          %v1335 = vunpack.c.l.b16 %v1303
          %v1336 = vunpack.c.l.b16 %v1304
          %v1337 = vunpack.c.l.b16 %v1305
          %v1338 = vunpack.c.l.b16 %v1306
          %v1339 = vunpack.c.l.b16 %v1307
          %v1340 = vunpack.c.l.b16 %v1308
          %v1341 = vunpack.c.l.b16 %v1309
          %v1342 = vpack.c.b16 %v1327, %v1326
          %v1343 = vpack.c.b16 %v1329, %v1328
          %v1344 = vpack.c.b16 %v1331, %v1330
          %v1345 = vpack.c.b16 %v1333, %v1332
          %v1346 = vpack.c.b16 %v1335, %v1334
          %v1347 = vpack.c.b16 %v1337, %v1336
          %v1348 = vpack.c.b16 %v1339, %v1338
          %v1349 = vpack.c.b16 %v1341, %v1340
          %1358 = vmatprep.subr.bf16.mxu0 0
          %1359 = vmatpush1.bf16.msra.mxu0 %v1349
          %1360 = vmatprep.subr.bf16.mxu0 0
          %1361 = vmatpush1.bf16.msra.mxu0 %v1348
          %1362 = vmatprep.subr.bf16.mxu0 0
          %1363 = vmatpush1.bf16.msra.mxu0 %v1347
          %1364 = vmatprep.subr.bf16.mxu0 0
          %1365 = vmatpush1.bf16.msra.mxu0 %v1346
          %1366 = vmatprep.subr.bf16.mxu0 0
          %1367 = vmatpush1.bf16.msra.mxu0 %v1345
          %1368 = vmatprep.subr.bf16.mxu0 0
          %1369 = vmatpush1.bf16.msra.mxu0 %v1344
          %1370 = vmatprep.subr.bf16.mxu0 0
          %1371 = vmatpush1.bf16.msra.mxu0 %v1343
          %1372 = vmatprep.subr.bf16.mxu0 0
          %1373 = vmatpush1.bf16.msra.mxu0 %v1342
          %1374 = vmatprep.subr.bf16.mxu0 0
          %1375 = vmatpush2.bf16.msra.mxu0 0
          %1376 = vmatprep.subr.bf16.mxu0 0
          %1377 = vmatpush2.bf16.msra.mxu0 0
          %1378 = vmatprep.subr.bf16.mxu0 0
          %1379 = vmatpush2.bf16.msra.mxu0 0
          %1380 = vmatprep.subr.bf16.mxu0 0
          %1381 = vmatpush2.bf16.msra.mxu0 0
          %1382 = vmatprep.subr.bf16.mxu0 0
          %1383 = vmatpush2.bf16.msra.mxu0 0
          %1384 = vmatprep.subr.bf16.mxu0 0
          %1385 = vmatpush2.bf16.msra.mxu0 0
          %1386 = vmatprep.subr.bf16.mxu0 0
          %1387 = vmatpush2.bf16.msra.mxu0 0
          %1388 = vmatprep.subr.bf16.mxu0 0
          %1389 = vmatpush2.bf16.msra.mxu0 0
          %1390 = vmatprep.mubr.bf16.mxu0 0
          %1391 = vmatmul.mubr.bf16.gmra.mxu0 %v1291
          %v1392 = vpop.f32.mrf.mxu0
          %v1393 = vadd.f32 0.0, %v1392
          %v1394 = vpop.f32.mrf.mxu0
          %v1395 = vpop.f32.mrf.mxu0
          %v1396 = vadd.f32 0.0, %v1395
          %v1397 = vpop.f32.mrf.mxu0
          %1398 = vmatprep.mubr.bf16.mxu0 0
          %1399 = vmatmul.mubr.bf16.gmra.mxu0 %v1292
          %v1400 = vpop.f32.mrf.mxu0
          %v1401 = vadd.f32 0.0, %v1400
          %v1402 = vpop.f32.mrf.mxu0
          %v1403 = vpop.f32.mrf.mxu0
          %v1404 = vadd.f32 0.0, %v1403
          %v1405 = vpop.f32.mrf.mxu0
          %1406 = vdwg.mxu0
          %v1407 = vadd.f32 %v1273, %v1393
          %v1408 = vadd.f32 %v1276, %v1396
          %v1409 = vadd.f32 %v1281, %v1401
          %v1410 = vadd.f32 %v1284, %v1404
          %s1411 = sadd.s32 %s1041, 1
          %s1412 = smul.u32 %s1411, 40
          %s1413 = scalar_lea.vmem %s707, %s1412
          %v1414 = vld [vmem:[%s1413] sm:$0xff]
          %v1415 = vld [vmem:[%s1413 + $0x8] sm:$0xff]
          %v1416 = vld [vmem:[%s1413 + $0x10] sm:$0xff]
          %v1417 = vld [vmem:[%s1413 + $0x18] sm:$0xff]
          %v1418 = vpack.c.bf16 %v1415, %v1414
          %v1419 = vpack.c.bf16 %v1417, %v1416
          %s1420 = scalar_lea.vmem %s1, 192
          %v1421 = vld [vmem:[%s1420] sm:$0xf]
          %v1422 = vld [vmem:[%s1420 + $0x4] sm:$0xf]
          %v1423 = vld [vmem:[%s1420 + $0x8] sm:$0xf]
          %v1424 = vld [vmem:[%s1420 + $0xc] sm:$0xf]
          %v1425 = vld [vmem:[%s1420 + $0x10] sm:$0xf]
          %v1426 = vld [vmem:[%s1420 + $0x14] sm:$0xf]
          %v1427 = vld [vmem:[%s1420 + $0x18] sm:$0xf]
          %v1428 = vld [vmem:[%s1420 + $0x1c] sm:$0xf]
          %v1429 = vld [vmem:[%s1420 + $0x20] sm:$0xf]
          %v1430 = vld [vmem:[%s1420 + $0x24] sm:$0xf]
          %v1431 = vld [vmem:[%s1420 + $0x28] sm:$0xf]
          %v1432 = vld [vmem:[%s1420 + $0x2c] sm:$0xf]
          %v1433 = vld [vmem:[%s1420 + $0x30] sm:$0xf]
          %v1434 = vld [vmem:[%s1420 + $0x34] sm:$0xf]
          %v1435 = vld [vmem:[%s1420 + $0x38] sm:$0xf]
          %v1436 = vld [vmem:[%s1420 + $0x3c] sm:$0xf]
          %v1453 = vunpack.c.l.b16 %v1421
          %v1454 = vunpack.c.l.b16 %v1422
          %v1455 = vunpack.c.l.b16 %v1423
          %v1456 = vunpack.c.l.b16 %v1424
          %v1457 = vunpack.c.l.b16 %v1425
          %v1458 = vunpack.c.l.b16 %v1426
          %v1459 = vunpack.c.l.b16 %v1427
          %v1460 = vunpack.c.l.b16 %v1428
          %v1461 = vunpack.c.l.b16 %v1429
          %v1462 = vunpack.c.l.b16 %v1430
          %v1463 = vunpack.c.l.b16 %v1431
          %v1464 = vunpack.c.l.b16 %v1432
          %v1465 = vunpack.c.l.b16 %v1433
          %v1466 = vunpack.c.l.b16 %v1434
          %v1467 = vunpack.c.l.b16 %v1435
          %v1468 = vunpack.c.l.b16 %v1436
          %v1469 = vpack.c.b16 %v1454, %v1453
          %v1470 = vpack.c.b16 %v1456, %v1455
          %v1471 = vpack.c.b16 %v1458, %v1457
          %v1472 = vpack.c.b16 %v1460, %v1459
          %v1473 = vpack.c.b16 %v1462, %v1461
          %v1474 = vpack.c.b16 %v1464, %v1463
          %v1475 = vpack.c.b16 %v1466, %v1465
          %v1476 = vpack.c.b16 %v1468, %v1467
          %1485 = vmatprep.subr.bf16.mxu0 0
          %1486 = vmatpush1.bf16.msra.mxu0 %v1476
          %1487 = vmatprep.subr.bf16.mxu0 0
          %1488 = vmatpush1.bf16.msra.mxu0 %v1475
          %1489 = vmatprep.subr.bf16.mxu0 0
          %1490 = vmatpush1.bf16.msra.mxu0 %v1474
          %1491 = vmatprep.subr.bf16.mxu0 0
          %1492 = vmatpush1.bf16.msra.mxu0 %v1473
          %1493 = vmatprep.subr.bf16.mxu0 0
          %1494 = vmatpush1.bf16.msra.mxu0 %v1472
          %1495 = vmatprep.subr.bf16.mxu0 0
          %1496 = vmatpush1.bf16.msra.mxu0 %v1471
          %1497 = vmatprep.subr.bf16.mxu0 0
          %1498 = vmatpush1.bf16.msra.mxu0 %v1470
          %1499 = vmatprep.subr.bf16.mxu0 0
          %1500 = vmatpush1.bf16.msra.mxu0 %v1469
          %1501 = vmatprep.subr.bf16.mxu0 0
          %1502 = vmatpush2.bf16.msra.mxu0 0
          %1503 = vmatprep.subr.bf16.mxu0 0
          %1504 = vmatpush2.bf16.msra.mxu0 0
          %1505 = vmatprep.subr.bf16.mxu0 0
          %1506 = vmatpush2.bf16.msra.mxu0 0
          %1507 = vmatprep.subr.bf16.mxu0 0
          %1508 = vmatpush2.bf16.msra.mxu0 0
          %1509 = vmatprep.subr.bf16.mxu0 0
          %1510 = vmatpush2.bf16.msra.mxu0 0
          %1511 = vmatprep.subr.bf16.mxu0 0
          %1512 = vmatpush2.bf16.msra.mxu0 0
          %1513 = vmatprep.subr.bf16.mxu0 0
          %1514 = vmatpush2.bf16.msra.mxu0 0
          %1515 = vmatprep.subr.bf16.mxu0 0
          %1516 = vmatpush2.bf16.msra.mxu0 0
          %1517 = vmatprep.mubr.bf16.mxu0 0
          %1518 = vmatmul.mubr.bf16.gmra.mxu0 %v1418
          %v1519 = vpop.f32.mrf.mxu0
          %v1520 = vadd.f32 0.0, %v1519
          %v1521 = vpop.f32.mrf.mxu0
          %v1522 = vpop.f32.mrf.mxu0
          %v1523 = vadd.f32 0.0, %v1522
          %v1524 = vpop.f32.mrf.mxu0
          %1525 = vmatprep.mubr.bf16.mxu0 0
          %1526 = vmatmul.mubr.bf16.gmra.mxu0 %v1419
          %v1527 = vpop.f32.mrf.mxu0
          %v1528 = vadd.f32 0.0, %v1527
          %v1529 = vpop.f32.mrf.mxu0
          %v1530 = vpop.f32.mrf.mxu0
          %v1531 = vadd.f32 0.0, %v1530
          %v1532 = vpop.f32.mrf.mxu0
          %1533 = vdwg.mxu0
          %v1534 = vadd.f32 %v1407, %v1520
          %v1535 = vadd.f32 %v1408, %v1523
          %v1536 = vadd.f32 %v1409, %v1528
          %v1537 = vadd.f32 %v1410, %v1531
          %v1538 = vld [vmem:[%s1413 + $0x1] sm:$0xff]
          %v1539 = vld [vmem:[%s1413 + $0x9] sm:$0xff]
          %v1540 = vld [vmem:[%s1413 + $0x11] sm:$0xff]
          %v1541 = vld [vmem:[%s1413 + $0x19] sm:$0xff]
          %v1542 = vpack.c.bf16 %v1539, %v1538
          %v1543 = vpack.c.bf16 %v1541, %v1540
          %s1544 = scalar_lea.vmem %s1, 256
          %v1545 = vld [vmem:[%s1544] sm:$0xf]
          %v1546 = vld [vmem:[%s1544 + $0x4] sm:$0xf]
          %v1547 = vld [vmem:[%s1544 + $0x8] sm:$0xf]
          %v1548 = vld [vmem:[%s1544 + $0xc] sm:$0xf]
          %v1549 = vld [vmem:[%s1544 + $0x10] sm:$0xf]
          %v1550 = vld [vmem:[%s1544 + $0x14] sm:$0xf]
          %v1551 = vld [vmem:[%s1544 + $0x18] sm:$0xf]
          %v1552 = vld [vmem:[%s1544 + $0x1c] sm:$0xf]
          %v1553 = vld [vmem:[%s1544 + $0x20] sm:$0xf]
          %v1554 = vld [vmem:[%s1544 + $0x24] sm:$0xf]
          %v1555 = vld [vmem:[%s1544 + $0x28] sm:$0xf]
          %v1556 = vld [vmem:[%s1544 + $0x2c] sm:$0xf]
          %v1557 = vld [vmem:[%s1544 + $0x30] sm:$0xf]
          %v1558 = vld [vmem:[%s1544 + $0x34] sm:$0xf]
          %v1559 = vld [vmem:[%s1544 + $0x38] sm:$0xf]
          %v1560 = vld [vmem:[%s1544 + $0x3c] sm:$0xf]
          %v1577 = vunpack.c.l.b16 %v1545
          %v1578 = vunpack.c.l.b16 %v1546
          %v1579 = vunpack.c.l.b16 %v1547
          %v1580 = vunpack.c.l.b16 %v1548
          %v1581 = vunpack.c.l.b16 %v1549
          %v1582 = vunpack.c.l.b16 %v1550
          %v1583 = vunpack.c.l.b16 %v1551
          %v1584 = vunpack.c.l.b16 %v1552
          %v1585 = vunpack.c.l.b16 %v1553
          %v1586 = vunpack.c.l.b16 %v1554
          %v1587 = vunpack.c.l.b16 %v1555
          %v1588 = vunpack.c.l.b16 %v1556
          %v1589 = vunpack.c.l.b16 %v1557
          %v1590 = vunpack.c.l.b16 %v1558
          %v1591 = vunpack.c.l.b16 %v1559
          %v1592 = vunpack.c.l.b16 %v1560
          %v1593 = vpack.c.b16 %v1578, %v1577
          %v1594 = vpack.c.b16 %v1580, %v1579
          %v1595 = vpack.c.b16 %v1582, %v1581
          %v1596 = vpack.c.b16 %v1584, %v1583
          %v1597 = vpack.c.b16 %v1586, %v1585
          %v1598 = vpack.c.b16 %v1588, %v1587
          %v1599 = vpack.c.b16 %v1590, %v1589
          %v1600 = vpack.c.b16 %v1592, %v1591
          %1609 = vmatprep.subr.bf16.mxu0 0
          %1610 = vmatpush1.bf16.msra.mxu0 %v1600
          %1611 = vmatprep.subr.bf16.mxu0 0
          %1612 = vmatpush1.bf16.msra.mxu0 %v1599
          %1613 = vmatprep.subr.bf16.mxu0 0
          %1614 = vmatpush1.bf16.msra.mxu0 %v1598
          %1615 = vmatprep.subr.bf16.mxu0 0
          %1616 = vmatpush1.bf16.msra.mxu0 %v1597
          %1617 = vmatprep.subr.bf16.mxu0 0
          %1618 = vmatpush1.bf16.msra.mxu0 %v1596
          %1619 = vmatprep.subr.bf16.mxu0 0
          %1620 = vmatpush1.bf16.msra.mxu0 %v1595
          %1621 = vmatprep.subr.bf16.mxu0 0
          %1622 = vmatpush1.bf16.msra.mxu0 %v1594
          %1623 = vmatprep.subr.bf16.mxu0 0
          %1624 = vmatpush1.bf16.msra.mxu0 %v1593
          %1625 = vmatprep.subr.bf16.mxu0 0
          %1626 = vmatpush2.bf16.msra.mxu0 0
          %1627 = vmatprep.subr.bf16.mxu0 0
          %1628 = vmatpush2.bf16.msra.mxu0 0
          %1629 = vmatprep.subr.bf16.mxu0 0
          %1630 = vmatpush2.bf16.msra.mxu0 0
          %1631 = vmatprep.subr.bf16.mxu0 0
          %1632 = vmatpush2.bf16.msra.mxu0 0
          %1633 = vmatprep.subr.bf16.mxu0 0
          %1634 = vmatpush2.bf16.msra.mxu0 0
          %1635 = vmatprep.subr.bf16.mxu0 0
          %1636 = vmatpush2.bf16.msra.mxu0 0
          %1637 = vmatprep.subr.bf16.mxu0 0
          %1638 = vmatpush2.bf16.msra.mxu0 0
          %1639 = vmatprep.subr.bf16.mxu0 0
          %1640 = vmatpush2.bf16.msra.mxu0 0
          %1641 = vmatprep.mubr.bf16.mxu0 0
          %1642 = vmatmul.mubr.bf16.gmra.mxu0 %v1542
          %v1643 = vpop.f32.mrf.mxu0
          %v1644 = vadd.f32 0.0, %v1643
          %v1645 = vpop.f32.mrf.mxu0
          %v1646 = vpop.f32.mrf.mxu0
          %v1647 = vadd.f32 0.0, %v1646
          %v1648 = vpop.f32.mrf.mxu0
          %1649 = vmatprep.mubr.bf16.mxu0 0
          %1650 = vmatmul.mubr.bf16.gmra.mxu0 %v1543
          %v1651 = vpop.f32.mrf.mxu0
          %v1652 = vadd.f32 0.0, %v1651
          %v1653 = vpop.f32.mrf.mxu0
          %v1654 = vpop.f32.mrf.mxu0
          %v1655 = vadd.f32 0.0, %v1654
          %v1656 = vpop.f32.mrf.mxu0
          %1657 = vdwg.mxu0
          %v1658 = vadd.f32 %v1534, %v1644
          %v1659 = vadd.f32 %v1535, %v1647
          %v1660 = vadd.f32 %v1536, %v1652
          %v1661 = vadd.f32 %v1537, %v1655
          %v1662 = vld [vmem:[%s1413 + $0x2] sm:$0xff]
          %v1663 = vld [vmem:[%s1413 + $0xa] sm:$0xff]
          %v1664 = vld [vmem:[%s1413 + $0x12] sm:$0xff]
          %v1665 = vld [vmem:[%s1413 + $0x1a] sm:$0xff]
          %v1666 = vpack.c.bf16 %v1663, %v1662
          %v1667 = vpack.c.bf16 %v1665, %v1664
          %s1668 = scalar_lea.vmem %s1, 320
          %v1669 = vld [vmem:[%s1668] sm:$0xf]
          %v1670 = vld [vmem:[%s1668 + $0x4] sm:$0xf]
          %v1671 = vld [vmem:[%s1668 + $0x8] sm:$0xf]
          %v1672 = vld [vmem:[%s1668 + $0xc] sm:$0xf]
          %v1673 = vld [vmem:[%s1668 + $0x10] sm:$0xf]
          %v1674 = vld [vmem:[%s1668 + $0x14] sm:$0xf]
          %v1675 = vld [vmem:[%s1668 + $0x18] sm:$0xf]
          %v1676 = vld [vmem:[%s1668 + $0x1c] sm:$0xf]
          %v1677 = vld [vmem:[%s1668 + $0x20] sm:$0xf]
          %v1678 = vld [vmem:[%s1668 + $0x24] sm:$0xf]
          %v1679 = vld [vmem:[%s1668 + $0x28] sm:$0xf]
          %v1680 = vld [vmem:[%s1668 + $0x2c] sm:$0xf]
          %v1681 = vld [vmem:[%s1668 + $0x30] sm:$0xf]
          %v1682 = vld [vmem:[%s1668 + $0x34] sm:$0xf]
          %v1683 = vld [vmem:[%s1668 + $0x38] sm:$0xf]
          %v1684 = vld [vmem:[%s1668 + $0x3c] sm:$0xf]
          %v1701 = vunpack.c.l.b16 %v1669
          %v1702 = vunpack.c.l.b16 %v1670
          %v1703 = vunpack.c.l.b16 %v1671
          %v1704 = vunpack.c.l.b16 %v1672
          %v1705 = vunpack.c.l.b16 %v1673
          %v1706 = vunpack.c.l.b16 %v1674
          %v1707 = vunpack.c.l.b16 %v1675
          %v1708 = vunpack.c.l.b16 %v1676
          %v1709 = vunpack.c.l.b16 %v1677
          %v1710 = vunpack.c.l.b16 %v1678
          %v1711 = vunpack.c.l.b16 %v1679
          %v1712 = vunpack.c.l.b16 %v1680
          %v1713 = vunpack.c.l.b16 %v1681
          %v1714 = vunpack.c.l.b16 %v1682
          %v1715 = vunpack.c.l.b16 %v1683
          %v1716 = vunpack.c.l.b16 %v1684
          %v1717 = vpack.c.b16 %v1702, %v1701
          %v1718 = vpack.c.b16 %v1704, %v1703
          %v1719 = vpack.c.b16 %v1706, %v1705
          %v1720 = vpack.c.b16 %v1708, %v1707
          %v1721 = vpack.c.b16 %v1710, %v1709
          %v1722 = vpack.c.b16 %v1712, %v1711
          %v1723 = vpack.c.b16 %v1714, %v1713
          %v1724 = vpack.c.b16 %v1716, %v1715
          %1733 = vmatprep.subr.bf16.mxu0 0
          %1734 = vmatpush1.bf16.msra.mxu0 %v1724
          %1735 = vmatprep.subr.bf16.mxu0 0
          %1736 = vmatpush1.bf16.msra.mxu0 %v1723
          %1737 = vmatprep.subr.bf16.mxu0 0
          %1738 = vmatpush1.bf16.msra.mxu0 %v1722
          %1739 = vmatprep.subr.bf16.mxu0 0
          %1740 = vmatpush1.bf16.msra.mxu0 %v1721
          %1741 = vmatprep.subr.bf16.mxu0 0
          %1742 = vmatpush1.bf16.msra.mxu0 %v1720
          %1743 = vmatprep.subr.bf16.mxu0 0
          %1744 = vmatpush1.bf16.msra.mxu0 %v1719
          %1745 = vmatprep.subr.bf16.mxu0 0
          %1746 = vmatpush1.bf16.msra.mxu0 %v1718
          %1747 = vmatprep.subr.bf16.mxu0 0
          %1748 = vmatpush1.bf16.msra.mxu0 %v1717
          %1749 = vmatprep.subr.bf16.mxu0 0
          %1750 = vmatpush2.bf16.msra.mxu0 0
          %1751 = vmatprep.subr.bf16.mxu0 0
          %1752 = vmatpush2.bf16.msra.mxu0 0
          %1753 = vmatprep.subr.bf16.mxu0 0
          %1754 = vmatpush2.bf16.msra.mxu0 0
          %1755 = vmatprep.subr.bf16.mxu0 0
          %1756 = vmatpush2.bf16.msra.mxu0 0
          %1757 = vmatprep.subr.bf16.mxu0 0
          %1758 = vmatpush2.bf16.msra.mxu0 0
          %1759 = vmatprep.subr.bf16.mxu0 0
          %1760 = vmatpush2.bf16.msra.mxu0 0
          %1761 = vmatprep.subr.bf16.mxu0 0
          %1762 = vmatpush2.bf16.msra.mxu0 0
          %1763 = vmatprep.subr.bf16.mxu0 0
          %1764 = vmatpush2.bf16.msra.mxu0 0
          %1765 = vmatprep.mubr.bf16.mxu0 0
          %1766 = vmatmul.mubr.bf16.gmra.mxu0 %v1666
          %v1767 = vpop.f32.mrf.mxu0
          %v1768 = vadd.f32 0.0, %v1767
          %v1769 = vpop.f32.mrf.mxu0
          %v1770 = vpop.f32.mrf.mxu0
          %v1771 = vadd.f32 0.0, %v1770
          %v1772 = vpop.f32.mrf.mxu0
          %1773 = vmatprep.mubr.bf16.mxu0 0
          %1774 = vmatmul.mubr.bf16.gmra.mxu0 %v1667
          %v1775 = vpop.f32.mrf.mxu0
          %v1776 = vadd.f32 0.0, %v1775
          %v1777 = vpop.f32.mrf.mxu0
          %v1778 = vpop.f32.mrf.mxu0
          %v1779 = vadd.f32 0.0, %v1778
          %v1780 = vpop.f32.mrf.mxu0
          %1781 = vdwg.mxu0
          %v1782 = vadd.f32 %v1658, %v1768
          %v1783 = vadd.f32 %v1659, %v1771
          %v1784 = vadd.f32 %v1660, %v1776
          %v1785 = vadd.f32 %v1661, %v1779
          %s1786 = sadd.s32 %s1041, 2
          %s1787 = smul.u32 %s1786, 40
          %s1788 = scalar_lea.vmem %s707, %s1787
          %v1789 = vld [vmem:[%s1788] sm:$0xff]
          %v1790 = vld [vmem:[%s1788 + $0x8] sm:$0xff]
          %v1791 = vld [vmem:[%s1788 + $0x10] sm:$0xff]
          %v1792 = vld [vmem:[%s1788 + $0x18] sm:$0xff]
          %v1793 = vpack.c.bf16 %v1790, %v1789
          %v1794 = vpack.c.bf16 %v1792, %v1791
          %s1795 = scalar_lea.vmem %s1, 384
          %v1796 = vld [vmem:[%s1795] sm:$0xf]
          %v1797 = vld [vmem:[%s1795 + $0x4] sm:$0xf]
          %v1798 = vld [vmem:[%s1795 + $0x8] sm:$0xf]
          %v1799 = vld [vmem:[%s1795 + $0xc] sm:$0xf]
          %v1800 = vld [vmem:[%s1795 + $0x10] sm:$0xf]
          %v1801 = vld [vmem:[%s1795 + $0x14] sm:$0xf]
          %v1802 = vld [vmem:[%s1795 + $0x18] sm:$0xf]
          %v1803 = vld [vmem:[%s1795 + $0x1c] sm:$0xf]
          %v1804 = vld [vmem:[%s1795 + $0x20] sm:$0xf]
          %v1805 = vld [vmem:[%s1795 + $0x24] sm:$0xf]
          %v1806 = vld [vmem:[%s1795 + $0x28] sm:$0xf]
          %v1807 = vld [vmem:[%s1795 + $0x2c] sm:$0xf]
          %v1808 = vld [vmem:[%s1795 + $0x30] sm:$0xf]
          %v1809 = vld [vmem:[%s1795 + $0x34] sm:$0xf]
          %v1810 = vld [vmem:[%s1795 + $0x38] sm:$0xf]
          %v1811 = vld [vmem:[%s1795 + $0x3c] sm:$0xf]
          %v1828 = vunpack.c.l.b16 %v1796
          %v1829 = vunpack.c.l.b16 %v1797
          %v1830 = vunpack.c.l.b16 %v1798
          %v1831 = vunpack.c.l.b16 %v1799
          %v1832 = vunpack.c.l.b16 %v1800
          %v1833 = vunpack.c.l.b16 %v1801
          %v1834 = vunpack.c.l.b16 %v1802
          %v1835 = vunpack.c.l.b16 %v1803
          %v1836 = vunpack.c.l.b16 %v1804
          %v1837 = vunpack.c.l.b16 %v1805
          %v1838 = vunpack.c.l.b16 %v1806
          %v1839 = vunpack.c.l.b16 %v1807
          %v1840 = vunpack.c.l.b16 %v1808
          %v1841 = vunpack.c.l.b16 %v1809
          %v1842 = vunpack.c.l.b16 %v1810
          %v1843 = vunpack.c.l.b16 %v1811
          %v1844 = vpack.c.b16 %v1829, %v1828
          %v1845 = vpack.c.b16 %v1831, %v1830
          %v1846 = vpack.c.b16 %v1833, %v1832
          %v1847 = vpack.c.b16 %v1835, %v1834
          %v1848 = vpack.c.b16 %v1837, %v1836
          %v1849 = vpack.c.b16 %v1839, %v1838
          %v1850 = vpack.c.b16 %v1841, %v1840
          %v1851 = vpack.c.b16 %v1843, %v1842
          %1860 = vmatprep.subr.bf16.mxu0 0
          %1861 = vmatpush1.bf16.msra.mxu0 %v1851
          %1862 = vmatprep.subr.bf16.mxu0 0
          %1863 = vmatpush1.bf16.msra.mxu0 %v1850
          %1864 = vmatprep.subr.bf16.mxu0 0
          %1865 = vmatpush1.bf16.msra.mxu0 %v1849
          %1866 = vmatprep.subr.bf16.mxu0 0
          %1867 = vmatpush1.bf16.msra.mxu0 %v1848
          %1868 = vmatprep.subr.bf16.mxu0 0
          %1869 = vmatpush1.bf16.msra.mxu0 %v1847
          %1870 = vmatprep.subr.bf16.mxu0 0
          %1871 = vmatpush1.bf16.msra.mxu0 %v1846
          %1872 = vmatprep.subr.bf16.mxu0 0
          %1873 = vmatpush1.bf16.msra.mxu0 %v1845
          %1874 = vmatprep.subr.bf16.mxu0 0
          %1875 = vmatpush1.bf16.msra.mxu0 %v1844
          %1876 = vmatprep.subr.bf16.mxu0 0
          %1877 = vmatpush2.bf16.msra.mxu0 0
          %1878 = vmatprep.subr.bf16.mxu0 0
          %1879 = vmatpush2.bf16.msra.mxu0 0
          %1880 = vmatprep.subr.bf16.mxu0 0
          %1881 = vmatpush2.bf16.msra.mxu0 0
          %1882 = vmatprep.subr.bf16.mxu0 0
          %1883 = vmatpush2.bf16.msra.mxu0 0
          %1884 = vmatprep.subr.bf16.mxu0 0
          %1885 = vmatpush2.bf16.msra.mxu0 0
          %1886 = vmatprep.subr.bf16.mxu0 0
          %1887 = vmatpush2.bf16.msra.mxu0 0
          %1888 = vmatprep.subr.bf16.mxu0 0
          %1889 = vmatpush2.bf16.msra.mxu0 0
          %1890 = vmatprep.subr.bf16.mxu0 0
          %1891 = vmatpush2.bf16.msra.mxu0 0
          %1892 = vmatprep.mubr.bf16.mxu0 0
          %1893 = vmatmul.mubr.bf16.gmra.mxu0 %v1793
          %v1894 = vpop.f32.mrf.mxu0
          %v1895 = vadd.f32 0.0, %v1894
          %v1896 = vpop.f32.mrf.mxu0
          %v1897 = vpop.f32.mrf.mxu0
          %v1898 = vadd.f32 0.0, %v1897
          %v1899 = vpop.f32.mrf.mxu0
          %1900 = vmatprep.mubr.bf16.mxu0 0
          %1901 = vmatmul.mubr.bf16.gmra.mxu0 %v1794
          %v1902 = vpop.f32.mrf.mxu0
          %v1903 = vadd.f32 0.0, %v1902
          %v1904 = vpop.f32.mrf.mxu0
          %v1905 = vpop.f32.mrf.mxu0
          %v1906 = vadd.f32 0.0, %v1905
          %v1907 = vpop.f32.mrf.mxu0
          %1908 = vdwg.mxu0
          %v1909 = vadd.f32 %v1782, %v1895
          %v1910 = vadd.f32 %v1783, %v1898
          %v1911 = vadd.f32 %v1784, %v1903
          %v1912 = vadd.f32 %v1785, %v1906
          %v1913 = vld [vmem:[%s1788 + $0x1] sm:$0xff]
          %v1914 = vld [vmem:[%s1788 + $0x9] sm:$0xff]
          %v1915 = vld [vmem:[%s1788 + $0x11] sm:$0xff]
          %v1916 = vld [vmem:[%s1788 + $0x19] sm:$0xff]
          %v1917 = vpack.c.bf16 %v1914, %v1913
          %v1918 = vpack.c.bf16 %v1916, %v1915
          %s1919 = scalar_lea.vmem %s1, 448
          %v1920 = vld [vmem:[%s1919] sm:$0xf]
          %v1921 = vld [vmem:[%s1919 + $0x4] sm:$0xf]
          %v1922 = vld [vmem:[%s1919 + $0x8] sm:$0xf]
          %v1923 = vld [vmem:[%s1919 + $0xc] sm:$0xf]
          %v1924 = vld [vmem:[%s1919 + $0x10] sm:$0xf]
          %v1925 = vld [vmem:[%s1919 + $0x14] sm:$0xf]
          %v1926 = vld [vmem:[%s1919 + $0x18] sm:$0xf]
          %v1927 = vld [vmem:[%s1919 + $0x1c] sm:$0xf]
          %v1928 = vld [vmem:[%s1919 + $0x20] sm:$0xf]
          %v1929 = vld [vmem:[%s1919 + $0x24] sm:$0xf]
          %v1930 = vld [vmem:[%s1919 + $0x28] sm:$0xf]
          %v1931 = vld [vmem:[%s1919 + $0x2c] sm:$0xf]
          %v1932 = vld [vmem:[%s1919 + $0x30] sm:$0xf]
          %v1933 = vld [vmem:[%s1919 + $0x34] sm:$0xf]
          %v1934 = vld [vmem:[%s1919 + $0x38] sm:$0xf]
          %v1935 = vld [vmem:[%s1919 + $0x3c] sm:$0xf]
          %v1952 = vunpack.c.l.b16 %v1920
          %v1953 = vunpack.c.l.b16 %v1921
          %v1954 = vunpack.c.l.b16 %v1922
          %v1955 = vunpack.c.l.b16 %v1923
          %v1956 = vunpack.c.l.b16 %v1924
          %v1957 = vunpack.c.l.b16 %v1925
          %v1958 = vunpack.c.l.b16 %v1926
          %v1959 = vunpack.c.l.b16 %v1927
          %v1960 = vunpack.c.l.b16 %v1928
          %v1961 = vunpack.c.l.b16 %v1929
          %v1962 = vunpack.c.l.b16 %v1930
          %v1963 = vunpack.c.l.b16 %v1931
          %v1964 = vunpack.c.l.b16 %v1932
          %v1965 = vunpack.c.l.b16 %v1933
          %v1966 = vunpack.c.l.b16 %v1934
          %v1967 = vunpack.c.l.b16 %v1935
          %v1968 = vpack.c.b16 %v1953, %v1952
          %v1969 = vpack.c.b16 %v1955, %v1954
          %v1970 = vpack.c.b16 %v1957, %v1956
          %v1971 = vpack.c.b16 %v1959, %v1958
          %v1972 = vpack.c.b16 %v1961, %v1960
          %v1973 = vpack.c.b16 %v1963, %v1962
          %v1974 = vpack.c.b16 %v1965, %v1964
          %v1975 = vpack.c.b16 %v1967, %v1966
          %1984 = vmatprep.subr.bf16.mxu0 0
          %1985 = vmatpush1.bf16.msra.mxu0 %v1975
          %1986 = vmatprep.subr.bf16.mxu0 0
          %1987 = vmatpush1.bf16.msra.mxu0 %v1974
          %1988 = vmatprep.subr.bf16.mxu0 0
          %1989 = vmatpush1.bf16.msra.mxu0 %v1973
          %1990 = vmatprep.subr.bf16.mxu0 0
          %1991 = vmatpush1.bf16.msra.mxu0 %v1972
          %1992 = vmatprep.subr.bf16.mxu0 0
          %1993 = vmatpush1.bf16.msra.mxu0 %v1971
          %1994 = vmatprep.subr.bf16.mxu0 0
          %1995 = vmatpush1.bf16.msra.mxu0 %v1970
          %1996 = vmatprep.subr.bf16.mxu0 0
          %1997 = vmatpush1.bf16.msra.mxu0 %v1969
          %1998 = vmatprep.subr.bf16.mxu0 0
          %1999 = vmatpush1.bf16.msra.mxu0 %v1968
          %2000 = vmatprep.subr.bf16.mxu0 0
          %2001 = vmatpush2.bf16.msra.mxu0 0
          %2002 = vmatprep.subr.bf16.mxu0 0
          %2003 = vmatpush2.bf16.msra.mxu0 0
          %2004 = vmatprep.subr.bf16.mxu0 0
          %2005 = vmatpush2.bf16.msra.mxu0 0
          %2006 = vmatprep.subr.bf16.mxu0 0
          %2007 = vmatpush2.bf16.msra.mxu0 0
          %2008 = vmatprep.subr.bf16.mxu0 0
          %2009 = vmatpush2.bf16.msra.mxu0 0
          %2010 = vmatprep.subr.bf16.mxu0 0
          %2011 = vmatpush2.bf16.msra.mxu0 0
          %2012 = vmatprep.subr.bf16.mxu0 0
          %2013 = vmatpush2.bf16.msra.mxu0 0
          %2014 = vmatprep.subr.bf16.mxu0 0
          %2015 = vmatpush2.bf16.msra.mxu0 0
          %2016 = vmatprep.mubr.bf16.mxu0 0
          %2017 = vmatmul.mubr.bf16.gmra.mxu0 %v1917
          %v2018 = vpop.f32.mrf.mxu0
          %v2019 = vadd.f32 0.0, %v2018
          %v2020 = vpop.f32.mrf.mxu0
          %v2021 = vpop.f32.mrf.mxu0
          %v2022 = vadd.f32 0.0, %v2021
          %v2023 = vpop.f32.mrf.mxu0
          %2024 = vmatprep.mubr.bf16.mxu0 0
          %2025 = vmatmul.mubr.bf16.gmra.mxu0 %v1918
          %v2026 = vpop.f32.mrf.mxu0
          %v2027 = vadd.f32 0.0, %v2026
          %v2028 = vpop.f32.mrf.mxu0
          %v2029 = vpop.f32.mrf.mxu0
          %v2030 = vadd.f32 0.0, %v2029
          %v2031 = vpop.f32.mrf.mxu0
          %2032 = vdwg.mxu0
          %v2033 = vadd.f32 %v1909, %v2019
          %v2034 = vadd.f32 %v1910, %v2022
          %v2035 = vadd.f32 %v1911, %v2027
          %v2036 = vadd.f32 %v1912, %v2030
          %v2037 = vld [vmem:[%s1788 + $0x2] sm:$0xff]
          %v2038 = vld [vmem:[%s1788 + $0xa] sm:$0xff]
          %v2039 = vld [vmem:[%s1788 + $0x12] sm:$0xff]
          %v2040 = vld [vmem:[%s1788 + $0x1a] sm:$0xff]
          %v2041 = vpack.c.bf16 %v2038, %v2037
          %v2042 = vpack.c.bf16 %v2040, %v2039
          %s2043 = scalar_lea.vmem %s1, 512
          %v2044 = vld [vmem:[%s2043] sm:$0xf]
          %v2045 = vld [vmem:[%s2043 + $0x4] sm:$0xf]
          %v2046 = vld [vmem:[%s2043 + $0x8] sm:$0xf]
          %v2047 = vld [vmem:[%s2043 + $0xc] sm:$0xf]
          %v2048 = vld [vmem:[%s2043 + $0x10] sm:$0xf]
          %v2049 = vld [vmem:[%s2043 + $0x14] sm:$0xf]
          %v2050 = vld [vmem:[%s2043 + $0x18] sm:$0xf]
          %v2051 = vld [vmem:[%s2043 + $0x1c] sm:$0xf]
          %v2052 = vld [vmem:[%s2043 + $0x20] sm:$0xf]
          %v2053 = vld [vmem:[%s2043 + $0x24] sm:$0xf]
          %v2054 = vld [vmem:[%s2043 + $0x28] sm:$0xf]
          %v2055 = vld [vmem:[%s2043 + $0x2c] sm:$0xf]
          %v2056 = vld [vmem:[%s2043 + $0x30] sm:$0xf]
          %v2057 = vld [vmem:[%s2043 + $0x34] sm:$0xf]
          %v2058 = vld [vmem:[%s2043 + $0x38] sm:$0xf]
          %v2059 = vld [vmem:[%s2043 + $0x3c] sm:$0xf]
          %v2076 = vunpack.c.l.b16 %v2044
          %v2077 = vunpack.c.l.b16 %v2045
          %v2078 = vunpack.c.l.b16 %v2046
          %v2079 = vunpack.c.l.b16 %v2047
          %v2080 = vunpack.c.l.b16 %v2048
          %v2081 = vunpack.c.l.b16 %v2049
          %v2082 = vunpack.c.l.b16 %v2050
          %v2083 = vunpack.c.l.b16 %v2051
          %v2084 = vunpack.c.l.b16 %v2052
          %v2085 = vunpack.c.l.b16 %v2053
          %v2086 = vunpack.c.l.b16 %v2054
          %v2087 = vunpack.c.l.b16 %v2055
          %v2088 = vunpack.c.l.b16 %v2056
          %v2089 = vunpack.c.l.b16 %v2057
          %v2090 = vunpack.c.l.b16 %v2058
          %v2091 = vunpack.c.l.b16 %v2059
          %v2092 = vpack.c.b16 %v2077, %v2076
          %v2093 = vpack.c.b16 %v2079, %v2078
          %v2094 = vpack.c.b16 %v2081, %v2080
          %v2095 = vpack.c.b16 %v2083, %v2082
          %v2096 = vpack.c.b16 %v2085, %v2084
          %v2097 = vpack.c.b16 %v2087, %v2086
          %v2098 = vpack.c.b16 %v2089, %v2088
          %v2099 = vpack.c.b16 %v2091, %v2090
          %2108 = vmatprep.subr.bf16.mxu0 0
          %2109 = vmatpush1.bf16.msra.mxu0 %v2099
          %2110 = vmatprep.subr.bf16.mxu0 0
          %2111 = vmatpush1.bf16.msra.mxu0 %v2098
          %2112 = vmatprep.subr.bf16.mxu0 0
          %2113 = vmatpush1.bf16.msra.mxu0 %v2097
          %2114 = vmatprep.subr.bf16.mxu0 0
          %2115 = vmatpush1.bf16.msra.mxu0 %v2096
          %2116 = vmatprep.subr.bf16.mxu0 0
          %2117 = vmatpush1.bf16.msra.mxu0 %v2095
          %2118 = vmatprep.subr.bf16.mxu0 0
          %2119 = vmatpush1.bf16.msra.mxu0 %v2094
          %2120 = vmatprep.subr.bf16.mxu0 0
          %2121 = vmatpush1.bf16.msra.mxu0 %v2093
          %2122 = vmatprep.subr.bf16.mxu0 0
          %2123 = vmatpush1.bf16.msra.mxu0 %v2092
          %2124 = vmatprep.subr.bf16.mxu0 0
          %2125 = vmatpush2.bf16.msra.mxu0 0
          %2126 = vmatprep.subr.bf16.mxu0 0
          %2127 = vmatpush2.bf16.msra.mxu0 0
          %2128 = vmatprep.subr.bf16.mxu0 0
          %2129 = vmatpush2.bf16.msra.mxu0 0
          %2130 = vmatprep.subr.bf16.mxu0 0
          %2131 = vmatpush2.bf16.msra.mxu0 0
          %2132 = vmatprep.subr.bf16.mxu0 0
          %2133 = vmatpush2.bf16.msra.mxu0 0
          %2134 = vmatprep.subr.bf16.mxu0 0
          %2135 = vmatpush2.bf16.msra.mxu0 0
          %2136 = vmatprep.subr.bf16.mxu0 0
          %2137 = vmatpush2.bf16.msra.mxu0 0
          %2138 = vmatprep.subr.bf16.mxu0 0
          %2139 = vmatpush2.bf16.msra.mxu0 0
          %2140 = vmatprep.mubr.bf16.mxu0 0
          %2141 = vmatmul.mubr.bf16.gmra.mxu0 %v2041
          %v2142 = vpop.f32.mrf.mxu0
          %v2143 = vadd.f32 0.0, %v2142
          %v2144 = vpop.f32.mrf.mxu0
          %v2145 = vpop.f32.mrf.mxu0
          %v2146 = vadd.f32 0.0, %v2145
          %v2147 = vpop.f32.mrf.mxu0
          %2148 = vmatprep.mubr.bf16.mxu0 0
          %2149 = vmatmul.mubr.bf16.gmra.mxu0 %v2042
          %v2150 = vpop.f32.mrf.mxu0
          %v2151 = vadd.f32 0.0, %v2150
          %v2152 = vpop.f32.mrf.mxu0
          %v2153 = vpop.f32.mrf.mxu0
          %v2154 = vadd.f32 0.0, %v2153
          %v2155 = vpop.f32.mrf.mxu0
          %2156 = vdwg.mxu0
          %v2157 = vadd.f32 %v2033, %v2143
          %v2158 = vadd.f32 %v2034, %v2146
          %v2159 = vadd.f32 %v2035, %v2151
          %v2160 = vadd.f32 %v2036, %v2154
          %v2162 = vlaneseq
          %v2163 = vshrl.u32 %v2162, 7
          %v2164 = vsub.s32 0, %v2163
          %v2165 = vrot.slane %v1039, %v2164
          %v2167 = vadd.f32 %v2157, %v2165
          %v2168 = vadd.f32 %v2158, %v2165
          %v2169 = vadd.f32 %v2159, %v2165
          %v2170 = vadd.f32 %v2160, %v2165
          %v2171 = vmax.f32 %v2167, 0.0
          %v2172 = vmax.f32 %v2168, 0.0
          %v2173 = vmax.f32 %v2169, 0.0
          %v2174 = vmax.f32 %v2170, 0.0
          %s2175 = scalar_lea.vmem [#allocation2], %s1412
          %2176 = vst [vmem:[%s2175 + $0x1] sm:$0xff] %v2171
          %2177 = vst [vmem:[%s2175 + $0x9] sm:$0xff] %v2172
          %2178 = vst [vmem:[%s2175 + $0x11] sm:$0xff] %v2173
          %2179 = vst [vmem:[%s2175 + $0x19] sm:$0xff] %v2174
        $region117: #{model_forward.1} parent=111 // loop_footer
          %s1045 = sadd.s32 1, %s1041
        $region118: #{model_forward.1} parent=111 // loop_footer_branch
          %1040 = sbr.rel target = $region114
        $region119: #{model_forward.1} parent=111 // loop_exit
          _
        %v2180 = vld [vmem:[%s4] sm:$0x1]
        loop: start=0, step=1, limit=16
        $region120: #{model_forward.1} parent=111 // loop_pre_header
          _
        $region121: #{model_forward.1} parent=111 // loop_header
          %s2182 = sphi 0, %s2186
          %p2183 = scmp.ge.s32.totalorder %s2182, 16
        $region122: #{model_forward.1} parent=111 // loop_header_branch
          %2185 = sbr.rel (%p2183) target = $region126
        $region123: #{model_forward.1} parent=111 // loop_body
          %s2187 = smul.u32 %s2182, 2
          %s2188 = smul.u32 %s2187, 40
          %s2189 = scalar_lea.vmem [#allocation2], %s2188
          %v2190 = vld [vmem:[%s2189] ss:$2 sm:$0xff]
          %s2191 = scalar_lea.vmem %s2189, 16 [#allocation2]
          %v2192 = vld [vmem:[%s2191] ss:$2 sm:$0xff]
          %v2193 = vpack.c.bf16 %v2192, %v2190
          %v2194 = vld [vmem:[%s3] sm:$0xf]
          %v2195 = vld [vmem:[%s3 + $0x4] sm:$0xf]
          %v2196 = vld [vmem:[%s3 + $0x8] sm:$0xf]
          %v2197 = vld [vmem:[%s3 + $0xc] sm:$0xf]
          %v2198 = vld [vmem:[%s3 + $0x10] sm:$0xf]
          %v2199 = vld [vmem:[%s3 + $0x14] sm:$0xf]
          %v2200 = vld [vmem:[%s3 + $0x18] sm:$0xf]
          %v2201 = vld [vmem:[%s3 + $0x1c] sm:$0xf]
          %v2202 = vld [vmem:[%s3 + $0x20] sm:$0xf]
          %v2203 = vld [vmem:[%s3 + $0x24] sm:$0xf]
          %v2204 = vld [vmem:[%s3 + $0x28] sm:$0xf]
          %v2205 = vld [vmem:[%s3 + $0x2c] sm:$0xf]
          %v2206 = vld [vmem:[%s3 + $0x30] sm:$0xf]
          %v2207 = vld [vmem:[%s3 + $0x34] sm:$0xf]
          %v2208 = vld [vmem:[%s3 + $0x38] sm:$0xf]
          %v2209 = vld [vmem:[%s3 + $0x3c] sm:$0xf]
          %s2210 = scalar_lea.vmem %s2189, 1 [#allocation2]
          %v2211 = vld [vmem:[%s2210] ss:$2 sm:$0xff]
          %s2212 = scalar_lea.vmem %s2189, 17 [#allocation2]
          %v2213 = vld [vmem:[%s2212] ss:$2 sm:$0xff]
          %v2214 = vpack.c.bf16 %v2213, %v2211
          %s2215 = scalar_lea.vmem %s3, 64
          %v2216 = vld [vmem:[%s2215] sm:$0xf]
          %v2217 = vld [vmem:[%s2215 + $0x4] sm:$0xf]
          %v2218 = vld [vmem:[%s2215 + $0x8] sm:$0xf]
          %v2219 = vld [vmem:[%s2215 + $0xc] sm:$0xf]
          %v2220 = vld [vmem:[%s2215 + $0x10] sm:$0xf]
          %v2221 = vld [vmem:[%s2215 + $0x14] sm:$0xf]
          %v2222 = vld [vmem:[%s2215 + $0x18] sm:$0xf]
          %v2223 = vld [vmem:[%s2215 + $0x1c] sm:$0xf]
          %v2224 = vld [vmem:[%s2215 + $0x20] sm:$0xf]
          %v2225 = vld [vmem:[%s2215 + $0x24] sm:$0xf]
          %v2226 = vld [vmem:[%s2215 + $0x28] sm:$0xf]
          %v2227 = vld [vmem:[%s2215 + $0x2c] sm:$0xf]
          %v2228 = vld [vmem:[%s2215 + $0x30] sm:$0xf]
          %v2229 = vld [vmem:[%s2215 + $0x34] sm:$0xf]
          %v2230 = vld [vmem:[%s2215 + $0x38] sm:$0xf]
          %v2231 = vld [vmem:[%s2215 + $0x3c] sm:$0xf]
          %v2248 = vunpack.c.l.b16 %v2216
          %v2249 = vunpack.c.l.b16 %v2217
          %v2250 = vunpack.c.l.b16 %v2218
          %v2251 = vunpack.c.l.b16 %v2219
          %v2252 = vunpack.c.l.b16 %v2220
          %v2253 = vunpack.c.l.b16 %v2221
          %v2254 = vunpack.c.l.b16 %v2222
          %v2255 = vunpack.c.l.b16 %v2223
          %v2256 = vunpack.c.l.b16 %v2224
          %v2257 = vunpack.c.l.b16 %v2225
          %v2258 = vunpack.c.l.b16 %v2226
          %v2259 = vunpack.c.l.b16 %v2227
          %v2260 = vunpack.c.l.b16 %v2228
          %v2261 = vunpack.c.l.b16 %v2229
          %v2262 = vunpack.c.l.b16 %v2230
          %v2263 = vunpack.c.l.b16 %v2231
          %v2264 = vpack.c.b16 %v2249, %v2248
          %v2265 = vpack.c.b16 %v2251, %v2250
          %v2266 = vpack.c.b16 %v2253, %v2252
          %v2267 = vpack.c.b16 %v2255, %v2254
          %v2268 = vpack.c.b16 %v2257, %v2256
          %v2269 = vpack.c.b16 %v2259, %v2258
          %v2270 = vpack.c.b16 %v2261, %v2260
          %v2271 = vpack.c.b16 %v2263, %v2262
          %2280 = vmatprep.subr.bf16.mxu0 0
          %2281 = vmatpush1.bf16.msra.mxu0 %v2271
          %2282 = vmatprep.subr.bf16.mxu0 0
          %2283 = vmatpush1.bf16.msra.mxu0 %v2270
          %2284 = vmatprep.subr.bf16.mxu0 0
          %2285 = vmatpush1.bf16.msra.mxu0 %v2269
          %2286 = vmatprep.subr.bf16.mxu0 0
          %2287 = vmatpush1.bf16.msra.mxu0 %v2268
          %2288 = vmatprep.subr.bf16.mxu0 0
          %2289 = vmatpush1.bf16.msra.mxu0 %v2267
          %2290 = vmatprep.subr.bf16.mxu0 0
          %2291 = vmatpush1.bf16.msra.mxu0 %v2266
          %2292 = vmatprep.subr.bf16.mxu0 0
          %2293 = vmatpush1.bf16.msra.mxu0 %v2265
          %2294 = vmatprep.subr.bf16.mxu0 0
          %2295 = vmatpush1.bf16.msra.mxu0 %v2264
          %2296 = vmatprep.subr.bf16.mxu0 0
          %2297 = vmatpush2.bf16.msra.mxu0 0
          %2298 = vmatprep.subr.bf16.mxu0 0
          %2299 = vmatpush2.bf16.msra.mxu0 0
          %2300 = vmatprep.subr.bf16.mxu0 0
          %2301 = vmatpush2.bf16.msra.mxu0 0
          %2302 = vmatprep.subr.bf16.mxu0 0
          %2303 = vmatpush2.bf16.msra.mxu0 0
          %2304 = vmatprep.subr.bf16.mxu0 0
          %2305 = vmatpush2.bf16.msra.mxu0 0
          %2306 = vmatprep.subr.bf16.mxu0 0
          %2307 = vmatpush2.bf16.msra.mxu0 0
          %2308 = vmatprep.subr.bf16.mxu0 0
          %2309 = vmatpush2.bf16.msra.mxu0 0
          %2310 = vmatprep.subr.bf16.mxu0 0
          %2311 = vmatpush2.bf16.msra.mxu0 0
          %2312 = vmatprep.mubr.bf16.mxu0 0
          %2313 = vmatmul.mubr.bf16.gmra.mxu0 %v2214
          %v2314 = vpop.f32.mrf.mxu0
          %v2315 = vadd.f32 0.0, %v2314
          %v2316 = vpop.f32.mrf.mxu0
          %v2317 = vpop.f32.mrf.mxu0
          %v2318 = vadd.f32 0.0, %v2317
          %v2319 = vpop.f32.mrf.mxu0
          %2320 = vdwg.mxu0
          %v2337 = vunpack.c.l.b16 %v2194
          %v2338 = vunpack.c.l.b16 %v2195
          %v2339 = vunpack.c.l.b16 %v2196
          %v2340 = vunpack.c.l.b16 %v2197
          %v2341 = vunpack.c.l.b16 %v2198
          %v2342 = vunpack.c.l.b16 %v2199
          %v2343 = vunpack.c.l.b16 %v2200
          %v2344 = vunpack.c.l.b16 %v2201
          %v2345 = vunpack.c.l.b16 %v2202
          %v2346 = vunpack.c.l.b16 %v2203
          %v2347 = vunpack.c.l.b16 %v2204
          %v2348 = vunpack.c.l.b16 %v2205
          %v2349 = vunpack.c.l.b16 %v2206
          %v2350 = vunpack.c.l.b16 %v2207
          %v2351 = vunpack.c.l.b16 %v2208
          %v2352 = vunpack.c.l.b16 %v2209
          %v2353 = vpack.c.b16 %v2338, %v2337
          %v2354 = vpack.c.b16 %v2340, %v2339
          %v2355 = vpack.c.b16 %v2342, %v2341
          %v2356 = vpack.c.b16 %v2344, %v2343
          %v2357 = vpack.c.b16 %v2346, %v2345
          %v2358 = vpack.c.b16 %v2348, %v2347
          %v2359 = vpack.c.b16 %v2350, %v2349
          %v2360 = vpack.c.b16 %v2352, %v2351
          %2369 = vmatprep.subr.bf16.mxu0 0
          %2370 = vmatpush1.bf16.msra.mxu0 %v2360
          %2371 = vmatprep.subr.bf16.mxu0 0
          %2372 = vmatpush1.bf16.msra.mxu0 %v2359
          %2373 = vmatprep.subr.bf16.mxu0 0
          %2374 = vmatpush1.bf16.msra.mxu0 %v2358
          %2375 = vmatprep.subr.bf16.mxu0 0
          %2376 = vmatpush1.bf16.msra.mxu0 %v2357
          %2377 = vmatprep.subr.bf16.mxu0 0
          %2378 = vmatpush1.bf16.msra.mxu0 %v2356
          %2379 = vmatprep.subr.bf16.mxu0 0
          %2380 = vmatpush1.bf16.msra.mxu0 %v2355
          %2381 = vmatprep.subr.bf16.mxu0 0
          %2382 = vmatpush1.bf16.msra.mxu0 %v2354
          %2383 = vmatprep.subr.bf16.mxu0 0
          %2384 = vmatpush1.bf16.msra.mxu0 %v2353
          %2385 = vmatprep.subr.bf16.mxu0 0
          %2386 = vmatpush2.bf16.msra.mxu0 0
          %2387 = vmatprep.subr.bf16.mxu0 0
          %2388 = vmatpush2.bf16.msra.mxu0 0
          %2389 = vmatprep.subr.bf16.mxu0 0
          %2390 = vmatpush2.bf16.msra.mxu0 0
          %2391 = vmatprep.subr.bf16.mxu0 0
          %2392 = vmatpush2.bf16.msra.mxu0 0
          %2393 = vmatprep.subr.bf16.mxu0 0
          %2394 = vmatpush2.bf16.msra.mxu0 0
          %2395 = vmatprep.subr.bf16.mxu0 0
          %2396 = vmatpush2.bf16.msra.mxu0 0
          %2397 = vmatprep.subr.bf16.mxu0 0
          %2398 = vmatpush2.bf16.msra.mxu0 0
          %2399 = vmatprep.subr.bf16.mxu0 0
          %2400 = vmatpush2.bf16.msra.mxu0 0
          %2401 = vmatprep.mubr.bf16.mxu0 0
          %2402 = vmatmul.mubr.bf16.gmra.mxu0 %v2193
          %v2403 = vpop.f32.mrf.mxu0
          %v2404 = vadd.f32 %v2315, %v2403
          %v2405 = vpop.f32.mrf.mxu0
          %v2406 = vpop.f32.mrf.mxu0
          %v2407 = vadd.f32 %v2318, %v2406
          %v2408 = vpop.f32.mrf.mxu0
          %2409 = vdwg.mxu0
          %s2410 = scalar_lea.vmem %s2189, 2 [#allocation2]
          %v2411 = vld [vmem:[%s2410] ss:$2 sm:$0xff]
          %s2412 = scalar_lea.vmem %s2189, 18 [#allocation2]
          %v2413 = vld [vmem:[%s2412] ss:$2 sm:$0xff]
          %v2414 = vpack.c.bf16 %v2413, %v2411
          %s2415 = scalar_lea.vmem %s3, 128
          %v2416 = vld [vmem:[%s2415] sm:$0xf]
          %v2417 = vld [vmem:[%s2415 + $0x4] sm:$0xf]
          %v2418 = vld [vmem:[%s2415 + $0x8] sm:$0xf]
          %v2419 = vld [vmem:[%s2415 + $0xc] sm:$0xf]
          %v2420 = vld [vmem:[%s2415 + $0x10] sm:$0xf]
          %v2421 = vld [vmem:[%s2415 + $0x14] sm:$0xf]
          %v2422 = vld [vmem:[%s2415 + $0x18] sm:$0xf]
          %v2423 = vld [vmem:[%s2415 + $0x1c] sm:$0xf]
          %v2424 = vld [vmem:[%s2415 + $0x20] sm:$0xf]
          %v2425 = vld [vmem:[%s2415 + $0x24] sm:$0xf]
          %v2426 = vld [vmem:[%s2415 + $0x28] sm:$0xf]
          %v2427 = vld [vmem:[%s2415 + $0x2c] sm:$0xf]
          %v2428 = vld [vmem:[%s2415 + $0x30] sm:$0xf]
          %v2429 = vld [vmem:[%s2415 + $0x34] sm:$0xf]
          %v2430 = vld [vmem:[%s2415 + $0x38] sm:$0xf]
          %v2431 = vld [vmem:[%s2415 + $0x3c] sm:$0xf]
          %v2448 = vunpack.c.l.b16 %v2416
          %v2449 = vunpack.c.l.b16 %v2417
          %v2450 = vunpack.c.l.b16 %v2418
          %v2451 = vunpack.c.l.b16 %v2419
          %v2452 = vunpack.c.l.b16 %v2420
          %v2453 = vunpack.c.l.b16 %v2421
          %v2454 = vunpack.c.l.b16 %v2422
          %v2455 = vunpack.c.l.b16 %v2423
          %v2456 = vunpack.c.l.b16 %v2424
          %v2457 = vunpack.c.l.b16 %v2425
          %v2458 = vunpack.c.l.b16 %v2426
          %v2459 = vunpack.c.l.b16 %v2427
          %v2460 = vunpack.c.l.b16 %v2428
          %v2461 = vunpack.c.l.b16 %v2429
          %v2462 = vunpack.c.l.b16 %v2430
          %v2463 = vunpack.c.l.b16 %v2431
          %v2464 = vpack.c.b16 %v2449, %v2448
          %v2465 = vpack.c.b16 %v2451, %v2450
          %v2466 = vpack.c.b16 %v2453, %v2452
          %v2467 = vpack.c.b16 %v2455, %v2454
          %v2468 = vpack.c.b16 %v2457, %v2456
          %v2469 = vpack.c.b16 %v2459, %v2458
          %v2470 = vpack.c.b16 %v2461, %v2460
          %v2471 = vpack.c.b16 %v2463, %v2462
          %2480 = vmatprep.subr.bf16.mxu0 0
          %2481 = vmatpush1.bf16.msra.mxu0 %v2471
          %2482 = vmatprep.subr.bf16.mxu0 0
          %2483 = vmatpush1.bf16.msra.mxu0 %v2470
          %2484 = vmatprep.subr.bf16.mxu0 0
          %2485 = vmatpush1.bf16.msra.mxu0 %v2469
          %2486 = vmatprep.subr.bf16.mxu0 0
          %2487 = vmatpush1.bf16.msra.mxu0 %v2468
          %2488 = vmatprep.subr.bf16.mxu0 0
          %2489 = vmatpush1.bf16.msra.mxu0 %v2467
          %2490 = vmatprep.subr.bf16.mxu0 0
          %2491 = vmatpush1.bf16.msra.mxu0 %v2466
          %2492 = vmatprep.subr.bf16.mxu0 0
          %2493 = vmatpush1.bf16.msra.mxu0 %v2465
          %2494 = vmatprep.subr.bf16.mxu0 0
          %2495 = vmatpush1.bf16.msra.mxu0 %v2464
          %2496 = vmatprep.subr.bf16.mxu0 0
          %2497 = vmatpush2.bf16.msra.mxu0 0
          %2498 = vmatprep.subr.bf16.mxu0 0
          %2499 = vmatpush2.bf16.msra.mxu0 0
          %2500 = vmatprep.subr.bf16.mxu0 0
          %2501 = vmatpush2.bf16.msra.mxu0 0
          %2502 = vmatprep.subr.bf16.mxu0 0
          %2503 = vmatpush2.bf16.msra.mxu0 0
          %2504 = vmatprep.subr.bf16.mxu0 0
          %2505 = vmatpush2.bf16.msra.mxu0 0
          %2506 = vmatprep.subr.bf16.mxu0 0
          %2507 = vmatpush2.bf16.msra.mxu0 0
          %2508 = vmatprep.subr.bf16.mxu0 0
          %2509 = vmatpush2.bf16.msra.mxu0 0
          %2510 = vmatprep.subr.bf16.mxu0 0
          %2511 = vmatpush2.bf16.msra.mxu0 0
          %2512 = vmatprep.mubr.bf16.mxu0 0
          %2513 = vmatmul.mubr.bf16.gmra.mxu0 %v2414
          %v2514 = vpop.f32.mrf.mxu0
          %v2515 = vadd.f32 0.0, %v2514
          %v2516 = vpop.f32.mrf.mxu0
          %v2517 = vpop.f32.mrf.mxu0
          %v2518 = vadd.f32 0.0, %v2517
          %v2519 = vpop.f32.mrf.mxu0
          %2520 = vdwg.mxu0
          %v2521 = vadd.f32 %v2404, %v2515
          %v2522 = vadd.f32 %v2407, %v2518
          %s2523 = sadd.s32 %s2187, 1
          %s2524 = smul.u32 %s2523, 40
          %s2525 = scalar_lea.vmem [#allocation2], %s2524
          %v2526 = vld [vmem:[%s2525] ss:$2 sm:$0xff]
          %s2527 = scalar_lea.vmem %s2525, 16 [#allocation2]
          %v2528 = vld [vmem:[%s2527] ss:$2 sm:$0xff]
          %v2529 = vpack.c.bf16 %v2528, %v2526
          %s2530 = scalar_lea.vmem %s3, 192
          %v2531 = vld [vmem:[%s2530] sm:$0xf]
          %v2532 = vld [vmem:[%s2530 + $0x4] sm:$0xf]
          %v2533 = vld [vmem:[%s2530 + $0x8] sm:$0xf]
          %v2534 = vld [vmem:[%s2530 + $0xc] sm:$0xf]
          %v2535 = vld [vmem:[%s2530 + $0x10] sm:$0xf]
          %v2536 = vld [vmem:[%s2530 + $0x14] sm:$0xf]
          %v2537 = vld [vmem:[%s2530 + $0x18] sm:$0xf]
          %v2538 = vld [vmem:[%s2530 + $0x1c] sm:$0xf]
          %v2539 = vld [vmem:[%s2530 + $0x20] sm:$0xf]
          %v2540 = vld [vmem:[%s2530 + $0x24] sm:$0xf]
          %v2541 = vld [vmem:[%s2530 + $0x28] sm:$0xf]
          %v2542 = vld [vmem:[%s2530 + $0x2c] sm:$0xf]
          %v2543 = vld [vmem:[%s2530 + $0x30] sm:$0xf]
          %v2544 = vld [vmem:[%s2530 + $0x34] sm:$0xf]
          %v2545 = vld [vmem:[%s2530 + $0x38] sm:$0xf]
          %v2546 = vld [vmem:[%s2530 + $0x3c] sm:$0xf]
          %v2563 = vunpack.c.l.b16 %v2531
          %v2564 = vunpack.c.l.b16 %v2532
          %v2565 = vunpack.c.l.b16 %v2533
          %v2566 = vunpack.c.l.b16 %v2534
          %v2567 = vunpack.c.l.b16 %v2535
          %v2568 = vunpack.c.l.b16 %v2536
          %v2569 = vunpack.c.l.b16 %v2537
          %v2570 = vunpack.c.l.b16 %v2538
          %v2571 = vunpack.c.l.b16 %v2539
          %v2572 = vunpack.c.l.b16 %v2540
          %v2573 = vunpack.c.l.b16 %v2541
          %v2574 = vunpack.c.l.b16 %v2542
          %v2575 = vunpack.c.l.b16 %v2543
          %v2576 = vunpack.c.l.b16 %v2544
          %v2577 = vunpack.c.l.b16 %v2545
          %v2578 = vunpack.c.l.b16 %v2546
          %v2579 = vpack.c.b16 %v2564, %v2563
          %v2580 = vpack.c.b16 %v2566, %v2565
          %v2581 = vpack.c.b16 %v2568, %v2567
          %v2582 = vpack.c.b16 %v2570, %v2569
          %v2583 = vpack.c.b16 %v2572, %v2571
          %v2584 = vpack.c.b16 %v2574, %v2573
          %v2585 = vpack.c.b16 %v2576, %v2575
          %v2586 = vpack.c.b16 %v2578, %v2577
          %2595 = vmatprep.subr.bf16.mxu0 0
          %2596 = vmatpush1.bf16.msra.mxu0 %v2586
          %2597 = vmatprep.subr.bf16.mxu0 0
          %2598 = vmatpush1.bf16.msra.mxu0 %v2585
          %2599 = vmatprep.subr.bf16.mxu0 0
          %2600 = vmatpush1.bf16.msra.mxu0 %v2584
          %2601 = vmatprep.subr.bf16.mxu0 0
          %2602 = vmatpush1.bf16.msra.mxu0 %v2583
          %2603 = vmatprep.subr.bf16.mxu0 0
          %2604 = vmatpush1.bf16.msra.mxu0 %v2582
          %2605 = vmatprep.subr.bf16.mxu0 0
          %2606 = vmatpush1.bf16.msra.mxu0 %v2581
          %2607 = vmatprep.subr.bf16.mxu0 0
          %2608 = vmatpush1.bf16.msra.mxu0 %v2580
          %2609 = vmatprep.subr.bf16.mxu0 0
          %2610 = vmatpush1.bf16.msra.mxu0 %v2579
          %2611 = vmatprep.subr.bf16.mxu0 0
          %2612 = vmatpush2.bf16.msra.mxu0 0
          %2613 = vmatprep.subr.bf16.mxu0 0
          %2614 = vmatpush2.bf16.msra.mxu0 0
          %2615 = vmatprep.subr.bf16.mxu0 0
          %2616 = vmatpush2.bf16.msra.mxu0 0
          %2617 = vmatprep.subr.bf16.mxu0 0
          %2618 = vmatpush2.bf16.msra.mxu0 0
          %2619 = vmatprep.subr.bf16.mxu0 0
          %2620 = vmatpush2.bf16.msra.mxu0 0
          %2621 = vmatprep.subr.bf16.mxu0 0
          %2622 = vmatpush2.bf16.msra.mxu0 0
          %2623 = vmatprep.subr.bf16.mxu0 0
          %2624 = vmatpush2.bf16.msra.mxu0 0
          %2625 = vmatprep.subr.bf16.mxu0 0
          %2626 = vmatpush2.bf16.msra.mxu0 0
          %2627 = vmatprep.mubr.bf16.mxu0 0
          %2628 = vmatmul.mubr.bf16.gmra.mxu0 %v2529
          %v2629 = vpop.f32.mrf.mxu0
          %v2630 = vadd.f32 0.0, %v2629
          %v2631 = vpop.f32.mrf.mxu0
          %v2632 = vpop.f32.mrf.mxu0
          %v2633 = vadd.f32 0.0, %v2632
          %v2634 = vpop.f32.mrf.mxu0
          %2635 = vdwg.mxu0
          %v2636 = vadd.f32 %v2521, %v2630
          %v2637 = vadd.f32 %v2522, %v2633
          %s2638 = scalar_lea.vmem %s2525, 1 [#allocation2]
          %v2639 = vld [vmem:[%s2638] ss:$2 sm:$0xff]
          %s2640 = scalar_lea.vmem %s2525, 17 [#allocation2]
          %v2641 = vld [vmem:[%s2640] ss:$2 sm:$0xff]
          %v2642 = vpack.c.bf16 %v2641, %v2639
          %s2643 = scalar_lea.vmem %s3, 256
          %v2644 = vld [vmem:[%s2643] sm:$0xf]
          %v2645 = vld [vmem:[%s2643 + $0x4] sm:$0xf]
          %v2646 = vld [vmem:[%s2643 + $0x8] sm:$0xf]
          %v2647 = vld [vmem:[%s2643 + $0xc] sm:$0xf]
          %v2648 = vld [vmem:[%s2643 + $0x10] sm:$0xf]
          %v2649 = vld [vmem:[%s2643 + $0x14] sm:$0xf]
          %v2650 = vld [vmem:[%s2643 + $0x18] sm:$0xf]
          %v2651 = vld [vmem:[%s2643 + $0x1c] sm:$0xf]
          %v2652 = vld [vmem:[%s2643 + $0x20] sm:$0xf]
          %v2653 = vld [vmem:[%s2643 + $0x24] sm:$0xf]
          %v2654 = vld [vmem:[%s2643 + $0x28] sm:$0xf]
          %v2655 = vld [vmem:[%s2643 + $0x2c] sm:$0xf]
          %v2656 = vld [vmem:[%s2643 + $0x30] sm:$0xf]
          %v2657 = vld [vmem:[%s2643 + $0x34] sm:$0xf]
          %v2658 = vld [vmem:[%s2643 + $0x38] sm:$0xf]
          %v2659 = vld [vmem:[%s2643 + $0x3c] sm:$0xf]
          %v2676 = vunpack.c.l.b16 %v2644
          %v2677 = vunpack.c.l.b16 %v2645
          %v2678 = vunpack.c.l.b16 %v2646
          %v2679 = vunpack.c.l.b16 %v2647
          %v2680 = vunpack.c.l.b16 %v2648
          %v2681 = vunpack.c.l.b16 %v2649
          %v2682 = vunpack.c.l.b16 %v2650
          %v2683 = vunpack.c.l.b16 %v2651
          %v2684 = vunpack.c.l.b16 %v2652
          %v2685 = vunpack.c.l.b16 %v2653
          %v2686 = vunpack.c.l.b16 %v2654
          %v2687 = vunpack.c.l.b16 %v2655
          %v2688 = vunpack.c.l.b16 %v2656
          %v2689 = vunpack.c.l.b16 %v2657
          %v2690 = vunpack.c.l.b16 %v2658
          %v2691 = vunpack.c.l.b16 %v2659
          %v2692 = vpack.c.b16 %v2677, %v2676
          %v2693 = vpack.c.b16 %v2679, %v2678
          %v2694 = vpack.c.b16 %v2681, %v2680
          %v2695 = vpack.c.b16 %v2683, %v2682
          %v2696 = vpack.c.b16 %v2685, %v2684
          %v2697 = vpack.c.b16 %v2687, %v2686
          %v2698 = vpack.c.b16 %v2689, %v2688
          %v2699 = vpack.c.b16 %v2691, %v2690
          %2708 = vmatprep.subr.bf16.mxu0 0
          %2709 = vmatpush1.bf16.msra.mxu0 %v2699
          %2710 = vmatprep.subr.bf16.mxu0 0
          %2711 = vmatpush1.bf16.msra.mxu0 %v2698
          %2712 = vmatprep.subr.bf16.mxu0 0
          %2713 = vmatpush1.bf16.msra.mxu0 %v2697
          %2714 = vmatprep.subr.bf16.mxu0 0
          %2715 = vmatpush1.bf16.msra.mxu0 %v2696
          %2716 = vmatprep.subr.bf16.mxu0 0
          %2717 = vmatpush1.bf16.msra.mxu0 %v2695
          %2718 = vmatprep.subr.bf16.mxu0 0
          %2719 = vmatpush1.bf16.msra.mxu0 %v2694
          %2720 = vmatprep.subr.bf16.mxu0 0
          %2721 = vmatpush1.bf16.msra.mxu0 %v2693
          %2722 = vmatprep.subr.bf16.mxu0 0
          %2723 = vmatpush1.bf16.msra.mxu0 %v2692
          %2724 = vmatprep.subr.bf16.mxu0 0
          %2725 = vmatpush2.bf16.msra.mxu0 0
          %2726 = vmatprep.subr.bf16.mxu0 0
          %2727 = vmatpush2.bf16.msra.mxu0 0
          %2728 = vmatprep.subr.bf16.mxu0 0
          %2729 = vmatpush2.bf16.msra.mxu0 0
          %2730 = vmatprep.subr.bf16.mxu0 0
          %2731 = vmatpush2.bf16.msra.mxu0 0
          %2732 = vmatprep.subr.bf16.mxu0 0
          %2733 = vmatpush2.bf16.msra.mxu0 0
          %2734 = vmatprep.subr.bf16.mxu0 0
          %2735 = vmatpush2.bf16.msra.mxu0 0
          %2736 = vmatprep.subr.bf16.mxu0 0
          %2737 = vmatpush2.bf16.msra.mxu0 0
          %2738 = vmatprep.subr.bf16.mxu0 0
          %2739 = vmatpush2.bf16.msra.mxu0 0
          %2740 = vmatprep.mubr.bf16.mxu0 0
          %2741 = vmatmul.mubr.bf16.gmra.mxu0 %v2642
          %v2742 = vpop.f32.mrf.mxu0
          %v2743 = vadd.f32 0.0, %v2742
          %v2744 = vpop.f32.mrf.mxu0
          %v2745 = vpop.f32.mrf.mxu0
          %v2746 = vadd.f32 0.0, %v2745
          %v2747 = vpop.f32.mrf.mxu0
          %2748 = vdwg.mxu0
          %v2749 = vadd.f32 %v2636, %v2743
          %v2750 = vadd.f32 %v2637, %v2746
          %s2751 = scalar_lea.vmem %s2525, 2 [#allocation2]
          %v2752 = vld [vmem:[%s2751] ss:$2 sm:$0xff]
          %s2753 = scalar_lea.vmem %s2525, 18 [#allocation2]
          %v2754 = vld [vmem:[%s2753] ss:$2 sm:$0xff]
          %v2755 = vpack.c.bf16 %v2754, %v2752
          %s2756 = scalar_lea.vmem %s3, 320
          %v2757 = vld [vmem:[%s2756] sm:$0xf]
          %v2758 = vld [vmem:[%s2756 + $0x4] sm:$0xf]
          %v2759 = vld [vmem:[%s2756 + $0x8] sm:$0xf]
          %v2760 = vld [vmem:[%s2756 + $0xc] sm:$0xf]
          %v2761 = vld [vmem:[%s2756 + $0x10] sm:$0xf]
          %v2762 = vld [vmem:[%s2756 + $0x14] sm:$0xf]
          %v2763 = vld [vmem:[%s2756 + $0x18] sm:$0xf]
          %v2764 = vld [vmem:[%s2756 + $0x1c] sm:$0xf]
          %v2765 = vld [vmem:[%s2756 + $0x20] sm:$0xf]
          %v2766 = vld [vmem:[%s2756 + $0x24] sm:$0xf]
          %v2767 = vld [vmem:[%s2756 + $0x28] sm:$0xf]
          %v2768 = vld [vmem:[%s2756 + $0x2c] sm:$0xf]
          %v2769 = vld [vmem:[%s2756 + $0x30] sm:$0xf]
          %v2770 = vld [vmem:[%s2756 + $0x34] sm:$0xf]
          %v2771 = vld [vmem:[%s2756 + $0x38] sm:$0xf]
          %v2772 = vld [vmem:[%s2756 + $0x3c] sm:$0xf]
          %v2789 = vunpack.c.l.b16 %v2757
          %v2790 = vunpack.c.l.b16 %v2758
          %v2791 = vunpack.c.l.b16 %v2759
          %v2792 = vunpack.c.l.b16 %v2760
          %v2793 = vunpack.c.l.b16 %v2761
          %v2794 = vunpack.c.l.b16 %v2762
          %v2795 = vunpack.c.l.b16 %v2763
          %v2796 = vunpack.c.l.b16 %v2764
          %v2797 = vunpack.c.l.b16 %v2765
          %v2798 = vunpack.c.l.b16 %v2766
          %v2799 = vunpack.c.l.b16 %v2767
          %v2800 = vunpack.c.l.b16 %v2768
          %v2801 = vunpack.c.l.b16 %v2769
          %v2802 = vunpack.c.l.b16 %v2770
          %v2803 = vunpack.c.l.b16 %v2771
          %v2804 = vunpack.c.l.b16 %v2772
          %v2805 = vpack.c.b16 %v2790, %v2789
          %v2806 = vpack.c.b16 %v2792, %v2791
          %v2807 = vpack.c.b16 %v2794, %v2793
          %v2808 = vpack.c.b16 %v2796, %v2795
          %v2809 = vpack.c.b16 %v2798, %v2797
          %v2810 = vpack.c.b16 %v2800, %v2799
          %v2811 = vpack.c.b16 %v2802, %v2801
          %v2812 = vpack.c.b16 %v2804, %v2803
          %2821 = vmatprep.subr.bf16.mxu0 0
          %2822 = vmatpush1.bf16.msra.mxu0 %v2812
          %2823 = vmatprep.subr.bf16.mxu0 0
          %2824 = vmatpush1.bf16.msra.mxu0 %v2811
          %2825 = vmatprep.subr.bf16.mxu0 0
          %2826 = vmatpush1.bf16.msra.mxu0 %v2810
          %2827 = vmatprep.subr.bf16.mxu0 0
          %2828 = vmatpush1.bf16.msra.mxu0 %v2809
          %2829 = vmatprep.subr.bf16.mxu0 0
          %2830 = vmatpush1.bf16.msra.mxu0 %v2808
          %2831 = vmatprep.subr.bf16.mxu0 0
          %2832 = vmatpush1.bf16.msra.mxu0 %v2807
          %2833 = vmatprep.subr.bf16.mxu0 0
          %2834 = vmatpush1.bf16.msra.mxu0 %v2806
          %2835 = vmatprep.subr.bf16.mxu0 0
          %2836 = vmatpush1.bf16.msra.mxu0 %v2805
          %2837 = vmatprep.subr.bf16.mxu0 0
          %2838 = vmatpush2.bf16.msra.mxu0 0
          %2839 = vmatprep.subr.bf16.mxu0 0
          %2840 = vmatpush2.bf16.msra.mxu0 0
          %2841 = vmatprep.subr.bf16.mxu0 0
          %2842 = vmatpush2.bf16.msra.mxu0 0
          %2843 = vmatprep.subr.bf16.mxu0 0
          %2844 = vmatpush2.bf16.msra.mxu0 0
          %2845 = vmatprep.subr.bf16.mxu0 0
          %2846 = vmatpush2.bf16.msra.mxu0 0
          %2847 = vmatprep.subr.bf16.mxu0 0
          %2848 = vmatpush2.bf16.msra.mxu0 0
          %2849 = vmatprep.subr.bf16.mxu0 0
          %2850 = vmatpush2.bf16.msra.mxu0 0
          %2851 = vmatprep.subr.bf16.mxu0 0
          %2852 = vmatpush2.bf16.msra.mxu0 0
          %2853 = vmatprep.mubr.bf16.mxu0 0
          %2854 = vmatmul.mubr.bf16.gmra.mxu0 %v2755
          %v2855 = vpop.f32.mrf.mxu0
          %v2856 = vadd.f32 0.0, %v2855
          %v2857 = vpop.f32.mrf.mxu0
          %v2858 = vpop.f32.mrf.mxu0
          %v2859 = vadd.f32 0.0, %v2858
          %v2860 = vpop.f32.mrf.mxu0
          %2861 = vdwg.mxu0
          %v2862 = vadd.f32 %v2749, %v2856
          %v2863 = vadd.f32 %v2750, %v2859
          %s2864 = sadd.s32 %s2187, 2
          %s2865 = smul.u32 %s2864, 40
          %s2866 = scalar_lea.vmem [#allocation2], %s2865
          %v2867 = vld [vmem:[%s2866] ss:$2 sm:$0xff]
          %s2868 = scalar_lea.vmem %s2866, 16 [#allocation2]
          %v2869 = vld [vmem:[%s2868] ss:$2 sm:$0xff]
          %v2870 = vpack.c.bf16 %v2869, %v2867
          %s2871 = scalar_lea.vmem %s3, 384
          %v2872 = vld [vmem:[%s2871] sm:$0xf]
          %v2873 = vld [vmem:[%s2871 + $0x4] sm:$0xf]
          %v2874 = vld [vmem:[%s2871 + $0x8] sm:$0xf]
          %v2875 = vld [vmem:[%s2871 + $0xc] sm:$0xf]
          %v2876 = vld [vmem:[%s2871 + $0x10] sm:$0xf]
          %v2877 = vld [vmem:[%s2871 + $0x14] sm:$0xf]
          %v2878 = vld [vmem:[%s2871 + $0x18] sm:$0xf]
          %v2879 = vld [vmem:[%s2871 + $0x1c] sm:$0xf]
          %v2880 = vld [vmem:[%s2871 + $0x20] sm:$0xf]
          %v2881 = vld [vmem:[%s2871 + $0x24] sm:$0xf]
          %v2882 = vld [vmem:[%s2871 + $0x28] sm:$0xf]
          %v2883 = vld [vmem:[%s2871 + $0x2c] sm:$0xf]
          %v2884 = vld [vmem:[%s2871 + $0x30] sm:$0xf]
          %v2885 = vld [vmem:[%s2871 + $0x34] sm:$0xf]
          %v2886 = vld [vmem:[%s2871 + $0x38] sm:$0xf]
          %v2887 = vld [vmem:[%s2871 + $0x3c] sm:$0xf]
          %v2904 = vunpack.c.l.b16 %v2872
          %v2905 = vunpack.c.l.b16 %v2873
          %v2906 = vunpack.c.l.b16 %v2874
          %v2907 = vunpack.c.l.b16 %v2875
          %v2908 = vunpack.c.l.b16 %v2876
          %v2909 = vunpack.c.l.b16 %v2877
          %v2910 = vunpack.c.l.b16 %v2878
          %v2911 = vunpack.c.l.b16 %v2879
          %v2912 = vunpack.c.l.b16 %v2880
          %v2913 = vunpack.c.l.b16 %v2881
          %v2914 = vunpack.c.l.b16 %v2882
          %v2915 = vunpack.c.l.b16 %v2883
          %v2916 = vunpack.c.l.b16 %v2884
          %v2917 = vunpack.c.l.b16 %v2885
          %v2918 = vunpack.c.l.b16 %v2886
          %v2919 = vunpack.c.l.b16 %v2887
          %v2920 = vpack.c.b16 %v2905, %v2904
          %v2921 = vpack.c.b16 %v2907, %v2906
          %v2922 = vpack.c.b16 %v2909, %v2908
          %v2923 = vpack.c.b16 %v2911, %v2910
          %v2924 = vpack.c.b16 %v2913, %v2912
          %v2925 = vpack.c.b16 %v2915, %v2914
          %v2926 = vpack.c.b16 %v2917, %v2916
          %v2927 = vpack.c.b16 %v2919, %v2918
          %2936 = vmatprep.subr.bf16.mxu0 0
          %2937 = vmatpush1.bf16.msra.mxu0 %v2927
          %2938 = vmatprep.subr.bf16.mxu0 0
          %2939 = vmatpush1.bf16.msra.mxu0 %v2926
          %2940 = vmatprep.subr.bf16.mxu0 0
          %2941 = vmatpush1.bf16.msra.mxu0 %v2925
          %2942 = vmatprep.subr.bf16.mxu0 0
          %2943 = vmatpush1.bf16.msra.mxu0 %v2924
          %2944 = vmatprep.subr.bf16.mxu0 0
          %2945 = vmatpush1.bf16.msra.mxu0 %v2923
          %2946 = vmatprep.subr.bf16.mxu0 0
          %2947 = vmatpush1.bf16.msra.mxu0 %v2922
          %2948 = vmatprep.subr.bf16.mxu0 0
          %2949 = vmatpush1.bf16.msra.mxu0 %v2921
          %2950 = vmatprep.subr.bf16.mxu0 0
          %2951 = vmatpush1.bf16.msra.mxu0 %v2920
          %2952 = vmatprep.subr.bf16.mxu0 0
          %2953 = vmatpush2.bf16.msra.mxu0 0
          %2954 = vmatprep.subr.bf16.mxu0 0
          %2955 = vmatpush2.bf16.msra.mxu0 0
          %2956 = vmatprep.subr.bf16.mxu0 0
          %2957 = vmatpush2.bf16.msra.mxu0 0
          %2958 = vmatprep.subr.bf16.mxu0 0
          %2959 = vmatpush2.bf16.msra.mxu0 0
          %2960 = vmatprep.subr.bf16.mxu0 0
          %2961 = vmatpush2.bf16.msra.mxu0 0
          %2962 = vmatprep.subr.bf16.mxu0 0
          %2963 = vmatpush2.bf16.msra.mxu0 0
          %2964 = vmatprep.subr.bf16.mxu0 0
          %2965 = vmatpush2.bf16.msra.mxu0 0
          %2966 = vmatprep.subr.bf16.mxu0 0
          %2967 = vmatpush2.bf16.msra.mxu0 0
          %2968 = vmatprep.mubr.bf16.mxu0 0
          %2969 = vmatmul.mubr.bf16.gmra.mxu0 %v2870
          %v2970 = vpop.f32.mrf.mxu0
          %v2971 = vadd.f32 0.0, %v2970
          %v2972 = vpop.f32.mrf.mxu0
          %v2973 = vpop.f32.mrf.mxu0
          %v2974 = vadd.f32 0.0, %v2973
          %v2975 = vpop.f32.mrf.mxu0
          %2976 = vdwg.mxu0
          %v2977 = vadd.f32 %v2862, %v2971
          %v2978 = vadd.f32 %v2863, %v2974
          %s2979 = scalar_lea.vmem %s2866, 1 [#allocation2]
          %v2980 = vld [vmem:[%s2979] ss:$2 sm:$0xff]
          %s2981 = scalar_lea.vmem %s2866, 17 [#allocation2]
          %v2982 = vld [vmem:[%s2981] ss:$2 sm:$0xff]
          %v2983 = vpack.c.bf16 %v2982, %v2980
          %s2984 = scalar_lea.vmem %s3, 448
          %v2985 = vld [vmem:[%s2984] sm:$0xf]
          %v2986 = vld [vmem:[%s2984 + $0x4] sm:$0xf]
          %v2987 = vld [vmem:[%s2984 + $0x8] sm:$0xf]
          %v2988 = vld [vmem:[%s2984 + $0xc] sm:$0xf]
          %v2989 = vld [vmem:[%s2984 + $0x10] sm:$0xf]
          %v2990 = vld [vmem:[%s2984 + $0x14] sm:$0xf]
          %v2991 = vld [vmem:[%s2984 + $0x18] sm:$0xf]
          %v2992 = vld [vmem:[%s2984 + $0x1c] sm:$0xf]
          %v2993 = vld [vmem:[%s2984 + $0x20] sm:$0xf]
          %v2994 = vld [vmem:[%s2984 + $0x24] sm:$0xf]
          %v2995 = vld [vmem:[%s2984 + $0x28] sm:$0xf]
          %v2996 = vld [vmem:[%s2984 + $0x2c] sm:$0xf]
          %v2997 = vld [vmem:[%s2984 + $0x30] sm:$0xf]
          %v2998 = vld [vmem:[%s2984 + $0x34] sm:$0xf]
          %v2999 = vld [vmem:[%s2984 + $0x38] sm:$0xf]
          %v3000 = vld [vmem:[%s2984 + $0x3c] sm:$0xf]
          %v3017 = vunpack.c.l.b16 %v2985
          %v3018 = vunpack.c.l.b16 %v2986
          %v3019 = vunpack.c.l.b16 %v2987
          %v3020 = vunpack.c.l.b16 %v2988
          %v3021 = vunpack.c.l.b16 %v2989
          %v3022 = vunpack.c.l.b16 %v2990
          %v3023 = vunpack.c.l.b16 %v2991
          %v3024 = vunpack.c.l.b16 %v2992
          %v3025 = vunpack.c.l.b16 %v2993
          %v3026 = vunpack.c.l.b16 %v2994
          %v3027 = vunpack.c.l.b16 %v2995
          %v3028 = vunpack.c.l.b16 %v2996
          %v3029 = vunpack.c.l.b16 %v2997
          %v3030 = vunpack.c.l.b16 %v2998
          %v3031 = vunpack.c.l.b16 %v2999
          %v3032 = vunpack.c.l.b16 %v3000
          %v3033 = vpack.c.b16 %v3018, %v3017
          %v3034 = vpack.c.b16 %v3020, %v3019
          %v3035 = vpack.c.b16 %v3022, %v3021
          %v3036 = vpack.c.b16 %v3024, %v3023
          %v3037 = vpack.c.b16 %v3026, %v3025
          %v3038 = vpack.c.b16 %v3028, %v3027
          %v3039 = vpack.c.b16 %v3030, %v3029
          %v3040 = vpack.c.b16 %v3032, %v3031
          %3049 = vmatprep.subr.bf16.mxu0 0
          %3050 = vmatpush1.bf16.msra.mxu0 %v3040
          %3051 = vmatprep.subr.bf16.mxu0 0
          %3052 = vmatpush1.bf16.msra.mxu0 %v3039
          %3053 = vmatprep.subr.bf16.mxu0 0
          %3054 = vmatpush1.bf16.msra.mxu0 %v3038
          %3055 = vmatprep.subr.bf16.mxu0 0
          %3056 = vmatpush1.bf16.msra.mxu0 %v3037
          %3057 = vmatprep.subr.bf16.mxu0 0
          %3058 = vmatpush1.bf16.msra.mxu0 %v3036
          %3059 = vmatprep.subr.bf16.mxu0 0
          %3060 = vmatpush1.bf16.msra.mxu0 %v3035
          %3061 = vmatprep.subr.bf16.mxu0 0
          %3062 = vmatpush1.bf16.msra.mxu0 %v3034
          %3063 = vmatprep.subr.bf16.mxu0 0
          %3064 = vmatpush1.bf16.msra.mxu0 %v3033
          %3065 = vmatprep.subr.bf16.mxu0 0
          %3066 = vmatpush2.bf16.msra.mxu0 0
          %3067 = vmatprep.subr.bf16.mxu0 0
          %3068 = vmatpush2.bf16.msra.mxu0 0
          %3069 = vmatprep.subr.bf16.mxu0 0
          %3070 = vmatpush2.bf16.msra.mxu0 0
          %3071 = vmatprep.subr.bf16.mxu0 0
          %3072 = vmatpush2.bf16.msra.mxu0 0
          %3073 = vmatprep.subr.bf16.mxu0 0
          %3074 = vmatpush2.bf16.msra.mxu0 0
          %3075 = vmatprep.subr.bf16.mxu0 0
          %3076 = vmatpush2.bf16.msra.mxu0 0
          %3077 = vmatprep.subr.bf16.mxu0 0
          %3078 = vmatpush2.bf16.msra.mxu0 0
          %3079 = vmatprep.subr.bf16.mxu0 0
          %3080 = vmatpush2.bf16.msra.mxu0 0
          %3081 = vmatprep.mubr.bf16.mxu0 0
          %3082 = vmatmul.mubr.bf16.gmra.mxu0 %v2983
          %v3083 = vpop.f32.mrf.mxu0
          %v3084 = vadd.f32 0.0, %v3083
          %v3085 = vpop.f32.mrf.mxu0
          %v3086 = vpop.f32.mrf.mxu0
          %v3087 = vadd.f32 0.0, %v3086
          %v3088 = vpop.f32.mrf.mxu0
          %3089 = vdwg.mxu0
          %v3090 = vadd.f32 %v2977, %v3084
          %v3091 = vadd.f32 %v2978, %v3087
          %s3092 = scalar_lea.vmem %s2866, 2 [#allocation2]
          %v3093 = vld [vmem:[%s3092] ss:$2 sm:$0xff]
          %s3094 = scalar_lea.vmem %s2866, 18 [#allocation2]
          %v3095 = vld [vmem:[%s3094] ss:$2 sm:$0xff]
          %v3096 = vpack.c.bf16 %v3095, %v3093
          %s3097 = scalar_lea.vmem %s3, 512
          %v3098 = vld [vmem:[%s3097] sm:$0xf]
          %v3099 = vld [vmem:[%s3097 + $0x4] sm:$0xf]
          %v3100 = vld [vmem:[%s3097 + $0x8] sm:$0xf]
          %v3101 = vld [vmem:[%s3097 + $0xc] sm:$0xf]
          %v3102 = vld [vmem:[%s3097 + $0x10] sm:$0xf]
          %v3103 = vld [vmem:[%s3097 + $0x14] sm:$0xf]
          %v3104 = vld [vmem:[%s3097 + $0x18] sm:$0xf]
          %v3105 = vld [vmem:[%s3097 + $0x1c] sm:$0xf]
          %v3106 = vld [vmem:[%s3097 + $0x20] sm:$0xf]
          %v3107 = vld [vmem:[%s3097 + $0x24] sm:$0xf]
          %v3108 = vld [vmem:[%s3097 + $0x28] sm:$0xf]
          %v3109 = vld [vmem:[%s3097 + $0x2c] sm:$0xf]
          %v3110 = vld [vmem:[%s3097 + $0x30] sm:$0xf]
          %v3111 = vld [vmem:[%s3097 + $0x34] sm:$0xf]
          %v3112 = vld [vmem:[%s3097 + $0x38] sm:$0xf]
          %v3113 = vld [vmem:[%s3097 + $0x3c] sm:$0xf]
          %v3130 = vunpack.c.l.b16 %v3098
          %v3131 = vunpack.c.l.b16 %v3099
          %v3132 = vunpack.c.l.b16 %v3100
          %v3133 = vunpack.c.l.b16 %v3101
          %v3134 = vunpack.c.l.b16 %v3102
          %v3135 = vunpack.c.l.b16 %v3103
          %v3136 = vunpack.c.l.b16 %v3104
          %v3137 = vunpack.c.l.b16 %v3105
          %v3138 = vunpack.c.l.b16 %v3106
          %v3139 = vunpack.c.l.b16 %v3107
          %v3140 = vunpack.c.l.b16 %v3108
          %v3141 = vunpack.c.l.b16 %v3109
          %v3142 = vunpack.c.l.b16 %v3110
          %v3143 = vunpack.c.l.b16 %v3111
          %v3144 = vunpack.c.l.b16 %v3112
          %v3145 = vunpack.c.l.b16 %v3113
          %v3146 = vpack.c.b16 %v3131, %v3130
          %v3147 = vpack.c.b16 %v3133, %v3132
          %v3148 = vpack.c.b16 %v3135, %v3134
          %v3149 = vpack.c.b16 %v3137, %v3136
          %v3150 = vpack.c.b16 %v3139, %v3138
          %v3151 = vpack.c.b16 %v3141, %v3140
          %v3152 = vpack.c.b16 %v3143, %v3142
          %v3153 = vpack.c.b16 %v3145, %v3144
          %3162 = vmatprep.subr.bf16.mxu0 0
          %3163 = vmatpush1.bf16.msra.mxu0 %v3153
          %3164 = vmatprep.subr.bf16.mxu0 0
          %3165 = vmatpush1.bf16.msra.mxu0 %v3152
          %3166 = vmatprep.subr.bf16.mxu0 0
          %3167 = vmatpush1.bf16.msra.mxu0 %v3151
          %3168 = vmatprep.subr.bf16.mxu0 0
          %3169 = vmatpush1.bf16.msra.mxu0 %v3150
          %3170 = vmatprep.subr.bf16.mxu0 0
          %3171 = vmatpush1.bf16.msra.mxu0 %v3149
          %3172 = vmatprep.subr.bf16.mxu0 0
          %3173 = vmatpush1.bf16.msra.mxu0 %v3148
          %3174 = vmatprep.subr.bf16.mxu0 0
          %3175 = vmatpush1.bf16.msra.mxu0 %v3147
          %3176 = vmatprep.subr.bf16.mxu0 0
          %3177 = vmatpush1.bf16.msra.mxu0 %v3146
          %3178 = vmatprep.subr.bf16.mxu0 0
          %3179 = vmatpush2.bf16.msra.mxu0 0
          %3180 = vmatprep.subr.bf16.mxu0 0
          %3181 = vmatpush2.bf16.msra.mxu0 0
          %3182 = vmatprep.subr.bf16.mxu0 0
          %3183 = vmatpush2.bf16.msra.mxu0 0
          %3184 = vmatprep.subr.bf16.mxu0 0
          %3185 = vmatpush2.bf16.msra.mxu0 0
          %3186 = vmatprep.subr.bf16.mxu0 0
          %3187 = vmatpush2.bf16.msra.mxu0 0
          %3188 = vmatprep.subr.bf16.mxu0 0
          %3189 = vmatpush2.bf16.msra.mxu0 0
          %3190 = vmatprep.subr.bf16.mxu0 0
          %3191 = vmatpush2.bf16.msra.mxu0 0
          %3192 = vmatprep.subr.bf16.mxu0 0
          %3193 = vmatpush2.bf16.msra.mxu0 0
          %3194 = vmatprep.mubr.bf16.mxu0 0
          %3195 = vmatmul.mubr.bf16.gmra.mxu0 %v3096
          %v3196 = vpop.f32.mrf.mxu0
          %v3197 = vadd.f32 0.0, %v3196
          %v3198 = vpop.f32.mrf.mxu0
          %v3199 = vpop.f32.mrf.mxu0
          %v3200 = vadd.f32 0.0, %v3199
          %v3201 = vpop.f32.mrf.mxu0
          %3202 = vdwg.mxu0
          %v3203 = vadd.f32 %v3090, %v3197
          %v3204 = vadd.f32 %v3091, %v3200
          %v3206 = vlaneseq
          %v3207 = vshrl.u32 %v3206, 7
          %v3208 = vsub.s32 0, %v3207
          %v3209 = vrot.slane %v2180, %v3208
          %v3211 = vadd.f32 %v3203, %v3209
          %v3212 = vadd.f32 %v3204, %v3209
          %v3213 = vmax.f32 %v3211, 0.0
          %v3214 = vmax.f32 %v3212, 0.0
          %s3215 = sadd.s32 %s2182, 1
          %s3216 = smul.u32 %s3215, 24
          %s3217 = scalar_lea.vmem [#allocation3], %s3216
          %3218 = vst [vmem:[%s3217 + $0x1] sm:$0xff] %v3213
          %3219 = vst [vmem:[%s3217 + $0x9] sm:$0xff] %v3214
        $region124: #{model_forward.1} parent=111 // loop_footer
          %s2186 = sadd.s32 1, %s2182
        $region125: #{model_forward.1} parent=111 // loop_footer_branch
          %2181 = sbr.rel target = $region121
        $region126: #{model_forward.1} parent=111 // loop_exit
          _
        %v3220 = vld [vmem:[%s6] sm:$0x1]
        loop: start=0, step=1, limit=16
        $region127: #{model_forward.1} parent=111 // loop_pre_header
          _
        $region128: #{model_forward.1} parent=111 // loop_header
          %s3222 = sphi 0, %s3226
          %p3223 = scmp.ge.s32.totalorder %s3222, 16
        $region129: #{model_forward.1} parent=111 // loop_header_branch
          %3225 = sbr.rel (%p3223) target = $region133
        $region130: #{model_forward.1} parent=111 // loop_body
          %s3227 = smul.u32 %s3222, 2
          %s3228 = sadd.s32 %s3227, 1
          %s3229 = smul.u32 %s3228, 40
          %s3230 = scalar_lea.vmem [#allocation2], %s3229
          %s3231 = scalar_lea.vmem %s3230, 1 [#allocation2]
          %v3232 = vld [vmem:[%s3231] ss:$2 sm:$0xff]
          %s3233 = scalar_lea.vmem %s3230, 17 [#allocation2]
          %v3234 = vld [vmem:[%s3233] ss:$2 sm:$0xff]
          %v3235 = vpack.c.bf16 %v3234, %v3232
          %v3236 = vld [vmem:[%s5] sm:$0xf]
          %v3237 = vld [vmem:[%s5 + $0x4] sm:$0xf]
          %v3238 = vld [vmem:[%s5 + $0x8] sm:$0xf]
          %v3239 = vld [vmem:[%s5 + $0xc] sm:$0xf]
          %v3240 = vld [vmem:[%s5 + $0x10] sm:$0xf]
          %v3241 = vld [vmem:[%s5 + $0x14] sm:$0xf]
          %v3242 = vld [vmem:[%s5 + $0x18] sm:$0xf]
          %v3243 = vld [vmem:[%s5 + $0x1c] sm:$0xf]
          %v3244 = vld [vmem:[%s5 + $0x20] sm:$0xf]
          %v3245 = vld [vmem:[%s5 + $0x24] sm:$0xf]
          %v3246 = vld [vmem:[%s5 + $0x28] sm:$0xf]
          %v3247 = vld [vmem:[%s5 + $0x2c] sm:$0xf]
          %v3248 = vld [vmem:[%s5 + $0x30] sm:$0xf]
          %v3249 = vld [vmem:[%s5 + $0x34] sm:$0xf]
          %v3250 = vld [vmem:[%s5 + $0x38] sm:$0xf]
          %v3251 = vld [vmem:[%s5 + $0x3c] sm:$0xf]
          %v3253 = vlaneseq
          %v3254 = vshrl.u32 %v3253, 7
          %v3255 = vsub.s32 0, %v3254
          %v3256 = vrot.slane %v3220, %v3255
          %v3274 = vunpack.c.l.b16 %v3236
          %v3275 = vunpack.c.l.b16 %v3237
          %v3276 = vunpack.c.l.b16 %v3238
          %v3277 = vunpack.c.l.b16 %v3239
          %v3278 = vunpack.c.l.b16 %v3240
          %v3279 = vunpack.c.l.b16 %v3241
          %v3280 = vunpack.c.l.b16 %v3242
          %v3281 = vunpack.c.l.b16 %v3243
          %v3282 = vunpack.c.l.b16 %v3244
          %v3283 = vunpack.c.l.b16 %v3245
          %v3284 = vunpack.c.l.b16 %v3246
          %v3285 = vunpack.c.l.b16 %v3247
          %v3286 = vunpack.c.l.b16 %v3248
          %v3287 = vunpack.c.l.b16 %v3249
          %v3288 = vunpack.c.l.b16 %v3250
          %v3289 = vunpack.c.l.b16 %v3251
          %v3290 = vpack.c.b16 %v3275, %v3274
          %v3291 = vpack.c.b16 %v3277, %v3276
          %v3292 = vpack.c.b16 %v3279, %v3278
          %v3293 = vpack.c.b16 %v3281, %v3280
          %v3294 = vpack.c.b16 %v3283, %v3282
          %v3295 = vpack.c.b16 %v3285, %v3284
          %v3296 = vpack.c.b16 %v3287, %v3286
          %v3297 = vpack.c.b16 %v3289, %v3288
          %3306 = vmatprep.subr.bf16.mxu0 0
          %3307 = vmatpush1.bf16.msra.mxu0 %v3297
          %3308 = vmatprep.subr.bf16.mxu0 0
          %3309 = vmatpush1.bf16.msra.mxu0 %v3296
          %3310 = vmatprep.subr.bf16.mxu0 0
          %3311 = vmatpush1.bf16.msra.mxu0 %v3295
          %3312 = vmatprep.subr.bf16.mxu0 0
          %3313 = vmatpush1.bf16.msra.mxu0 %v3294
          %3314 = vmatprep.subr.bf16.mxu0 0
          %3315 = vmatpush1.bf16.msra.mxu0 %v3293
          %3316 = vmatprep.subr.bf16.mxu0 0
          %3317 = vmatpush1.bf16.msra.mxu0 %v3292
          %3318 = vmatprep.subr.bf16.mxu0 0
          %3319 = vmatpush1.bf16.msra.mxu0 %v3291
          %3320 = vmatprep.subr.bf16.mxu0 0
          %3321 = vmatpush1.bf16.msra.mxu0 %v3290
          %3322 = vmatprep.subr.bf16.mxu0 0
          %3323 = vmatpush2.bf16.msra.mxu0 0
          %3324 = vmatprep.subr.bf16.mxu0 0
          %3325 = vmatpush2.bf16.msra.mxu0 0
          %3326 = vmatprep.subr.bf16.mxu0 0
          %3327 = vmatpush2.bf16.msra.mxu0 0
          %3328 = vmatprep.subr.bf16.mxu0 0
          %3329 = vmatpush2.bf16.msra.mxu0 0
          %3330 = vmatprep.subr.bf16.mxu0 0
          %3331 = vmatpush2.bf16.msra.mxu0 0
          %3332 = vmatprep.subr.bf16.mxu0 0
          %3333 = vmatpush2.bf16.msra.mxu0 0
          %3334 = vmatprep.subr.bf16.mxu0 0
          %3335 = vmatpush2.bf16.msra.mxu0 0
          %3336 = vmatprep.subr.bf16.mxu0 0
          %3337 = vmatpush2.bf16.msra.mxu0 0
          %3338 = vmatprep.mubr.bf16.mxu0 0
          %3339 = vmatmul.mubr.bf16.gmra.mxu0 %v3235
          %v3340 = vpop.f32.mrf.mxu0
          %v3341 = vadd.f32 %v3256, %v3340
          %v3342 = vpop.f32.mrf.mxu0
          %v3343 = vpop.f32.mrf.mxu0
          %v3344 = vadd.f32 %v3256, %v3343
          %v3345 = vpop.f32.mrf.mxu0
          %3346 = vdwg.mxu0
          %s3347 = sadd.s32 %s3222, 1
          %s3348 = smul.u32 %s3347, 24
          %s3349 = scalar_lea.vmem [#allocation4], %s3348
          %3350 = vst [vmem:[%s3349 + $0x1] sm:$0xff] %v3341
          %3351 = vst [vmem:[%s3349 + $0x9] sm:$0xff] %v3344
        $region131: #{model_forward.1} parent=111 // loop_footer
          %s3226 = sadd.s32 1, %s3222
        $region132: #{model_forward.1} parent=111 // loop_footer_branch
          %3221 = sbr.rel target = $region128
        $region133: #{model_forward.1} parent=111 // loop_exit
          _
        %v3352 = vld [vmem:[%s8] sm:$0x1]
        loop: start=0, step=1, limit=16
        $region134: #{model_forward.1} parent=111 // loop_pre_header
          _
        $region135: #{model_forward.1} parent=111 // loop_header
          %s3354 = sphi 0, %s3358
          %p3355 = scmp.ge.s32.totalorder %s3354, 16
        $region136: #{model_forward.1} parent=111 // loop_header_branch
          %3357 = sbr.rel (%p3355) target = $region140
        $region137: #{model_forward.1} parent=111 // loop_body
          %s3359 = smul.u32 %s3354, 24
          %s3360 = scalar_lea.vmem [#allocation3], %s3359
          %v3361 = vld [vmem:[%s3360] sm:$0xff]
          %v3362 = vld [vmem:[%s3360 + $0x8] sm:$0xff]
          %v3363 = vpack.c.bf16 %v3362, %v3361
          %v3364 = vld [vmem:[%s7] sm:$0xf]
          %v3365 = vld [vmem:[%s7 + $0x4] sm:$0xf]
          %v3366 = vld [vmem:[%s7 + $0x8] sm:$0xf]
          %v3367 = vld [vmem:[%s7 + $0xc] sm:$0xf]
          %v3368 = vld [vmem:[%s7 + $0x10] sm:$0xf]
          %v3369 = vld [vmem:[%s7 + $0x14] sm:$0xf]
          %v3370 = vld [vmem:[%s7 + $0x18] sm:$0xf]
          %v3371 = vld [vmem:[%s7 + $0x1c] sm:$0xf]
          %v3372 = vld [vmem:[%s7 + $0x20] sm:$0xf]
          %v3373 = vld [vmem:[%s7 + $0x24] sm:$0xf]
          %v3374 = vld [vmem:[%s7 + $0x28] sm:$0xf]
          %v3375 = vld [vmem:[%s7 + $0x2c] sm:$0xf]
          %v3376 = vld [vmem:[%s7 + $0x30] sm:$0xf]
          %v3377 = vld [vmem:[%s7 + $0x34] sm:$0xf]
          %v3378 = vld [vmem:[%s7 + $0x38] sm:$0xf]
          %v3379 = vld [vmem:[%s7 + $0x3c] sm:$0xf]
          %v3380 = vld [vmem:[%s3360 + $0x1] sm:$0xff]
          %v3381 = vld [vmem:[%s3360 + $0x9] sm:$0xff]
          %v3382 = vpack.c.bf16 %v3381, %v3380
          %s3383 = scalar_lea.vmem %s7, 64
          %v3384 = vld [vmem:[%s3383] sm:$0xf]
          %v3385 = vld [vmem:[%s3383 + $0x4] sm:$0xf]
          %v3386 = vld [vmem:[%s3383 + $0x8] sm:$0xf]
          %v3387 = vld [vmem:[%s3383 + $0xc] sm:$0xf]
          %v3388 = vld [vmem:[%s3383 + $0x10] sm:$0xf]
          %v3389 = vld [vmem:[%s3383 + $0x14] sm:$0xf]
          %v3390 = vld [vmem:[%s3383 + $0x18] sm:$0xf]
          %v3391 = vld [vmem:[%s3383 + $0x1c] sm:$0xf]
          %v3392 = vld [vmem:[%s3383 + $0x20] sm:$0xf]
          %v3393 = vld [vmem:[%s3383 + $0x24] sm:$0xf]
          %v3394 = vld [vmem:[%s3383 + $0x28] sm:$0xf]
          %v3395 = vld [vmem:[%s3383 + $0x2c] sm:$0xf]
          %v3396 = vld [vmem:[%s3383 + $0x30] sm:$0xf]
          %v3397 = vld [vmem:[%s3383 + $0x34] sm:$0xf]
          %v3398 = vld [vmem:[%s3383 + $0x38] sm:$0xf]
          %v3399 = vld [vmem:[%s3383 + $0x3c] sm:$0xf]
          %v3416 = vunpack.c.l.b16 %v3384
          %v3417 = vunpack.c.l.b16 %v3385
          %v3418 = vunpack.c.l.b16 %v3386
          %v3419 = vunpack.c.l.b16 %v3387
          %v3420 = vunpack.c.l.b16 %v3388
          %v3421 = vunpack.c.l.b16 %v3389
          %v3422 = vunpack.c.l.b16 %v3390
          %v3423 = vunpack.c.l.b16 %v3391
          %v3424 = vunpack.c.l.b16 %v3392
          %v3425 = vunpack.c.l.b16 %v3393
          %v3426 = vunpack.c.l.b16 %v3394
          %v3427 = vunpack.c.l.b16 %v3395
          %v3428 = vunpack.c.l.b16 %v3396
          %v3429 = vunpack.c.l.b16 %v3397
          %v3430 = vunpack.c.l.b16 %v3398
          %v3431 = vunpack.c.l.b16 %v3399
          %v3432 = vpack.c.b16 %v3417, %v3416
          %v3433 = vpack.c.b16 %v3419, %v3418
          %v3434 = vpack.c.b16 %v3421, %v3420
          %v3435 = vpack.c.b16 %v3423, %v3422
          %v3436 = vpack.c.b16 %v3425, %v3424
          %v3437 = vpack.c.b16 %v3427, %v3426
          %v3438 = vpack.c.b16 %v3429, %v3428
          %v3439 = vpack.c.b16 %v3431, %v3430
          %3448 = vmatprep.subr.bf16.mxu0 0
          %3449 = vmatpush1.bf16.msra.mxu0 %v3439
          %3450 = vmatprep.subr.bf16.mxu0 0
          %3451 = vmatpush1.bf16.msra.mxu0 %v3438
          %3452 = vmatprep.subr.bf16.mxu0 0
          %3453 = vmatpush1.bf16.msra.mxu0 %v3437
          %3454 = vmatprep.subr.bf16.mxu0 0
          %3455 = vmatpush1.bf16.msra.mxu0 %v3436
          %3456 = vmatprep.subr.bf16.mxu0 0
          %3457 = vmatpush1.bf16.msra.mxu0 %v3435
          %3458 = vmatprep.subr.bf16.mxu0 0
          %3459 = vmatpush1.bf16.msra.mxu0 %v3434
          %3460 = vmatprep.subr.bf16.mxu0 0
          %3461 = vmatpush1.bf16.msra.mxu0 %v3433
          %3462 = vmatprep.subr.bf16.mxu0 0
          %3463 = vmatpush1.bf16.msra.mxu0 %v3432
          %3464 = vmatprep.subr.bf16.mxu0 0
          %3465 = vmatpush2.bf16.msra.mxu0 0
          %3466 = vmatprep.subr.bf16.mxu0 0
          %3467 = vmatpush2.bf16.msra.mxu0 0
          %3468 = vmatprep.subr.bf16.mxu0 0
          %3469 = vmatpush2.bf16.msra.mxu0 0
          %3470 = vmatprep.subr.bf16.mxu0 0
          %3471 = vmatpush2.bf16.msra.mxu0 0
          %3472 = vmatprep.subr.bf16.mxu0 0
          %3473 = vmatpush2.bf16.msra.mxu0 0
          %3474 = vmatprep.subr.bf16.mxu0 0
          %3475 = vmatpush2.bf16.msra.mxu0 0
          %3476 = vmatprep.subr.bf16.mxu0 0
          %3477 = vmatpush2.bf16.msra.mxu0 0
          %3478 = vmatprep.subr.bf16.mxu0 0
          %3479 = vmatpush2.bf16.msra.mxu0 0
          %3480 = vmatprep.mubr.bf16.mxu0 0
          %3481 = vmatmul.mubr.bf16.gmra.mxu0 %v3382
          %v3482 = vpop.f32.mrf.mxu0
          %v3483 = vadd.f32 0.0, %v3482
          %v3484 = vpop.f32.mrf.mxu0
          %v3485 = vpop.f32.mrf.mxu0
          %v3486 = vadd.f32 0.0, %v3485
          %v3487 = vpop.f32.mrf.mxu0
          %3488 = vdwg.mxu0
          %v3505 = vunpack.c.l.b16 %v3364
          %v3506 = vunpack.c.l.b16 %v3365
          %v3507 = vunpack.c.l.b16 %v3366
          %v3508 = vunpack.c.l.b16 %v3367
          %v3509 = vunpack.c.l.b16 %v3368
          %v3510 = vunpack.c.l.b16 %v3369
          %v3511 = vunpack.c.l.b16 %v3370
          %v3512 = vunpack.c.l.b16 %v3371
          %v3513 = vunpack.c.l.b16 %v3372
          %v3514 = vunpack.c.l.b16 %v3373
          %v3515 = vunpack.c.l.b16 %v3374
          %v3516 = vunpack.c.l.b16 %v3375
          %v3517 = vunpack.c.l.b16 %v3376
          %v3518 = vunpack.c.l.b16 %v3377
          %v3519 = vunpack.c.l.b16 %v3378
          %v3520 = vunpack.c.l.b16 %v3379
          %v3521 = vpack.c.b16 %v3506, %v3505
          %v3522 = vpack.c.b16 %v3508, %v3507
          %v3523 = vpack.c.b16 %v3510, %v3509
          %v3524 = vpack.c.b16 %v3512, %v3511
          %v3525 = vpack.c.b16 %v3514, %v3513
          %v3526 = vpack.c.b16 %v3516, %v3515
          %v3527 = vpack.c.b16 %v3518, %v3517
          %v3528 = vpack.c.b16 %v3520, %v3519
          %3537 = vmatprep.subr.bf16.mxu0 0
          %3538 = vmatpush1.bf16.msra.mxu0 %v3528
          %3539 = vmatprep.subr.bf16.mxu0 0
          %3540 = vmatpush1.bf16.msra.mxu0 %v3527
          %3541 = vmatprep.subr.bf16.mxu0 0
          %3542 = vmatpush1.bf16.msra.mxu0 %v3526
          %3543 = vmatprep.subr.bf16.mxu0 0
          %3544 = vmatpush1.bf16.msra.mxu0 %v3525
          %3545 = vmatprep.subr.bf16.mxu0 0
          %3546 = vmatpush1.bf16.msra.mxu0 %v3524
          %3547 = vmatprep.subr.bf16.mxu0 0
          %3548 = vmatpush1.bf16.msra.mxu0 %v3523
          %3549 = vmatprep.subr.bf16.mxu0 0
          %3550 = vmatpush1.bf16.msra.mxu0 %v3522
          %3551 = vmatprep.subr.bf16.mxu0 0
          %3552 = vmatpush1.bf16.msra.mxu0 %v3521
          %3553 = vmatprep.subr.bf16.mxu0 0
          %3554 = vmatpush2.bf16.msra.mxu0 0
          %3555 = vmatprep.subr.bf16.mxu0 0
          %3556 = vmatpush2.bf16.msra.mxu0 0
          %3557 = vmatprep.subr.bf16.mxu0 0
          %3558 = vmatpush2.bf16.msra.mxu0 0
          %3559 = vmatprep.subr.bf16.mxu0 0
          %3560 = vmatpush2.bf16.msra.mxu0 0
          %3561 = vmatprep.subr.bf16.mxu0 0
          %3562 = vmatpush2.bf16.msra.mxu0 0
          %3563 = vmatprep.subr.bf16.mxu0 0
          %3564 = vmatpush2.bf16.msra.mxu0 0
          %3565 = vmatprep.subr.bf16.mxu0 0
          %3566 = vmatpush2.bf16.msra.mxu0 0
          %3567 = vmatprep.subr.bf16.mxu0 0
          %3568 = vmatpush2.bf16.msra.mxu0 0
          %3569 = vmatprep.mubr.bf16.mxu0 0
          %3570 = vmatmul.mubr.bf16.gmra.mxu0 %v3363
          %v3571 = vpop.f32.mrf.mxu0
          %v3572 = vadd.f32 %v3483, %v3571
          %v3573 = vpop.f32.mrf.mxu0
          %v3574 = vpop.f32.mrf.mxu0
          %v3575 = vadd.f32 %v3486, %v3574
          %v3576 = vpop.f32.mrf.mxu0
          %3577 = vdwg.mxu0
          %v3578 = vld [vmem:[%s3360 + $0x2] sm:$0xff]
          %v3579 = vld [vmem:[%s3360 + $0xa] sm:$0xff]
          %v3580 = vpack.c.bf16 %v3579, %v3578
          %s3581 = scalar_lea.vmem %s7, 128
          %v3582 = vld [vmem:[%s3581] sm:$0xf]
          %v3583 = vld [vmem:[%s3581 + $0x4] sm:$0xf]
          %v3584 = vld [vmem:[%s3581 + $0x8] sm:$0xf]
          %v3585 = vld [vmem:[%s3581 + $0xc] sm:$0xf]
          %v3586 = vld [vmem:[%s3581 + $0x10] sm:$0xf]
          %v3587 = vld [vmem:[%s3581 + $0x14] sm:$0xf]
          %v3588 = vld [vmem:[%s3581 + $0x18] sm:$0xf]
          %v3589 = vld [vmem:[%s3581 + $0x1c] sm:$0xf]
          %v3590 = vld [vmem:[%s3581 + $0x20] sm:$0xf]
          %v3591 = vld [vmem:[%s3581 + $0x24] sm:$0xf]
          %v3592 = vld [vmem:[%s3581 + $0x28] sm:$0xf]
          %v3593 = vld [vmem:[%s3581 + $0x2c] sm:$0xf]
          %v3594 = vld [vmem:[%s3581 + $0x30] sm:$0xf]
          %v3595 = vld [vmem:[%s3581 + $0x34] sm:$0xf]
          %v3596 = vld [vmem:[%s3581 + $0x38] sm:$0xf]
          %v3597 = vld [vmem:[%s3581 + $0x3c] sm:$0xf]
          %v3614 = vunpack.c.l.b16 %v3582
          %v3615 = vunpack.c.l.b16 %v3583
          %v3616 = vunpack.c.l.b16 %v3584
          %v3617 = vunpack.c.l.b16 %v3585
          %v3618 = vunpack.c.l.b16 %v3586
          %v3619 = vunpack.c.l.b16 %v3587
          %v3620 = vunpack.c.l.b16 %v3588
          %v3621 = vunpack.c.l.b16 %v3589
          %v3622 = vunpack.c.l.b16 %v3590
          %v3623 = vunpack.c.l.b16 %v3591
          %v3624 = vunpack.c.l.b16 %v3592
          %v3625 = vunpack.c.l.b16 %v3593
          %v3626 = vunpack.c.l.b16 %v3594
          %v3627 = vunpack.c.l.b16 %v3595
          %v3628 = vunpack.c.l.b16 %v3596
          %v3629 = vunpack.c.l.b16 %v3597
          %v3630 = vpack.c.b16 %v3615, %v3614
          %v3631 = vpack.c.b16 %v3617, %v3616
          %v3632 = vpack.c.b16 %v3619, %v3618
          %v3633 = vpack.c.b16 %v3621, %v3620
          %v3634 = vpack.c.b16 %v3623, %v3622
          %v3635 = vpack.c.b16 %v3625, %v3624
          %v3636 = vpack.c.b16 %v3627, %v3626
          %v3637 = vpack.c.b16 %v3629, %v3628
          %3646 = vmatprep.subr.bf16.mxu0 0
          %3647 = vmatpush1.bf16.msra.mxu0 %v3637
          %3648 = vmatprep.subr.bf16.mxu0 0
          %3649 = vmatpush1.bf16.msra.mxu0 %v3636
          %3650 = vmatprep.subr.bf16.mxu0 0
          %3651 = vmatpush1.bf16.msra.mxu0 %v3635
          %3652 = vmatprep.subr.bf16.mxu0 0
          %3653 = vmatpush1.bf16.msra.mxu0 %v3634
          %3654 = vmatprep.subr.bf16.mxu0 0
          %3655 = vmatpush1.bf16.msra.mxu0 %v3633
          %3656 = vmatprep.subr.bf16.mxu0 0
          %3657 = vmatpush1.bf16.msra.mxu0 %v3632
          %3658 = vmatprep.subr.bf16.mxu0 0
          %3659 = vmatpush1.bf16.msra.mxu0 %v3631
          %3660 = vmatprep.subr.bf16.mxu0 0
          %3661 = vmatpush1.bf16.msra.mxu0 %v3630
          %3662 = vmatprep.subr.bf16.mxu0 0
          %3663 = vmatpush2.bf16.msra.mxu0 0
          %3664 = vmatprep.subr.bf16.mxu0 0
          %3665 = vmatpush2.bf16.msra.mxu0 0
          %3666 = vmatprep.subr.bf16.mxu0 0
          %3667 = vmatpush2.bf16.msra.mxu0 0
          %3668 = vmatprep.subr.bf16.mxu0 0
          %3669 = vmatpush2.bf16.msra.mxu0 0
          %3670 = vmatprep.subr.bf16.mxu0 0
          %3671 = vmatpush2.bf16.msra.mxu0 0
          %3672 = vmatprep.subr.bf16.mxu0 0
          %3673 = vmatpush2.bf16.msra.mxu0 0
          %3674 = vmatprep.subr.bf16.mxu0 0
          %3675 = vmatpush2.bf16.msra.mxu0 0
          %3676 = vmatprep.subr.bf16.mxu0 0
          %3677 = vmatpush2.bf16.msra.mxu0 0
          %3678 = vmatprep.mubr.bf16.mxu0 0
          %3679 = vmatmul.mubr.bf16.gmra.mxu0 %v3580
          %v3680 = vpop.f32.mrf.mxu0
          %v3681 = vadd.f32 0.0, %v3680
          %v3682 = vpop.f32.mrf.mxu0
          %v3683 = vpop.f32.mrf.mxu0
          %v3684 = vadd.f32 0.0, %v3683
          %v3685 = vpop.f32.mrf.mxu0
          %3686 = vdwg.mxu0
          %v3687 = vadd.f32 %v3572, %v3681
          %v3688 = vadd.f32 %v3575, %v3684
          %s3689 = sadd.s32 %s3354, 1
          %s3690 = smul.u32 %s3689, 24
          %s3691 = scalar_lea.vmem [#allocation3], %s3690
          %v3692 = vld [vmem:[%s3691] sm:$0xff]
          %v3693 = vld [vmem:[%s3691 + $0x8] sm:$0xff]
          %v3694 = vpack.c.bf16 %v3693, %v3692
          %s3695 = scalar_lea.vmem %s7, 192
          %v3696 = vld [vmem:[%s3695] sm:$0xf]
          %v3697 = vld [vmem:[%s3695 + $0x4] sm:$0xf]
          %v3698 = vld [vmem:[%s3695 + $0x8] sm:$0xf]
          %v3699 = vld [vmem:[%s3695 + $0xc] sm:$0xf]
          %v3700 = vld [vmem:[%s3695 + $0x10] sm:$0xf]
          %v3701 = vld [vmem:[%s3695 + $0x14] sm:$0xf]
          %v3702 = vld [vmem:[%s3695 + $0x18] sm:$0xf]
          %v3703 = vld [vmem:[%s3695 + $0x1c] sm:$0xf]
          %v3704 = vld [vmem:[%s3695 + $0x20] sm:$0xf]
          %v3705 = vld [vmem:[%s3695 + $0x24] sm:$0xf]
          %v3706 = vld [vmem:[%s3695 + $0x28] sm:$0xf]
          %v3707 = vld [vmem:[%s3695 + $0x2c] sm:$0xf]
          %v3708 = vld [vmem:[%s3695 + $0x30] sm:$0xf]
          %v3709 = vld [vmem:[%s3695 + $0x34] sm:$0xf]
          %v3710 = vld [vmem:[%s3695 + $0x38] sm:$0xf]
          %v3711 = vld [vmem:[%s3695 + $0x3c] sm:$0xf]
          %v3728 = vunpack.c.l.b16 %v3696
          %v3729 = vunpack.c.l.b16 %v3697
          %v3730 = vunpack.c.l.b16 %v3698
          %v3731 = vunpack.c.l.b16 %v3699
          %v3732 = vunpack.c.l.b16 %v3700
          %v3733 = vunpack.c.l.b16 %v3701
          %v3734 = vunpack.c.l.b16 %v3702
          %v3735 = vunpack.c.l.b16 %v3703
          %v3736 = vunpack.c.l.b16 %v3704
          %v3737 = vunpack.c.l.b16 %v3705
          %v3738 = vunpack.c.l.b16 %v3706
          %v3739 = vunpack.c.l.b16 %v3707
          %v3740 = vunpack.c.l.b16 %v3708
          %v3741 = vunpack.c.l.b16 %v3709
          %v3742 = vunpack.c.l.b16 %v3710
          %v3743 = vunpack.c.l.b16 %v3711
          %v3744 = vpack.c.b16 %v3729, %v3728
          %v3745 = vpack.c.b16 %v3731, %v3730
          %v3746 = vpack.c.b16 %v3733, %v3732
          %v3747 = vpack.c.b16 %v3735, %v3734
          %v3748 = vpack.c.b16 %v3737, %v3736
          %v3749 = vpack.c.b16 %v3739, %v3738
          %v3750 = vpack.c.b16 %v3741, %v3740
          %v3751 = vpack.c.b16 %v3743, %v3742
          %3760 = vmatprep.subr.bf16.mxu0 0
          %3761 = vmatpush1.bf16.msra.mxu0 %v3751
          %3762 = vmatprep.subr.bf16.mxu0 0
          %3763 = vmatpush1.bf16.msra.mxu0 %v3750
          %3764 = vmatprep.subr.bf16.mxu0 0
          %3765 = vmatpush1.bf16.msra.mxu0 %v3749
          %3766 = vmatprep.subr.bf16.mxu0 0
          %3767 = vmatpush1.bf16.msra.mxu0 %v3748
          %3768 = vmatprep.subr.bf16.mxu0 0
          %3769 = vmatpush1.bf16.msra.mxu0 %v3747
          %3770 = vmatprep.subr.bf16.mxu0 0
          %3771 = vmatpush1.bf16.msra.mxu0 %v3746
          %3772 = vmatprep.subr.bf16.mxu0 0
          %3773 = vmatpush1.bf16.msra.mxu0 %v3745
          %3774 = vmatprep.subr.bf16.mxu0 0
          %3775 = vmatpush1.bf16.msra.mxu0 %v3744
          %3776 = vmatprep.subr.bf16.mxu0 0
          %3777 = vmatpush2.bf16.msra.mxu0 0
          %3778 = vmatprep.subr.bf16.mxu0 0
          %3779 = vmatpush2.bf16.msra.mxu0 0
          %3780 = vmatprep.subr.bf16.mxu0 0
          %3781 = vmatpush2.bf16.msra.mxu0 0
          %3782 = vmatprep.subr.bf16.mxu0 0
          %3783 = vmatpush2.bf16.msra.mxu0 0
          %3784 = vmatprep.subr.bf16.mxu0 0
          %3785 = vmatpush2.bf16.msra.mxu0 0
          %3786 = vmatprep.subr.bf16.mxu0 0
          %3787 = vmatpush2.bf16.msra.mxu0 0
          %3788 = vmatprep.subr.bf16.mxu0 0
          %3789 = vmatpush2.bf16.msra.mxu0 0
          %3790 = vmatprep.subr.bf16.mxu0 0
          %3791 = vmatpush2.bf16.msra.mxu0 0
          %3792 = vmatprep.mubr.bf16.mxu0 0
          %3793 = vmatmul.mubr.bf16.gmra.mxu0 %v3694
          %v3794 = vpop.f32.mrf.mxu0
          %v3795 = vadd.f32 0.0, %v3794
          %v3796 = vpop.f32.mrf.mxu0
          %v3797 = vpop.f32.mrf.mxu0
          %v3798 = vadd.f32 0.0, %v3797
          %v3799 = vpop.f32.mrf.mxu0
          %3800 = vdwg.mxu0
          %v3801 = vadd.f32 %v3687, %v3795
          %v3802 = vadd.f32 %v3688, %v3798
          %v3803 = vld [vmem:[%s3691 + $0x1] sm:$0xff]
          %v3804 = vld [vmem:[%s3691 + $0x9] sm:$0xff]
          %v3805 = vpack.c.bf16 %v3804, %v3803
          %s3806 = scalar_lea.vmem %s7, 256
          %v3807 = vld [vmem:[%s3806] sm:$0xf]
          %v3808 = vld [vmem:[%s3806 + $0x4] sm:$0xf]
          %v3809 = vld [vmem:[%s3806 + $0x8] sm:$0xf]
          %v3810 = vld [vmem:[%s3806 + $0xc] sm:$0xf]
          %v3811 = vld [vmem:[%s3806 + $0x10] sm:$0xf]
          %v3812 = vld [vmem:[%s3806 + $0x14] sm:$0xf]
          %v3813 = vld [vmem:[%s3806 + $0x18] sm:$0xf]
          %v3814 = vld [vmem:[%s3806 + $0x1c] sm:$0xf]
          %v3815 = vld [vmem:[%s3806 + $0x20] sm:$0xf]
          %v3816 = vld [vmem:[%s3806 + $0x24] sm:$0xf]
          %v3817 = vld [vmem:[%s3806 + $0x28] sm:$0xf]
          %v3818 = vld [vmem:[%s3806 + $0x2c] sm:$0xf]
          %v3819 = vld [vmem:[%s3806 + $0x30] sm:$0xf]
          %v3820 = vld [vmem:[%s3806 + $0x34] sm:$0xf]
          %v3821 = vld [vmem:[%s3806 + $0x38] sm:$0xf]
          %v3822 = vld [vmem:[%s3806 + $0x3c] sm:$0xf]
          %v3839 = vunpack.c.l.b16 %v3807
          %v3840 = vunpack.c.l.b16 %v3808
          %v3841 = vunpack.c.l.b16 %v3809
          %v3842 = vunpack.c.l.b16 %v3810
          %v3843 = vunpack.c.l.b16 %v3811
          %v3844 = vunpack.c.l.b16 %v3812
          %v3845 = vunpack.c.l.b16 %v3813
          %v3846 = vunpack.c.l.b16 %v3814
          %v3847 = vunpack.c.l.b16 %v3815
          %v3848 = vunpack.c.l.b16 %v3816
          %v3849 = vunpack.c.l.b16 %v3817
          %v3850 = vunpack.c.l.b16 %v3818
          %v3851 = vunpack.c.l.b16 %v3819
          %v3852 = vunpack.c.l.b16 %v3820
          %v3853 = vunpack.c.l.b16 %v3821
          %v3854 = vunpack.c.l.b16 %v3822
          %v3855 = vpack.c.b16 %v3840, %v3839
          %v3856 = vpack.c.b16 %v3842, %v3841
          %v3857 = vpack.c.b16 %v3844, %v3843
          %v3858 = vpack.c.b16 %v3846, %v3845
          %v3859 = vpack.c.b16 %v3848, %v3847
          %v3860 = vpack.c.b16 %v3850, %v3849
          %v3861 = vpack.c.b16 %v3852, %v3851
          %v3862 = vpack.c.b16 %v3854, %v3853
          %3871 = vmatprep.subr.bf16.mxu0 0
          %3872 = vmatpush1.bf16.msra.mxu0 %v3862
          %3873 = vmatprep.subr.bf16.mxu0 0
          %3874 = vmatpush1.bf16.msra.mxu0 %v3861
          %3875 = vmatprep.subr.bf16.mxu0 0
          %3876 = vmatpush1.bf16.msra.mxu0 %v3860
          %3877 = vmatprep.subr.bf16.mxu0 0
          %3878 = vmatpush1.bf16.msra.mxu0 %v3859
          %3879 = vmatprep.subr.bf16.mxu0 0
          %3880 = vmatpush1.bf16.msra.mxu0 %v3858
          %3881 = vmatprep.subr.bf16.mxu0 0
          %3882 = vmatpush1.bf16.msra.mxu0 %v3857
          %3883 = vmatprep.subr.bf16.mxu0 0
          %3884 = vmatpush1.bf16.msra.mxu0 %v3856
          %3885 = vmatprep.subr.bf16.mxu0 0
          %3886 = vmatpush1.bf16.msra.mxu0 %v3855
          %3887 = vmatprep.subr.bf16.mxu0 0
          %3888 = vmatpush2.bf16.msra.mxu0 0
          %3889 = vmatprep.subr.bf16.mxu0 0
          %3890 = vmatpush2.bf16.msra.mxu0 0
          %3891 = vmatprep.subr.bf16.mxu0 0
          %3892 = vmatpush2.bf16.msra.mxu0 0
          %3893 = vmatprep.subr.bf16.mxu0 0
          %3894 = vmatpush2.bf16.msra.mxu0 0
          %3895 = vmatprep.subr.bf16.mxu0 0
          %3896 = vmatpush2.bf16.msra.mxu0 0
          %3897 = vmatprep.subr.bf16.mxu0 0
          %3898 = vmatpush2.bf16.msra.mxu0 0
          %3899 = vmatprep.subr.bf16.mxu0 0
          %3900 = vmatpush2.bf16.msra.mxu0 0
          %3901 = vmatprep.subr.bf16.mxu0 0
          %3902 = vmatpush2.bf16.msra.mxu0 0
          %3903 = vmatprep.mubr.bf16.mxu0 0
          %3904 = vmatmul.mubr.bf16.gmra.mxu0 %v3805
          %v3905 = vpop.f32.mrf.mxu0
          %v3906 = vadd.f32 0.0, %v3905
          %v3907 = vpop.f32.mrf.mxu0
          %v3908 = vpop.f32.mrf.mxu0
          %v3909 = vadd.f32 0.0, %v3908
          %v3910 = vpop.f32.mrf.mxu0
          %3911 = vdwg.mxu0
          %v3912 = vadd.f32 %v3801, %v3906
          %v3913 = vadd.f32 %v3802, %v3909
          %v3914 = vld [vmem:[%s3691 + $0x2] sm:$0xff]
          %v3915 = vld [vmem:[%s3691 + $0xa] sm:$0xff]
          %v3916 = vpack.c.bf16 %v3915, %v3914
          %s3917 = scalar_lea.vmem %s7, 320
          %v3918 = vld [vmem:[%s3917] sm:$0xf]
          %v3919 = vld [vmem:[%s3917 + $0x4] sm:$0xf]
          %v3920 = vld [vmem:[%s3917 + $0x8] sm:$0xf]
          %v3921 = vld [vmem:[%s3917 + $0xc] sm:$0xf]
          %v3922 = vld [vmem:[%s3917 + $0x10] sm:$0xf]
          %v3923 = vld [vmem:[%s3917 + $0x14] sm:$0xf]
          %v3924 = vld [vmem:[%s3917 + $0x18] sm:$0xf]
          %v3925 = vld [vmem:[%s3917 + $0x1c] sm:$0xf]
          %v3926 = vld [vmem:[%s3917 + $0x20] sm:$0xf]
          %v3927 = vld [vmem:[%s3917 + $0x24] sm:$0xf]
          %v3928 = vld [vmem:[%s3917 + $0x28] sm:$0xf]
          %v3929 = vld [vmem:[%s3917 + $0x2c] sm:$0xf]
          %v3930 = vld [vmem:[%s3917 + $0x30] sm:$0xf]
          %v3931 = vld [vmem:[%s3917 + $0x34] sm:$0xf]
          %v3932 = vld [vmem:[%s3917 + $0x38] sm:$0xf]
          %v3933 = vld [vmem:[%s3917 + $0x3c] sm:$0xf]
          %v3950 = vunpack.c.l.b16 %v3918
          %v3951 = vunpack.c.l.b16 %v3919
          %v3952 = vunpack.c.l.b16 %v3920
          %v3953 = vunpack.c.l.b16 %v3921
          %v3954 = vunpack.c.l.b16 %v3922
          %v3955 = vunpack.c.l.b16 %v3923
          %v3956 = vunpack.c.l.b16 %v3924
          %v3957 = vunpack.c.l.b16 %v3925
          %v3958 = vunpack.c.l.b16 %v3926
          %v3959 = vunpack.c.l.b16 %v3927
          %v3960 = vunpack.c.l.b16 %v3928
          %v3961 = vunpack.c.l.b16 %v3929
          %v3962 = vunpack.c.l.b16 %v3930
          %v3963 = vunpack.c.l.b16 %v3931
          %v3964 = vunpack.c.l.b16 %v3932
          %v3965 = vunpack.c.l.b16 %v3933
          %v3966 = vpack.c.b16 %v3951, %v3950
          %v3967 = vpack.c.b16 %v3953, %v3952
          %v3968 = vpack.c.b16 %v3955, %v3954
          %v3969 = vpack.c.b16 %v3957, %v3956
          %v3970 = vpack.c.b16 %v3959, %v3958
          %v3971 = vpack.c.b16 %v3961, %v3960
          %v3972 = vpack.c.b16 %v3963, %v3962
          %v3973 = vpack.c.b16 %v3965, %v3964
          %3982 = vmatprep.subr.bf16.mxu0 0
          %3983 = vmatpush1.bf16.msra.mxu0 %v3973
          %3984 = vmatprep.subr.bf16.mxu0 0
          %3985 = vmatpush1.bf16.msra.mxu0 %v3972
          %3986 = vmatprep.subr.bf16.mxu0 0
          %3987 = vmatpush1.bf16.msra.mxu0 %v3971
          %3988 = vmatprep.subr.bf16.mxu0 0
          %3989 = vmatpush1.bf16.msra.mxu0 %v3970
          %3990 = vmatprep.subr.bf16.mxu0 0
          %3991 = vmatpush1.bf16.msra.mxu0 %v3969
          %3992 = vmatprep.subr.bf16.mxu0 0
          %3993 = vmatpush1.bf16.msra.mxu0 %v3968
          %3994 = vmatprep.subr.bf16.mxu0 0
          %3995 = vmatpush1.bf16.msra.mxu0 %v3967
          %3996 = vmatprep.subr.bf16.mxu0 0
          %3997 = vmatpush1.bf16.msra.mxu0 %v3966
          %3998 = vmatprep.subr.bf16.mxu0 0
          %3999 = vmatpush2.bf16.msra.mxu0 0
          %4000 = vmatprep.subr.bf16.mxu0 0
          %4001 = vmatpush2.bf16.msra.mxu0 0
          %4002 = vmatprep.subr.bf16.mxu0 0
          %4003 = vmatpush2.bf16.msra.mxu0 0
          %4004 = vmatprep.subr.bf16.mxu0 0
          %4005 = vmatpush2.bf16.msra.mxu0 0
          %4006 = vmatprep.subr.bf16.mxu0 0
          %4007 = vmatpush2.bf16.msra.mxu0 0
          %4008 = vmatprep.subr.bf16.mxu0 0
          %4009 = vmatpush2.bf16.msra.mxu0 0
          %4010 = vmatprep.subr.bf16.mxu0 0
          %4011 = vmatpush2.bf16.msra.mxu0 0
          %4012 = vmatprep.subr.bf16.mxu0 0
          %4013 = vmatpush2.bf16.msra.mxu0 0
          %4014 = vmatprep.mubr.bf16.mxu0 0
          %4015 = vmatmul.mubr.bf16.gmra.mxu0 %v3916
          %v4016 = vpop.f32.mrf.mxu0
          %v4017 = vadd.f32 0.0, %v4016
          %v4018 = vpop.f32.mrf.mxu0
          %v4019 = vpop.f32.mrf.mxu0
          %v4020 = vadd.f32 0.0, %v4019
          %v4021 = vpop.f32.mrf.mxu0
          %4022 = vdwg.mxu0
          %v4023 = vadd.f32 %v3912, %v4017
          %v4024 = vadd.f32 %v3913, %v4020
          %s4025 = sadd.s32 %s3354, 2
          %s4026 = smul.u32 %s4025, 24
          %s4027 = scalar_lea.vmem [#allocation3], %s4026
          %v4028 = vld [vmem:[%s4027] sm:$0xff]
          %v4029 = vld [vmem:[%s4027 + $0x8] sm:$0xff]
          %v4030 = vpack.c.bf16 %v4029, %v4028
          %s4031 = scalar_lea.vmem %s7, 384
          %v4032 = vld [vmem:[%s4031] sm:$0xf]
          %v4033 = vld [vmem:[%s4031 + $0x4] sm:$0xf]
          %v4034 = vld [vmem:[%s4031 + $0x8] sm:$0xf]
          %v4035 = vld [vmem:[%s4031 + $0xc] sm:$0xf]
          %v4036 = vld [vmem:[%s4031 + $0x10] sm:$0xf]
          %v4037 = vld [vmem:[%s4031 + $0x14] sm:$0xf]
          %v4038 = vld [vmem:[%s4031 + $0x18] sm:$0xf]
          %v4039 = vld [vmem:[%s4031 + $0x1c] sm:$0xf]
          %v4040 = vld [vmem:[%s4031 + $0x20] sm:$0xf]
          %v4041 = vld [vmem:[%s4031 + $0x24] sm:$0xf]
          %v4042 = vld [vmem:[%s4031 + $0x28] sm:$0xf]
          %v4043 = vld [vmem:[%s4031 + $0x2c] sm:$0xf]
          %v4044 = vld [vmem:[%s4031 + $0x30] sm:$0xf]
          %v4045 = vld [vmem:[%s4031 + $0x34] sm:$0xf]
          %v4046 = vld [vmem:[%s4031 + $0x38] sm:$0xf]
          %v4047 = vld [vmem:[%s4031 + $0x3c] sm:$0xf]
          %v4064 = vunpack.c.l.b16 %v4032
          %v4065 = vunpack.c.l.b16 %v4033
          %v4066 = vunpack.c.l.b16 %v4034
          %v4067 = vunpack.c.l.b16 %v4035
          %v4068 = vunpack.c.l.b16 %v4036
          %v4069 = vunpack.c.l.b16 %v4037
          %v4070 = vunpack.c.l.b16 %v4038
          %v4071 = vunpack.c.l.b16 %v4039
          %v4072 = vunpack.c.l.b16 %v4040
          %v4073 = vunpack.c.l.b16 %v4041
          %v4074 = vunpack.c.l.b16 %v4042
          %v4075 = vunpack.c.l.b16 %v4043
          %v4076 = vunpack.c.l.b16 %v4044
          %v4077 = vunpack.c.l.b16 %v4045
          %v4078 = vunpack.c.l.b16 %v4046
          %v4079 = vunpack.c.l.b16 %v4047
          %v4080 = vpack.c.b16 %v4065, %v4064
          %v4081 = vpack.c.b16 %v4067, %v4066
          %v4082 = vpack.c.b16 %v4069, %v4068
          %v4083 = vpack.c.b16 %v4071, %v4070
          %v4084 = vpack.c.b16 %v4073, %v4072
          %v4085 = vpack.c.b16 %v4075, %v4074
          %v4086 = vpack.c.b16 %v4077, %v4076
          %v4087 = vpack.c.b16 %v4079, %v4078
          %4096 = vmatprep.subr.bf16.mxu0 0
          %4097 = vmatpush1.bf16.msra.mxu0 %v4087
          %4098 = vmatprep.subr.bf16.mxu0 0
          %4099 = vmatpush1.bf16.msra.mxu0 %v4086
          %4100 = vmatprep.subr.bf16.mxu0 0
          %4101 = vmatpush1.bf16.msra.mxu0 %v4085
          %4102 = vmatprep.subr.bf16.mxu0 0
          %4103 = vmatpush1.bf16.msra.mxu0 %v4084
          %4104 = vmatprep.subr.bf16.mxu0 0
          %4105 = vmatpush1.bf16.msra.mxu0 %v4083
          %4106 = vmatprep.subr.bf16.mxu0 0
          %4107 = vmatpush1.bf16.msra.mxu0 %v4082
          %4108 = vmatprep.subr.bf16.mxu0 0
          %4109 = vmatpush1.bf16.msra.mxu0 %v4081
          %4110 = vmatprep.subr.bf16.mxu0 0
          %4111 = vmatpush1.bf16.msra.mxu0 %v4080
          %4112 = vmatprep.subr.bf16.mxu0 0
          %4113 = vmatpush2.bf16.msra.mxu0 0
          %4114 = vmatprep.subr.bf16.mxu0 0
          %4115 = vmatpush2.bf16.msra.mxu0 0
          %4116 = vmatprep.subr.bf16.mxu0 0
          %4117 = vmatpush2.bf16.msra.mxu0 0
          %4118 = vmatprep.subr.bf16.mxu0 0
          %4119 = vmatpush2.bf16.msra.mxu0 0
          %4120 = vmatprep.subr.bf16.mxu0 0
          %4121 = vmatpush2.bf16.msra.mxu0 0
          %4122 = vmatprep.subr.bf16.mxu0 0
          %4123 = vmatpush2.bf16.msra.mxu0 0
          %4124 = vmatprep.subr.bf16.mxu0 0
          %4125 = vmatpush2.bf16.msra.mxu0 0
          %4126 = vmatprep.subr.bf16.mxu0 0
          %4127 = vmatpush2.bf16.msra.mxu0 0
          %4128 = vmatprep.mubr.bf16.mxu0 0
          %4129 = vmatmul.mubr.bf16.gmra.mxu0 %v4030
          %v4130 = vpop.f32.mrf.mxu0
          %v4131 = vadd.f32 0.0, %v4130
          %v4132 = vpop.f32.mrf.mxu0
          %v4133 = vpop.f32.mrf.mxu0
          %v4134 = vadd.f32 0.0, %v4133
          %v4135 = vpop.f32.mrf.mxu0
          %4136 = vdwg.mxu0
          %v4137 = vadd.f32 %v4023, %v4131
          %v4138 = vadd.f32 %v4024, %v4134
          %v4139 = vld [vmem:[%s4027 + $0x1] sm:$0xff]
          %v4140 = vld [vmem:[%s4027 + $0x9] sm:$0xff]
          %v4141 = vpack.c.bf16 %v4140, %v4139
          %s4142 = scalar_lea.vmem %s7, 448
          %v4143 = vld [vmem:[%s4142] sm:$0xf]
          %v4144 = vld [vmem:[%s4142 + $0x4] sm:$0xf]
          %v4145 = vld [vmem:[%s4142 + $0x8] sm:$0xf]
          %v4146 = vld [vmem:[%s4142 + $0xc] sm:$0xf]
          %v4147 = vld [vmem:[%s4142 + $0x10] sm:$0xf]
          %v4148 = vld [vmem:[%s4142 + $0x14] sm:$0xf]
          %v4149 = vld [vmem:[%s4142 + $0x18] sm:$0xf]
          %v4150 = vld [vmem:[%s4142 + $0x1c] sm:$0xf]
          %v4151 = vld [vmem:[%s4142 + $0x20] sm:$0xf]
          %v4152 = vld [vmem:[%s4142 + $0x24] sm:$0xf]
          %v4153 = vld [vmem:[%s4142 + $0x28] sm:$0xf]
          %v4154 = vld [vmem:[%s4142 + $0x2c] sm:$0xf]
          %v4155 = vld [vmem:[%s4142 + $0x30] sm:$0xf]
          %v4156 = vld [vmem:[%s4142 + $0x34] sm:$0xf]
          %v4157 = vld [vmem:[%s4142 + $0x38] sm:$0xf]
          %v4158 = vld [vmem:[%s4142 + $0x3c] sm:$0xf]
          %v4175 = vunpack.c.l.b16 %v4143
          %v4176 = vunpack.c.l.b16 %v4144
          %v4177 = vunpack.c.l.b16 %v4145
          %v4178 = vunpack.c.l.b16 %v4146
          %v4179 = vunpack.c.l.b16 %v4147
          %v4180 = vunpack.c.l.b16 %v4148
          %v4181 = vunpack.c.l.b16 %v4149
          %v4182 = vunpack.c.l.b16 %v4150
          %v4183 = vunpack.c.l.b16 %v4151
          %v4184 = vunpack.c.l.b16 %v4152
          %v4185 = vunpack.c.l.b16 %v4153
          %v4186 = vunpack.c.l.b16 %v4154
          %v4187 = vunpack.c.l.b16 %v4155
          %v4188 = vunpack.c.l.b16 %v4156
          %v4189 = vunpack.c.l.b16 %v4157
          %v4190 = vunpack.c.l.b16 %v4158
          %v4191 = vpack.c.b16 %v4176, %v4175
          %v4192 = vpack.c.b16 %v4178, %v4177
          %v4193 = vpack.c.b16 %v4180, %v4179
          %v4194 = vpack.c.b16 %v4182, %v4181
          %v4195 = vpack.c.b16 %v4184, %v4183
          %v4196 = vpack.c.b16 %v4186, %v4185
          %v4197 = vpack.c.b16 %v4188, %v4187
          %v4198 = vpack.c.b16 %v4190, %v4189
          %4207 = vmatprep.subr.bf16.mxu0 0
          %4208 = vmatpush1.bf16.msra.mxu0 %v4198
          %4209 = vmatprep.subr.bf16.mxu0 0
          %4210 = vmatpush1.bf16.msra.mxu0 %v4197
          %4211 = vmatprep.subr.bf16.mxu0 0
          %4212 = vmatpush1.bf16.msra.mxu0 %v4196
          %4213 = vmatprep.subr.bf16.mxu0 0
          %4214 = vmatpush1.bf16.msra.mxu0 %v4195
          %4215 = vmatprep.subr.bf16.mxu0 0
          %4216 = vmatpush1.bf16.msra.mxu0 %v4194
          %4217 = vmatprep.subr.bf16.mxu0 0
          %4218 = vmatpush1.bf16.msra.mxu0 %v4193
          %4219 = vmatprep.subr.bf16.mxu0 0
          %4220 = vmatpush1.bf16.msra.mxu0 %v4192
          %4221 = vmatprep.subr.bf16.mxu0 0
          %4222 = vmatpush1.bf16.msra.mxu0 %v4191
          %4223 = vmatprep.subr.bf16.mxu0 0
          %4224 = vmatpush2.bf16.msra.mxu0 0
          %4225 = vmatprep.subr.bf16.mxu0 0
          %4226 = vmatpush2.bf16.msra.mxu0 0
          %4227 = vmatprep.subr.bf16.mxu0 0
          %4228 = vmatpush2.bf16.msra.mxu0 0
          %4229 = vmatprep.subr.bf16.mxu0 0
          %4230 = vmatpush2.bf16.msra.mxu0 0
          %4231 = vmatprep.subr.bf16.mxu0 0
          %4232 = vmatpush2.bf16.msra.mxu0 0
          %4233 = vmatprep.subr.bf16.mxu0 0
          %4234 = vmatpush2.bf16.msra.mxu0 0
          %4235 = vmatprep.subr.bf16.mxu0 0
          %4236 = vmatpush2.bf16.msra.mxu0 0
          %4237 = vmatprep.subr.bf16.mxu0 0
          %4238 = vmatpush2.bf16.msra.mxu0 0
          %4239 = vmatprep.mubr.bf16.mxu0 0
          %4240 = vmatmul.mubr.bf16.gmra.mxu0 %v4141
          %v4241 = vpop.f32.mrf.mxu0
          %v4242 = vadd.f32 0.0, %v4241
          %v4243 = vpop.f32.mrf.mxu0
          %v4244 = vpop.f32.mrf.mxu0
          %v4245 = vadd.f32 0.0, %v4244
          %v4246 = vpop.f32.mrf.mxu0
          %4247 = vdwg.mxu0
          %v4248 = vadd.f32 %v4137, %v4242
          %v4249 = vadd.f32 %v4138, %v4245
          %v4250 = vld [vmem:[%s4027 + $0x2] sm:$0xff]
          %v4251 = vld [vmem:[%s4027 + $0xa] sm:$0xff]
          %v4252 = vpack.c.bf16 %v4251, %v4250
          %s4253 = scalar_lea.vmem %s7, 512
          %v4254 = vld [vmem:[%s4253] sm:$0xf]
          %v4255 = vld [vmem:[%s4253 + $0x4] sm:$0xf]
          %v4256 = vld [vmem:[%s4253 + $0x8] sm:$0xf]
          %v4257 = vld [vmem:[%s4253 + $0xc] sm:$0xf]
          %v4258 = vld [vmem:[%s4253 + $0x10] sm:$0xf]
          %v4259 = vld [vmem:[%s4253 + $0x14] sm:$0xf]
          %v4260 = vld [vmem:[%s4253 + $0x18] sm:$0xf]
          %v4261 = vld [vmem:[%s4253 + $0x1c] sm:$0xf]
          %v4262 = vld [vmem:[%s4253 + $0x20] sm:$0xf]
          %v4263 = vld [vmem:[%s4253 + $0x24] sm:$0xf]
          %v4264 = vld [vmem:[%s4253 + $0x28] sm:$0xf]
          %v4265 = vld [vmem:[%s4253 + $0x2c] sm:$0xf]
          %v4266 = vld [vmem:[%s4253 + $0x30] sm:$0xf]
          %v4267 = vld [vmem:[%s4253 + $0x34] sm:$0xf]
          %v4268 = vld [vmem:[%s4253 + $0x38] sm:$0xf]
          %v4269 = vld [vmem:[%s4253 + $0x3c] sm:$0xf]
          %v4286 = vunpack.c.l.b16 %v4254
          %v4287 = vunpack.c.l.b16 %v4255
          %v4288 = vunpack.c.l.b16 %v4256
          %v4289 = vunpack.c.l.b16 %v4257
          %v4290 = vunpack.c.l.b16 %v4258
          %v4291 = vunpack.c.l.b16 %v4259
          %v4292 = vunpack.c.l.b16 %v4260
          %v4293 = vunpack.c.l.b16 %v4261
          %v4294 = vunpack.c.l.b16 %v4262
          %v4295 = vunpack.c.l.b16 %v4263
          %v4296 = vunpack.c.l.b16 %v4264
          %v4297 = vunpack.c.l.b16 %v4265
          %v4298 = vunpack.c.l.b16 %v4266
          %v4299 = vunpack.c.l.b16 %v4267
          %v4300 = vunpack.c.l.b16 %v4268
          %v4301 = vunpack.c.l.b16 %v4269
          %v4302 = vpack.c.b16 %v4287, %v4286
          %v4303 = vpack.c.b16 %v4289, %v4288
          %v4304 = vpack.c.b16 %v4291, %v4290
          %v4305 = vpack.c.b16 %v4293, %v4292
          %v4306 = vpack.c.b16 %v4295, %v4294
          %v4307 = vpack.c.b16 %v4297, %v4296
          %v4308 = vpack.c.b16 %v4299, %v4298
          %v4309 = vpack.c.b16 %v4301, %v4300
          %4318 = vmatprep.subr.bf16.mxu0 0
          %4319 = vmatpush1.bf16.msra.mxu0 %v4309
          %4320 = vmatprep.subr.bf16.mxu0 0
          %4321 = vmatpush1.bf16.msra.mxu0 %v4308
          %4322 = vmatprep.subr.bf16.mxu0 0
          %4323 = vmatpush1.bf16.msra.mxu0 %v4307
          %4324 = vmatprep.subr.bf16.mxu0 0
          %4325 = vmatpush1.bf16.msra.mxu0 %v4306
          %4326 = vmatprep.subr.bf16.mxu0 0
          %4327 = vmatpush1.bf16.msra.mxu0 %v4305
          %4328 = vmatprep.subr.bf16.mxu0 0
          %4329 = vmatpush1.bf16.msra.mxu0 %v4304
          %4330 = vmatprep.subr.bf16.mxu0 0
          %4331 = vmatpush1.bf16.msra.mxu0 %v4303
          %4332 = vmatprep.subr.bf16.mxu0 0
          %4333 = vmatpush1.bf16.msra.mxu0 %v4302
          %4334 = vmatprep.subr.bf16.mxu0 0
          %4335 = vmatpush2.bf16.msra.mxu0 0
          %4336 = vmatprep.subr.bf16.mxu0 0
          %4337 = vmatpush2.bf16.msra.mxu0 0
          %4338 = vmatprep.subr.bf16.mxu0 0
          %4339 = vmatpush2.bf16.msra.mxu0 0
          %4340 = vmatprep.subr.bf16.mxu0 0
          %4341 = vmatpush2.bf16.msra.mxu0 0
          %4342 = vmatprep.subr.bf16.mxu0 0
          %4343 = vmatpush2.bf16.msra.mxu0 0
          %4344 = vmatprep.subr.bf16.mxu0 0
          %4345 = vmatpush2.bf16.msra.mxu0 0
          %4346 = vmatprep.subr.bf16.mxu0 0
          %4347 = vmatpush2.bf16.msra.mxu0 0
          %4348 = vmatprep.subr.bf16.mxu0 0
          %4349 = vmatpush2.bf16.msra.mxu0 0
          %4350 = vmatprep.mubr.bf16.mxu0 0
          %4351 = vmatmul.mubr.bf16.gmra.mxu0 %v4252
          %v4352 = vpop.f32.mrf.mxu0
          %v4353 = vadd.f32 0.0, %v4352
          %v4354 = vpop.f32.mrf.mxu0
          %v4355 = vpop.f32.mrf.mxu0
          %v4356 = vadd.f32 0.0, %v4355
          %v4357 = vpop.f32.mrf.mxu0
          %4358 = vdwg.mxu0
          %v4359 = vadd.f32 %v4248, %v4353
          %v4360 = vadd.f32 %v4249, %v4356
          %v4362 = vlaneseq
          %v4363 = vshrl.u32 %v4362, 7
          %v4364 = vsub.s32 0, %v4363
          %v4365 = vrot.slane %v3352, %v4364
          %v4367 = vadd.f32 %v4359, %v4365
          %v4368 = vadd.f32 %v4360, %v4365
          %s4369 = scalar_lea.vmem [#allocation4], %s3690
          %v4370 = vld [vmem:[%s4369 + $0x1] sm:$0xff]
          %v4371 = vld [vmem:[%s4369 + $0x9] sm:$0xff]
          %v4372 = vadd.f32 %v4367, %v4370
          %v4373 = vadd.f32 %v4368, %v4371
          %v4374 = vmax.f32 %v4372, 0.0
          %v4375 = vmax.f32 %v4373, 0.0
          %4376 = vst [vmem:[%s4369 + $0x1] sm:$0xff] %v4374
          %4377 = vst [vmem:[%s4369 + $0x9] sm:$0xff] %v4375
        $region138: #{model_forward.1} parent=111 // loop_footer
          %s3358 = sadd.s32 1, %s3354
        $region139: #{model_forward.1} parent=111 // loop_footer_branch
          %3353 = sbr.rel target = $region135
        $region140: #{model_forward.1} parent=111 // loop_exit
          _
        %v4378 = vld [vmem:[%s10] sm:$0x1]
        loop: start=0, step=1, limit=8
        $region141: #{model_forward.1} parent=111 // loop_pre_header
          _
        $region142: #{model_forward.1} parent=111 // loop_header
          %s4380 = sphi 0, %s4384
          %p4381 = scmp.ge.s32.totalorder %s4380, 8
        $region143: #{model_forward.1} parent=111 // loop_header_branch
          %4383 = sbr.rel (%p4381) target = $region147
        $region144: #{model_forward.1} parent=111 // loop_body
          %s4385 = smul.u32 %s4380, 2
          %s4386 = smul.u32 %s4385, 24
          %s4387 = scalar_lea.vmem [#allocation4], %s4386
          %v4388 = vld [vmem:[%s4387] ss:$2 sm:$0xff]
          %v4389 = vpack.c.bf16 %v4388, %v4388
          %v4390 = vld [vmem:[%s9] sm:$0xf]
          %v4391 = vld [vmem:[%s9 + $0x4] sm:$0xf]
          %v4392 = vld [vmem:[%s9 + $0x8] sm:$0xf]
          %v4393 = vld [vmem:[%s9 + $0xc] sm:$0xf]
          %v4394 = vld [vmem:[%s9 + $0x10] sm:$0xf]
          %v4395 = vld [vmem:[%s9 + $0x14] sm:$0xf]
          %v4396 = vld [vmem:[%s9 + $0x18] sm:$0xf]
          %v4397 = vld [vmem:[%s9 + $0x1c] sm:$0xf]
          %v4398 = vld [vmem:[%s9 + $0x20] sm:$0xf]
          %v4399 = vld [vmem:[%s9 + $0x24] sm:$0xf]
          %v4400 = vld [vmem:[%s9 + $0x28] sm:$0xf]
          %v4401 = vld [vmem:[%s9 + $0x2c] sm:$0xf]
          %v4402 = vld [vmem:[%s9 + $0x30] sm:$0xf]
          %v4403 = vld [vmem:[%s9 + $0x34] sm:$0xf]
          %v4404 = vld [vmem:[%s9 + $0x38] sm:$0xf]
          %v4405 = vld [vmem:[%s9 + $0x3c] sm:$0xf]
          %s4406 = scalar_lea.vmem %s4387, 1 [#allocation4]
          %v4407 = vld [vmem:[%s4406] ss:$2 sm:$0xff]
          %v4408 = vpack.c.bf16 %v4407, %v4407
          %s4409 = scalar_lea.vmem %s9, 64
          %v4410 = vld [vmem:[%s4409] sm:$0xf]
          %v4411 = vld [vmem:[%s4409 + $0x4] sm:$0xf]
          %v4412 = vld [vmem:[%s4409 + $0x8] sm:$0xf]
          %v4413 = vld [vmem:[%s4409 + $0xc] sm:$0xf]
          %v4414 = vld [vmem:[%s4409 + $0x10] sm:$0xf]
          %v4415 = vld [vmem:[%s4409 + $0x14] sm:$0xf]
          %v4416 = vld [vmem:[%s4409 + $0x18] sm:$0xf]
          %v4417 = vld [vmem:[%s4409 + $0x1c] sm:$0xf]
          %v4418 = vld [vmem:[%s4409 + $0x20] sm:$0xf]
          %v4419 = vld [vmem:[%s4409 + $0x24] sm:$0xf]
          %v4420 = vld [vmem:[%s4409 + $0x28] sm:$0xf]
          %v4421 = vld [vmem:[%s4409 + $0x2c] sm:$0xf]
          %v4422 = vld [vmem:[%s4409 + $0x30] sm:$0xf]
          %v4423 = vld [vmem:[%s4409 + $0x34] sm:$0xf]
          %v4424 = vld [vmem:[%s4409 + $0x38] sm:$0xf]
          %v4425 = vld [vmem:[%s4409 + $0x3c] sm:$0xf]
          %v4442 = vunpack.c.l.b16 %v4410
          %v4443 = vunpack.c.l.b16 %v4411
          %v4444 = vunpack.c.l.b16 %v4412
          %v4445 = vunpack.c.l.b16 %v4413
          %v4446 = vunpack.c.l.b16 %v4414
          %v4447 = vunpack.c.l.b16 %v4415
          %v4448 = vunpack.c.l.b16 %v4416
          %v4449 = vunpack.c.l.b16 %v4417
          %v4450 = vunpack.c.l.b16 %v4418
          %v4451 = vunpack.c.l.b16 %v4419
          %v4452 = vunpack.c.l.b16 %v4420
          %v4453 = vunpack.c.l.b16 %v4421
          %v4454 = vunpack.c.l.b16 %v4422
          %v4455 = vunpack.c.l.b16 %v4423
          %v4456 = vunpack.c.l.b16 %v4424
          %v4457 = vunpack.c.l.b16 %v4425
          %v4458 = vpack.c.b16 %v4443, %v4442
          %v4459 = vpack.c.b16 %v4445, %v4444
          %v4460 = vpack.c.b16 %v4447, %v4446
          %v4461 = vpack.c.b16 %v4449, %v4448
          %v4462 = vpack.c.b16 %v4451, %v4450
          %v4463 = vpack.c.b16 %v4453, %v4452
          %v4464 = vpack.c.b16 %v4455, %v4454
          %v4465 = vpack.c.b16 %v4457, %v4456
          %4474 = vmatprep.subr.bf16.mxu0 0
          %4475 = vmatpush1.bf16.msra.mxu0 %v4465
          %4476 = vmatprep.subr.bf16.mxu0 0
          %4477 = vmatpush1.bf16.msra.mxu0 %v4464
          %4478 = vmatprep.subr.bf16.mxu0 0
          %4479 = vmatpush1.bf16.msra.mxu0 %v4463
          %4480 = vmatprep.subr.bf16.mxu0 0
          %4481 = vmatpush1.bf16.msra.mxu0 %v4462
          %4482 = vmatprep.subr.bf16.mxu0 0
          %4483 = vmatpush1.bf16.msra.mxu0 %v4461
          %4484 = vmatprep.subr.bf16.mxu0 0
          %4485 = vmatpush1.bf16.msra.mxu0 %v4460
          %4486 = vmatprep.subr.bf16.mxu0 0
          %4487 = vmatpush1.bf16.msra.mxu0 %v4459
          %4488 = vmatprep.subr.bf16.mxu0 0
          %4489 = vmatpush1.bf16.msra.mxu0 %v4458
          %4490 = vmatprep.subr.bf16.mxu0 0
          %4491 = vmatpush2.bf16.msra.mxu0 0
          %4492 = vmatprep.subr.bf16.mxu0 0
          %4493 = vmatpush2.bf16.msra.mxu0 0
          %4494 = vmatprep.subr.bf16.mxu0 0
          %4495 = vmatpush2.bf16.msra.mxu0 0
          %4496 = vmatprep.subr.bf16.mxu0 0
          %4497 = vmatpush2.bf16.msra.mxu0 0
          %4498 = vmatprep.subr.bf16.mxu0 0
          %4499 = vmatpush2.bf16.msra.mxu0 0
          %4500 = vmatprep.subr.bf16.mxu0 0
          %4501 = vmatpush2.bf16.msra.mxu0 0
          %4502 = vmatprep.subr.bf16.mxu0 0
          %4503 = vmatpush2.bf16.msra.mxu0 0
          %4504 = vmatprep.subr.bf16.mxu0 0
          %4505 = vmatpush2.bf16.msra.mxu0 0
          %4506 = vmatprep.mubr.bf16.mxu0 0
          %4507 = vmatmul.mubr.bf16.gmra.mxu0 %v4408
          %v4508 = vpop.f32.mrf.mxu0
          %v4509 = vadd.f32 0.0, %v4508
          %v4510 = vpop.f32.mrf.mxu0
          %v4511 = vpop.f32.mrf.mxu0
          %v4512 = vpop.f32.mrf.mxu0
          %4513 = vdwg.mxu0
          %v4530 = vunpack.c.l.b16 %v4390
          %v4531 = vunpack.c.l.b16 %v4391
          %v4532 = vunpack.c.l.b16 %v4392
          %v4533 = vunpack.c.l.b16 %v4393
          %v4534 = vunpack.c.l.b16 %v4394
          %v4535 = vunpack.c.l.b16 %v4395
          %v4536 = vunpack.c.l.b16 %v4396
          %v4537 = vunpack.c.l.b16 %v4397
          %v4538 = vunpack.c.l.b16 %v4398
          %v4539 = vunpack.c.l.b16 %v4399
          %v4540 = vunpack.c.l.b16 %v4400
          %v4541 = vunpack.c.l.b16 %v4401
          %v4542 = vunpack.c.l.b16 %v4402
          %v4543 = vunpack.c.l.b16 %v4403
          %v4544 = vunpack.c.l.b16 %v4404
          %v4545 = vunpack.c.l.b16 %v4405
          %v4546 = vpack.c.b16 %v4531, %v4530
          %v4547 = vpack.c.b16 %v4533, %v4532
          %v4548 = vpack.c.b16 %v4535, %v4534
          %v4549 = vpack.c.b16 %v4537, %v4536
          %v4550 = vpack.c.b16 %v4539, %v4538
          %v4551 = vpack.c.b16 %v4541, %v4540
          %v4552 = vpack.c.b16 %v4543, %v4542
          %v4553 = vpack.c.b16 %v4545, %v4544
          %4562 = vmatprep.subr.bf16.mxu0 0
          %4563 = vmatpush1.bf16.msra.mxu0 %v4553
          %4564 = vmatprep.subr.bf16.mxu0 0
          %4565 = vmatpush1.bf16.msra.mxu0 %v4552
          %4566 = vmatprep.subr.bf16.mxu0 0
          %4567 = vmatpush1.bf16.msra.mxu0 %v4551
          %4568 = vmatprep.subr.bf16.mxu0 0
          %4569 = vmatpush1.bf16.msra.mxu0 %v4550
          %4570 = vmatprep.subr.bf16.mxu0 0
          %4571 = vmatpush1.bf16.msra.mxu0 %v4549
          %4572 = vmatprep.subr.bf16.mxu0 0
          %4573 = vmatpush1.bf16.msra.mxu0 %v4548
          %4574 = vmatprep.subr.bf16.mxu0 0
          %4575 = vmatpush1.bf16.msra.mxu0 %v4547
          %4576 = vmatprep.subr.bf16.mxu0 0
          %4577 = vmatpush1.bf16.msra.mxu0 %v4546
          %4578 = vmatprep.subr.bf16.mxu0 0
          %4579 = vmatpush2.bf16.msra.mxu0 0
          %4580 = vmatprep.subr.bf16.mxu0 0
          %4581 = vmatpush2.bf16.msra.mxu0 0
          %4582 = vmatprep.subr.bf16.mxu0 0
          %4583 = vmatpush2.bf16.msra.mxu0 0
          %4584 = vmatprep.subr.bf16.mxu0 0
          %4585 = vmatpush2.bf16.msra.mxu0 0
          %4586 = vmatprep.subr.bf16.mxu0 0
          %4587 = vmatpush2.bf16.msra.mxu0 0
          %4588 = vmatprep.subr.bf16.mxu0 0
          %4589 = vmatpush2.bf16.msra.mxu0 0
          %4590 = vmatprep.subr.bf16.mxu0 0
          %4591 = vmatpush2.bf16.msra.mxu0 0
          %4592 = vmatprep.subr.bf16.mxu0 0
          %4593 = vmatpush2.bf16.msra.mxu0 0
          %4594 = vmatprep.mubr.bf16.mxu0 0
          %4595 = vmatmul.mubr.bf16.gmra.mxu0 %v4389
          %v4596 = vpop.f32.mrf.mxu0
          %v4597 = vadd.f32 %v4509, %v4596
          %v4598 = vpop.f32.mrf.mxu0
          %v4599 = vpop.f32.mrf.mxu0
          %v4600 = vpop.f32.mrf.mxu0
          %4601 = vdwg.mxu0
          %s4602 = scalar_lea.vmem %s4387, 2 [#allocation4]
          %v4603 = vld [vmem:[%s4602] ss:$2 sm:$0xff]
          %v4604 = vpack.c.bf16 %v4603, %v4603
          %s4605 = scalar_lea.vmem %s9, 128
          %v4606 = vld [vmem:[%s4605] sm:$0xf]
          %v4607 = vld [vmem:[%s4605 + $0x4] sm:$0xf]
          %v4608 = vld [vmem:[%s4605 + $0x8] sm:$0xf]
          %v4609 = vld [vmem:[%s4605 + $0xc] sm:$0xf]
          %v4610 = vld [vmem:[%s4605 + $0x10] sm:$0xf]
          %v4611 = vld [vmem:[%s4605 + $0x14] sm:$0xf]
          %v4612 = vld [vmem:[%s4605 + $0x18] sm:$0xf]
          %v4613 = vld [vmem:[%s4605 + $0x1c] sm:$0xf]
          %v4614 = vld [vmem:[%s4605 + $0x20] sm:$0xf]
          %v4615 = vld [vmem:[%s4605 + $0x24] sm:$0xf]
          %v4616 = vld [vmem:[%s4605 + $0x28] sm:$0xf]
          %v4617 = vld [vmem:[%s4605 + $0x2c] sm:$0xf]
          %v4618 = vld [vmem:[%s4605 + $0x30] sm:$0xf]
          %v4619 = vld [vmem:[%s4605 + $0x34] sm:$0xf]
          %v4620 = vld [vmem:[%s4605 + $0x38] sm:$0xf]
          %v4621 = vld [vmem:[%s4605 + $0x3c] sm:$0xf]
          %v4638 = vunpack.c.l.b16 %v4606
          %v4639 = vunpack.c.l.b16 %v4607
          %v4640 = vunpack.c.l.b16 %v4608
          %v4641 = vunpack.c.l.b16 %v4609
          %v4642 = vunpack.c.l.b16 %v4610
          %v4643 = vunpack.c.l.b16 %v4611
          %v4644 = vunpack.c.l.b16 %v4612
          %v4645 = vunpack.c.l.b16 %v4613
          %v4646 = vunpack.c.l.b16 %v4614
          %v4647 = vunpack.c.l.b16 %v4615
          %v4648 = vunpack.c.l.b16 %v4616
          %v4649 = vunpack.c.l.b16 %v4617
          %v4650 = vunpack.c.l.b16 %v4618
          %v4651 = vunpack.c.l.b16 %v4619
          %v4652 = vunpack.c.l.b16 %v4620
          %v4653 = vunpack.c.l.b16 %v4621
          %v4654 = vpack.c.b16 %v4639, %v4638
          %v4655 = vpack.c.b16 %v4641, %v4640
          %v4656 = vpack.c.b16 %v4643, %v4642
          %v4657 = vpack.c.b16 %v4645, %v4644
          %v4658 = vpack.c.b16 %v4647, %v4646
          %v4659 = vpack.c.b16 %v4649, %v4648
          %v4660 = vpack.c.b16 %v4651, %v4650
          %v4661 = vpack.c.b16 %v4653, %v4652
          %4670 = vmatprep.subr.bf16.mxu0 0
          %4671 = vmatpush1.bf16.msra.mxu0 %v4661
          %4672 = vmatprep.subr.bf16.mxu0 0
          %4673 = vmatpush1.bf16.msra.mxu0 %v4660
          %4674 = vmatprep.subr.bf16.mxu0 0
          %4675 = vmatpush1.bf16.msra.mxu0 %v4659
          %4676 = vmatprep.subr.bf16.mxu0 0
          %4677 = vmatpush1.bf16.msra.mxu0 %v4658
          %4678 = vmatprep.subr.bf16.mxu0 0
          %4679 = vmatpush1.bf16.msra.mxu0 %v4657
          %4680 = vmatprep.subr.bf16.mxu0 0
          %4681 = vmatpush1.bf16.msra.mxu0 %v4656
          %4682 = vmatprep.subr.bf16.mxu0 0
          %4683 = vmatpush1.bf16.msra.mxu0 %v4655
          %4684 = vmatprep.subr.bf16.mxu0 0
          %4685 = vmatpush1.bf16.msra.mxu0 %v4654
          %4686 = vmatprep.subr.bf16.mxu0 0
          %4687 = vmatpush2.bf16.msra.mxu0 0
          %4688 = vmatprep.subr.bf16.mxu0 0
          %4689 = vmatpush2.bf16.msra.mxu0 0
          %4690 = vmatprep.subr.bf16.mxu0 0
          %4691 = vmatpush2.bf16.msra.mxu0 0
          %4692 = vmatprep.subr.bf16.mxu0 0
          %4693 = vmatpush2.bf16.msra.mxu0 0
          %4694 = vmatprep.subr.bf16.mxu0 0
          %4695 = vmatpush2.bf16.msra.mxu0 0
          %4696 = vmatprep.subr.bf16.mxu0 0
          %4697 = vmatpush2.bf16.msra.mxu0 0
          %4698 = vmatprep.subr.bf16.mxu0 0
          %4699 = vmatpush2.bf16.msra.mxu0 0
          %4700 = vmatprep.subr.bf16.mxu0 0
          %4701 = vmatpush2.bf16.msra.mxu0 0
          %4702 = vmatprep.mubr.bf16.mxu0 0
          %4703 = vmatmul.mubr.bf16.gmra.mxu0 %v4604
          %v4704 = vpop.f32.mrf.mxu0
          %v4705 = vadd.f32 0.0, %v4704
          %v4706 = vpop.f32.mrf.mxu0
          %v4707 = vpop.f32.mrf.mxu0
          %v4708 = vpop.f32.mrf.mxu0
          %4709 = vdwg.mxu0
          %v4710 = vadd.f32 %v4597, %v4705
          %s4711 = sadd.s32 %s4385, 1
          %s4712 = smul.u32 %s4711, 24
          %s4713 = scalar_lea.vmem [#allocation4], %s4712
          %v4714 = vld [vmem:[%s4713] ss:$2 sm:$0xff]
          %v4715 = vpack.c.bf16 %v4714, %v4714
          %s4716 = scalar_lea.vmem %s9, 192
          %v4717 = vld [vmem:[%s4716] sm:$0xf]
          %v4718 = vld [vmem:[%s4716 + $0x4] sm:$0xf]
          %v4719 = vld [vmem:[%s4716 + $0x8] sm:$0xf]
          %v4720 = vld [vmem:[%s4716 + $0xc] sm:$0xf]
          %v4721 = vld [vmem:[%s4716 + $0x10] sm:$0xf]
          %v4722 = vld [vmem:[%s4716 + $0x14] sm:$0xf]
          %v4723 = vld [vmem:[%s4716 + $0x18] sm:$0xf]
          %v4724 = vld [vmem:[%s4716 + $0x1c] sm:$0xf]
          %v4725 = vld [vmem:[%s4716 + $0x20] sm:$0xf]
          %v4726 = vld [vmem:[%s4716 + $0x24] sm:$0xf]
          %v4727 = vld [vmem:[%s4716 + $0x28] sm:$0xf]
          %v4728 = vld [vmem:[%s4716 + $0x2c] sm:$0xf]
          %v4729 = vld [vmem:[%s4716 + $0x30] sm:$0xf]
          %v4730 = vld [vmem:[%s4716 + $0x34] sm:$0xf]
          %v4731 = vld [vmem:[%s4716 + $0x38] sm:$0xf]
          %v4732 = vld [vmem:[%s4716 + $0x3c] sm:$0xf]
          %v4749 = vunpack.c.l.b16 %v4717
          %v4750 = vunpack.c.l.b16 %v4718
          %v4751 = vunpack.c.l.b16 %v4719
          %v4752 = vunpack.c.l.b16 %v4720
          %v4753 = vunpack.c.l.b16 %v4721
          %v4754 = vunpack.c.l.b16 %v4722
          %v4755 = vunpack.c.l.b16 %v4723
          %v4756 = vunpack.c.l.b16 %v4724
          %v4757 = vunpack.c.l.b16 %v4725
          %v4758 = vunpack.c.l.b16 %v4726
          %v4759 = vunpack.c.l.b16 %v4727
          %v4760 = vunpack.c.l.b16 %v4728
          %v4761 = vunpack.c.l.b16 %v4729
          %v4762 = vunpack.c.l.b16 %v4730
          %v4763 = vunpack.c.l.b16 %v4731
          %v4764 = vunpack.c.l.b16 %v4732
          %v4765 = vpack.c.b16 %v4750, %v4749
          %v4766 = vpack.c.b16 %v4752, %v4751
          %v4767 = vpack.c.b16 %v4754, %v4753
          %v4768 = vpack.c.b16 %v4756, %v4755
          %v4769 = vpack.c.b16 %v4758, %v4757
          %v4770 = vpack.c.b16 %v4760, %v4759
          %v4771 = vpack.c.b16 %v4762, %v4761
          %v4772 = vpack.c.b16 %v4764, %v4763
          %4781 = vmatprep.subr.bf16.mxu0 0
          %4782 = vmatpush1.bf16.msra.mxu0 %v4772
          %4783 = vmatprep.subr.bf16.mxu0 0
          %4784 = vmatpush1.bf16.msra.mxu0 %v4771
          %4785 = vmatprep.subr.bf16.mxu0 0
          %4786 = vmatpush1.bf16.msra.mxu0 %v4770
          %4787 = vmatprep.subr.bf16.mxu0 0
          %4788 = vmatpush1.bf16.msra.mxu0 %v4769
          %4789 = vmatprep.subr.bf16.mxu0 0
          %4790 = vmatpush1.bf16.msra.mxu0 %v4768
          %4791 = vmatprep.subr.bf16.mxu0 0
          %4792 = vmatpush1.bf16.msra.mxu0 %v4767
          %4793 = vmatprep.subr.bf16.mxu0 0
          %4794 = vmatpush1.bf16.msra.mxu0 %v4766
          %4795 = vmatprep.subr.bf16.mxu0 0
          %4796 = vmatpush1.bf16.msra.mxu0 %v4765
          %4797 = vmatprep.subr.bf16.mxu0 0
          %4798 = vmatpush2.bf16.msra.mxu0 0
          %4799 = vmatprep.subr.bf16.mxu0 0
          %4800 = vmatpush2.bf16.msra.mxu0 0
          %4801 = vmatprep.subr.bf16.mxu0 0
          %4802 = vmatpush2.bf16.msra.mxu0 0
          %4803 = vmatprep.subr.bf16.mxu0 0
          %4804 = vmatpush2.bf16.msra.mxu0 0
          %4805 = vmatprep.subr.bf16.mxu0 0
          %4806 = vmatpush2.bf16.msra.mxu0 0
          %4807 = vmatprep.subr.bf16.mxu0 0
          %4808 = vmatpush2.bf16.msra.mxu0 0
          %4809 = vmatprep.subr.bf16.mxu0 0
          %4810 = vmatpush2.bf16.msra.mxu0 0
          %4811 = vmatprep.subr.bf16.mxu0 0
          %4812 = vmatpush2.bf16.msra.mxu0 0
          %4813 = vmatprep.mubr.bf16.mxu0 0
          %4814 = vmatmul.mubr.bf16.gmra.mxu0 %v4715
          %v4815 = vpop.f32.mrf.mxu0
          %v4816 = vadd.f32 0.0, %v4815
          %v4817 = vpop.f32.mrf.mxu0
          %v4818 = vpop.f32.mrf.mxu0
          %v4819 = vpop.f32.mrf.mxu0
          %4820 = vdwg.mxu0
          %v4821 = vadd.f32 %v4710, %v4816
          %s4822 = scalar_lea.vmem %s4713, 1 [#allocation4]
          %v4823 = vld [vmem:[%s4822] ss:$2 sm:$0xff]
          %v4824 = vpack.c.bf16 %v4823, %v4823
          %s4825 = scalar_lea.vmem %s9, 256
          %v4826 = vld [vmem:[%s4825] sm:$0xf]
          %v4827 = vld [vmem:[%s4825 + $0x4] sm:$0xf]
          %v4828 = vld [vmem:[%s4825 + $0x8] sm:$0xf]
          %v4829 = vld [vmem:[%s4825 + $0xc] sm:$0xf]
          %v4830 = vld [vmem:[%s4825 + $0x10] sm:$0xf]
          %v4831 = vld [vmem:[%s4825 + $0x14] sm:$0xf]
          %v4832 = vld [vmem:[%s4825 + $0x18] sm:$0xf]
          %v4833 = vld [vmem:[%s4825 + $0x1c] sm:$0xf]
          %v4834 = vld [vmem:[%s4825 + $0x20] sm:$0xf]
          %v4835 = vld [vmem:[%s4825 + $0x24] sm:$0xf]
          %v4836 = vld [vmem:[%s4825 + $0x28] sm:$0xf]
          %v4837 = vld [vmem:[%s4825 + $0x2c] sm:$0xf]
          %v4838 = vld [vmem:[%s4825 + $0x30] sm:$0xf]
          %v4839 = vld [vmem:[%s4825 + $0x34] sm:$0xf]
          %v4840 = vld [vmem:[%s4825 + $0x38] sm:$0xf]
          %v4841 = vld [vmem:[%s4825 + $0x3c] sm:$0xf]
          %v4858 = vunpack.c.l.b16 %v4826
          %v4859 = vunpack.c.l.b16 %v4827
          %v4860 = vunpack.c.l.b16 %v4828
          %v4861 = vunpack.c.l.b16 %v4829
          %v4862 = vunpack.c.l.b16 %v4830
          %v4863 = vunpack.c.l.b16 %v4831
          %v4864 = vunpack.c.l.b16 %v4832
          %v4865 = vunpack.c.l.b16 %v4833
          %v4866 = vunpack.c.l.b16 %v4834
          %v4867 = vunpack.c.l.b16 %v4835
          %v4868 = vunpack.c.l.b16 %v4836
          %v4869 = vunpack.c.l.b16 %v4837
          %v4870 = vunpack.c.l.b16 %v4838
          %v4871 = vunpack.c.l.b16 %v4839
          %v4872 = vunpack.c.l.b16 %v4840
          %v4873 = vunpack.c.l.b16 %v4841
          %v4874 = vpack.c.b16 %v4859, %v4858
          %v4875 = vpack.c.b16 %v4861, %v4860
          %v4876 = vpack.c.b16 %v4863, %v4862
          %v4877 = vpack.c.b16 %v4865, %v4864
          %v4878 = vpack.c.b16 %v4867, %v4866
          %v4879 = vpack.c.b16 %v4869, %v4868
          %v4880 = vpack.c.b16 %v4871, %v4870
          %v4881 = vpack.c.b16 %v4873, %v4872
          %4890 = vmatprep.subr.bf16.mxu0 0
          %4891 = vmatpush1.bf16.msra.mxu0 %v4881
          %4892 = vmatprep.subr.bf16.mxu0 0
          %4893 = vmatpush1.bf16.msra.mxu0 %v4880
          %4894 = vmatprep.subr.bf16.mxu0 0
          %4895 = vmatpush1.bf16.msra.mxu0 %v4879
          %4896 = vmatprep.subr.bf16.mxu0 0
          %4897 = vmatpush1.bf16.msra.mxu0 %v4878
          %4898 = vmatprep.subr.bf16.mxu0 0
          %4899 = vmatpush1.bf16.msra.mxu0 %v4877
          %4900 = vmatprep.subr.bf16.mxu0 0
          %4901 = vmatpush1.bf16.msra.mxu0 %v4876
          %4902 = vmatprep.subr.bf16.mxu0 0
          %4903 = vmatpush1.bf16.msra.mxu0 %v4875
          %4904 = vmatprep.subr.bf16.mxu0 0
          %4905 = vmatpush1.bf16.msra.mxu0 %v4874
          %4906 = vmatprep.subr.bf16.mxu0 0
          %4907 = vmatpush2.bf16.msra.mxu0 0
          %4908 = vmatprep.subr.bf16.mxu0 0
          %4909 = vmatpush2.bf16.msra.mxu0 0
          %4910 = vmatprep.subr.bf16.mxu0 0
          %4911 = vmatpush2.bf16.msra.mxu0 0
          %4912 = vmatprep.subr.bf16.mxu0 0
          %4913 = vmatpush2.bf16.msra.mxu0 0
          %4914 = vmatprep.subr.bf16.mxu0 0
          %4915 = vmatpush2.bf16.msra.mxu0 0
          %4916 = vmatprep.subr.bf16.mxu0 0
          %4917 = vmatpush2.bf16.msra.mxu0 0
          %4918 = vmatprep.subr.bf16.mxu0 0
          %4919 = vmatpush2.bf16.msra.mxu0 0
          %4920 = vmatprep.subr.bf16.mxu0 0
          %4921 = vmatpush2.bf16.msra.mxu0 0
          %4922 = vmatprep.mubr.bf16.mxu0 0
          %4923 = vmatmul.mubr.bf16.gmra.mxu0 %v4824
          %v4924 = vpop.f32.mrf.mxu0
          %v4925 = vadd.f32 0.0, %v4924
          %v4926 = vpop.f32.mrf.mxu0
          %v4927 = vpop.f32.mrf.mxu0
          %v4928 = vpop.f32.mrf.mxu0
          %4929 = vdwg.mxu0
          %v4930 = vadd.f32 %v4821, %v4925
          %s4931 = scalar_lea.vmem %s4713, 2 [#allocation4]
          %v4932 = vld [vmem:[%s4931] ss:$2 sm:$0xff]
          %v4933 = vpack.c.bf16 %v4932, %v4932
          %s4934 = scalar_lea.vmem %s9, 320
          %v4935 = vld [vmem:[%s4934] sm:$0xf]
          %v4936 = vld [vmem:[%s4934 + $0x4] sm:$0xf]
          %v4937 = vld [vmem:[%s4934 + $0x8] sm:$0xf]
          %v4938 = vld [vmem:[%s4934 + $0xc] sm:$0xf]
          %v4939 = vld [vmem:[%s4934 + $0x10] sm:$0xf]
          %v4940 = vld [vmem:[%s4934 + $0x14] sm:$0xf]
          %v4941 = vld [vmem:[%s4934 + $0x18] sm:$0xf]
          %v4942 = vld [vmem:[%s4934 + $0x1c] sm:$0xf]
          %v4943 = vld [vmem:[%s4934 + $0x20] sm:$0xf]
          %v4944 = vld [vmem:[%s4934 + $0x24] sm:$0xf]
          %v4945 = vld [vmem:[%s4934 + $0x28] sm:$0xf]
          %v4946 = vld [vmem:[%s4934 + $0x2c] sm:$0xf]
          %v4947 = vld [vmem:[%s4934 + $0x30] sm:$0xf]
          %v4948 = vld [vmem:[%s4934 + $0x34] sm:$0xf]
          %v4949 = vld [vmem:[%s4934 + $0x38] sm:$0xf]
          %v4950 = vld [vmem:[%s4934 + $0x3c] sm:$0xf]
          %v4967 = vunpack.c.l.b16 %v4935
          %v4968 = vunpack.c.l.b16 %v4936
          %v4969 = vunpack.c.l.b16 %v4937
          %v4970 = vunpack.c.l.b16 %v4938
          %v4971 = vunpack.c.l.b16 %v4939
          %v4972 = vunpack.c.l.b16 %v4940
          %v4973 = vunpack.c.l.b16 %v4941
          %v4974 = vunpack.c.l.b16 %v4942
          %v4975 = vunpack.c.l.b16 %v4943
          %v4976 = vunpack.c.l.b16 %v4944
          %v4977 = vunpack.c.l.b16 %v4945
          %v4978 = vunpack.c.l.b16 %v4946
          %v4979 = vunpack.c.l.b16 %v4947
          %v4980 = vunpack.c.l.b16 %v4948
          %v4981 = vunpack.c.l.b16 %v4949
          %v4982 = vunpack.c.l.b16 %v4950
          %v4983 = vpack.c.b16 %v4968, %v4967
          %v4984 = vpack.c.b16 %v4970, %v4969
          %v4985 = vpack.c.b16 %v4972, %v4971
          %v4986 = vpack.c.b16 %v4974, %v4973
          %v4987 = vpack.c.b16 %v4976, %v4975
          %v4988 = vpack.c.b16 %v4978, %v4977
          %v4989 = vpack.c.b16 %v4980, %v4979
          %v4990 = vpack.c.b16 %v4982, %v4981
          %4999 = vmatprep.subr.bf16.mxu0 0
          %5000 = vmatpush1.bf16.msra.mxu0 %v4990
          %5001 = vmatprep.subr.bf16.mxu0 0
          %5002 = vmatpush1.bf16.msra.mxu0 %v4989
          %5003 = vmatprep.subr.bf16.mxu0 0
          %5004 = vmatpush1.bf16.msra.mxu0 %v4988
          %5005 = vmatprep.subr.bf16.mxu0 0
          %5006 = vmatpush1.bf16.msra.mxu0 %v4987
          %5007 = vmatprep.subr.bf16.mxu0 0
          %5008 = vmatpush1.bf16.msra.mxu0 %v4986
          %5009 = vmatprep.subr.bf16.mxu0 0
          %5010 = vmatpush1.bf16.msra.mxu0 %v4985
          %5011 = vmatprep.subr.bf16.mxu0 0
          %5012 = vmatpush1.bf16.msra.mxu0 %v4984
          %5013 = vmatprep.subr.bf16.mxu0 0
          %5014 = vmatpush1.bf16.msra.mxu0 %v4983
          %5015 = vmatprep.subr.bf16.mxu0 0
          %5016 = vmatpush2.bf16.msra.mxu0 0
          %5017 = vmatprep.subr.bf16.mxu0 0
          %5018 = vmatpush2.bf16.msra.mxu0 0
          %5019 = vmatprep.subr.bf16.mxu0 0
          %5020 = vmatpush2.bf16.msra.mxu0 0
          %5021 = vmatprep.subr.bf16.mxu0 0
          %5022 = vmatpush2.bf16.msra.mxu0 0
          %5023 = vmatprep.subr.bf16.mxu0 0
          %5024 = vmatpush2.bf16.msra.mxu0 0
          %5025 = vmatprep.subr.bf16.mxu0 0
          %5026 = vmatpush2.bf16.msra.mxu0 0
          %5027 = vmatprep.subr.bf16.mxu0 0
          %5028 = vmatpush2.bf16.msra.mxu0 0
          %5029 = vmatprep.subr.bf16.mxu0 0
          %5030 = vmatpush2.bf16.msra.mxu0 0
          %5031 = vmatprep.mubr.bf16.mxu0 0
          %5032 = vmatmul.mubr.bf16.gmra.mxu0 %v4933
          %v5033 = vpop.f32.mrf.mxu0
          %v5034 = vadd.f32 0.0, %v5033
          %v5035 = vpop.f32.mrf.mxu0
          %v5036 = vpop.f32.mrf.mxu0
          %v5037 = vpop.f32.mrf.mxu0
          %5038 = vdwg.mxu0
          %v5039 = vadd.f32 %v4930, %v5034
          %s5040 = sadd.s32 %s4385, 2
          %s5041 = smul.u32 %s5040, 24
          %s5042 = scalar_lea.vmem [#allocation4], %s5041
          %v5043 = vld [vmem:[%s5042] ss:$2 sm:$0xff]
          %v5044 = vpack.c.bf16 %v5043, %v5043
          %s5045 = scalar_lea.vmem %s9, 384
          %v5046 = vld [vmem:[%s5045] sm:$0xf]
          %v5047 = vld [vmem:[%s5045 + $0x4] sm:$0xf]
          %v5048 = vld [vmem:[%s5045 + $0x8] sm:$0xf]
          %v5049 = vld [vmem:[%s5045 + $0xc] sm:$0xf]
          %v5050 = vld [vmem:[%s5045 + $0x10] sm:$0xf]
          %v5051 = vld [vmem:[%s5045 + $0x14] sm:$0xf]
          %v5052 = vld [vmem:[%s5045 + $0x18] sm:$0xf]
          %v5053 = vld [vmem:[%s5045 + $0x1c] sm:$0xf]
          %v5054 = vld [vmem:[%s5045 + $0x20] sm:$0xf]
          %v5055 = vld [vmem:[%s5045 + $0x24] sm:$0xf]
          %v5056 = vld [vmem:[%s5045 + $0x28] sm:$0xf]
          %v5057 = vld [vmem:[%s5045 + $0x2c] sm:$0xf]
          %v5058 = vld [vmem:[%s5045 + $0x30] sm:$0xf]
          %v5059 = vld [vmem:[%s5045 + $0x34] sm:$0xf]
          %v5060 = vld [vmem:[%s5045 + $0x38] sm:$0xf]
          %v5061 = vld [vmem:[%s5045 + $0x3c] sm:$0xf]
          %v5078 = vunpack.c.l.b16 %v5046
          %v5079 = vunpack.c.l.b16 %v5047
          %v5080 = vunpack.c.l.b16 %v5048
          %v5081 = vunpack.c.l.b16 %v5049
          %v5082 = vunpack.c.l.b16 %v5050
          %v5083 = vunpack.c.l.b16 %v5051
          %v5084 = vunpack.c.l.b16 %v5052
          %v5085 = vunpack.c.l.b16 %v5053
          %v5086 = vunpack.c.l.b16 %v5054
          %v5087 = vunpack.c.l.b16 %v5055
          %v5088 = vunpack.c.l.b16 %v5056
          %v5089 = vunpack.c.l.b16 %v5057
          %v5090 = vunpack.c.l.b16 %v5058
          %v5091 = vunpack.c.l.b16 %v5059
          %v5092 = vunpack.c.l.b16 %v5060
          %v5093 = vunpack.c.l.b16 %v5061
          %v5094 = vpack.c.b16 %v5079, %v5078
          %v5095 = vpack.c.b16 %v5081, %v5080
          %v5096 = vpack.c.b16 %v5083, %v5082
          %v5097 = vpack.c.b16 %v5085, %v5084
          %v5098 = vpack.c.b16 %v5087, %v5086
          %v5099 = vpack.c.b16 %v5089, %v5088
          %v5100 = vpack.c.b16 %v5091, %v5090
          %v5101 = vpack.c.b16 %v5093, %v5092
          %5110 = vmatprep.subr.bf16.mxu0 0
          %5111 = vmatpush1.bf16.msra.mxu0 %v5101
          %5112 = vmatprep.subr.bf16.mxu0 0
          %5113 = vmatpush1.bf16.msra.mxu0 %v5100
          %5114 = vmatprep.subr.bf16.mxu0 0
          %5115 = vmatpush1.bf16.msra.mxu0 %v5099
          %5116 = vmatprep.subr.bf16.mxu0 0
          %5117 = vmatpush1.bf16.msra.mxu0 %v5098
          %5118 = vmatprep.subr.bf16.mxu0 0
          %5119 = vmatpush1.bf16.msra.mxu0 %v5097
          %5120 = vmatprep.subr.bf16.mxu0 0
          %5121 = vmatpush1.bf16.msra.mxu0 %v5096
          %5122 = vmatprep.subr.bf16.mxu0 0
          %5123 = vmatpush1.bf16.msra.mxu0 %v5095
          %5124 = vmatprep.subr.bf16.mxu0 0
          %5125 = vmatpush1.bf16.msra.mxu0 %v5094
          %5126 = vmatprep.subr.bf16.mxu0 0
          %5127 = vmatpush2.bf16.msra.mxu0 0
          %5128 = vmatprep.subr.bf16.mxu0 0
          %5129 = vmatpush2.bf16.msra.mxu0 0
          %5130 = vmatprep.subr.bf16.mxu0 0
          %5131 = vmatpush2.bf16.msra.mxu0 0
          %5132 = vmatprep.subr.bf16.mxu0 0
          %5133 = vmatpush2.bf16.msra.mxu0 0
          %5134 = vmatprep.subr.bf16.mxu0 0
          %5135 = vmatpush2.bf16.msra.mxu0 0
          %5136 = vmatprep.subr.bf16.mxu0 0
          %5137 = vmatpush2.bf16.msra.mxu0 0
          %5138 = vmatprep.subr.bf16.mxu0 0
          %5139 = vmatpush2.bf16.msra.mxu0 0
          %5140 = vmatprep.subr.bf16.mxu0 0
          %5141 = vmatpush2.bf16.msra.mxu0 0
          %5142 = vmatprep.mubr.bf16.mxu0 0
          %5143 = vmatmul.mubr.bf16.gmra.mxu0 %v5044
          %v5144 = vpop.f32.mrf.mxu0
          %v5145 = vadd.f32 0.0, %v5144
          %v5146 = vpop.f32.mrf.mxu0
          %v5147 = vpop.f32.mrf.mxu0
          %v5148 = vpop.f32.mrf.mxu0
          %5149 = vdwg.mxu0
          %v5150 = vadd.f32 %v5039, %v5145
          %s5151 = scalar_lea.vmem %s5042, 1 [#allocation4]
          %v5152 = vld [vmem:[%s5151] ss:$2 sm:$0xff]
          %v5153 = vpack.c.bf16 %v5152, %v5152
          %s5154 = scalar_lea.vmem %s9, 448
          %v5155 = vld [vmem:[%s5154] sm:$0xf]
          %v5156 = vld [vmem:[%s5154 + $0x4] sm:$0xf]
          %v5157 = vld [vmem:[%s5154 + $0x8] sm:$0xf]
          %v5158 = vld [vmem:[%s5154 + $0xc] sm:$0xf]
          %v5159 = vld [vmem:[%s5154 + $0x10] sm:$0xf]
          %v5160 = vld [vmem:[%s5154 + $0x14] sm:$0xf]
          %v5161 = vld [vmem:[%s5154 + $0x18] sm:$0xf]
          %v5162 = vld [vmem:[%s5154 + $0x1c] sm:$0xf]
          %v5163 = vld [vmem:[%s5154 + $0x20] sm:$0xf]
          %v5164 = vld [vmem:[%s5154 + $0x24] sm:$0xf]
          %v5165 = vld [vmem:[%s5154 + $0x28] sm:$0xf]
          %v5166 = vld [vmem:[%s5154 + $0x2c] sm:$0xf]
          %v5167 = vld [vmem:[%s5154 + $0x30] sm:$0xf]
          %v5168 = vld [vmem:[%s5154 + $0x34] sm:$0xf]
          %v5169 = vld [vmem:[%s5154 + $0x38] sm:$0xf]
          %v5170 = vld [vmem:[%s5154 + $0x3c] sm:$0xf]
          %v5187 = vunpack.c.l.b16 %v5155
          %v5188 = vunpack.c.l.b16 %v5156
          %v5189 = vunpack.c.l.b16 %v5157
          %v5190 = vunpack.c.l.b16 %v5158
          %v5191 = vunpack.c.l.b16 %v5159
          %v5192 = vunpack.c.l.b16 %v5160
          %v5193 = vunpack.c.l.b16 %v5161
          %v5194 = vunpack.c.l.b16 %v5162
          %v5195 = vunpack.c.l.b16 %v5163
          %v5196 = vunpack.c.l.b16 %v5164
          %v5197 = vunpack.c.l.b16 %v5165
          %v5198 = vunpack.c.l.b16 %v5166
          %v5199 = vunpack.c.l.b16 %v5167
          %v5200 = vunpack.c.l.b16 %v5168
          %v5201 = vunpack.c.l.b16 %v5169
          %v5202 = vunpack.c.l.b16 %v5170
          %v5203 = vpack.c.b16 %v5188, %v5187
          %v5204 = vpack.c.b16 %v5190, %v5189
          %v5205 = vpack.c.b16 %v5192, %v5191
          %v5206 = vpack.c.b16 %v5194, %v5193
          %v5207 = vpack.c.b16 %v5196, %v5195
          %v5208 = vpack.c.b16 %v5198, %v5197
          %v5209 = vpack.c.b16 %v5200, %v5199
          %v5210 = vpack.c.b16 %v5202, %v5201
          %5219 = vmatprep.subr.bf16.mxu0 0
          %5220 = vmatpush1.bf16.msra.mxu0 %v5210
          %5221 = vmatprep.subr.bf16.mxu0 0
          %5222 = vmatpush1.bf16.msra.mxu0 %v5209
          %5223 = vmatprep.subr.bf16.mxu0 0
          %5224 = vmatpush1.bf16.msra.mxu0 %v5208
          %5225 = vmatprep.subr.bf16.mxu0 0
          %5226 = vmatpush1.bf16.msra.mxu0 %v5207
          %5227 = vmatprep.subr.bf16.mxu0 0
          %5228 = vmatpush1.bf16.msra.mxu0 %v5206
          %5229 = vmatprep.subr.bf16.mxu0 0
          %5230 = vmatpush1.bf16.msra.mxu0 %v5205
          %5231 = vmatprep.subr.bf16.mxu0 0
          %5232 = vmatpush1.bf16.msra.mxu0 %v5204
          %5233 = vmatprep.subr.bf16.mxu0 0
          %5234 = vmatpush1.bf16.msra.mxu0 %v5203
          %5235 = vmatprep.subr.bf16.mxu0 0
          %5236 = vmatpush2.bf16.msra.mxu0 0
          %5237 = vmatprep.subr.bf16.mxu0 0
          %5238 = vmatpush2.bf16.msra.mxu0 0
          %5239 = vmatprep.subr.bf16.mxu0 0
          %5240 = vmatpush2.bf16.msra.mxu0 0
          %5241 = vmatprep.subr.bf16.mxu0 0
          %5242 = vmatpush2.bf16.msra.mxu0 0
          %5243 = vmatprep.subr.bf16.mxu0 0
          %5244 = vmatpush2.bf16.msra.mxu0 0
          %5245 = vmatprep.subr.bf16.mxu0 0
          %5246 = vmatpush2.bf16.msra.mxu0 0
          %5247 = vmatprep.subr.bf16.mxu0 0
          %5248 = vmatpush2.bf16.msra.mxu0 0
          %5249 = vmatprep.subr.bf16.mxu0 0
          %5250 = vmatpush2.bf16.msra.mxu0 0
          %5251 = vmatprep.mubr.bf16.mxu0 0
          %5252 = vmatmul.mubr.bf16.gmra.mxu0 %v5153
          %v5253 = vpop.f32.mrf.mxu0
          %v5254 = vadd.f32 0.0, %v5253
          %v5255 = vpop.f32.mrf.mxu0
          %v5256 = vpop.f32.mrf.mxu0
          %v5257 = vpop.f32.mrf.mxu0
          %5258 = vdwg.mxu0
          %v5259 = vadd.f32 %v5150, %v5254
          %s5260 = scalar_lea.vmem %s5042, 2 [#allocation4]
          %v5261 = vld [vmem:[%s5260] ss:$2 sm:$0xff]
          %v5262 = vpack.c.bf16 %v5261, %v5261
          %s5263 = scalar_lea.vmem %s9, 512
          %v5264 = vld [vmem:[%s5263] sm:$0xf]
          %v5265 = vld [vmem:[%s5263 + $0x4] sm:$0xf]
          %v5266 = vld [vmem:[%s5263 + $0x8] sm:$0xf]
          %v5267 = vld [vmem:[%s5263 + $0xc] sm:$0xf]
          %v5268 = vld [vmem:[%s5263 + $0x10] sm:$0xf]
          %v5269 = vld [vmem:[%s5263 + $0x14] sm:$0xf]
          %v5270 = vld [vmem:[%s5263 + $0x18] sm:$0xf]
          %v5271 = vld [vmem:[%s5263 + $0x1c] sm:$0xf]
          %v5272 = vld [vmem:[%s5263 + $0x20] sm:$0xf]
          %v5273 = vld [vmem:[%s5263 + $0x24] sm:$0xf]
          %v5274 = vld [vmem:[%s5263 + $0x28] sm:$0xf]
          %v5275 = vld [vmem:[%s5263 + $0x2c] sm:$0xf]
          %v5276 = vld [vmem:[%s5263 + $0x30] sm:$0xf]
          %v5277 = vld [vmem:[%s5263 + $0x34] sm:$0xf]
          %v5278 = vld [vmem:[%s5263 + $0x38] sm:$0xf]
          %v5279 = vld [vmem:[%s5263 + $0x3c] sm:$0xf]
          %v5296 = vunpack.c.l.b16 %v5264
          %v5297 = vunpack.c.l.b16 %v5265
          %v5298 = vunpack.c.l.b16 %v5266
          %v5299 = vunpack.c.l.b16 %v5267
          %v5300 = vunpack.c.l.b16 %v5268
          %v5301 = vunpack.c.l.b16 %v5269
          %v5302 = vunpack.c.l.b16 %v5270
          %v5303 = vunpack.c.l.b16 %v5271
          %v5304 = vunpack.c.l.b16 %v5272
          %v5305 = vunpack.c.l.b16 %v5273
          %v5306 = vunpack.c.l.b16 %v5274
          %v5307 = vunpack.c.l.b16 %v5275
          %v5308 = vunpack.c.l.b16 %v5276
          %v5309 = vunpack.c.l.b16 %v5277
          %v5310 = vunpack.c.l.b16 %v5278
          %v5311 = vunpack.c.l.b16 %v5279
          %v5312 = vpack.c.b16 %v5297, %v5296
          %v5313 = vpack.c.b16 %v5299, %v5298
          %v5314 = vpack.c.b16 %v5301, %v5300
          %v5315 = vpack.c.b16 %v5303, %v5302
          %v5316 = vpack.c.b16 %v5305, %v5304
          %v5317 = vpack.c.b16 %v5307, %v5306
          %v5318 = vpack.c.b16 %v5309, %v5308
          %v5319 = vpack.c.b16 %v5311, %v5310
          %5328 = vmatprep.subr.bf16.mxu0 0
          %5329 = vmatpush1.bf16.msra.mxu0 %v5319
          %5330 = vmatprep.subr.bf16.mxu0 0
          %5331 = vmatpush1.bf16.msra.mxu0 %v5318
          %5332 = vmatprep.subr.bf16.mxu0 0
          %5333 = vmatpush1.bf16.msra.mxu0 %v5317
          %5334 = vmatprep.subr.bf16.mxu0 0
          %5335 = vmatpush1.bf16.msra.mxu0 %v5316
          %5336 = vmatprep.subr.bf16.mxu0 0
          %5337 = vmatpush1.bf16.msra.mxu0 %v5315
          %5338 = vmatprep.subr.bf16.mxu0 0
          %5339 = vmatpush1.bf16.msra.mxu0 %v5314
          %5340 = vmatprep.subr.bf16.mxu0 0
          %5341 = vmatpush1.bf16.msra.mxu0 %v5313
          %5342 = vmatprep.subr.bf16.mxu0 0
          %5343 = vmatpush1.bf16.msra.mxu0 %v5312
          %5344 = vmatprep.subr.bf16.mxu0 0
          %5345 = vmatpush2.bf16.msra.mxu0 0
          %5346 = vmatprep.subr.bf16.mxu0 0
          %5347 = vmatpush2.bf16.msra.mxu0 0
          %5348 = vmatprep.subr.bf16.mxu0 0
          %5349 = vmatpush2.bf16.msra.mxu0 0
          %5350 = vmatprep.subr.bf16.mxu0 0
          %5351 = vmatpush2.bf16.msra.mxu0 0
          %5352 = vmatprep.subr.bf16.mxu0 0
          %5353 = vmatpush2.bf16.msra.mxu0 0
          %5354 = vmatprep.subr.bf16.mxu0 0
          %5355 = vmatpush2.bf16.msra.mxu0 0
          %5356 = vmatprep.subr.bf16.mxu0 0
          %5357 = vmatpush2.bf16.msra.mxu0 0
          %5358 = vmatprep.subr.bf16.mxu0 0
          %5359 = vmatpush2.bf16.msra.mxu0 0
          %5360 = vmatprep.mubr.bf16.mxu0 0
          %5361 = vmatmul.mubr.bf16.gmra.mxu0 %v5262
          %v5362 = vpop.f32.mrf.mxu0
          %v5363 = vadd.f32 0.0, %v5362
          %v5364 = vpop.f32.mrf.mxu0
          %v5365 = vpop.f32.mrf.mxu0
          %v5366 = vpop.f32.mrf.mxu0
          %5367 = vdwg.mxu0
          %v5368 = vadd.f32 %v5259, %v5363
          %v5370 = vlaneseq
          %v5371 = vshrl.u32 %v5370, 7
          %v5372 = vsub.s32 0, %v5371
          %v5373 = vrot.slane %v4378, %v5372
          %v5375 = vadd.f32 %v5368, %v5373
          %v5376 = vmax.f32 %v5375, 0.0
          %s5377 = sadd.s32 %s4380, 1
          %s5378 = smul.u32 %s5377, 16
          %s5379 = scalar_lea.vmem [#allocation5], %s5378
          %5380 = vst [vmem:[%s5379 + $0x1] sm:$0xff] %v5376
        $region145: #{model_forward.1} parent=111 // loop_footer
          %s4384 = sadd.s32 1, %s4380
        $region146: #{model_forward.1} parent=111 // loop_footer_branch
          %4379 = sbr.rel target = $region142
        $region147: #{model_forward.1} parent=111 // loop_exit
          _
        %v5381 = vld [vmem:[%s12] sm:$0x1]
        loop: start=0, step=1, limit=8
        $region148: #{model_forward.1} parent=111 // loop_pre_header
          _
        $region149: #{model_forward.1} parent=111 // loop_header
          %s5383 = sphi 0, %s5387
          %p5384 = scmp.ge.s32.totalorder %s5383, 8
        $region150: #{model_forward.1} parent=111 // loop_header_branch
          %5386 = sbr.rel (%p5384) target = $region154
        $region151: #{model_forward.1} parent=111 // loop_body
          %s5388 = smul.u32 %s5383, 2
          %s5389 = sadd.s32 %s5388, 1
          %s5390 = smul.u32 %s5389, 24
          %s5391 = scalar_lea.vmem [#allocation4], %s5390
          %s5392 = scalar_lea.vmem %s5391, 1 [#allocation4]
          %v5393 = vld [vmem:[%s5392] ss:$2 sm:$0xff]
          %v5394 = vpack.c.bf16 %v5393, %v5393
          %v5395 = vld [vmem:[%s11] sm:$0xf]
          %v5396 = vld [vmem:[%s11 + $0x4] sm:$0xf]
          %v5397 = vld [vmem:[%s11 + $0x8] sm:$0xf]
          %v5398 = vld [vmem:[%s11 + $0xc] sm:$0xf]
          %v5399 = vld [vmem:[%s11 + $0x10] sm:$0xf]
          %v5400 = vld [vmem:[%s11 + $0x14] sm:$0xf]
          %v5401 = vld [vmem:[%s11 + $0x18] sm:$0xf]
          %v5402 = vld [vmem:[%s11 + $0x1c] sm:$0xf]
          %v5403 = vld [vmem:[%s11 + $0x20] sm:$0xf]
          %v5404 = vld [vmem:[%s11 + $0x24] sm:$0xf]
          %v5405 = vld [vmem:[%s11 + $0x28] sm:$0xf]
          %v5406 = vld [vmem:[%s11 + $0x2c] sm:$0xf]
          %v5407 = vld [vmem:[%s11 + $0x30] sm:$0xf]
          %v5408 = vld [vmem:[%s11 + $0x34] sm:$0xf]
          %v5409 = vld [vmem:[%s11 + $0x38] sm:$0xf]
          %v5410 = vld [vmem:[%s11 + $0x3c] sm:$0xf]
          %v5412 = vlaneseq
          %v5413 = vshrl.u32 %v5412, 7
          %v5414 = vsub.s32 0, %v5413
          %v5415 = vrot.slane %v5381, %v5414
          %v5433 = vunpack.c.l.b16 %v5395
          %v5434 = vunpack.c.l.b16 %v5396
          %v5435 = vunpack.c.l.b16 %v5397
          %v5436 = vunpack.c.l.b16 %v5398
          %v5437 = vunpack.c.l.b16 %v5399
          %v5438 = vunpack.c.l.b16 %v5400
          %v5439 = vunpack.c.l.b16 %v5401
          %v5440 = vunpack.c.l.b16 %v5402
          %v5441 = vunpack.c.l.b16 %v5403
          %v5442 = vunpack.c.l.b16 %v5404
          %v5443 = vunpack.c.l.b16 %v5405
          %v5444 = vunpack.c.l.b16 %v5406
          %v5445 = vunpack.c.l.b16 %v5407
          %v5446 = vunpack.c.l.b16 %v5408
          %v5447 = vunpack.c.l.b16 %v5409
          %v5448 = vunpack.c.l.b16 %v5410
          %v5449 = vpack.c.b16 %v5434, %v5433
          %v5450 = vpack.c.b16 %v5436, %v5435
          %v5451 = vpack.c.b16 %v5438, %v5437
          %v5452 = vpack.c.b16 %v5440, %v5439
          %v5453 = vpack.c.b16 %v5442, %v5441
          %v5454 = vpack.c.b16 %v5444, %v5443
          %v5455 = vpack.c.b16 %v5446, %v5445
          %v5456 = vpack.c.b16 %v5448, %v5447
          %5465 = vmatprep.subr.bf16.mxu0 0
          %5466 = vmatpush1.bf16.msra.mxu0 %v5456
          %5467 = vmatprep.subr.bf16.mxu0 0
          %5468 = vmatpush1.bf16.msra.mxu0 %v5455
          %5469 = vmatprep.subr.bf16.mxu0 0
          %5470 = vmatpush1.bf16.msra.mxu0 %v5454
          %5471 = vmatprep.subr.bf16.mxu0 0
          %5472 = vmatpush1.bf16.msra.mxu0 %v5453
          %5473 = vmatprep.subr.bf16.mxu0 0
          %5474 = vmatpush1.bf16.msra.mxu0 %v5452
          %5475 = vmatprep.subr.bf16.mxu0 0
          %5476 = vmatpush1.bf16.msra.mxu0 %v5451
          %5477 = vmatprep.subr.bf16.mxu0 0
          %5478 = vmatpush1.bf16.msra.mxu0 %v5450
          %5479 = vmatprep.subr.bf16.mxu0 0
          %5480 = vmatpush1.bf16.msra.mxu0 %v5449
          %5481 = vmatprep.subr.bf16.mxu0 0
          %5482 = vmatpush2.bf16.msra.mxu0 0
          %5483 = vmatprep.subr.bf16.mxu0 0
          %5484 = vmatpush2.bf16.msra.mxu0 0
          %5485 = vmatprep.subr.bf16.mxu0 0
          %5486 = vmatpush2.bf16.msra.mxu0 0
          %5487 = vmatprep.subr.bf16.mxu0 0
          %5488 = vmatpush2.bf16.msra.mxu0 0
          %5489 = vmatprep.subr.bf16.mxu0 0
          %5490 = vmatpush2.bf16.msra.mxu0 0
          %5491 = vmatprep.subr.bf16.mxu0 0
          %5492 = vmatpush2.bf16.msra.mxu0 0
          %5493 = vmatprep.subr.bf16.mxu0 0
          %5494 = vmatpush2.bf16.msra.mxu0 0
          %5495 = vmatprep.subr.bf16.mxu0 0
          %5496 = vmatpush2.bf16.msra.mxu0 0
          %5497 = vmatprep.mubr.bf16.mxu0 0
          %5498 = vmatmul.mubr.bf16.gmra.mxu0 %v5394
          %v5499 = vpop.f32.mrf.mxu0
          %v5500 = vadd.f32 %v5415, %v5499
          %v5501 = vpop.f32.mrf.mxu0
          %v5502 = vpop.f32.mrf.mxu0
          %v5503 = vpop.f32.mrf.mxu0
          %5504 = vdwg.mxu0
          %s5505 = sadd.s32 %s5383, 1
          %s5506 = smul.u32 %s5505, 16
          %s5507 = scalar_lea.vmem [#allocation6], %s5506
          %5508 = vst [vmem:[%s5507 + $0x1] sm:$0xff] %v5500
        $region152: #{model_forward.1} parent=111 // loop_footer
          %s5387 = sadd.s32 1, %s5383
        $region153: #{model_forward.1} parent=111 // loop_footer_branch
          %5382 = sbr.rel target = $region149
        $region154: #{model_forward.1} parent=111 // loop_exit
          _
        %v5509 = vld [vmem:[%s14] sm:$0x1]
        loop: start=0, step=1, limit=8
        $region155: #{model_forward.1} parent=111 // loop_pre_header
          _
        $region156: #{model_forward.1} parent=111 // loop_header
          %s5511 = sphi 0, %s5515
          %p5512 = scmp.ge.s32.totalorder %s5511, 8
        $region157: #{model_forward.1} parent=111 // loop_header_branch
          %5514 = sbr.rel (%p5512) target = $region161
        $region158: #{model_forward.1} parent=111 // loop_body
          %s5516 = smul.u32 %s5511, 16
          %s5517 = scalar_lea.vmem [#allocation5], %s5516
          %v5518 = vld [vmem:[%s5517] sm:$0xff]
          %v5519 = vpack.c.bf16 %v5518, %v5518
          %v5520 = vld [vmem:[%s13] sm:$0xf]
          %v5521 = vld [vmem:[%s13 + $0x4] sm:$0xf]
          %v5522 = vld [vmem:[%s13 + $0x8] sm:$0xf]
          %v5523 = vld [vmem:[%s13 + $0xc] sm:$0xf]
          %v5524 = vld [vmem:[%s13 + $0x10] sm:$0xf]
          %v5525 = vld [vmem:[%s13 + $0x14] sm:$0xf]
          %v5526 = vld [vmem:[%s13 + $0x18] sm:$0xf]
          %v5527 = vld [vmem:[%s13 + $0x1c] sm:$0xf]
          %v5528 = vld [vmem:[%s13 + $0x20] sm:$0xf]
          %v5529 = vld [vmem:[%s13 + $0x24] sm:$0xf]
          %v5530 = vld [vmem:[%s13 + $0x28] sm:$0xf]
          %v5531 = vld [vmem:[%s13 + $0x2c] sm:$0xf]
          %v5532 = vld [vmem:[%s13 + $0x30] sm:$0xf]
          %v5533 = vld [vmem:[%s13 + $0x34] sm:$0xf]
          %v5534 = vld [vmem:[%s13 + $0x38] sm:$0xf]
          %v5535 = vld [vmem:[%s13 + $0x3c] sm:$0xf]
          %v5536 = vld [vmem:[%s5517 + $0x1] sm:$0xff]
          %v5537 = vpack.c.bf16 %v5536, %v5536
          %s5538 = scalar_lea.vmem %s13, 64
          %v5539 = vld [vmem:[%s5538] sm:$0xf]
          %v5540 = vld [vmem:[%s5538 + $0x4] sm:$0xf]
          %v5541 = vld [vmem:[%s5538 + $0x8] sm:$0xf]
          %v5542 = vld [vmem:[%s5538 + $0xc] sm:$0xf]
          %v5543 = vld [vmem:[%s5538 + $0x10] sm:$0xf]
          %v5544 = vld [vmem:[%s5538 + $0x14] sm:$0xf]
          %v5545 = vld [vmem:[%s5538 + $0x18] sm:$0xf]
          %v5546 = vld [vmem:[%s5538 + $0x1c] sm:$0xf]
          %v5547 = vld [vmem:[%s5538 + $0x20] sm:$0xf]
          %v5548 = vld [vmem:[%s5538 + $0x24] sm:$0xf]
          %v5549 = vld [vmem:[%s5538 + $0x28] sm:$0xf]
          %v5550 = vld [vmem:[%s5538 + $0x2c] sm:$0xf]
          %v5551 = vld [vmem:[%s5538 + $0x30] sm:$0xf]
          %v5552 = vld [vmem:[%s5538 + $0x34] sm:$0xf]
          %v5553 = vld [vmem:[%s5538 + $0x38] sm:$0xf]
          %v5554 = vld [vmem:[%s5538 + $0x3c] sm:$0xf]
          %v5571 = vunpack.c.l.b16 %v5539
          %v5572 = vunpack.c.l.b16 %v5540
          %v5573 = vunpack.c.l.b16 %v5541
          %v5574 = vunpack.c.l.b16 %v5542
          %v5575 = vunpack.c.l.b16 %v5543
          %v5576 = vunpack.c.l.b16 %v5544
          %v5577 = vunpack.c.l.b16 %v5545
          %v5578 = vunpack.c.l.b16 %v5546
          %v5579 = vunpack.c.l.b16 %v5547
          %v5580 = vunpack.c.l.b16 %v5548
          %v5581 = vunpack.c.l.b16 %v5549
          %v5582 = vunpack.c.l.b16 %v5550
          %v5583 = vunpack.c.l.b16 %v5551
          %v5584 = vunpack.c.l.b16 %v5552
          %v5585 = vunpack.c.l.b16 %v5553
          %v5586 = vunpack.c.l.b16 %v5554
          %v5587 = vpack.c.b16 %v5572, %v5571
          %v5588 = vpack.c.b16 %v5574, %v5573
          %v5589 = vpack.c.b16 %v5576, %v5575
          %v5590 = vpack.c.b16 %v5578, %v5577
          %v5591 = vpack.c.b16 %v5580, %v5579
          %v5592 = vpack.c.b16 %v5582, %v5581
          %v5593 = vpack.c.b16 %v5584, %v5583
          %v5594 = vpack.c.b16 %v5586, %v5585
          %5603 = vmatprep.subr.bf16.mxu0 0
          %5604 = vmatpush1.bf16.msra.mxu0 %v5594
          %5605 = vmatprep.subr.bf16.mxu0 0
          %5606 = vmatpush1.bf16.msra.mxu0 %v5593
          %5607 = vmatprep.subr.bf16.mxu0 0
          %5608 = vmatpush1.bf16.msra.mxu0 %v5592
          %5609 = vmatprep.subr.bf16.mxu0 0
          %5610 = vmatpush1.bf16.msra.mxu0 %v5591
          %5611 = vmatprep.subr.bf16.mxu0 0
          %5612 = vmatpush1.bf16.msra.mxu0 %v5590
          %5613 = vmatprep.subr.bf16.mxu0 0
          %5614 = vmatpush1.bf16.msra.mxu0 %v5589
          %5615 = vmatprep.subr.bf16.mxu0 0
          %5616 = vmatpush1.bf16.msra.mxu0 %v5588
          %5617 = vmatprep.subr.bf16.mxu0 0
          %5618 = vmatpush1.bf16.msra.mxu0 %v5587
          %5619 = vmatprep.subr.bf16.mxu0 0
          %5620 = vmatpush2.bf16.msra.mxu0 0
          %5621 = vmatprep.subr.bf16.mxu0 0
          %5622 = vmatpush2.bf16.msra.mxu0 0
          %5623 = vmatprep.subr.bf16.mxu0 0
          %5624 = vmatpush2.bf16.msra.mxu0 0
          %5625 = vmatprep.subr.bf16.mxu0 0
          %5626 = vmatpush2.bf16.msra.mxu0 0
          %5627 = vmatprep.subr.bf16.mxu0 0
          %5628 = vmatpush2.bf16.msra.mxu0 0
          %5629 = vmatprep.subr.bf16.mxu0 0
          %5630 = vmatpush2.bf16.msra.mxu0 0
          %5631 = vmatprep.subr.bf16.mxu0 0
          %5632 = vmatpush2.bf16.msra.mxu0 0
          %5633 = vmatprep.subr.bf16.mxu0 0
          %5634 = vmatpush2.bf16.msra.mxu0 0
          %5635 = vmatprep.mubr.bf16.mxu0 0
          %5636 = vmatmul.mubr.bf16.gmra.mxu0 %v5537
          %v5637 = vpop.f32.mrf.mxu0
          %v5638 = vadd.f32 0.0, %v5637
          %v5639 = vpop.f32.mrf.mxu0
          %v5640 = vpop.f32.mrf.mxu0
          %v5641 = vpop.f32.mrf.mxu0
          %5642 = vdwg.mxu0
          %v5659 = vunpack.c.l.b16 %v5520
          %v5660 = vunpack.c.l.b16 %v5521
          %v5661 = vunpack.c.l.b16 %v5522
          %v5662 = vunpack.c.l.b16 %v5523
          %v5663 = vunpack.c.l.b16 %v5524
          %v5664 = vunpack.c.l.b16 %v5525
          %v5665 = vunpack.c.l.b16 %v5526
          %v5666 = vunpack.c.l.b16 %v5527
          %v5667 = vunpack.c.l.b16 %v5528
          %v5668 = vunpack.c.l.b16 %v5529
          %v5669 = vunpack.c.l.b16 %v5530
          %v5670 = vunpack.c.l.b16 %v5531
          %v5671 = vunpack.c.l.b16 %v5532
          %v5672 = vunpack.c.l.b16 %v5533
          %v5673 = vunpack.c.l.b16 %v5534
          %v5674 = vunpack.c.l.b16 %v5535
          %v5675 = vpack.c.b16 %v5660, %v5659
          %v5676 = vpack.c.b16 %v5662, %v5661
          %v5677 = vpack.c.b16 %v5664, %v5663
          %v5678 = vpack.c.b16 %v5666, %v5665
          %v5679 = vpack.c.b16 %v5668, %v5667
          %v5680 = vpack.c.b16 %v5670, %v5669
          %v5681 = vpack.c.b16 %v5672, %v5671
          %v5682 = vpack.c.b16 %v5674, %v5673
          %5691 = vmatprep.subr.bf16.mxu0 0
          %5692 = vmatpush1.bf16.msra.mxu0 %v5682
          %5693 = vmatprep.subr.bf16.mxu0 0
          %5694 = vmatpush1.bf16.msra.mxu0 %v5681
          %5695 = vmatprep.subr.bf16.mxu0 0
          %5696 = vmatpush1.bf16.msra.mxu0 %v5680
          %5697 = vmatprep.subr.bf16.mxu0 0
          %5698 = vmatpush1.bf16.msra.mxu0 %v5679
          %5699 = vmatprep.subr.bf16.mxu0 0
          %5700 = vmatpush1.bf16.msra.mxu0 %v5678
          %5701 = vmatprep.subr.bf16.mxu0 0
          %5702 = vmatpush1.bf16.msra.mxu0 %v5677
          %5703 = vmatprep.subr.bf16.mxu0 0
          %5704 = vmatpush1.bf16.msra.mxu0 %v5676
          %5705 = vmatprep.subr.bf16.mxu0 0
          %5706 = vmatpush1.bf16.msra.mxu0 %v5675
          %5707 = vmatprep.subr.bf16.mxu0 0
          %5708 = vmatpush2.bf16.msra.mxu0 0
          %5709 = vmatprep.subr.bf16.mxu0 0
          %5710 = vmatpush2.bf16.msra.mxu0 0
          %5711 = vmatprep.subr.bf16.mxu0 0
          %5712 = vmatpush2.bf16.msra.mxu0 0
          %5713 = vmatprep.subr.bf16.mxu0 0
          %5714 = vmatpush2.bf16.msra.mxu0 0
          %5715 = vmatprep.subr.bf16.mxu0 0
          %5716 = vmatpush2.bf16.msra.mxu0 0
          %5717 = vmatprep.subr.bf16.mxu0 0
          %5718 = vmatpush2.bf16.msra.mxu0 0
          %5719 = vmatprep.subr.bf16.mxu0 0
          %5720 = vmatpush2.bf16.msra.mxu0 0
          %5721 = vmatprep.subr.bf16.mxu0 0
          %5722 = vmatpush2.bf16.msra.mxu0 0
          %5723 = vmatprep.mubr.bf16.mxu0 0
          %5724 = vmatmul.mubr.bf16.gmra.mxu0 %v5519
          %v5725 = vpop.f32.mrf.mxu0
          %v5726 = vadd.f32 %v5638, %v5725
          %v5727 = vpop.f32.mrf.mxu0
          %v5728 = vpop.f32.mrf.mxu0
          %v5729 = vpop.f32.mrf.mxu0
          %5730 = vdwg.mxu0
          %v5731 = vld [vmem:[%s5517 + $0x2] sm:$0xff]
          %v5732 = vpack.c.bf16 %v5731, %v5731
          %s5733 = scalar_lea.vmem %s13, 128
          %v5734 = vld [vmem:[%s5733] sm:$0xf]
          %v5735 = vld [vmem:[%s5733 + $0x4] sm:$0xf]
          %v5736 = vld [vmem:[%s5733 + $0x8] sm:$0xf]
          %v5737 = vld [vmem:[%s5733 + $0xc] sm:$0xf]
          %v5738 = vld [vmem:[%s5733 + $0x10] sm:$0xf]
          %v5739 = vld [vmem:[%s5733 + $0x14] sm:$0xf]
          %v5740 = vld [vmem:[%s5733 + $0x18] sm:$0xf]
          %v5741 = vld [vmem:[%s5733 + $0x1c] sm:$0xf]
          %v5742 = vld [vmem:[%s5733 + $0x20] sm:$0xf]
          %v5743 = vld [vmem:[%s5733 + $0x24] sm:$0xf]
          %v5744 = vld [vmem:[%s5733 + $0x28] sm:$0xf]
          %v5745 = vld [vmem:[%s5733 + $0x2c] sm:$0xf]
          %v5746 = vld [vmem:[%s5733 + $0x30] sm:$0xf]
          %v5747 = vld [vmem:[%s5733 + $0x34] sm:$0xf]
          %v5748 = vld [vmem:[%s5733 + $0x38] sm:$0xf]
          %v5749 = vld [vmem:[%s5733 + $0x3c] sm:$0xf]
          %v5766 = vunpack.c.l.b16 %v5734
          %v5767 = vunpack.c.l.b16 %v5735
          %v5768 = vunpack.c.l.b16 %v5736
          %v5769 = vunpack.c.l.b16 %v5737
          %v5770 = vunpack.c.l.b16 %v5738
          %v5771 = vunpack.c.l.b16 %v5739
          %v5772 = vunpack.c.l.b16 %v5740
          %v5773 = vunpack.c.l.b16 %v5741
          %v5774 = vunpack.c.l.b16 %v5742
          %v5775 = vunpack.c.l.b16 %v5743
          %v5776 = vunpack.c.l.b16 %v5744
          %v5777 = vunpack.c.l.b16 %v5745
          %v5778 = vunpack.c.l.b16 %v5746
          %v5779 = vunpack.c.l.b16 %v5747
          %v5780 = vunpack.c.l.b16 %v5748
          %v5781 = vunpack.c.l.b16 %v5749
          %v5782 = vpack.c.b16 %v5767, %v5766
          %v5783 = vpack.c.b16 %v5769, %v5768
          %v5784 = vpack.c.b16 %v5771, %v5770
          %v5785 = vpack.c.b16 %v5773, %v5772
          %v5786 = vpack.c.b16 %v5775, %v5774
          %v5787 = vpack.c.b16 %v5777, %v5776
          %v5788 = vpack.c.b16 %v5779, %v5778
          %v5789 = vpack.c.b16 %v5781, %v5780
          %5798 = vmatprep.subr.bf16.mxu0 0
          %5799 = vmatpush1.bf16.msra.mxu0 %v5789
          %5800 = vmatprep.subr.bf16.mxu0 0
          %5801 = vmatpush1.bf16.msra.mxu0 %v5788
          %5802 = vmatprep.subr.bf16.mxu0 0
          %5803 = vmatpush1.bf16.msra.mxu0 %v5787
          %5804 = vmatprep.subr.bf16.mxu0 0
          %5805 = vmatpush1.bf16.msra.mxu0 %v5786
          %5806 = vmatprep.subr.bf16.mxu0 0
          %5807 = vmatpush1.bf16.msra.mxu0 %v5785
          %5808 = vmatprep.subr.bf16.mxu0 0
          %5809 = vmatpush1.bf16.msra.mxu0 %v5784
          %5810 = vmatprep.subr.bf16.mxu0 0
          %5811 = vmatpush1.bf16.msra.mxu0 %v5783
          %5812 = vmatprep.subr.bf16.mxu0 0
          %5813 = vmatpush1.bf16.msra.mxu0 %v5782
          %5814 = vmatprep.subr.bf16.mxu0 0
          %5815 = vmatpush2.bf16.msra.mxu0 0
          %5816 = vmatprep.subr.bf16.mxu0 0
          %5817 = vmatpush2.bf16.msra.mxu0 0
          %5818 = vmatprep.subr.bf16.mxu0 0
          %5819 = vmatpush2.bf16.msra.mxu0 0
          %5820 = vmatprep.subr.bf16.mxu0 0
          %5821 = vmatpush2.bf16.msra.mxu0 0
          %5822 = vmatprep.subr.bf16.mxu0 0
          %5823 = vmatpush2.bf16.msra.mxu0 0
          %5824 = vmatprep.subr.bf16.mxu0 0
          %5825 = vmatpush2.bf16.msra.mxu0 0
          %5826 = vmatprep.subr.bf16.mxu0 0
          %5827 = vmatpush2.bf16.msra.mxu0 0
          %5828 = vmatprep.subr.bf16.mxu0 0
          %5829 = vmatpush2.bf16.msra.mxu0 0
          %5830 = vmatprep.mubr.bf16.mxu0 0
          %5831 = vmatmul.mubr.bf16.gmra.mxu0 %v5732
          %v5832 = vpop.f32.mrf.mxu0
          %v5833 = vadd.f32 0.0, %v5832
          %v5834 = vpop.f32.mrf.mxu0
          %v5835 = vpop.f32.mrf.mxu0
          %v5836 = vpop.f32.mrf.mxu0
          %5837 = vdwg.mxu0
          %v5838 = vadd.f32 %v5726, %v5833
          %s5839 = sadd.s32 %s5511, 1
          %s5840 = smul.u32 %s5839, 16
          %s5841 = scalar_lea.vmem [#allocation5], %s5840
          %v5842 = vld [vmem:[%s5841] sm:$0xff]
          %v5843 = vpack.c.bf16 %v5842, %v5842
          %s5844 = scalar_lea.vmem %s13, 192
          %v5845 = vld [vmem:[%s5844] sm:$0xf]
          %v5846 = vld [vmem:[%s5844 + $0x4] sm:$0xf]
          %v5847 = vld [vmem:[%s5844 + $0x8] sm:$0xf]
          %v5848 = vld [vmem:[%s5844 + $0xc] sm:$0xf]
          %v5849 = vld [vmem:[%s5844 + $0x10] sm:$0xf]
          %v5850 = vld [vmem:[%s5844 + $0x14] sm:$0xf]
          %v5851 = vld [vmem:[%s5844 + $0x18] sm:$0xf]
          %v5852 = vld [vmem:[%s5844 + $0x1c] sm:$0xf]
          %v5853 = vld [vmem:[%s5844 + $0x20] sm:$0xf]
          %v5854 = vld [vmem:[%s5844 + $0x24] sm:$0xf]
          %v5855 = vld [vmem:[%s5844 + $0x28] sm:$0xf]
          %v5856 = vld [vmem:[%s5844 + $0x2c] sm:$0xf]
          %v5857 = vld [vmem:[%s5844 + $0x30] sm:$0xf]
          %v5858 = vld [vmem:[%s5844 + $0x34] sm:$0xf]
          %v5859 = vld [vmem:[%s5844 + $0x38] sm:$0xf]
          %v5860 = vld [vmem:[%s5844 + $0x3c] sm:$0xf]
          %v5877 = vunpack.c.l.b16 %v5845
          %v5878 = vunpack.c.l.b16 %v5846
          %v5879 = vunpack.c.l.b16 %v5847
          %v5880 = vunpack.c.l.b16 %v5848
          %v5881 = vunpack.c.l.b16 %v5849
          %v5882 = vunpack.c.l.b16 %v5850
          %v5883 = vunpack.c.l.b16 %v5851
          %v5884 = vunpack.c.l.b16 %v5852
          %v5885 = vunpack.c.l.b16 %v5853
          %v5886 = vunpack.c.l.b16 %v5854
          %v5887 = vunpack.c.l.b16 %v5855
          %v5888 = vunpack.c.l.b16 %v5856
          %v5889 = vunpack.c.l.b16 %v5857
          %v5890 = vunpack.c.l.b16 %v5858
          %v5891 = vunpack.c.l.b16 %v5859
          %v5892 = vunpack.c.l.b16 %v5860
          %v5893 = vpack.c.b16 %v5878, %v5877
          %v5894 = vpack.c.b16 %v5880, %v5879
          %v5895 = vpack.c.b16 %v5882, %v5881
          %v5896 = vpack.c.b16 %v5884, %v5883
          %v5897 = vpack.c.b16 %v5886, %v5885
          %v5898 = vpack.c.b16 %v5888, %v5887
          %v5899 = vpack.c.b16 %v5890, %v5889
          %v5900 = vpack.c.b16 %v5892, %v5891
          %5909 = vmatprep.subr.bf16.mxu0 0
          %5910 = vmatpush1.bf16.msra.mxu0 %v5900
          %5911 = vmatprep.subr.bf16.mxu0 0
          %5912 = vmatpush1.bf16.msra.mxu0 %v5899
          %5913 = vmatprep.subr.bf16.mxu0 0
          %5914 = vmatpush1.bf16.msra.mxu0 %v5898
          %5915 = vmatprep.subr.bf16.mxu0 0
          %5916 = vmatpush1.bf16.msra.mxu0 %v5897
          %5917 = vmatprep.subr.bf16.mxu0 0
          %5918 = vmatpush1.bf16.msra.mxu0 %v5896
          %5919 = vmatprep.subr.bf16.mxu0 0
          %5920 = vmatpush1.bf16.msra.mxu0 %v5895
          %5921 = vmatprep.subr.bf16.mxu0 0
          %5922 = vmatpush1.bf16.msra.mxu0 %v5894
          %5923 = vmatprep.subr.bf16.mxu0 0
          %5924 = vmatpush1.bf16.msra.mxu0 %v5893
          %5925 = vmatprep.subr.bf16.mxu0 0
          %5926 = vmatpush2.bf16.msra.mxu0 0
          %5927 = vmatprep.subr.bf16.mxu0 0
          %5928 = vmatpush2.bf16.msra.mxu0 0
          %5929 = vmatprep.subr.bf16.mxu0 0
          %5930 = vmatpush2.bf16.msra.mxu0 0
          %5931 = vmatprep.subr.bf16.mxu0 0
          %5932 = vmatpush2.bf16.msra.mxu0 0
          %5933 = vmatprep.subr.bf16.mxu0 0
          %5934 = vmatpush2.bf16.msra.mxu0 0
          %5935 = vmatprep.subr.bf16.mxu0 0
          %5936 = vmatpush2.bf16.msra.mxu0 0
          %5937 = vmatprep.subr.bf16.mxu0 0
          %5938 = vmatpush2.bf16.msra.mxu0 0
          %5939 = vmatprep.subr.bf16.mxu0 0
          %5940 = vmatpush2.bf16.msra.mxu0 0
          %5941 = vmatprep.mubr.bf16.mxu0 0
          %5942 = vmatmul.mubr.bf16.gmra.mxu0 %v5843
          %v5943 = vpop.f32.mrf.mxu0
          %v5944 = vadd.f32 0.0, %v5943
          %v5945 = vpop.f32.mrf.mxu0
          %v5946 = vpop.f32.mrf.mxu0
          %v5947 = vpop.f32.mrf.mxu0
          %5948 = vdwg.mxu0
          %v5949 = vadd.f32 %v5838, %v5944
          %v5950 = vld [vmem:[%s5841 + $0x1] sm:$0xff]
          %v5951 = vpack.c.bf16 %v5950, %v5950
          %s5952 = scalar_lea.vmem %s13, 256
          %v5953 = vld [vmem:[%s5952] sm:$0xf]
          %v5954 = vld [vmem:[%s5952 + $0x4] sm:$0xf]
          %v5955 = vld [vmem:[%s5952 + $0x8] sm:$0xf]
          %v5956 = vld [vmem:[%s5952 + $0xc] sm:$0xf]
          %v5957 = vld [vmem:[%s5952 + $0x10] sm:$0xf]
          %v5958 = vld [vmem:[%s5952 + $0x14] sm:$0xf]
          %v5959 = vld [vmem:[%s5952 + $0x18] sm:$0xf]
          %v5960 = vld [vmem:[%s5952 + $0x1c] sm:$0xf]
          %v5961 = vld [vmem:[%s5952 + $0x20] sm:$0xf]
          %v5962 = vld [vmem:[%s5952 + $0x24] sm:$0xf]
          %v5963 = vld [vmem:[%s5952 + $0x28] sm:$0xf]
          %v5964 = vld [vmem:[%s5952 + $0x2c] sm:$0xf]
          %v5965 = vld [vmem:[%s5952 + $0x30] sm:$0xf]
          %v5966 = vld [vmem:[%s5952 + $0x34] sm:$0xf]
          %v5967 = vld [vmem:[%s5952 + $0x38] sm:$0xf]
          %v5968 = vld [vmem:[%s5952 + $0x3c] sm:$0xf]
          %v5985 = vunpack.c.l.b16 %v5953
          %v5986 = vunpack.c.l.b16 %v5954
          %v5987 = vunpack.c.l.b16 %v5955
          %v5988 = vunpack.c.l.b16 %v5956
          %v5989 = vunpack.c.l.b16 %v5957
          %v5990 = vunpack.c.l.b16 %v5958
          %v5991 = vunpack.c.l.b16 %v5959
          %v5992 = vunpack.c.l.b16 %v5960
          %v5993 = vunpack.c.l.b16 %v5961
          %v5994 = vunpack.c.l.b16 %v5962
          %v5995 = vunpack.c.l.b16 %v5963
          %v5996 = vunpack.c.l.b16 %v5964
          %v5997 = vunpack.c.l.b16 %v5965
          %v5998 = vunpack.c.l.b16 %v5966
          %v5999 = vunpack.c.l.b16 %v5967
          %v6000 = vunpack.c.l.b16 %v5968
          %v6001 = vpack.c.b16 %v5986, %v5985
          %v6002 = vpack.c.b16 %v5988, %v5987
          %v6003 = vpack.c.b16 %v5990, %v5989
          %v6004 = vpack.c.b16 %v5992, %v5991
          %v6005 = vpack.c.b16 %v5994, %v5993
          %v6006 = vpack.c.b16 %v5996, %v5995
          %v6007 = vpack.c.b16 %v5998, %v5997
          %v6008 = vpack.c.b16 %v6000, %v5999
          %6017 = vmatprep.subr.bf16.mxu0 0
          %6018 = vmatpush1.bf16.msra.mxu0 %v6008
          %6019 = vmatprep.subr.bf16.mxu0 0
          %6020 = vmatpush1.bf16.msra.mxu0 %v6007
          %6021 = vmatprep.subr.bf16.mxu0 0
          %6022 = vmatpush1.bf16.msra.mxu0 %v6006
          %6023 = vmatprep.subr.bf16.mxu0 0
          %6024 = vmatpush1.bf16.msra.mxu0 %v6005
          %6025 = vmatprep.subr.bf16.mxu0 0
          %6026 = vmatpush1.bf16.msra.mxu0 %v6004
          %6027 = vmatprep.subr.bf16.mxu0 0
          %6028 = vmatpush1.bf16.msra.mxu0 %v6003
          %6029 = vmatprep.subr.bf16.mxu0 0
          %6030 = vmatpush1.bf16.msra.mxu0 %v6002
          %6031 = vmatprep.subr.bf16.mxu0 0
          %6032 = vmatpush1.bf16.msra.mxu0 %v6001
          %6033 = vmatprep.subr.bf16.mxu0 0
          %6034 = vmatpush2.bf16.msra.mxu0 0
          %6035 = vmatprep.subr.bf16.mxu0 0
          %6036 = vmatpush2.bf16.msra.mxu0 0
          %6037 = vmatprep.subr.bf16.mxu0 0
          %6038 = vmatpush2.bf16.msra.mxu0 0
          %6039 = vmatprep.subr.bf16.mxu0 0
          %6040 = vmatpush2.bf16.msra.mxu0 0
          %6041 = vmatprep.subr.bf16.mxu0 0
          %6042 = vmatpush2.bf16.msra.mxu0 0
          %6043 = vmatprep.subr.bf16.mxu0 0
          %6044 = vmatpush2.bf16.msra.mxu0 0
          %6045 = vmatprep.subr.bf16.mxu0 0
          %6046 = vmatpush2.bf16.msra.mxu0 0
          %6047 = vmatprep.subr.bf16.mxu0 0
          %6048 = vmatpush2.bf16.msra.mxu0 0
          %6049 = vmatprep.mubr.bf16.mxu0 0
          %6050 = vmatmul.mubr.bf16.gmra.mxu0 %v5951
          %v6051 = vpop.f32.mrf.mxu0
          %v6052 = vadd.f32 0.0, %v6051
          %v6053 = vpop.f32.mrf.mxu0
          %v6054 = vpop.f32.mrf.mxu0
          %v6055 = vpop.f32.mrf.mxu0
          %6056 = vdwg.mxu0
          %v6057 = vadd.f32 %v5949, %v6052
          %v6058 = vld [vmem:[%s5841 + $0x2] sm:$0xff]
          %v6059 = vpack.c.bf16 %v6058, %v6058
          %s6060 = scalar_lea.vmem %s13, 320
          %v6061 = vld [vmem:[%s6060] sm:$0xf]
          %v6062 = vld [vmem:[%s6060 + $0x4] sm:$0xf]
          %v6063 = vld [vmem:[%s6060 + $0x8] sm:$0xf]
          %v6064 = vld [vmem:[%s6060 + $0xc] sm:$0xf]
          %v6065 = vld [vmem:[%s6060 + $0x10] sm:$0xf]
          %v6066 = vld [vmem:[%s6060 + $0x14] sm:$0xf]
          %v6067 = vld [vmem:[%s6060 + $0x18] sm:$0xf]
          %v6068 = vld [vmem:[%s6060 + $0x1c] sm:$0xf]
          %v6069 = vld [vmem:[%s6060 + $0x20] sm:$0xf]
          %v6070 = vld [vmem:[%s6060 + $0x24] sm:$0xf]
          %v6071 = vld [vmem:[%s6060 + $0x28] sm:$0xf]
          %v6072 = vld [vmem:[%s6060 + $0x2c] sm:$0xf]
          %v6073 = vld [vmem:[%s6060 + $0x30] sm:$0xf]
          %v6074 = vld [vmem:[%s6060 + $0x34] sm:$0xf]
          %v6075 = vld [vmem:[%s6060 + $0x38] sm:$0xf]
          %v6076 = vld [vmem:[%s6060 + $0x3c] sm:$0xf]
          %v6093 = vunpack.c.l.b16 %v6061
          %v6094 = vunpack.c.l.b16 %v6062
          %v6095 = vunpack.c.l.b16 %v6063
          %v6096 = vunpack.c.l.b16 %v6064
          %v6097 = vunpack.c.l.b16 %v6065
          %v6098 = vunpack.c.l.b16 %v6066
          %v6099 = vunpack.c.l.b16 %v6067
          %v6100 = vunpack.c.l.b16 %v6068
          %v6101 = vunpack.c.l.b16 %v6069
          %v6102 = vunpack.c.l.b16 %v6070
          %v6103 = vunpack.c.l.b16 %v6071
          %v6104 = vunpack.c.l.b16 %v6072
          %v6105 = vunpack.c.l.b16 %v6073
          %v6106 = vunpack.c.l.b16 %v6074
          %v6107 = vunpack.c.l.b16 %v6075
          %v6108 = vunpack.c.l.b16 %v6076
          %v6109 = vpack.c.b16 %v6094, %v6093
          %v6110 = vpack.c.b16 %v6096, %v6095
          %v6111 = vpack.c.b16 %v6098, %v6097
          %v6112 = vpack.c.b16 %v6100, %v6099
          %v6113 = vpack.c.b16 %v6102, %v6101
          %v6114 = vpack.c.b16 %v6104, %v6103
          %v6115 = vpack.c.b16 %v6106, %v6105
          %v6116 = vpack.c.b16 %v6108, %v6107
          %6125 = vmatprep.subr.bf16.mxu0 0
          %6126 = vmatpush1.bf16.msra.mxu0 %v6116
          %6127 = vmatprep.subr.bf16.mxu0 0
          %6128 = vmatpush1.bf16.msra.mxu0 %v6115
          %6129 = vmatprep.subr.bf16.mxu0 0
          %6130 = vmatpush1.bf16.msra.mxu0 %v6114
          %6131 = vmatprep.subr.bf16.mxu0 0
          %6132 = vmatpush1.bf16.msra.mxu0 %v6113
          %6133 = vmatprep.subr.bf16.mxu0 0
          %6134 = vmatpush1.bf16.msra.mxu0 %v6112
          %6135 = vmatprep.subr.bf16.mxu0 0
          %6136 = vmatpush1.bf16.msra.mxu0 %v6111
          %6137 = vmatprep.subr.bf16.mxu0 0
          %6138 = vmatpush1.bf16.msra.mxu0 %v6110
          %6139 = vmatprep.subr.bf16.mxu0 0
          %6140 = vmatpush1.bf16.msra.mxu0 %v6109
          %6141 = vmatprep.subr.bf16.mxu0 0
          %6142 = vmatpush2.bf16.msra.mxu0 0
          %6143 = vmatprep.subr.bf16.mxu0 0
          %6144 = vmatpush2.bf16.msra.mxu0 0
          %6145 = vmatprep.subr.bf16.mxu0 0
          %6146 = vmatpush2.bf16.msra.mxu0 0
          %6147 = vmatprep.subr.bf16.mxu0 0
          %6148 = vmatpush2.bf16.msra.mxu0 0
          %6149 = vmatprep.subr.bf16.mxu0 0
          %6150 = vmatpush2.bf16.msra.mxu0 0
          %6151 = vmatprep.subr.bf16.mxu0 0
          %6152 = vmatpush2.bf16.msra.mxu0 0
          %6153 = vmatprep.subr.bf16.mxu0 0
          %6154 = vmatpush2.bf16.msra.mxu0 0
          %6155 = vmatprep.subr.bf16.mxu0 0
          %6156 = vmatpush2.bf16.msra.mxu0 0
          %6157 = vmatprep.mubr.bf16.mxu0 0
          %6158 = vmatmul.mubr.bf16.gmra.mxu0 %v6059
          %v6159 = vpop.f32.mrf.mxu0
          %v6160 = vadd.f32 0.0, %v6159
          %v6161 = vpop.f32.mrf.mxu0
          %v6162 = vpop.f32.mrf.mxu0
          %v6163 = vpop.f32.mrf.mxu0
          %6164 = vdwg.mxu0
          %v6165 = vadd.f32 %v6057, %v6160
          %s6166 = sadd.s32 %s5511, 2
          %s6167 = smul.u32 %s6166, 16
          %s6168 = scalar_lea.vmem [#allocation5], %s6167
          %v6169 = vld [vmem:[%s6168] sm:$0xff]
          %v6170 = vpack.c.bf16 %v6169, %v6169
          %s6171 = scalar_lea.vmem %s13, 384
          %v6172 = vld [vmem:[%s6171] sm:$0xf]
          %v6173 = vld [vmem:[%s6171 + $0x4] sm:$0xf]
          %v6174 = vld [vmem:[%s6171 + $0x8] sm:$0xf]
          %v6175 = vld [vmem:[%s6171 + $0xc] sm:$0xf]
          %v6176 = vld [vmem:[%s6171 + $0x10] sm:$0xf]
          %v6177 = vld [vmem:[%s6171 + $0x14] sm:$0xf]
          %v6178 = vld [vmem:[%s6171 + $0x18] sm:$0xf]
          %v6179 = vld [vmem:[%s6171 + $0x1c] sm:$0xf]
          %v6180 = vld [vmem:[%s6171 + $0x20] sm:$0xf]
          %v6181 = vld [vmem:[%s6171 + $0x24] sm:$0xf]
          %v6182 = vld [vmem:[%s6171 + $0x28] sm:$0xf]
          %v6183 = vld [vmem:[%s6171 + $0x2c] sm:$0xf]
          %v6184 = vld [vmem:[%s6171 + $0x30] sm:$0xf]
          %v6185 = vld [vmem:[%s6171 + $0x34] sm:$0xf]
          %v6186 = vld [vmem:[%s6171 + $0x38] sm:$0xf]
          %v6187 = vld [vmem:[%s6171 + $0x3c] sm:$0xf]
          %v6204 = vunpack.c.l.b16 %v6172
          %v6205 = vunpack.c.l.b16 %v6173
          %v6206 = vunpack.c.l.b16 %v6174
          %v6207 = vunpack.c.l.b16 %v6175
          %v6208 = vunpack.c.l.b16 %v6176
          %v6209 = vunpack.c.l.b16 %v6177
          %v6210 = vunpack.c.l.b16 %v6178
          %v6211 = vunpack.c.l.b16 %v6179
          %v6212 = vunpack.c.l.b16 %v6180
          %v6213 = vunpack.c.l.b16 %v6181
          %v6214 = vunpack.c.l.b16 %v6182
          %v6215 = vunpack.c.l.b16 %v6183
          %v6216 = vunpack.c.l.b16 %v6184
          %v6217 = vunpack.c.l.b16 %v6185
          %v6218 = vunpack.c.l.b16 %v6186
          %v6219 = vunpack.c.l.b16 %v6187
          %v6220 = vpack.c.b16 %v6205, %v6204
          %v6221 = vpack.c.b16 %v6207, %v6206
          %v6222 = vpack.c.b16 %v6209, %v6208
          %v6223 = vpack.c.b16 %v6211, %v6210
          %v6224 = vpack.c.b16 %v6213, %v6212
          %v6225 = vpack.c.b16 %v6215, %v6214
          %v6226 = vpack.c.b16 %v6217, %v6216
          %v6227 = vpack.c.b16 %v6219, %v6218
          %6236 = vmatprep.subr.bf16.mxu0 0
          %6237 = vmatpush1.bf16.msra.mxu0 %v6227
          %6238 = vmatprep.subr.bf16.mxu0 0
          %6239 = vmatpush1.bf16.msra.mxu0 %v6226
          %6240 = vmatprep.subr.bf16.mxu0 0
          %6241 = vmatpush1.bf16.msra.mxu0 %v6225
          %6242 = vmatprep.subr.bf16.mxu0 0
          %6243 = vmatpush1.bf16.msra.mxu0 %v6224
          %6244 = vmatprep.subr.bf16.mxu0 0
          %6245 = vmatpush1.bf16.msra.mxu0 %v6223
          %6246 = vmatprep.subr.bf16.mxu0 0
          %6247 = vmatpush1.bf16.msra.mxu0 %v6222
          %6248 = vmatprep.subr.bf16.mxu0 0
          %6249 = vmatpush1.bf16.msra.mxu0 %v6221
          %6250 = vmatprep.subr.bf16.mxu0 0
          %6251 = vmatpush1.bf16.msra.mxu0 %v6220
          %6252 = vmatprep.subr.bf16.mxu0 0
          %6253 = vmatpush2.bf16.msra.mxu0 0
          %6254 = vmatprep.subr.bf16.mxu0 0
          %6255 = vmatpush2.bf16.msra.mxu0 0
          %6256 = vmatprep.subr.bf16.mxu0 0
          %6257 = vmatpush2.bf16.msra.mxu0 0
          %6258 = vmatprep.subr.bf16.mxu0 0
          %6259 = vmatpush2.bf16.msra.mxu0 0
          %6260 = vmatprep.subr.bf16.mxu0 0
          %6261 = vmatpush2.bf16.msra.mxu0 0
          %6262 = vmatprep.subr.bf16.mxu0 0
          %6263 = vmatpush2.bf16.msra.mxu0 0
          %6264 = vmatprep.subr.bf16.mxu0 0
          %6265 = vmatpush2.bf16.msra.mxu0 0
          %6266 = vmatprep.subr.bf16.mxu0 0
          %6267 = vmatpush2.bf16.msra.mxu0 0
          %6268 = vmatprep.mubr.bf16.mxu0 0
          %6269 = vmatmul.mubr.bf16.gmra.mxu0 %v6170
          %v6270 = vpop.f32.mrf.mxu0
          %v6271 = vadd.f32 0.0, %v6270
          %v6272 = vpop.f32.mrf.mxu0
          %v6273 = vpop.f32.mrf.mxu0
          %v6274 = vpop.f32.mrf.mxu0
          %6275 = vdwg.mxu0
          %v6276 = vadd.f32 %v6165, %v6271
          %v6277 = vld [vmem:[%s6168 + $0x1] sm:$0xff]
          %v6278 = vpack.c.bf16 %v6277, %v6277
          %s6279 = scalar_lea.vmem %s13, 448
          %v6280 = vld [vmem:[%s6279] sm:$0xf]
          %v6281 = vld [vmem:[%s6279 + $0x4] sm:$0xf]
          %v6282 = vld [vmem:[%s6279 + $0x8] sm:$0xf]
          %v6283 = vld [vmem:[%s6279 + $0xc] sm:$0xf]
          %v6284 = vld [vmem:[%s6279 + $0x10] sm:$0xf]
          %v6285 = vld [vmem:[%s6279 + $0x14] sm:$0xf]
          %v6286 = vld [vmem:[%s6279 + $0x18] sm:$0xf]
          %v6287 = vld [vmem:[%s6279 + $0x1c] sm:$0xf]
          %v6288 = vld [vmem:[%s6279 + $0x20] sm:$0xf]
          %v6289 = vld [vmem:[%s6279 + $0x24] sm:$0xf]
          %v6290 = vld [vmem:[%s6279 + $0x28] sm:$0xf]
          %v6291 = vld [vmem:[%s6279 + $0x2c] sm:$0xf]
          %v6292 = vld [vmem:[%s6279 + $0x30] sm:$0xf]
          %v6293 = vld [vmem:[%s6279 + $0x34] sm:$0xf]
          %v6294 = vld [vmem:[%s6279 + $0x38] sm:$0xf]
          %v6295 = vld [vmem:[%s6279 + $0x3c] sm:$0xf]
          %v6312 = vunpack.c.l.b16 %v6280
          %v6313 = vunpack.c.l.b16 %v6281
          %v6314 = vunpack.c.l.b16 %v6282
          %v6315 = vunpack.c.l.b16 %v6283
          %v6316 = vunpack.c.l.b16 %v6284
          %v6317 = vunpack.c.l.b16 %v6285
          %v6318 = vunpack.c.l.b16 %v6286
          %v6319 = vunpack.c.l.b16 %v6287
          %v6320 = vunpack.c.l.b16 %v6288
          %v6321 = vunpack.c.l.b16 %v6289
          %v6322 = vunpack.c.l.b16 %v6290
          %v6323 = vunpack.c.l.b16 %v6291
          %v6324 = vunpack.c.l.b16 %v6292
          %v6325 = vunpack.c.l.b16 %v6293
          %v6326 = vunpack.c.l.b16 %v6294
          %v6327 = vunpack.c.l.b16 %v6295
          %v6328 = vpack.c.b16 %v6313, %v6312
          %v6329 = vpack.c.b16 %v6315, %v6314
          %v6330 = vpack.c.b16 %v6317, %v6316
          %v6331 = vpack.c.b16 %v6319, %v6318
          %v6332 = vpack.c.b16 %v6321, %v6320
          %v6333 = vpack.c.b16 %v6323, %v6322
          %v6334 = vpack.c.b16 %v6325, %v6324
          %v6335 = vpack.c.b16 %v6327, %v6326
          %6344 = vmatprep.subr.bf16.mxu0 0
          %6345 = vmatpush1.bf16.msra.mxu0 %v6335
          %6346 = vmatprep.subr.bf16.mxu0 0
          %6347 = vmatpush1.bf16.msra.mxu0 %v6334
          %6348 = vmatprep.subr.bf16.mxu0 0
          %6349 = vmatpush1.bf16.msra.mxu0 %v6333
          %6350 = vmatprep.subr.bf16.mxu0 0
          %6351 = vmatpush1.bf16.msra.mxu0 %v6332
          %6352 = vmatprep.subr.bf16.mxu0 0
          %6353 = vmatpush1.bf16.msra.mxu0 %v6331
          %6354 = vmatprep.subr.bf16.mxu0 0
          %6355 = vmatpush1.bf16.msra.mxu0 %v6330
          %6356 = vmatprep.subr.bf16.mxu0 0
          %6357 = vmatpush1.bf16.msra.mxu0 %v6329
          %6358 = vmatprep.subr.bf16.mxu0 0
          %6359 = vmatpush1.bf16.msra.mxu0 %v6328
          %6360 = vmatprep.subr.bf16.mxu0 0
          %6361 = vmatpush2.bf16.msra.mxu0 0
          %6362 = vmatprep.subr.bf16.mxu0 0
          %6363 = vmatpush2.bf16.msra.mxu0 0
          %6364 = vmatprep.subr.bf16.mxu0 0
          %6365 = vmatpush2.bf16.msra.mxu0 0
          %6366 = vmatprep.subr.bf16.mxu0 0
          %6367 = vmatpush2.bf16.msra.mxu0 0
          %6368 = vmatprep.subr.bf16.mxu0 0
          %6369 = vmatpush2.bf16.msra.mxu0 0
          %6370 = vmatprep.subr.bf16.mxu0 0
          %6371 = vmatpush2.bf16.msra.mxu0 0
          %6372 = vmatprep.subr.bf16.mxu0 0
          %6373 = vmatpush2.bf16.msra.mxu0 0
          %6374 = vmatprep.subr.bf16.mxu0 0
          %6375 = vmatpush2.bf16.msra.mxu0 0
          %6376 = vmatprep.mubr.bf16.mxu0 0
          %6377 = vmatmul.mubr.bf16.gmra.mxu0 %v6278
          %v6378 = vpop.f32.mrf.mxu0
          %v6379 = vadd.f32 0.0, %v6378
          %v6380 = vpop.f32.mrf.mxu0
          %v6381 = vpop.f32.mrf.mxu0
          %v6382 = vpop.f32.mrf.mxu0
          %6383 = vdwg.mxu0
          %v6384 = vadd.f32 %v6276, %v6379
          %v6385 = vld [vmem:[%s6168 + $0x2] sm:$0xff]
          %v6386 = vpack.c.bf16 %v6385, %v6385
          %s6387 = scalar_lea.vmem %s13, 512
          %v6388 = vld [vmem:[%s6387] sm:$0xf]
          %v6389 = vld [vmem:[%s6387 + $0x4] sm:$0xf]
          %v6390 = vld [vmem:[%s6387 + $0x8] sm:$0xf]
          %v6391 = vld [vmem:[%s6387 + $0xc] sm:$0xf]
          %v6392 = vld [vmem:[%s6387 + $0x10] sm:$0xf]
          %v6393 = vld [vmem:[%s6387 + $0x14] sm:$0xf]
          %v6394 = vld [vmem:[%s6387 + $0x18] sm:$0xf]
          %v6395 = vld [vmem:[%s6387 + $0x1c] sm:$0xf]
          %v6396 = vld [vmem:[%s6387 + $0x20] sm:$0xf]
          %v6397 = vld [vmem:[%s6387 + $0x24] sm:$0xf]
          %v6398 = vld [vmem:[%s6387 + $0x28] sm:$0xf]
          %v6399 = vld [vmem:[%s6387 + $0x2c] sm:$0xf]
          %v6400 = vld [vmem:[%s6387 + $0x30] sm:$0xf]
          %v6401 = vld [vmem:[%s6387 + $0x34] sm:$0xf]
          %v6402 = vld [vmem:[%s6387 + $0x38] sm:$0xf]
          %v6403 = vld [vmem:[%s6387 + $0x3c] sm:$0xf]
          %v6420 = vunpack.c.l.b16 %v6388
          %v6421 = vunpack.c.l.b16 %v6389
          %v6422 = vunpack.c.l.b16 %v6390
          %v6423 = vunpack.c.l.b16 %v6391
          %v6424 = vunpack.c.l.b16 %v6392
          %v6425 = vunpack.c.l.b16 %v6393
          %v6426 = vunpack.c.l.b16 %v6394
          %v6427 = vunpack.c.l.b16 %v6395
          %v6428 = vunpack.c.l.b16 %v6396
          %v6429 = vunpack.c.l.b16 %v6397
          %v6430 = vunpack.c.l.b16 %v6398
          %v6431 = vunpack.c.l.b16 %v6399
          %v6432 = vunpack.c.l.b16 %v6400
          %v6433 = vunpack.c.l.b16 %v6401
          %v6434 = vunpack.c.l.b16 %v6402
          %v6435 = vunpack.c.l.b16 %v6403
          %v6436 = vpack.c.b16 %v6421, %v6420
          %v6437 = vpack.c.b16 %v6423, %v6422
          %v6438 = vpack.c.b16 %v6425, %v6424
          %v6439 = vpack.c.b16 %v6427, %v6426
          %v6440 = vpack.c.b16 %v6429, %v6428
          %v6441 = vpack.c.b16 %v6431, %v6430
          %v6442 = vpack.c.b16 %v6433, %v6432
          %v6443 = vpack.c.b16 %v6435, %v6434
          %6452 = vmatprep.subr.bf16.mxu0 0
          %6453 = vmatpush1.bf16.msra.mxu0 %v6443
          %6454 = vmatprep.subr.bf16.mxu0 0
          %6455 = vmatpush1.bf16.msra.mxu0 %v6442
          %6456 = vmatprep.subr.bf16.mxu0 0
          %6457 = vmatpush1.bf16.msra.mxu0 %v6441
          %6458 = vmatprep.subr.bf16.mxu0 0
          %6459 = vmatpush1.bf16.msra.mxu0 %v6440
          %6460 = vmatprep.subr.bf16.mxu0 0
          %6461 = vmatpush1.bf16.msra.mxu0 %v6439
          %6462 = vmatprep.subr.bf16.mxu0 0
          %6463 = vmatpush1.bf16.msra.mxu0 %v6438
          %6464 = vmatprep.subr.bf16.mxu0 0
          %6465 = vmatpush1.bf16.msra.mxu0 %v6437
          %6466 = vmatprep.subr.bf16.mxu0 0
          %6467 = vmatpush1.bf16.msra.mxu0 %v6436
          %6468 = vmatprep.subr.bf16.mxu0 0
          %6469 = vmatpush2.bf16.msra.mxu0 0
          %6470 = vmatprep.subr.bf16.mxu0 0
          %6471 = vmatpush2.bf16.msra.mxu0 0
          %6472 = vmatprep.subr.bf16.mxu0 0
          %6473 = vmatpush2.bf16.msra.mxu0 0
          %6474 = vmatprep.subr.bf16.mxu0 0
          %6475 = vmatpush2.bf16.msra.mxu0 0
          %6476 = vmatprep.subr.bf16.mxu0 0
          %6477 = vmatpush2.bf16.msra.mxu0 0
          %6478 = vmatprep.subr.bf16.mxu0 0
          %6479 = vmatpush2.bf16.msra.mxu0 0
          %6480 = vmatprep.subr.bf16.mxu0 0
          %6481 = vmatpush2.bf16.msra.mxu0 0
          %6482 = vmatprep.subr.bf16.mxu0 0
          %6483 = vmatpush2.bf16.msra.mxu0 0
          %6484 = vmatprep.mubr.bf16.mxu0 0
          %6485 = vmatmul.mubr.bf16.gmra.mxu0 %v6386
          %v6486 = vpop.f32.mrf.mxu0
          %v6487 = vadd.f32 0.0, %v6486
          %v6488 = vpop.f32.mrf.mxu0
          %v6489 = vpop.f32.mrf.mxu0
          %v6490 = vpop.f32.mrf.mxu0
          %6491 = vdwg.mxu0
          %v6492 = vadd.f32 %v6384, %v6487
          %v6494 = vlaneseq
          %v6495 = vshrl.u32 %v6494, 7
          %v6496 = vsub.s32 0, %v6495
          %v6497 = vrot.slane %v5509, %v6496
          %v6499 = vadd.f32 %v6492, %v6497
          %s6500 = scalar_lea.vmem [#allocation6], %s5840
          %v6501 = vld [vmem:[%s6500 + $0x1] sm:$0xff]
          %v6502 = vadd.f32 %v6499, %v6501
          %v6503 = vmax.f32 %v6502, 0.0
          %6504 = vst [vmem:[%s6500 + $0x1] sm:$0xff] %v6503
        $region159: #{model_forward.1} parent=111 // loop_footer
          %s5515 = sadd.s32 1, %s5511
        $region160: #{model_forward.1} parent=111 // loop_footer_branch
          %5510 = sbr.rel target = $region156
        $region161: #{model_forward.1} parent=111 // loop_exit
          _
        %v6505 = vld [vmem:[%s16] sm:$0x1]
        loop: start=0, step=1, limit=4
        $region162: #{model_forward.1} parent=111 // loop_pre_header
          _
        $region163: #{model_forward.1} parent=111 // loop_header
          %s6507 = sphi 0, %s6511
          %p6508 = scmp.ge.s32.totalorder %s6507, 4
        $region164: #{model_forward.1} parent=111 // loop_header_branch
          %6510 = sbr.rel (%p6508) target = $region168
        $region165: #{model_forward.1} parent=111 // loop_body
          %s6512 = smul.u32 %s6507, 2
          %s6513 = smul.u32 %s6512, 16
          %s6514 = scalar_lea.vmem [#allocation6], %s6513
          %v6515 = vld [vmem:[%s6514] ss:$2 sm:$0xf]
          %v6516 = vpack.c.bf16 %v6515, %v6515
          %v6517 = vld [vmem:[%s15] sm:$0xf]
          %v6518 = vld [vmem:[%s15 + $0x4] sm:$0xf]
          %v6519 = vld [vmem:[%s15 + $0x8] sm:$0xf]
          %v6520 = vld [vmem:[%s15 + $0xc] sm:$0xf]
          %v6521 = vld [vmem:[%s15 + $0x10] sm:$0xf]
          %v6522 = vld [vmem:[%s15 + $0x14] sm:$0xf]
          %v6523 = vld [vmem:[%s15 + $0x18] sm:$0xf]
          %v6524 = vld [vmem:[%s15 + $0x1c] sm:$0xf]
          %v6525 = vld [vmem:[%s15 + $0x20] sm:$0xf]
          %v6526 = vld [vmem:[%s15 + $0x24] sm:$0xf]
          %v6527 = vld [vmem:[%s15 + $0x28] sm:$0xf]
          %v6528 = vld [vmem:[%s15 + $0x2c] sm:$0xf]
          %v6529 = vld [vmem:[%s15 + $0x30] sm:$0xf]
          %v6530 = vld [vmem:[%s15 + $0x34] sm:$0xf]
          %v6531 = vld [vmem:[%s15 + $0x38] sm:$0xf]
          %v6532 = vld [vmem:[%s15 + $0x3c] sm:$0xf]
          %s6533 = scalar_lea.vmem %s6514, 1 [#allocation6]
          %v6534 = vld [vmem:[%s6533] ss:$2 sm:$0xf]
          %v6535 = vpack.c.bf16 %v6534, %v6534
          %s6536 = scalar_lea.vmem %s15, 64
          %v6537 = vld [vmem:[%s6536] sm:$0xf]
          %v6538 = vld [vmem:[%s6536 + $0x4] sm:$0xf]
          %v6539 = vld [vmem:[%s6536 + $0x8] sm:$0xf]
          %v6540 = vld [vmem:[%s6536 + $0xc] sm:$0xf]
          %v6541 = vld [vmem:[%s6536 + $0x10] sm:$0xf]
          %v6542 = vld [vmem:[%s6536 + $0x14] sm:$0xf]
          %v6543 = vld [vmem:[%s6536 + $0x18] sm:$0xf]
          %v6544 = vld [vmem:[%s6536 + $0x1c] sm:$0xf]
          %v6545 = vld [vmem:[%s6536 + $0x20] sm:$0xf]
          %v6546 = vld [vmem:[%s6536 + $0x24] sm:$0xf]
          %v6547 = vld [vmem:[%s6536 + $0x28] sm:$0xf]
          %v6548 = vld [vmem:[%s6536 + $0x2c] sm:$0xf]
          %v6549 = vld [vmem:[%s6536 + $0x30] sm:$0xf]
          %v6550 = vld [vmem:[%s6536 + $0x34] sm:$0xf]
          %v6551 = vld [vmem:[%s6536 + $0x38] sm:$0xf]
          %v6552 = vld [vmem:[%s6536 + $0x3c] sm:$0xf]
          %v6569 = vunpack.c.l.b16 %v6537
          %v6570 = vunpack.c.l.b16 %v6538
          %v6571 = vunpack.c.l.b16 %v6539
          %v6572 = vunpack.c.l.b16 %v6540
          %v6573 = vunpack.c.l.b16 %v6541
          %v6574 = vunpack.c.l.b16 %v6542
          %v6575 = vunpack.c.l.b16 %v6543
          %v6576 = vunpack.c.l.b16 %v6544
          %v6577 = vunpack.c.l.b16 %v6545
          %v6578 = vunpack.c.l.b16 %v6546
          %v6579 = vunpack.c.l.b16 %v6547
          %v6580 = vunpack.c.l.b16 %v6548
          %v6581 = vunpack.c.l.b16 %v6549
          %v6582 = vunpack.c.l.b16 %v6550
          %v6583 = vunpack.c.l.b16 %v6551
          %v6584 = vunpack.c.l.b16 %v6552
          %v6585 = vpack.c.b16 %v6570, %v6569
          %v6586 = vpack.c.b16 %v6572, %v6571
          %v6587 = vpack.c.b16 %v6574, %v6573
          %v6588 = vpack.c.b16 %v6576, %v6575
          %v6589 = vpack.c.b16 %v6578, %v6577
          %v6590 = vpack.c.b16 %v6580, %v6579
          %v6591 = vpack.c.b16 %v6582, %v6581
          %v6592 = vpack.c.b16 %v6584, %v6583
          %6601 = vmatprep.subr.bf16.mxu0 0
          %6602 = vmatpush1.bf16.msra.mxu0 %v6592
          %6603 = vmatprep.subr.bf16.mxu0 0
          %6604 = vmatpush1.bf16.msra.mxu0 %v6591
          %6605 = vmatprep.subr.bf16.mxu0 0
          %6606 = vmatpush1.bf16.msra.mxu0 %v6590
          %6607 = vmatprep.subr.bf16.mxu0 0
          %6608 = vmatpush1.bf16.msra.mxu0 %v6589
          %6609 = vmatprep.subr.bf16.mxu0 0
          %6610 = vmatpush1.bf16.msra.mxu0 %v6588
          %6611 = vmatprep.subr.bf16.mxu0 0
          %6612 = vmatpush1.bf16.msra.mxu0 %v6587
          %6613 = vmatprep.subr.bf16.mxu0 0
          %6614 = vmatpush1.bf16.msra.mxu0 %v6586
          %6615 = vmatprep.subr.bf16.mxu0 0
          %6616 = vmatpush1.bf16.msra.mxu0 %v6585
          %6617 = vmatprep.subr.bf16.mxu0 0
          %6618 = vmatpush2.bf16.msra.mxu0 0
          %6619 = vmatprep.subr.bf16.mxu0 0
          %6620 = vmatpush2.bf16.msra.mxu0 0
          %6621 = vmatprep.subr.bf16.mxu0 0
          %6622 = vmatpush2.bf16.msra.mxu0 0
          %6623 = vmatprep.subr.bf16.mxu0 0
          %6624 = vmatpush2.bf16.msra.mxu0 0
          %6625 = vmatprep.subr.bf16.mxu0 0
          %6626 = vmatpush2.bf16.msra.mxu0 0
          %6627 = vmatprep.subr.bf16.mxu0 0
          %6628 = vmatpush2.bf16.msra.mxu0 0
          %6629 = vmatprep.subr.bf16.mxu0 0
          %6630 = vmatpush2.bf16.msra.mxu0 0
          %6631 = vmatprep.subr.bf16.mxu0 0
          %6632 = vmatpush2.bf16.msra.mxu0 0
          %6633 = vmatprep.mubr.bf16.mxu0 0
          %6634 = vmatmul.mubr.bf16.gmra.mxu0 %v6535
          %v6635 = vpop.f32.mrf.mxu0
          %v6636 = vadd.f32 0.0, %v6635
          %v6637 = vpop.f32.mrf.mxu0
          %v6638 = vpop.f32.mrf.mxu0
          %v6639 = vpop.f32.mrf.mxu0
          %6640 = vdwg.mxu0
          %v6657 = vunpack.c.l.b16 %v6517
          %v6658 = vunpack.c.l.b16 %v6518
          %v6659 = vunpack.c.l.b16 %v6519
          %v6660 = vunpack.c.l.b16 %v6520
          %v6661 = vunpack.c.l.b16 %v6521
          %v6662 = vunpack.c.l.b16 %v6522
          %v6663 = vunpack.c.l.b16 %v6523
          %v6664 = vunpack.c.l.b16 %v6524
          %v6665 = vunpack.c.l.b16 %v6525
          %v6666 = vunpack.c.l.b16 %v6526
          %v6667 = vunpack.c.l.b16 %v6527
          %v6668 = vunpack.c.l.b16 %v6528
          %v6669 = vunpack.c.l.b16 %v6529
          %v6670 = vunpack.c.l.b16 %v6530
          %v6671 = vunpack.c.l.b16 %v6531
          %v6672 = vunpack.c.l.b16 %v6532
          %v6673 = vpack.c.b16 %v6658, %v6657
          %v6674 = vpack.c.b16 %v6660, %v6659
          %v6675 = vpack.c.b16 %v6662, %v6661
          %v6676 = vpack.c.b16 %v6664, %v6663
          %v6677 = vpack.c.b16 %v6666, %v6665
          %v6678 = vpack.c.b16 %v6668, %v6667
          %v6679 = vpack.c.b16 %v6670, %v6669
          %v6680 = vpack.c.b16 %v6672, %v6671
          %6689 = vmatprep.subr.bf16.mxu0 0
          %6690 = vmatpush1.bf16.msra.mxu0 %v6680
          %6691 = vmatprep.subr.bf16.mxu0 0
          %6692 = vmatpush1.bf16.msra.mxu0 %v6679
          %6693 = vmatprep.subr.bf16.mxu0 0
          %6694 = vmatpush1.bf16.msra.mxu0 %v6678
          %6695 = vmatprep.subr.bf16.mxu0 0
          %6696 = vmatpush1.bf16.msra.mxu0 %v6677
          %6697 = vmatprep.subr.bf16.mxu0 0
          %6698 = vmatpush1.bf16.msra.mxu0 %v6676
          %6699 = vmatprep.subr.bf16.mxu0 0
          %6700 = vmatpush1.bf16.msra.mxu0 %v6675
          %6701 = vmatprep.subr.bf16.mxu0 0
          %6702 = vmatpush1.bf16.msra.mxu0 %v6674
          %6703 = vmatprep.subr.bf16.mxu0 0
          %6704 = vmatpush1.bf16.msra.mxu0 %v6673
          %6705 = vmatprep.subr.bf16.mxu0 0
          %6706 = vmatpush2.bf16.msra.mxu0 0
          %6707 = vmatprep.subr.bf16.mxu0 0
          %6708 = vmatpush2.bf16.msra.mxu0 0
          %6709 = vmatprep.subr.bf16.mxu0 0
          %6710 = vmatpush2.bf16.msra.mxu0 0
          %6711 = vmatprep.subr.bf16.mxu0 0
          %6712 = vmatpush2.bf16.msra.mxu0 0
          %6713 = vmatprep.subr.bf16.mxu0 0
          %6714 = vmatpush2.bf16.msra.mxu0 0
          %6715 = vmatprep.subr.bf16.mxu0 0
          %6716 = vmatpush2.bf16.msra.mxu0 0
          %6717 = vmatprep.subr.bf16.mxu0 0
          %6718 = vmatpush2.bf16.msra.mxu0 0
          %6719 = vmatprep.subr.bf16.mxu0 0
          %6720 = vmatpush2.bf16.msra.mxu0 0
          %6721 = vmatprep.mubr.bf16.mxu0 0
          %6722 = vmatmul.mubr.bf16.gmra.mxu0 %v6516
          %v6723 = vpop.f32.mrf.mxu0
          %v6724 = vadd.f32 %v6636, %v6723
          %v6725 = vpop.f32.mrf.mxu0
          %v6726 = vpop.f32.mrf.mxu0
          %v6727 = vpop.f32.mrf.mxu0
          %6728 = vdwg.mxu0
          %s6729 = scalar_lea.vmem %s6514, 2 [#allocation6]
          %v6730 = vld [vmem:[%s6729] ss:$2 sm:$0xf]
          %v6731 = vpack.c.bf16 %v6730, %v6730
          %s6732 = scalar_lea.vmem %s15, 128
          %v6733 = vld [vmem:[%s6732] sm:$0xf]
          %v6734 = vld [vmem:[%s6732 + $0x4] sm:$0xf]
          %v6735 = vld [vmem:[%s6732 + $0x8] sm:$0xf]
          %v6736 = vld [vmem:[%s6732 + $0xc] sm:$0xf]
          %v6737 = vld [vmem:[%s6732 + $0x10] sm:$0xf]
          %v6738 = vld [vmem:[%s6732 + $0x14] sm:$0xf]
          %v6739 = vld [vmem:[%s6732 + $0x18] sm:$0xf]
          %v6740 = vld [vmem:[%s6732 + $0x1c] sm:$0xf]
          %v6741 = vld [vmem:[%s6732 + $0x20] sm:$0xf]
          %v6742 = vld [vmem:[%s6732 + $0x24] sm:$0xf]
          %v6743 = vld [vmem:[%s6732 + $0x28] sm:$0xf]
          %v6744 = vld [vmem:[%s6732 + $0x2c] sm:$0xf]
          %v6745 = vld [vmem:[%s6732 + $0x30] sm:$0xf]
          %v6746 = vld [vmem:[%s6732 + $0x34] sm:$0xf]
          %v6747 = vld [vmem:[%s6732 + $0x38] sm:$0xf]
          %v6748 = vld [vmem:[%s6732 + $0x3c] sm:$0xf]
          %v6765 = vunpack.c.l.b16 %v6733
          %v6766 = vunpack.c.l.b16 %v6734
          %v6767 = vunpack.c.l.b16 %v6735
          %v6768 = vunpack.c.l.b16 %v6736
          %v6769 = vunpack.c.l.b16 %v6737
          %v6770 = vunpack.c.l.b16 %v6738
          %v6771 = vunpack.c.l.b16 %v6739
          %v6772 = vunpack.c.l.b16 %v6740
          %v6773 = vunpack.c.l.b16 %v6741
          %v6774 = vunpack.c.l.b16 %v6742
          %v6775 = vunpack.c.l.b16 %v6743
          %v6776 = vunpack.c.l.b16 %v6744
          %v6777 = vunpack.c.l.b16 %v6745
          %v6778 = vunpack.c.l.b16 %v6746
          %v6779 = vunpack.c.l.b16 %v6747
          %v6780 = vunpack.c.l.b16 %v6748
          %v6781 = vpack.c.b16 %v6766, %v6765
          %v6782 = vpack.c.b16 %v6768, %v6767
          %v6783 = vpack.c.b16 %v6770, %v6769
          %v6784 = vpack.c.b16 %v6772, %v6771
          %v6785 = vpack.c.b16 %v6774, %v6773
          %v6786 = vpack.c.b16 %v6776, %v6775
          %v6787 = vpack.c.b16 %v6778, %v6777
          %v6788 = vpack.c.b16 %v6780, %v6779
          %6797 = vmatprep.subr.bf16.mxu0 0
          %6798 = vmatpush1.bf16.msra.mxu0 %v6788
          %6799 = vmatprep.subr.bf16.mxu0 0
          %6800 = vmatpush1.bf16.msra.mxu0 %v6787
          %6801 = vmatprep.subr.bf16.mxu0 0
          %6802 = vmatpush1.bf16.msra.mxu0 %v6786
          %6803 = vmatprep.subr.bf16.mxu0 0
          %6804 = vmatpush1.bf16.msra.mxu0 %v6785
          %6805 = vmatprep.subr.bf16.mxu0 0
          %6806 = vmatpush1.bf16.msra.mxu0 %v6784
          %6807 = vmatprep.subr.bf16.mxu0 0
          %6808 = vmatpush1.bf16.msra.mxu0 %v6783
          %6809 = vmatprep.subr.bf16.mxu0 0
          %6810 = vmatpush1.bf16.msra.mxu0 %v6782
          %6811 = vmatprep.subr.bf16.mxu0 0
          %6812 = vmatpush1.bf16.msra.mxu0 %v6781
          %6813 = vmatprep.subr.bf16.mxu0 0
          %6814 = vmatpush2.bf16.msra.mxu0 0
          %6815 = vmatprep.subr.bf16.mxu0 0
          %6816 = vmatpush2.bf16.msra.mxu0 0
          %6817 = vmatprep.subr.bf16.mxu0 0
          %6818 = vmatpush2.bf16.msra.mxu0 0
          %6819 = vmatprep.subr.bf16.mxu0 0
          %6820 = vmatpush2.bf16.msra.mxu0 0
          %6821 = vmatprep.subr.bf16.mxu0 0
          %6822 = vmatpush2.bf16.msra.mxu0 0
          %6823 = vmatprep.subr.bf16.mxu0 0
          %6824 = vmatpush2.bf16.msra.mxu0 0
          %6825 = vmatprep.subr.bf16.mxu0 0
          %6826 = vmatpush2.bf16.msra.mxu0 0
          %6827 = vmatprep.subr.bf16.mxu0 0
          %6828 = vmatpush2.bf16.msra.mxu0 0
          %6829 = vmatprep.mubr.bf16.mxu0 0
          %6830 = vmatmul.mubr.bf16.gmra.mxu0 %v6731
          %v6831 = vpop.f32.mrf.mxu0
          %v6832 = vadd.f32 0.0, %v6831
          %v6833 = vpop.f32.mrf.mxu0
          %v6834 = vpop.f32.mrf.mxu0
          %v6835 = vpop.f32.mrf.mxu0
          %6836 = vdwg.mxu0
          %v6837 = vadd.f32 %v6724, %v6832
          %s6838 = sadd.s32 %s6512, 1
          %s6839 = smul.u32 %s6838, 16
          %s6840 = scalar_lea.vmem [#allocation6], %s6839
          %v6841 = vld [vmem:[%s6840] ss:$2 sm:$0xf]
          %v6842 = vpack.c.bf16 %v6841, %v6841
          %s6843 = scalar_lea.vmem %s15, 192
          %v6844 = vld [vmem:[%s6843] sm:$0xf]
          %v6845 = vld [vmem:[%s6843 + $0x4] sm:$0xf]
          %v6846 = vld [vmem:[%s6843 + $0x8] sm:$0xf]
          %v6847 = vld [vmem:[%s6843 + $0xc] sm:$0xf]
          %v6848 = vld [vmem:[%s6843 + $0x10] sm:$0xf]
          %v6849 = vld [vmem:[%s6843 + $0x14] sm:$0xf]
          %v6850 = vld [vmem:[%s6843 + $0x18] sm:$0xf]
          %v6851 = vld [vmem:[%s6843 + $0x1c] sm:$0xf]
          %v6852 = vld [vmem:[%s6843 + $0x20] sm:$0xf]
          %v6853 = vld [vmem:[%s6843 + $0x24] sm:$0xf]
          %v6854 = vld [vmem:[%s6843 + $0x28] sm:$0xf]
          %v6855 = vld [vmem:[%s6843 + $0x2c] sm:$0xf]
          %v6856 = vld [vmem:[%s6843 + $0x30] sm:$0xf]
          %v6857 = vld [vmem:[%s6843 + $0x34] sm:$0xf]
          %v6858 = vld [vmem:[%s6843 + $0x38] sm:$0xf]
          %v6859 = vld [vmem:[%s6843 + $0x3c] sm:$0xf]
          %v6876 = vunpack.c.l.b16 %v6844
          %v6877 = vunpack.c.l.b16 %v6845
          %v6878 = vunpack.c.l.b16 %v6846
          %v6879 = vunpack.c.l.b16 %v6847
          %v6880 = vunpack.c.l.b16 %v6848
          %v6881 = vunpack.c.l.b16 %v6849
          %v6882 = vunpack.c.l.b16 %v6850
          %v6883 = vunpack.c.l.b16 %v6851
          %v6884 = vunpack.c.l.b16 %v6852
          %v6885 = vunpack.c.l.b16 %v6853
          %v6886 = vunpack.c.l.b16 %v6854
          %v6887 = vunpack.c.l.b16 %v6855
          %v6888 = vunpack.c.l.b16 %v6856
          %v6889 = vunpack.c.l.b16 %v6857
          %v6890 = vunpack.c.l.b16 %v6858
          %v6891 = vunpack.c.l.b16 %v6859
          %v6892 = vpack.c.b16 %v6877, %v6876
          %v6893 = vpack.c.b16 %v6879, %v6878
          %v6894 = vpack.c.b16 %v6881, %v6880
          %v6895 = vpack.c.b16 %v6883, %v6882
          %v6896 = vpack.c.b16 %v6885, %v6884
          %v6897 = vpack.c.b16 %v6887, %v6886
          %v6898 = vpack.c.b16 %v6889, %v6888
          %v6899 = vpack.c.b16 %v6891, %v6890
          %6908 = vmatprep.subr.bf16.mxu0 0
          %6909 = vmatpush1.bf16.msra.mxu0 %v6899
          %6910 = vmatprep.subr.bf16.mxu0 0
          %6911 = vmatpush1.bf16.msra.mxu0 %v6898
          %6912 = vmatprep.subr.bf16.mxu0 0
          %6913 = vmatpush1.bf16.msra.mxu0 %v6897
          %6914 = vmatprep.subr.bf16.mxu0 0
          %6915 = vmatpush1.bf16.msra.mxu0 %v6896
          %6916 = vmatprep.subr.bf16.mxu0 0
          %6917 = vmatpush1.bf16.msra.mxu0 %v6895
          %6918 = vmatprep.subr.bf16.mxu0 0
          %6919 = vmatpush1.bf16.msra.mxu0 %v6894
          %6920 = vmatprep.subr.bf16.mxu0 0
          %6921 = vmatpush1.bf16.msra.mxu0 %v6893
          %6922 = vmatprep.subr.bf16.mxu0 0
          %6923 = vmatpush1.bf16.msra.mxu0 %v6892
          %6924 = vmatprep.subr.bf16.mxu0 0
          %6925 = vmatpush2.bf16.msra.mxu0 0
          %6926 = vmatprep.subr.bf16.mxu0 0
          %6927 = vmatpush2.bf16.msra.mxu0 0
          %6928 = vmatprep.subr.bf16.mxu0 0
          %6929 = vmatpush2.bf16.msra.mxu0 0
          %6930 = vmatprep.subr.bf16.mxu0 0
          %6931 = vmatpush2.bf16.msra.mxu0 0
          %6932 = vmatprep.subr.bf16.mxu0 0
          %6933 = vmatpush2.bf16.msra.mxu0 0
          %6934 = vmatprep.subr.bf16.mxu0 0
          %6935 = vmatpush2.bf16.msra.mxu0 0
          %6936 = vmatprep.subr.bf16.mxu0 0
          %6937 = vmatpush2.bf16.msra.mxu0 0
          %6938 = vmatprep.subr.bf16.mxu0 0
          %6939 = vmatpush2.bf16.msra.mxu0 0
          %6940 = vmatprep.mubr.bf16.mxu0 0
          %6941 = vmatmul.mubr.bf16.gmra.mxu0 %v6842
          %v6942 = vpop.f32.mrf.mxu0
          %v6943 = vadd.f32 0.0, %v6942
          %v6944 = vpop.f32.mrf.mxu0
          %v6945 = vpop.f32.mrf.mxu0
          %v6946 = vpop.f32.mrf.mxu0
          %6947 = vdwg.mxu0
          %v6948 = vadd.f32 %v6837, %v6943
          %s6949 = scalar_lea.vmem %s6840, 1 [#allocation6]
          %v6950 = vld [vmem:[%s6949] ss:$2 sm:$0xf]
          %v6951 = vpack.c.bf16 %v6950, %v6950
          %s6952 = scalar_lea.vmem %s15, 256
          %v6953 = vld [vmem:[%s6952] sm:$0xf]
          %v6954 = vld [vmem:[%s6952 + $0x4] sm:$0xf]
          %v6955 = vld [vmem:[%s6952 + $0x8] sm:$0xf]
          %v6956 = vld [vmem:[%s6952 + $0xc] sm:$0xf]
          %v6957 = vld [vmem:[%s6952 + $0x10] sm:$0xf]
          %v6958 = vld [vmem:[%s6952 + $0x14] sm:$0xf]
          %v6959 = vld [vmem:[%s6952 + $0x18] sm:$0xf]
          %v6960 = vld [vmem:[%s6952 + $0x1c] sm:$0xf]
          %v6961 = vld [vmem:[%s6952 + $0x20] sm:$0xf]
          %v6962 = vld [vmem:[%s6952 + $0x24] sm:$0xf]
          %v6963 = vld [vmem:[%s6952 + $0x28] sm:$0xf]
          %v6964 = vld [vmem:[%s6952 + $0x2c] sm:$0xf]
          %v6965 = vld [vmem:[%s6952 + $0x30] sm:$0xf]
          %v6966 = vld [vmem:[%s6952 + $0x34] sm:$0xf]
          %v6967 = vld [vmem:[%s6952 + $0x38] sm:$0xf]
          %v6968 = vld [vmem:[%s6952 + $0x3c] sm:$0xf]
          %v6985 = vunpack.c.l.b16 %v6953
          %v6986 = vunpack.c.l.b16 %v6954
          %v6987 = vunpack.c.l.b16 %v6955
          %v6988 = vunpack.c.l.b16 %v6956
          %v6989 = vunpack.c.l.b16 %v6957
          %v6990 = vunpack.c.l.b16 %v6958
          %v6991 = vunpack.c.l.b16 %v6959
          %v6992 = vunpack.c.l.b16 %v6960
          %v6993 = vunpack.c.l.b16 %v6961
          %v6994 = vunpack.c.l.b16 %v6962
          %v6995 = vunpack.c.l.b16 %v6963
          %v6996 = vunpack.c.l.b16 %v6964
          %v6997 = vunpack.c.l.b16 %v6965
          %v6998 = vunpack.c.l.b16 %v6966
          %v6999 = vunpack.c.l.b16 %v6967
          %v7000 = vunpack.c.l.b16 %v6968
          %v7001 = vpack.c.b16 %v6986, %v6985
          %v7002 = vpack.c.b16 %v6988, %v6987
          %v7003 = vpack.c.b16 %v6990, %v6989
          %v7004 = vpack.c.b16 %v6992, %v6991
          %v7005 = vpack.c.b16 %v6994, %v6993
          %v7006 = vpack.c.b16 %v6996, %v6995
          %v7007 = vpack.c.b16 %v6998, %v6997
          %v7008 = vpack.c.b16 %v7000, %v6999
          %7017 = vmatprep.subr.bf16.mxu0 0
          %7018 = vmatpush1.bf16.msra.mxu0 %v7008
          %7019 = vmatprep.subr.bf16.mxu0 0
          %7020 = vmatpush1.bf16.msra.mxu0 %v7007
          %7021 = vmatprep.subr.bf16.mxu0 0
          %7022 = vmatpush1.bf16.msra.mxu0 %v7006
          %7023 = vmatprep.subr.bf16.mxu0 0
          %7024 = vmatpush1.bf16.msra.mxu0 %v7005
          %7025 = vmatprep.subr.bf16.mxu0 0
          %7026 = vmatpush1.bf16.msra.mxu0 %v7004
          %7027 = vmatprep.subr.bf16.mxu0 0
          %7028 = vmatpush1.bf16.msra.mxu0 %v7003
          %7029 = vmatprep.subr.bf16.mxu0 0
          %7030 = vmatpush1.bf16.msra.mxu0 %v7002
          %7031 = vmatprep.subr.bf16.mxu0 0
          %7032 = vmatpush1.bf16.msra.mxu0 %v7001
          %7033 = vmatprep.subr.bf16.mxu0 0
          %7034 = vmatpush2.bf16.msra.mxu0 0
          %7035 = vmatprep.subr.bf16.mxu0 0
          %7036 = vmatpush2.bf16.msra.mxu0 0
          %7037 = vmatprep.subr.bf16.mxu0 0
          %7038 = vmatpush2.bf16.msra.mxu0 0
          %7039 = vmatprep.subr.bf16.mxu0 0
          %7040 = vmatpush2.bf16.msra.mxu0 0
          %7041 = vmatprep.subr.bf16.mxu0 0
          %7042 = vmatpush2.bf16.msra.mxu0 0
          %7043 = vmatprep.subr.bf16.mxu0 0
          %7044 = vmatpush2.bf16.msra.mxu0 0
          %7045 = vmatprep.subr.bf16.mxu0 0
          %7046 = vmatpush2.bf16.msra.mxu0 0
          %7047 = vmatprep.subr.bf16.mxu0 0
          %7048 = vmatpush2.bf16.msra.mxu0 0
          %7049 = vmatprep.mubr.bf16.mxu0 0
          %7050 = vmatmul.mubr.bf16.gmra.mxu0 %v6951
          %v7051 = vpop.f32.mrf.mxu0
          %v7052 = vadd.f32 0.0, %v7051
          %v7053 = vpop.f32.mrf.mxu0
          %v7054 = vpop.f32.mrf.mxu0
          %v7055 = vpop.f32.mrf.mxu0
          %7056 = vdwg.mxu0
          %v7057 = vadd.f32 %v6948, %v7052
          %s7058 = scalar_lea.vmem %s6840, 2 [#allocation6]
          %v7059 = vld [vmem:[%s7058] ss:$2 sm:$0xf]
          %v7060 = vpack.c.bf16 %v7059, %v7059
          %s7061 = scalar_lea.vmem %s15, 320
          %v7062 = vld [vmem:[%s7061] sm:$0xf]
          %v7063 = vld [vmem:[%s7061 + $0x4] sm:$0xf]
          %v7064 = vld [vmem:[%s7061 + $0x8] sm:$0xf]
          %v7065 = vld [vmem:[%s7061 + $0xc] sm:$0xf]
          %v7066 = vld [vmem:[%s7061 + $0x10] sm:$0xf]
          %v7067 = vld [vmem:[%s7061 + $0x14] sm:$0xf]
          %v7068 = vld [vmem:[%s7061 + $0x18] sm:$0xf]
          %v7069 = vld [vmem:[%s7061 + $0x1c] sm:$0xf]
          %v7070 = vld [vmem:[%s7061 + $0x20] sm:$0xf]
          %v7071 = vld [vmem:[%s7061 + $0x24] sm:$0xf]
          %v7072 = vld [vmem:[%s7061 + $0x28] sm:$0xf]
          %v7073 = vld [vmem:[%s7061 + $0x2c] sm:$0xf]
          %v7074 = vld [vmem:[%s7061 + $0x30] sm:$0xf]
          %v7075 = vld [vmem:[%s7061 + $0x34] sm:$0xf]
          %v7076 = vld [vmem:[%s7061 + $0x38] sm:$0xf]
          %v7077 = vld [vmem:[%s7061 + $0x3c] sm:$0xf]
          %v7094 = vunpack.c.l.b16 %v7062
          %v7095 = vunpack.c.l.b16 %v7063
          %v7096 = vunpack.c.l.b16 %v7064
          %v7097 = vunpack.c.l.b16 %v7065
          %v7098 = vunpack.c.l.b16 %v7066
          %v7099 = vunpack.c.l.b16 %v7067
          %v7100 = vunpack.c.l.b16 %v7068
          %v7101 = vunpack.c.l.b16 %v7069
          %v7102 = vunpack.c.l.b16 %v7070
          %v7103 = vunpack.c.l.b16 %v7071
          %v7104 = vunpack.c.l.b16 %v7072
          %v7105 = vunpack.c.l.b16 %v7073
          %v7106 = vunpack.c.l.b16 %v7074
          %v7107 = vunpack.c.l.b16 %v7075
          %v7108 = vunpack.c.l.b16 %v7076
          %v7109 = vunpack.c.l.b16 %v7077
          %v7110 = vpack.c.b16 %v7095, %v7094
          %v7111 = vpack.c.b16 %v7097, %v7096
          %v7112 = vpack.c.b16 %v7099, %v7098
          %v7113 = vpack.c.b16 %v7101, %v7100
          %v7114 = vpack.c.b16 %v7103, %v7102
          %v7115 = vpack.c.b16 %v7105, %v7104
          %v7116 = vpack.c.b16 %v7107, %v7106
          %v7117 = vpack.c.b16 %v7109, %v7108
          %7126 = vmatprep.subr.bf16.mxu0 0
          %7127 = vmatpush1.bf16.msra.mxu0 %v7117
          %7128 = vmatprep.subr.bf16.mxu0 0
          %7129 = vmatpush1.bf16.msra.mxu0 %v7116
          %7130 = vmatprep.subr.bf16.mxu0 0
          %7131 = vmatpush1.bf16.msra.mxu0 %v7115
          %7132 = vmatprep.subr.bf16.mxu0 0
          %7133 = vmatpush1.bf16.msra.mxu0 %v7114
          %7134 = vmatprep.subr.bf16.mxu0 0
          %7135 = vmatpush1.bf16.msra.mxu0 %v7113
          %7136 = vmatprep.subr.bf16.mxu0 0
          %7137 = vmatpush1.bf16.msra.mxu0 %v7112
          %7138 = vmatprep.subr.bf16.mxu0 0
          %7139 = vmatpush1.bf16.msra.mxu0 %v7111
          %7140 = vmatprep.subr.bf16.mxu0 0
          %7141 = vmatpush1.bf16.msra.mxu0 %v7110
          %7142 = vmatprep.subr.bf16.mxu0 0
          %7143 = vmatpush2.bf16.msra.mxu0 0
          %7144 = vmatprep.subr.bf16.mxu0 0
          %7145 = vmatpush2.bf16.msra.mxu0 0
          %7146 = vmatprep.subr.bf16.mxu0 0
          %7147 = vmatpush2.bf16.msra.mxu0 0
          %7148 = vmatprep.subr.bf16.mxu0 0
          %7149 = vmatpush2.bf16.msra.mxu0 0
          %7150 = vmatprep.subr.bf16.mxu0 0
          %7151 = vmatpush2.bf16.msra.mxu0 0
          %7152 = vmatprep.subr.bf16.mxu0 0
          %7153 = vmatpush2.bf16.msra.mxu0 0
          %7154 = vmatprep.subr.bf16.mxu0 0
          %7155 = vmatpush2.bf16.msra.mxu0 0
          %7156 = vmatprep.subr.bf16.mxu0 0
          %7157 = vmatpush2.bf16.msra.mxu0 0
          %7158 = vmatprep.mubr.bf16.mxu0 0
          %7159 = vmatmul.mubr.bf16.gmra.mxu0 %v7060
          %v7160 = vpop.f32.mrf.mxu0
          %v7161 = vadd.f32 0.0, %v7160
          %v7162 = vpop.f32.mrf.mxu0
          %v7163 = vpop.f32.mrf.mxu0
          %v7164 = vpop.f32.mrf.mxu0
          %7165 = vdwg.mxu0
          %v7166 = vadd.f32 %v7057, %v7161
          %s7167 = sadd.s32 %s6512, 2
          %s7168 = smul.u32 %s7167, 16
          %s7169 = scalar_lea.vmem [#allocation6], %s7168
          %v7170 = vld [vmem:[%s7169] ss:$2 sm:$0xf]
          %v7171 = vpack.c.bf16 %v7170, %v7170
          %s7172 = scalar_lea.vmem %s15, 384
          %v7173 = vld [vmem:[%s7172] sm:$0xf]
          %v7174 = vld [vmem:[%s7172 + $0x4] sm:$0xf]
          %v7175 = vld [vmem:[%s7172 + $0x8] sm:$0xf]
          %v7176 = vld [vmem:[%s7172 + $0xc] sm:$0xf]
          %v7177 = vld [vmem:[%s7172 + $0x10] sm:$0xf]
          %v7178 = vld [vmem:[%s7172 + $0x14] sm:$0xf]
          %v7179 = vld [vmem:[%s7172 + $0x18] sm:$0xf]
          %v7180 = vld [vmem:[%s7172 + $0x1c] sm:$0xf]
          %v7181 = vld [vmem:[%s7172 + $0x20] sm:$0xf]
          %v7182 = vld [vmem:[%s7172 + $0x24] sm:$0xf]
          %v7183 = vld [vmem:[%s7172 + $0x28] sm:$0xf]
          %v7184 = vld [vmem:[%s7172 + $0x2c] sm:$0xf]
          %v7185 = vld [vmem:[%s7172 + $0x30] sm:$0xf]
          %v7186 = vld [vmem:[%s7172 + $0x34] sm:$0xf]
          %v7187 = vld [vmem:[%s7172 + $0x38] sm:$0xf]
          %v7188 = vld [vmem:[%s7172 + $0x3c] sm:$0xf]
          %v7205 = vunpack.c.l.b16 %v7173
          %v7206 = vunpack.c.l.b16 %v7174
          %v7207 = vunpack.c.l.b16 %v7175
          %v7208 = vunpack.c.l.b16 %v7176
          %v7209 = vunpack.c.l.b16 %v7177
          %v7210 = vunpack.c.l.b16 %v7178
          %v7211 = vunpack.c.l.b16 %v7179
          %v7212 = vunpack.c.l.b16 %v7180
          %v7213 = vunpack.c.l.b16 %v7181
          %v7214 = vunpack.c.l.b16 %v7182
          %v7215 = vunpack.c.l.b16 %v7183
          %v7216 = vunpack.c.l.b16 %v7184
          %v7217 = vunpack.c.l.b16 %v7185
          %v7218 = vunpack.c.l.b16 %v7186
          %v7219 = vunpack.c.l.b16 %v7187
          %v7220 = vunpack.c.l.b16 %v7188
          %v7221 = vpack.c.b16 %v7206, %v7205
          %v7222 = vpack.c.b16 %v7208, %v7207
          %v7223 = vpack.c.b16 %v7210, %v7209
          %v7224 = vpack.c.b16 %v7212, %v7211
          %v7225 = vpack.c.b16 %v7214, %v7213
          %v7226 = vpack.c.b16 %v7216, %v7215
          %v7227 = vpack.c.b16 %v7218, %v7217
          %v7228 = vpack.c.b16 %v7220, %v7219
          %7237 = vmatprep.subr.bf16.mxu0 0
          %7238 = vmatpush1.bf16.msra.mxu0 %v7228
          %7239 = vmatprep.subr.bf16.mxu0 0
          %7240 = vmatpush1.bf16.msra.mxu0 %v7227
          %7241 = vmatprep.subr.bf16.mxu0 0
          %7242 = vmatpush1.bf16.msra.mxu0 %v7226
          %7243 = vmatprep.subr.bf16.mxu0 0
          %7244 = vmatpush1.bf16.msra.mxu0 %v7225
          %7245 = vmatprep.subr.bf16.mxu0 0
          %7246 = vmatpush1.bf16.msra.mxu0 %v7224
          %7247 = vmatprep.subr.bf16.mxu0 0
          %7248 = vmatpush1.bf16.msra.mxu0 %v7223
          %7249 = vmatprep.subr.bf16.mxu0 0
          %7250 = vmatpush1.bf16.msra.mxu0 %v7222
          %7251 = vmatprep.subr.bf16.mxu0 0
          %7252 = vmatpush1.bf16.msra.mxu0 %v7221
          %7253 = vmatprep.subr.bf16.mxu0 0
          %7254 = vmatpush2.bf16.msra.mxu0 0
          %7255 = vmatprep.subr.bf16.mxu0 0
          %7256 = vmatpush2.bf16.msra.mxu0 0
          %7257 = vmatprep.subr.bf16.mxu0 0
          %7258 = vmatpush2.bf16.msra.mxu0 0
          %7259 = vmatprep.subr.bf16.mxu0 0
          %7260 = vmatpush2.bf16.msra.mxu0 0
          %7261 = vmatprep.subr.bf16.mxu0 0
          %7262 = vmatpush2.bf16.msra.mxu0 0
          %7263 = vmatprep.subr.bf16.mxu0 0
          %7264 = vmatpush2.bf16.msra.mxu0 0
          %7265 = vmatprep.subr.bf16.mxu0 0
          %7266 = vmatpush2.bf16.msra.mxu0 0
          %7267 = vmatprep.subr.bf16.mxu0 0
          %7268 = vmatpush2.bf16.msra.mxu0 0
          %7269 = vmatprep.mubr.bf16.mxu0 0
          %7270 = vmatmul.mubr.bf16.gmra.mxu0 %v7171
          %v7271 = vpop.f32.mrf.mxu0
          %v7272 = vadd.f32 0.0, %v7271
          %v7273 = vpop.f32.mrf.mxu0
          %v7274 = vpop.f32.mrf.mxu0
          %v7275 = vpop.f32.mrf.mxu0
          %7276 = vdwg.mxu0
          %v7277 = vadd.f32 %v7166, %v7272
          %s7278 = scalar_lea.vmem %s7169, 1 [#allocation6]
          %v7279 = vld [vmem:[%s7278] ss:$2 sm:$0xf]
          %v7280 = vpack.c.bf16 %v7279, %v7279
          %s7281 = scalar_lea.vmem %s15, 448
          %v7282 = vld [vmem:[%s7281] sm:$0xf]
          %v7283 = vld [vmem:[%s7281 + $0x4] sm:$0xf]
          %v7284 = vld [vmem:[%s7281 + $0x8] sm:$0xf]
          %v7285 = vld [vmem:[%s7281 + $0xc] sm:$0xf]
          %v7286 = vld [vmem:[%s7281 + $0x10] sm:$0xf]
          %v7287 = vld [vmem:[%s7281 + $0x14] sm:$0xf]
          %v7288 = vld [vmem:[%s7281 + $0x18] sm:$0xf]
          %v7289 = vld [vmem:[%s7281 + $0x1c] sm:$0xf]
          %v7290 = vld [vmem:[%s7281 + $0x20] sm:$0xf]
          %v7291 = vld [vmem:[%s7281 + $0x24] sm:$0xf]
          %v7292 = vld [vmem:[%s7281 + $0x28] sm:$0xf]
          %v7293 = vld [vmem:[%s7281 + $0x2c] sm:$0xf]
          %v7294 = vld [vmem:[%s7281 + $0x30] sm:$0xf]
          %v7295 = vld [vmem:[%s7281 + $0x34] sm:$0xf]
          %v7296 = vld [vmem:[%s7281 + $0x38] sm:$0xf]
          %v7297 = vld [vmem:[%s7281 + $0x3c] sm:$0xf]
          %v7314 = vunpack.c.l.b16 %v7282
          %v7315 = vunpack.c.l.b16 %v7283
          %v7316 = vunpack.c.l.b16 %v7284
          %v7317 = vunpack.c.l.b16 %v7285
          %v7318 = vunpack.c.l.b16 %v7286
          %v7319 = vunpack.c.l.b16 %v7287
          %v7320 = vunpack.c.l.b16 %v7288
          %v7321 = vunpack.c.l.b16 %v7289
          %v7322 = vunpack.c.l.b16 %v7290
          %v7323 = vunpack.c.l.b16 %v7291
          %v7324 = vunpack.c.l.b16 %v7292
          %v7325 = vunpack.c.l.b16 %v7293
          %v7326 = vunpack.c.l.b16 %v7294
          %v7327 = vunpack.c.l.b16 %v7295
          %v7328 = vunpack.c.l.b16 %v7296
          %v7329 = vunpack.c.l.b16 %v7297
          %v7330 = vpack.c.b16 %v7315, %v7314
          %v7331 = vpack.c.b16 %v7317, %v7316
          %v7332 = vpack.c.b16 %v7319, %v7318
          %v7333 = vpack.c.b16 %v7321, %v7320
          %v7334 = vpack.c.b16 %v7323, %v7322
          %v7335 = vpack.c.b16 %v7325, %v7324
          %v7336 = vpack.c.b16 %v7327, %v7326
          %v7337 = vpack.c.b16 %v7329, %v7328
          %7346 = vmatprep.subr.bf16.mxu0 0
          %7347 = vmatpush1.bf16.msra.mxu0 %v7337
          %7348 = vmatprep.subr.bf16.mxu0 0
          %7349 = vmatpush1.bf16.msra.mxu0 %v7336
          %7350 = vmatprep.subr.bf16.mxu0 0
          %7351 = vmatpush1.bf16.msra.mxu0 %v7335
          %7352 = vmatprep.subr.bf16.mxu0 0
          %7353 = vmatpush1.bf16.msra.mxu0 %v7334
          %7354 = vmatprep.subr.bf16.mxu0 0
          %7355 = vmatpush1.bf16.msra.mxu0 %v7333
          %7356 = vmatprep.subr.bf16.mxu0 0
          %7357 = vmatpush1.bf16.msra.mxu0 %v7332
          %7358 = vmatprep.subr.bf16.mxu0 0
          %7359 = vmatpush1.bf16.msra.mxu0 %v7331
          %7360 = vmatprep.subr.bf16.mxu0 0
          %7361 = vmatpush1.bf16.msra.mxu0 %v7330
          %7362 = vmatprep.subr.bf16.mxu0 0
          %7363 = vmatpush2.bf16.msra.mxu0 0
          %7364 = vmatprep.subr.bf16.mxu0 0
          %7365 = vmatpush2.bf16.msra.mxu0 0
          %7366 = vmatprep.subr.bf16.mxu0 0
          %7367 = vmatpush2.bf16.msra.mxu0 0
          %7368 = vmatprep.subr.bf16.mxu0 0
          %7369 = vmatpush2.bf16.msra.mxu0 0
          %7370 = vmatprep.subr.bf16.mxu0 0
          %7371 = vmatpush2.bf16.msra.mxu0 0
          %7372 = vmatprep.subr.bf16.mxu0 0
          %7373 = vmatpush2.bf16.msra.mxu0 0
          %7374 = vmatprep.subr.bf16.mxu0 0
          %7375 = vmatpush2.bf16.msra.mxu0 0
          %7376 = vmatprep.subr.bf16.mxu0 0
          %7377 = vmatpush2.bf16.msra.mxu0 0
          %7378 = vmatprep.mubr.bf16.mxu0 0
          %7379 = vmatmul.mubr.bf16.gmra.mxu0 %v7280
          %v7380 = vpop.f32.mrf.mxu0
          %v7381 = vadd.f32 0.0, %v7380
          %v7382 = vpop.f32.mrf.mxu0
          %v7383 = vpop.f32.mrf.mxu0
          %v7384 = vpop.f32.mrf.mxu0
          %7385 = vdwg.mxu0
          %v7386 = vadd.f32 %v7277, %v7381
          %s7387 = scalar_lea.vmem %s7169, 2 [#allocation6]
          %v7388 = vld [vmem:[%s7387] ss:$2 sm:$0xf]
          %v7389 = vpack.c.bf16 %v7388, %v7388
          %s7390 = scalar_lea.vmem %s15, 512
          %v7391 = vld [vmem:[%s7390] sm:$0xf]
          %v7392 = vld [vmem:[%s7390 + $0x4] sm:$0xf]
          %v7393 = vld [vmem:[%s7390 + $0x8] sm:$0xf]
          %v7394 = vld [vmem:[%s7390 + $0xc] sm:$0xf]
          %v7395 = vld [vmem:[%s7390 + $0x10] sm:$0xf]
          %v7396 = vld [vmem:[%s7390 + $0x14] sm:$0xf]
          %v7397 = vld [vmem:[%s7390 + $0x18] sm:$0xf]
          %v7398 = vld [vmem:[%s7390 + $0x1c] sm:$0xf]
          %v7399 = vld [vmem:[%s7390 + $0x20] sm:$0xf]
          %v7400 = vld [vmem:[%s7390 + $0x24] sm:$0xf]
          %v7401 = vld [vmem:[%s7390 + $0x28] sm:$0xf]
          %v7402 = vld [vmem:[%s7390 + $0x2c] sm:$0xf]
          %v7403 = vld [vmem:[%s7390 + $0x30] sm:$0xf]
          %v7404 = vld [vmem:[%s7390 + $0x34] sm:$0xf]
          %v7405 = vld [vmem:[%s7390 + $0x38] sm:$0xf]
          %v7406 = vld [vmem:[%s7390 + $0x3c] sm:$0xf]
          %v7423 = vunpack.c.l.b16 %v7391
          %v7424 = vunpack.c.l.b16 %v7392
          %v7425 = vunpack.c.l.b16 %v7393
          %v7426 = vunpack.c.l.b16 %v7394
          %v7427 = vunpack.c.l.b16 %v7395
          %v7428 = vunpack.c.l.b16 %v7396
          %v7429 = vunpack.c.l.b16 %v7397
          %v7430 = vunpack.c.l.b16 %v7398
          %v7431 = vunpack.c.l.b16 %v7399
          %v7432 = vunpack.c.l.b16 %v7400
          %v7433 = vunpack.c.l.b16 %v7401
          %v7434 = vunpack.c.l.b16 %v7402
          %v7435 = vunpack.c.l.b16 %v7403
          %v7436 = vunpack.c.l.b16 %v7404
          %v7437 = vunpack.c.l.b16 %v7405
          %v7438 = vunpack.c.l.b16 %v7406
          %v7439 = vpack.c.b16 %v7424, %v7423
          %v7440 = vpack.c.b16 %v7426, %v7425
          %v7441 = vpack.c.b16 %v7428, %v7427
          %v7442 = vpack.c.b16 %v7430, %v7429
          %v7443 = vpack.c.b16 %v7432, %v7431
          %v7444 = vpack.c.b16 %v7434, %v7433
          %v7445 = vpack.c.b16 %v7436, %v7435
          %v7446 = vpack.c.b16 %v7438, %v7437
          %7455 = vmatprep.subr.bf16.mxu0 0
          %7456 = vmatpush1.bf16.msra.mxu0 %v7446
          %7457 = vmatprep.subr.bf16.mxu0 0
          %7458 = vmatpush1.bf16.msra.mxu0 %v7445
          %7459 = vmatprep.subr.bf16.mxu0 0
          %7460 = vmatpush1.bf16.msra.mxu0 %v7444
          %7461 = vmatprep.subr.bf16.mxu0 0
          %7462 = vmatpush1.bf16.msra.mxu0 %v7443
          %7463 = vmatprep.subr.bf16.mxu0 0
          %7464 = vmatpush1.bf16.msra.mxu0 %v7442
          %7465 = vmatprep.subr.bf16.mxu0 0
          %7466 = vmatpush1.bf16.msra.mxu0 %v7441
          %7467 = vmatprep.subr.bf16.mxu0 0
          %7468 = vmatpush1.bf16.msra.mxu0 %v7440
          %7469 = vmatprep.subr.bf16.mxu0 0
          %7470 = vmatpush1.bf16.msra.mxu0 %v7439
          %7471 = vmatprep.subr.bf16.mxu0 0
          %7472 = vmatpush2.bf16.msra.mxu0 0
          %7473 = vmatprep.subr.bf16.mxu0 0
          %7474 = vmatpush2.bf16.msra.mxu0 0
          %7475 = vmatprep.subr.bf16.mxu0 0
          %7476 = vmatpush2.bf16.msra.mxu0 0
          %7477 = vmatprep.subr.bf16.mxu0 0
          %7478 = vmatpush2.bf16.msra.mxu0 0
          %7479 = vmatprep.subr.bf16.mxu0 0
          %7480 = vmatpush2.bf16.msra.mxu0 0
          %7481 = vmatprep.subr.bf16.mxu0 0
          %7482 = vmatpush2.bf16.msra.mxu0 0
          %7483 = vmatprep.subr.bf16.mxu0 0
          %7484 = vmatpush2.bf16.msra.mxu0 0
          %7485 = vmatprep.subr.bf16.mxu0 0
          %7486 = vmatpush2.bf16.msra.mxu0 0
          %7487 = vmatprep.mubr.bf16.mxu0 0
          %7488 = vmatmul.mubr.bf16.gmra.mxu0 %v7389
          %v7489 = vpop.f32.mrf.mxu0
          %v7490 = vadd.f32 0.0, %v7489
          %v7491 = vpop.f32.mrf.mxu0
          %v7492 = vpop.f32.mrf.mxu0
          %v7493 = vpop.f32.mrf.mxu0
          %7494 = vdwg.mxu0
          %v7495 = vadd.f32 %v7386, %v7490
          %v7497 = vlaneseq
          %v7498 = vshrl.u32 %v7497, 7
          %v7499 = vsub.s32 0, %v7498
          %v7500 = vrot.slane %v6505, %v7499
          %v7502 = vadd.f32 %v7495, %v7500
          %v7503 = vmax.f32 %v7502, 0.0
          %s7504 = sadd.s32 %s6507, 1
          %s7505 = smul.u32 %s7504, 8
          %s7506 = scalar_lea.vmem [#allocation7], %s7505
          %7507 = vst [vmem:[%s7506 + $0x1] sm:$0xf] %v7503
        $region166: #{model_forward.1} parent=111 // loop_footer
          %s6511 = sadd.s32 1, %s6507
        $region167: #{model_forward.1} parent=111 // loop_footer_branch
          %6506 = sbr.rel target = $region163
        $region168: #{model_forward.1} parent=111 // loop_exit
          _
        %v7508 = vld [vmem:[%s18] sm:$0x1]
        loop: start=0, step=1, limit=4
        $region169: #{model_forward.1} parent=111 // loop_pre_header
          _
        $region170: #{model_forward.1} parent=111 // loop_header
          %s7510 = sphi 0, %s7514
          %p7511 = scmp.ge.s32.totalorder %s7510, 4
        $region171: #{model_forward.1} parent=111 // loop_header_branch
          %7513 = sbr.rel (%p7511) target = $region175
        $region172: #{model_forward.1} parent=111 // loop_body
          %s7515 = smul.u32 %s7510, 2
          %s7516 = sadd.s32 %s7515, 1
          %s7517 = smul.u32 %s7516, 16
          %s7518 = scalar_lea.vmem [#allocation6], %s7517
          %s7519 = scalar_lea.vmem %s7518, 1 [#allocation6]
          %v7520 = vld [vmem:[%s7519] ss:$2 sm:$0xf]
          %v7521 = vpack.c.bf16 %v7520, %v7520
          %v7522 = vld [vmem:[%s17] sm:$0xf]
          %v7523 = vld [vmem:[%s17 + $0x4] sm:$0xf]
          %v7524 = vld [vmem:[%s17 + $0x8] sm:$0xf]
          %v7525 = vld [vmem:[%s17 + $0xc] sm:$0xf]
          %v7526 = vld [vmem:[%s17 + $0x10] sm:$0xf]
          %v7527 = vld [vmem:[%s17 + $0x14] sm:$0xf]
          %v7528 = vld [vmem:[%s17 + $0x18] sm:$0xf]
          %v7529 = vld [vmem:[%s17 + $0x1c] sm:$0xf]
          %v7530 = vld [vmem:[%s17 + $0x20] sm:$0xf]
          %v7531 = vld [vmem:[%s17 + $0x24] sm:$0xf]
          %v7532 = vld [vmem:[%s17 + $0x28] sm:$0xf]
          %v7533 = vld [vmem:[%s17 + $0x2c] sm:$0xf]
          %v7534 = vld [vmem:[%s17 + $0x30] sm:$0xf]
          %v7535 = vld [vmem:[%s17 + $0x34] sm:$0xf]
          %v7536 = vld [vmem:[%s17 + $0x38] sm:$0xf]
          %v7537 = vld [vmem:[%s17 + $0x3c] sm:$0xf]
          %v7539 = vlaneseq
          %v7540 = vshrl.u32 %v7539, 7
          %v7541 = vsub.s32 0, %v7540
          %v7542 = vrot.slane %v7508, %v7541
          %v7560 = vunpack.c.l.b16 %v7522
          %v7561 = vunpack.c.l.b16 %v7523
          %v7562 = vunpack.c.l.b16 %v7524
          %v7563 = vunpack.c.l.b16 %v7525
          %v7564 = vunpack.c.l.b16 %v7526
          %v7565 = vunpack.c.l.b16 %v7527
          %v7566 = vunpack.c.l.b16 %v7528
          %v7567 = vunpack.c.l.b16 %v7529
          %v7568 = vunpack.c.l.b16 %v7530
          %v7569 = vunpack.c.l.b16 %v7531
          %v7570 = vunpack.c.l.b16 %v7532
          %v7571 = vunpack.c.l.b16 %v7533
          %v7572 = vunpack.c.l.b16 %v7534
          %v7573 = vunpack.c.l.b16 %v7535
          %v7574 = vunpack.c.l.b16 %v7536
          %v7575 = vunpack.c.l.b16 %v7537
          %v7576 = vpack.c.b16 %v7561, %v7560
          %v7577 = vpack.c.b16 %v7563, %v7562
          %v7578 = vpack.c.b16 %v7565, %v7564
          %v7579 = vpack.c.b16 %v7567, %v7566
          %v7580 = vpack.c.b16 %v7569, %v7568
          %v7581 = vpack.c.b16 %v7571, %v7570
          %v7582 = vpack.c.b16 %v7573, %v7572
          %v7583 = vpack.c.b16 %v7575, %v7574
          %7592 = vmatprep.subr.bf16.mxu0 0
          %7593 = vmatpush1.bf16.msra.mxu0 %v7583
          %7594 = vmatprep.subr.bf16.mxu0 0
          %7595 = vmatpush1.bf16.msra.mxu0 %v7582
          %7596 = vmatprep.subr.bf16.mxu0 0
          %7597 = vmatpush1.bf16.msra.mxu0 %v7581
          %7598 = vmatprep.subr.bf16.mxu0 0
          %7599 = vmatpush1.bf16.msra.mxu0 %v7580
          %7600 = vmatprep.subr.bf16.mxu0 0
          %7601 = vmatpush1.bf16.msra.mxu0 %v7579
          %7602 = vmatprep.subr.bf16.mxu0 0
          %7603 = vmatpush1.bf16.msra.mxu0 %v7578
          %7604 = vmatprep.subr.bf16.mxu0 0
          %7605 = vmatpush1.bf16.msra.mxu0 %v7577
          %7606 = vmatprep.subr.bf16.mxu0 0
          %7607 = vmatpush1.bf16.msra.mxu0 %v7576
          %7608 = vmatprep.subr.bf16.mxu0 0
          %7609 = vmatpush2.bf16.msra.mxu0 0
          %7610 = vmatprep.subr.bf16.mxu0 0
          %7611 = vmatpush2.bf16.msra.mxu0 0
          %7612 = vmatprep.subr.bf16.mxu0 0
          %7613 = vmatpush2.bf16.msra.mxu0 0
          %7614 = vmatprep.subr.bf16.mxu0 0
          %7615 = vmatpush2.bf16.msra.mxu0 0
          %7616 = vmatprep.subr.bf16.mxu0 0
          %7617 = vmatpush2.bf16.msra.mxu0 0
          %7618 = vmatprep.subr.bf16.mxu0 0
          %7619 = vmatpush2.bf16.msra.mxu0 0
          %7620 = vmatprep.subr.bf16.mxu0 0
          %7621 = vmatpush2.bf16.msra.mxu0 0
          %7622 = vmatprep.subr.bf16.mxu0 0
          %7623 = vmatpush2.bf16.msra.mxu0 0
          %7624 = vmatprep.mubr.bf16.mxu0 0
          %7625 = vmatmul.mubr.bf16.gmra.mxu0 %v7521
          %v7626 = vpop.f32.mrf.mxu0
          %v7627 = vadd.f32 %v7542, %v7626
          %v7628 = vpop.f32.mrf.mxu0
          %v7629 = vpop.f32.mrf.mxu0
          %v7630 = vpop.f32.mrf.mxu0
          %7631 = vdwg.mxu0
          %s7632 = sadd.s32 %s7510, 1
          %s7633 = smul.u32 %s7632, 8
          %s7634 = scalar_lea.vmem [#allocation8], %s7633
          %7635 = vst [vmem:[%s7634 + $0x1] sm:$0xf] %v7627
        $region173: #{model_forward.1} parent=111 // loop_footer
          %s7514 = sadd.s32 1, %s7510
        $region174: #{model_forward.1} parent=111 // loop_footer_branch
          %7509 = sbr.rel target = $region170
        $region175: #{model_forward.1} parent=111 // loop_exit
          _
        %v7636 = vld [vmem:[%s20] sm:$0x1]
        loop: start=0, step=1, limit=4
        $region176: #{model_forward.1} parent=111 // loop_pre_header
          _
        $region177: #{model_forward.1} parent=111 // loop_header
          %s7638 = sphi 0, %s7642
          %p7639 = scmp.ge.s32.totalorder %s7638, 4
        $region178: #{model_forward.1} parent=111 // loop_header_branch
          %7641 = sbr.rel (%p7639) target = $region182
        $region179: #{model_forward.1} parent=111 // loop_body
          %s7643 = smul.u32 %s7638, 8
          %s7644 = scalar_lea.vmem [#allocation7], %s7643
          %v7645 = vld [vmem:[%s7644] sm:$0xf]
          %v7646 = vpack.c.bf16 %v7645, %v7645
          %v7647 = vld [vmem:[%s19] sm:$0xf]
          %v7648 = vld [vmem:[%s19 + $0x4] sm:$0xf]
          %v7649 = vld [vmem:[%s19 + $0x8] sm:$0xf]
          %v7650 = vld [vmem:[%s19 + $0xc] sm:$0xf]
          %v7651 = vld [vmem:[%s19 + $0x10] sm:$0xf]
          %v7652 = vld [vmem:[%s19 + $0x14] sm:$0xf]
          %v7653 = vld [vmem:[%s19 + $0x18] sm:$0xf]
          %v7654 = vld [vmem:[%s19 + $0x1c] sm:$0xf]
          %v7655 = vld [vmem:[%s19 + $0x20] sm:$0xf]
          %v7656 = vld [vmem:[%s19 + $0x24] sm:$0xf]
          %v7657 = vld [vmem:[%s19 + $0x28] sm:$0xf]
          %v7658 = vld [vmem:[%s19 + $0x2c] sm:$0xf]
          %v7659 = vld [vmem:[%s19 + $0x30] sm:$0xf]
          %v7660 = vld [vmem:[%s19 + $0x34] sm:$0xf]
          %v7661 = vld [vmem:[%s19 + $0x38] sm:$0xf]
          %v7662 = vld [vmem:[%s19 + $0x3c] sm:$0xf]
          %v7663 = vld [vmem:[%s7644 + $0x1] sm:$0xf]
          %v7664 = vpack.c.bf16 %v7663, %v7663
          %s7665 = scalar_lea.vmem %s19, 64
          %v7666 = vld [vmem:[%s7665] sm:$0xf]
          %v7667 = vld [vmem:[%s7665 + $0x4] sm:$0xf]
          %v7668 = vld [vmem:[%s7665 + $0x8] sm:$0xf]
          %v7669 = vld [vmem:[%s7665 + $0xc] sm:$0xf]
          %v7670 = vld [vmem:[%s7665 + $0x10] sm:$0xf]
          %v7671 = vld [vmem:[%s7665 + $0x14] sm:$0xf]
          %v7672 = vld [vmem:[%s7665 + $0x18] sm:$0xf]
          %v7673 = vld [vmem:[%s7665 + $0x1c] sm:$0xf]
          %v7674 = vld [vmem:[%s7665 + $0x20] sm:$0xf]
          %v7675 = vld [vmem:[%s7665 + $0x24] sm:$0xf]
          %v7676 = vld [vmem:[%s7665 + $0x28] sm:$0xf]
          %v7677 = vld [vmem:[%s7665 + $0x2c] sm:$0xf]
          %v7678 = vld [vmem:[%s7665 + $0x30] sm:$0xf]
          %v7679 = vld [vmem:[%s7665 + $0x34] sm:$0xf]
          %v7680 = vld [vmem:[%s7665 + $0x38] sm:$0xf]
          %v7681 = vld [vmem:[%s7665 + $0x3c] sm:$0xf]
          %v7698 = vunpack.c.l.b16 %v7666
          %v7699 = vunpack.c.l.b16 %v7667
          %v7700 = vunpack.c.l.b16 %v7668
          %v7701 = vunpack.c.l.b16 %v7669
          %v7702 = vunpack.c.l.b16 %v7670
          %v7703 = vunpack.c.l.b16 %v7671
          %v7704 = vunpack.c.l.b16 %v7672
          %v7705 = vunpack.c.l.b16 %v7673
          %v7706 = vunpack.c.l.b16 %v7674
          %v7707 = vunpack.c.l.b16 %v7675
          %v7708 = vunpack.c.l.b16 %v7676
          %v7709 = vunpack.c.l.b16 %v7677
          %v7710 = vunpack.c.l.b16 %v7678
          %v7711 = vunpack.c.l.b16 %v7679
          %v7712 = vunpack.c.l.b16 %v7680
          %v7713 = vunpack.c.l.b16 %v7681
          %v7714 = vpack.c.b16 %v7699, %v7698
          %v7715 = vpack.c.b16 %v7701, %v7700
          %v7716 = vpack.c.b16 %v7703, %v7702
          %v7717 = vpack.c.b16 %v7705, %v7704
          %v7718 = vpack.c.b16 %v7707, %v7706
          %v7719 = vpack.c.b16 %v7709, %v7708
          %v7720 = vpack.c.b16 %v7711, %v7710
          %v7721 = vpack.c.b16 %v7713, %v7712
          %7730 = vmatprep.subr.bf16.mxu0 0
          %7731 = vmatpush1.bf16.msra.mxu0 %v7721
          %7732 = vmatprep.subr.bf16.mxu0 0
          %7733 = vmatpush1.bf16.msra.mxu0 %v7720
          %7734 = vmatprep.subr.bf16.mxu0 0
          %7735 = vmatpush1.bf16.msra.mxu0 %v7719
          %7736 = vmatprep.subr.bf16.mxu0 0
          %7737 = vmatpush1.bf16.msra.mxu0 %v7718
          %7738 = vmatprep.subr.bf16.mxu0 0
          %7739 = vmatpush1.bf16.msra.mxu0 %v7717
          %7740 = vmatprep.subr.bf16.mxu0 0
          %7741 = vmatpush1.bf16.msra.mxu0 %v7716
          %7742 = vmatprep.subr.bf16.mxu0 0
          %7743 = vmatpush1.bf16.msra.mxu0 %v7715
          %7744 = vmatprep.subr.bf16.mxu0 0
          %7745 = vmatpush1.bf16.msra.mxu0 %v7714
          %7746 = vmatprep.subr.bf16.mxu0 0
          %7747 = vmatpush2.bf16.msra.mxu0 0
          %7748 = vmatprep.subr.bf16.mxu0 0
          %7749 = vmatpush2.bf16.msra.mxu0 0
          %7750 = vmatprep.subr.bf16.mxu0 0
          %7751 = vmatpush2.bf16.msra.mxu0 0
          %7752 = vmatprep.subr.bf16.mxu0 0
          %7753 = vmatpush2.bf16.msra.mxu0 0
          %7754 = vmatprep.subr.bf16.mxu0 0
          %7755 = vmatpush2.bf16.msra.mxu0 0
          %7756 = vmatprep.subr.bf16.mxu0 0
          %7757 = vmatpush2.bf16.msra.mxu0 0
          %7758 = vmatprep.subr.bf16.mxu0 0
          %7759 = vmatpush2.bf16.msra.mxu0 0
          %7760 = vmatprep.subr.bf16.mxu0 0
          %7761 = vmatpush2.bf16.msra.mxu0 0
          %7762 = vmatprep.mubr.bf16.mxu0 0
          %7763 = vmatmul.mubr.bf16.gmra.mxu0 %v7664
          %v7764 = vpop.f32.mrf.mxu0
          %v7765 = vadd.f32 0.0, %v7764
          %v7766 = vpop.f32.mrf.mxu0
          %v7767 = vpop.f32.mrf.mxu0
          %v7768 = vpop.f32.mrf.mxu0
          %7769 = vdwg.mxu0
          %v7786 = vunpack.c.l.b16 %v7647
          %v7787 = vunpack.c.l.b16 %v7648
          %v7788 = vunpack.c.l.b16 %v7649
          %v7789 = vunpack.c.l.b16 %v7650
          %v7790 = vunpack.c.l.b16 %v7651
          %v7791 = vunpack.c.l.b16 %v7652
          %v7792 = vunpack.c.l.b16 %v7653
          %v7793 = vunpack.c.l.b16 %v7654
          %v7794 = vunpack.c.l.b16 %v7655
          %v7795 = vunpack.c.l.b16 %v7656
          %v7796 = vunpack.c.l.b16 %v7657
          %v7797 = vunpack.c.l.b16 %v7658
          %v7798 = vunpack.c.l.b16 %v7659
          %v7799 = vunpack.c.l.b16 %v7660
          %v7800 = vunpack.c.l.b16 %v7661
          %v7801 = vunpack.c.l.b16 %v7662
          %v7802 = vpack.c.b16 %v7787, %v7786
          %v7803 = vpack.c.b16 %v7789, %v7788
          %v7804 = vpack.c.b16 %v7791, %v7790
          %v7805 = vpack.c.b16 %v7793, %v7792
          %v7806 = vpack.c.b16 %v7795, %v7794
          %v7807 = vpack.c.b16 %v7797, %v7796
          %v7808 = vpack.c.b16 %v7799, %v7798
          %v7809 = vpack.c.b16 %v7801, %v7800
          %7818 = vmatprep.subr.bf16.mxu0 0
          %7819 = vmatpush1.bf16.msra.mxu0 %v7809
          %7820 = vmatprep.subr.bf16.mxu0 0
          %7821 = vmatpush1.bf16.msra.mxu0 %v7808
          %7822 = vmatprep.subr.bf16.mxu0 0
          %7823 = vmatpush1.bf16.msra.mxu0 %v7807
          %7824 = vmatprep.subr.bf16.mxu0 0
          %7825 = vmatpush1.bf16.msra.mxu0 %v7806
          %7826 = vmatprep.subr.bf16.mxu0 0
          %7827 = vmatpush1.bf16.msra.mxu0 %v7805
          %7828 = vmatprep.subr.bf16.mxu0 0
          %7829 = vmatpush1.bf16.msra.mxu0 %v7804
          %7830 = vmatprep.subr.bf16.mxu0 0
          %7831 = vmatpush1.bf16.msra.mxu0 %v7803
          %7832 = vmatprep.subr.bf16.mxu0 0
          %7833 = vmatpush1.bf16.msra.mxu0 %v7802
          %7834 = vmatprep.subr.bf16.mxu0 0
          %7835 = vmatpush2.bf16.msra.mxu0 0
          %7836 = vmatprep.subr.bf16.mxu0 0
          %7837 = vmatpush2.bf16.msra.mxu0 0
          %7838 = vmatprep.subr.bf16.mxu0 0
          %7839 = vmatpush2.bf16.msra.mxu0 0
          %7840 = vmatprep.subr.bf16.mxu0 0
          %7841 = vmatpush2.bf16.msra.mxu0 0
          %7842 = vmatprep.subr.bf16.mxu0 0
          %7843 = vmatpush2.bf16.msra.mxu0 0
          %7844 = vmatprep.subr.bf16.mxu0 0
          %7845 = vmatpush2.bf16.msra.mxu0 0
          %7846 = vmatprep.subr.bf16.mxu0 0
          %7847 = vmatpush2.bf16.msra.mxu0 0
          %7848 = vmatprep.subr.bf16.mxu0 0
          %7849 = vmatpush2.bf16.msra.mxu0 0
          %7850 = vmatprep.mubr.bf16.mxu0 0
          %7851 = vmatmul.mubr.bf16.gmra.mxu0 %v7646
          %v7852 = vpop.f32.mrf.mxu0
          %v7853 = vadd.f32 %v7765, %v7852
          %v7854 = vpop.f32.mrf.mxu0
          %v7855 = vpop.f32.mrf.mxu0
          %v7856 = vpop.f32.mrf.mxu0
          %7857 = vdwg.mxu0
          %v7858 = vld [vmem:[%s7644 + $0x2] sm:$0xf]
          %v7859 = vpack.c.bf16 %v7858, %v7858
          %s7860 = scalar_lea.vmem %s19, 128
          %v7861 = vld [vmem:[%s7860] sm:$0xf]
          %v7862 = vld [vmem:[%s7860 + $0x4] sm:$0xf]
          %v7863 = vld [vmem:[%s7860 + $0x8] sm:$0xf]
          %v7864 = vld [vmem:[%s7860 + $0xc] sm:$0xf]
          %v7865 = vld [vmem:[%s7860 + $0x10] sm:$0xf]
          %v7866 = vld [vmem:[%s7860 + $0x14] sm:$0xf]
          %v7867 = vld [vmem:[%s7860 + $0x18] sm:$0xf]
          %v7868 = vld [vmem:[%s7860 + $0x1c] sm:$0xf]
          %v7869 = vld [vmem:[%s7860 + $0x20] sm:$0xf]
          %v7870 = vld [vmem:[%s7860 + $0x24] sm:$0xf]
          %v7871 = vld [vmem:[%s7860 + $0x28] sm:$0xf]
          %v7872 = vld [vmem:[%s7860 + $0x2c] sm:$0xf]
          %v7873 = vld [vmem:[%s7860 + $0x30] sm:$0xf]
          %v7874 = vld [vmem:[%s7860 + $0x34] sm:$0xf]
          %v7875 = vld [vmem:[%s7860 + $0x38] sm:$0xf]
          %v7876 = vld [vmem:[%s7860 + $0x3c] sm:$0xf]
          %v7893 = vunpack.c.l.b16 %v7861
          %v7894 = vunpack.c.l.b16 %v7862
          %v7895 = vunpack.c.l.b16 %v7863
          %v7896 = vunpack.c.l.b16 %v7864
          %v7897 = vunpack.c.l.b16 %v7865
          %v7898 = vunpack.c.l.b16 %v7866
          %v7899 = vunpack.c.l.b16 %v7867
          %v7900 = vunpack.c.l.b16 %v7868
          %v7901 = vunpack.c.l.b16 %v7869
          %v7902 = vunpack.c.l.b16 %v7870
          %v7903 = vunpack.c.l.b16 %v7871
          %v7904 = vunpack.c.l.b16 %v7872
          %v7905 = vunpack.c.l.b16 %v7873
          %v7906 = vunpack.c.l.b16 %v7874
          %v7907 = vunpack.c.l.b16 %v7875
          %v7908 = vunpack.c.l.b16 %v7876
          %v7909 = vpack.c.b16 %v7894, %v7893
          %v7910 = vpack.c.b16 %v7896, %v7895
          %v7911 = vpack.c.b16 %v7898, %v7897
          %v7912 = vpack.c.b16 %v7900, %v7899
          %v7913 = vpack.c.b16 %v7902, %v7901
          %v7914 = vpack.c.b16 %v7904, %v7903
          %v7915 = vpack.c.b16 %v7906, %v7905
          %v7916 = vpack.c.b16 %v7908, %v7907
          %7925 = vmatprep.subr.bf16.mxu0 0
          %7926 = vmatpush1.bf16.msra.mxu0 %v7916
          %7927 = vmatprep.subr.bf16.mxu0 0
          %7928 = vmatpush1.bf16.msra.mxu0 %v7915
          %7929 = vmatprep.subr.bf16.mxu0 0
          %7930 = vmatpush1.bf16.msra.mxu0 %v7914
          %7931 = vmatprep.subr.bf16.mxu0 0
          %7932 = vmatpush1.bf16.msra.mxu0 %v7913
          %7933 = vmatprep.subr.bf16.mxu0 0
          %7934 = vmatpush1.bf16.msra.mxu0 %v7912
          %7935 = vmatprep.subr.bf16.mxu0 0
          %7936 = vmatpush1.bf16.msra.mxu0 %v7911
          %7937 = vmatprep.subr.bf16.mxu0 0
          %7938 = vmatpush1.bf16.msra.mxu0 %v7910
          %7939 = vmatprep.subr.bf16.mxu0 0
          %7940 = vmatpush1.bf16.msra.mxu0 %v7909
          %7941 = vmatprep.subr.bf16.mxu0 0
          %7942 = vmatpush2.bf16.msra.mxu0 0
          %7943 = vmatprep.subr.bf16.mxu0 0
          %7944 = vmatpush2.bf16.msra.mxu0 0
          %7945 = vmatprep.subr.bf16.mxu0 0
          %7946 = vmatpush2.bf16.msra.mxu0 0
          %7947 = vmatprep.subr.bf16.mxu0 0
          %7948 = vmatpush2.bf16.msra.mxu0 0
          %7949 = vmatprep.subr.bf16.mxu0 0
          %7950 = vmatpush2.bf16.msra.mxu0 0
          %7951 = vmatprep.subr.bf16.mxu0 0
          %7952 = vmatpush2.bf16.msra.mxu0 0
          %7953 = vmatprep.subr.bf16.mxu0 0
          %7954 = vmatpush2.bf16.msra.mxu0 0
          %7955 = vmatprep.subr.bf16.mxu0 0
          %7956 = vmatpush2.bf16.msra.mxu0 0
          %7957 = vmatprep.mubr.bf16.mxu0 0
          %7958 = vmatmul.mubr.bf16.gmra.mxu0 %v7859
          %v7959 = vpop.f32.mrf.mxu0
          %v7960 = vadd.f32 0.0, %v7959
          %v7961 = vpop.f32.mrf.mxu0
          %v7962 = vpop.f32.mrf.mxu0
          %v7963 = vpop.f32.mrf.mxu0
          %7964 = vdwg.mxu0
          %v7965 = vadd.f32 %v7853, %v7960
          %s7966 = sadd.s32 %s7638, 1
          %s7967 = smul.u32 %s7966, 8
          %s7968 = scalar_lea.vmem [#allocation7], %s7967
          %v7969 = vld [vmem:[%s7968] sm:$0xf]
          %v7970 = vpack.c.bf16 %v7969, %v7969
          %s7971 = scalar_lea.vmem %s19, 192
          %v7972 = vld [vmem:[%s7971] sm:$0xf]
          %v7973 = vld [vmem:[%s7971 + $0x4] sm:$0xf]
          %v7974 = vld [vmem:[%s7971 + $0x8] sm:$0xf]
          %v7975 = vld [vmem:[%s7971 + $0xc] sm:$0xf]
          %v7976 = vld [vmem:[%s7971 + $0x10] sm:$0xf]
          %v7977 = vld [vmem:[%s7971 + $0x14] sm:$0xf]
          %v7978 = vld [vmem:[%s7971 + $0x18] sm:$0xf]
          %v7979 = vld [vmem:[%s7971 + $0x1c] sm:$0xf]
          %v7980 = vld [vmem:[%s7971 + $0x20] sm:$0xf]
          %v7981 = vld [vmem:[%s7971 + $0x24] sm:$0xf]
          %v7982 = vld [vmem:[%s7971 + $0x28] sm:$0xf]
          %v7983 = vld [vmem:[%s7971 + $0x2c] sm:$0xf]
          %v7984 = vld [vmem:[%s7971 + $0x30] sm:$0xf]
          %v7985 = vld [vmem:[%s7971 + $0x34] sm:$0xf]
          %v7986 = vld [vmem:[%s7971 + $0x38] sm:$0xf]
          %v7987 = vld [vmem:[%s7971 + $0x3c] sm:$0xf]
          %v8004 = vunpack.c.l.b16 %v7972
          %v8005 = vunpack.c.l.b16 %v7973
          %v8006 = vunpack.c.l.b16 %v7974
          %v8007 = vunpack.c.l.b16 %v7975
          %v8008 = vunpack.c.l.b16 %v7976
          %v8009 = vunpack.c.l.b16 %v7977
          %v8010 = vunpack.c.l.b16 %v7978
          %v8011 = vunpack.c.l.b16 %v7979
          %v8012 = vunpack.c.l.b16 %v7980
          %v8013 = vunpack.c.l.b16 %v7981
          %v8014 = vunpack.c.l.b16 %v7982
          %v8015 = vunpack.c.l.b16 %v7983
          %v8016 = vunpack.c.l.b16 %v7984
          %v8017 = vunpack.c.l.b16 %v7985
          %v8018 = vunpack.c.l.b16 %v7986
          %v8019 = vunpack.c.l.b16 %v7987
          %v8020 = vpack.c.b16 %v8005, %v8004
          %v8021 = vpack.c.b16 %v8007, %v8006
          %v8022 = vpack.c.b16 %v8009, %v8008
          %v8023 = vpack.c.b16 %v8011, %v8010
          %v8024 = vpack.c.b16 %v8013, %v8012
          %v8025 = vpack.c.b16 %v8015, %v8014
          %v8026 = vpack.c.b16 %v8017, %v8016
          %v8027 = vpack.c.b16 %v8019, %v8018
          %8036 = vmatprep.subr.bf16.mxu0 0
          %8037 = vmatpush1.bf16.msra.mxu0 %v8027
          %8038 = vmatprep.subr.bf16.mxu0 0
          %8039 = vmatpush1.bf16.msra.mxu0 %v8026
          %8040 = vmatprep.subr.bf16.mxu0 0
          %8041 = vmatpush1.bf16.msra.mxu0 %v8025
          %8042 = vmatprep.subr.bf16.mxu0 0
          %8043 = vmatpush1.bf16.msra.mxu0 %v8024
          %8044 = vmatprep.subr.bf16.mxu0 0
          %8045 = vmatpush1.bf16.msra.mxu0 %v8023
          %8046 = vmatprep.subr.bf16.mxu0 0
          %8047 = vmatpush1.bf16.msra.mxu0 %v8022
          %8048 = vmatprep.subr.bf16.mxu0 0
          %8049 = vmatpush1.bf16.msra.mxu0 %v8021
          %8050 = vmatprep.subr.bf16.mxu0 0
          %8051 = vmatpush1.bf16.msra.mxu0 %v8020
          %8052 = vmatprep.subr.bf16.mxu0 0
          %8053 = vmatpush2.bf16.msra.mxu0 0
          %8054 = vmatprep.subr.bf16.mxu0 0
          %8055 = vmatpush2.bf16.msra.mxu0 0
          %8056 = vmatprep.subr.bf16.mxu0 0
          %8057 = vmatpush2.bf16.msra.mxu0 0
          %8058 = vmatprep.subr.bf16.mxu0 0
          %8059 = vmatpush2.bf16.msra.mxu0 0
          %8060 = vmatprep.subr.bf16.mxu0 0
          %8061 = vmatpush2.bf16.msra.mxu0 0
          %8062 = vmatprep.subr.bf16.mxu0 0
          %8063 = vmatpush2.bf16.msra.mxu0 0
          %8064 = vmatprep.subr.bf16.mxu0 0
          %8065 = vmatpush2.bf16.msra.mxu0 0
          %8066 = vmatprep.subr.bf16.mxu0 0
          %8067 = vmatpush2.bf16.msra.mxu0 0
          %8068 = vmatprep.mubr.bf16.mxu0 0
          %8069 = vmatmul.mubr.bf16.gmra.mxu0 %v7970
          %v8070 = vpop.f32.mrf.mxu0
          %v8071 = vadd.f32 0.0, %v8070
          %v8072 = vpop.f32.mrf.mxu0
          %v8073 = vpop.f32.mrf.mxu0
          %v8074 = vpop.f32.mrf.mxu0
          %8075 = vdwg.mxu0
          %v8076 = vadd.f32 %v7965, %v8071
          %v8077 = vld [vmem:[%s7968 + $0x1] sm:$0xf]
          %v8078 = vpack.c.bf16 %v8077, %v8077
          %s8079 = scalar_lea.vmem %s19, 256
          %v8080 = vld [vmem:[%s8079] sm:$0xf]
          %v8081 = vld [vmem:[%s8079 + $0x4] sm:$0xf]
          %v8082 = vld [vmem:[%s8079 + $0x8] sm:$0xf]
          %v8083 = vld [vmem:[%s8079 + $0xc] sm:$0xf]
          %v8084 = vld [vmem:[%s8079 + $0x10] sm:$0xf]
          %v8085 = vld [vmem:[%s8079 + $0x14] sm:$0xf]
          %v8086 = vld [vmem:[%s8079 + $0x18] sm:$0xf]
          %v8087 = vld [vmem:[%s8079 + $0x1c] sm:$0xf]
          %v8088 = vld [vmem:[%s8079 + $0x20] sm:$0xf]
          %v8089 = vld [vmem:[%s8079 + $0x24] sm:$0xf]
          %v8090 = vld [vmem:[%s8079 + $0x28] sm:$0xf]
          %v8091 = vld [vmem:[%s8079 + $0x2c] sm:$0xf]
          %v8092 = vld [vmem:[%s8079 + $0x30] sm:$0xf]
          %v8093 = vld [vmem:[%s8079 + $0x34] sm:$0xf]
          %v8094 = vld [vmem:[%s8079 + $0x38] sm:$0xf]
          %v8095 = vld [vmem:[%s8079 + $0x3c] sm:$0xf]
          %v8112 = vunpack.c.l.b16 %v8080
          %v8113 = vunpack.c.l.b16 %v8081
          %v8114 = vunpack.c.l.b16 %v8082
          %v8115 = vunpack.c.l.b16 %v8083
          %v8116 = vunpack.c.l.b16 %v8084
          %v8117 = vunpack.c.l.b16 %v8085
          %v8118 = vunpack.c.l.b16 %v8086
          %v8119 = vunpack.c.l.b16 %v8087
          %v8120 = vunpack.c.l.b16 %v8088
          %v8121 = vunpack.c.l.b16 %v8089
          %v8122 = vunpack.c.l.b16 %v8090
          %v8123 = vunpack.c.l.b16 %v8091
          %v8124 = vunpack.c.l.b16 %v8092
          %v8125 = vunpack.c.l.b16 %v8093
          %v8126 = vunpack.c.l.b16 %v8094
          %v8127 = vunpack.c.l.b16 %v8095
          %v8128 = vpack.c.b16 %v8113, %v8112
          %v8129 = vpack.c.b16 %v8115, %v8114
          %v8130 = vpack.c.b16 %v8117, %v8116
          %v8131 = vpack.c.b16 %v8119, %v8118
          %v8132 = vpack.c.b16 %v8121, %v8120
          %v8133 = vpack.c.b16 %v8123, %v8122
          %v8134 = vpack.c.b16 %v8125, %v8124
          %v8135 = vpack.c.b16 %v8127, %v8126
          %8144 = vmatprep.subr.bf16.mxu0 0
          %8145 = vmatpush1.bf16.msra.mxu0 %v8135
          %8146 = vmatprep.subr.bf16.mxu0 0
          %8147 = vmatpush1.bf16.msra.mxu0 %v8134
          %8148 = vmatprep.subr.bf16.mxu0 0
          %8149 = vmatpush1.bf16.msra.mxu0 %v8133
          %8150 = vmatprep.subr.bf16.mxu0 0
          %8151 = vmatpush1.bf16.msra.mxu0 %v8132
          %8152 = vmatprep.subr.bf16.mxu0 0
          %8153 = vmatpush1.bf16.msra.mxu0 %v8131
          %8154 = vmatprep.subr.bf16.mxu0 0
          %8155 = vmatpush1.bf16.msra.mxu0 %v8130
          %8156 = vmatprep.subr.bf16.mxu0 0
          %8157 = vmatpush1.bf16.msra.mxu0 %v8129
          %8158 = vmatprep.subr.bf16.mxu0 0
          %8159 = vmatpush1.bf16.msra.mxu0 %v8128
          %8160 = vmatprep.subr.bf16.mxu0 0
          %8161 = vmatpush2.bf16.msra.mxu0 0
          %8162 = vmatprep.subr.bf16.mxu0 0
          %8163 = vmatpush2.bf16.msra.mxu0 0
          %8164 = vmatprep.subr.bf16.mxu0 0
          %8165 = vmatpush2.bf16.msra.mxu0 0
          %8166 = vmatprep.subr.bf16.mxu0 0
          %8167 = vmatpush2.bf16.msra.mxu0 0
          %8168 = vmatprep.subr.bf16.mxu0 0
          %8169 = vmatpush2.bf16.msra.mxu0 0
          %8170 = vmatprep.subr.bf16.mxu0 0
          %8171 = vmatpush2.bf16.msra.mxu0 0
          %8172 = vmatprep.subr.bf16.mxu0 0
          %8173 = vmatpush2.bf16.msra.mxu0 0
          %8174 = vmatprep.subr.bf16.mxu0 0
          %8175 = vmatpush2.bf16.msra.mxu0 0
          %8176 = vmatprep.mubr.bf16.mxu0 0
          %8177 = vmatmul.mubr.bf16.gmra.mxu0 %v8078
          %v8178 = vpop.f32.mrf.mxu0
          %v8179 = vadd.f32 0.0, %v8178
          %v8180 = vpop.f32.mrf.mxu0
          %v8181 = vpop.f32.mrf.mxu0
          %v8182 = vpop.f32.mrf.mxu0
          %8183 = vdwg.mxu0
          %v8184 = vadd.f32 %v8076, %v8179
          %v8185 = vld [vmem:[%s7968 + $0x2] sm:$0xf]
          %v8186 = vpack.c.bf16 %v8185, %v8185
          %s8187 = scalar_lea.vmem %s19, 320
          %v8188 = vld [vmem:[%s8187] sm:$0xf]
          %v8189 = vld [vmem:[%s8187 + $0x4] sm:$0xf]
          %v8190 = vld [vmem:[%s8187 + $0x8] sm:$0xf]
          %v8191 = vld [vmem:[%s8187 + $0xc] sm:$0xf]
          %v8192 = vld [vmem:[%s8187 + $0x10] sm:$0xf]
          %v8193 = vld [vmem:[%s8187 + $0x14] sm:$0xf]
          %v8194 = vld [vmem:[%s8187 + $0x18] sm:$0xf]
          %v8195 = vld [vmem:[%s8187 + $0x1c] sm:$0xf]
          %v8196 = vld [vmem:[%s8187 + $0x20] sm:$0xf]
          %v8197 = vld [vmem:[%s8187 + $0x24] sm:$0xf]
          %v8198 = vld [vmem:[%s8187 + $0x28] sm:$0xf]
          %v8199 = vld [vmem:[%s8187 + $0x2c] sm:$0xf]
          %v8200 = vld [vmem:[%s8187 + $0x30] sm:$0xf]
          %v8201 = vld [vmem:[%s8187 + $0x34] sm:$0xf]
          %v8202 = vld [vmem:[%s8187 + $0x38] sm:$0xf]
          %v8203 = vld [vmem:[%s8187 + $0x3c] sm:$0xf]
          %v8220 = vunpack.c.l.b16 %v8188
          %v8221 = vunpack.c.l.b16 %v8189
          %v8222 = vunpack.c.l.b16 %v8190
          %v8223 = vunpack.c.l.b16 %v8191
          %v8224 = vunpack.c.l.b16 %v8192
          %v8225 = vunpack.c.l.b16 %v8193
          %v8226 = vunpack.c.l.b16 %v8194
          %v8227 = vunpack.c.l.b16 %v8195
          %v8228 = vunpack.c.l.b16 %v8196
          %v8229 = vunpack.c.l.b16 %v8197
          %v8230 = vunpack.c.l.b16 %v8198
          %v8231 = vunpack.c.l.b16 %v8199
          %v8232 = vunpack.c.l.b16 %v8200
          %v8233 = vunpack.c.l.b16 %v8201
          %v8234 = vunpack.c.l.b16 %v8202
          %v8235 = vunpack.c.l.b16 %v8203
          %v8236 = vpack.c.b16 %v8221, %v8220
          %v8237 = vpack.c.b16 %v8223, %v8222
          %v8238 = vpack.c.b16 %v8225, %v8224
          %v8239 = vpack.c.b16 %v8227, %v8226
          %v8240 = vpack.c.b16 %v8229, %v8228
          %v8241 = vpack.c.b16 %v8231, %v8230
          %v8242 = vpack.c.b16 %v8233, %v8232
          %v8243 = vpack.c.b16 %v8235, %v8234
          %8252 = vmatprep.subr.bf16.mxu0 0
          %8253 = vmatpush1.bf16.msra.mxu0 %v8243
          %8254 = vmatprep.subr.bf16.mxu0 0
          %8255 = vmatpush1.bf16.msra.mxu0 %v8242
          %8256 = vmatprep.subr.bf16.mxu0 0
          %8257 = vmatpush1.bf16.msra.mxu0 %v8241
          %8258 = vmatprep.subr.bf16.mxu0 0
          %8259 = vmatpush1.bf16.msra.mxu0 %v8240
          %8260 = vmatprep.subr.bf16.mxu0 0
          %8261 = vmatpush1.bf16.msra.mxu0 %v8239
          %8262 = vmatprep.subr.bf16.mxu0 0
          %8263 = vmatpush1.bf16.msra.mxu0 %v8238
          %8264 = vmatprep.subr.bf16.mxu0 0
          %8265 = vmatpush1.bf16.msra.mxu0 %v8237
          %8266 = vmatprep.subr.bf16.mxu0 0
          %8267 = vmatpush1.bf16.msra.mxu0 %v8236
          %8268 = vmatprep.subr.bf16.mxu0 0
          %8269 = vmatpush2.bf16.msra.mxu0 0
          %8270 = vmatprep.subr.bf16.mxu0 0
          %8271 = vmatpush2.bf16.msra.mxu0 0
          %8272 = vmatprep.subr.bf16.mxu0 0
          %8273 = vmatpush2.bf16.msra.mxu0 0
          %8274 = vmatprep.subr.bf16.mxu0 0
          %8275 = vmatpush2.bf16.msra.mxu0 0
          %8276 = vmatprep.subr.bf16.mxu0 0
          %8277 = vmatpush2.bf16.msra.mxu0 0
          %8278 = vmatprep.subr.bf16.mxu0 0
          %8279 = vmatpush2.bf16.msra.mxu0 0
          %8280 = vmatprep.subr.bf16.mxu0 0
          %8281 = vmatpush2.bf16.msra.mxu0 0
          %8282 = vmatprep.subr.bf16.mxu0 0
          %8283 = vmatpush2.bf16.msra.mxu0 0
          %8284 = vmatprep.mubr.bf16.mxu0 0
          %8285 = vmatmul.mubr.bf16.gmra.mxu0 %v8186
          %v8286 = vpop.f32.mrf.mxu0
          %v8287 = vadd.f32 0.0, %v8286
          %v8288 = vpop.f32.mrf.mxu0
          %v8289 = vpop.f32.mrf.mxu0
          %v8290 = vpop.f32.mrf.mxu0
          %8291 = vdwg.mxu0
          %v8292 = vadd.f32 %v8184, %v8287
          %s8293 = sadd.s32 %s7638, 2
          %s8294 = smul.u32 %s8293, 8
          %s8295 = scalar_lea.vmem [#allocation7], %s8294
          %v8296 = vld [vmem:[%s8295] sm:$0xf]
          %v8297 = vpack.c.bf16 %v8296, %v8296
          %s8298 = scalar_lea.vmem %s19, 384
          %v8299 = vld [vmem:[%s8298] sm:$0xf]
          %v8300 = vld [vmem:[%s8298 + $0x4] sm:$0xf]
          %v8301 = vld [vmem:[%s8298 + $0x8] sm:$0xf]
          %v8302 = vld [vmem:[%s8298 + $0xc] sm:$0xf]
          %v8303 = vld [vmem:[%s8298 + $0x10] sm:$0xf]
          %v8304 = vld [vmem:[%s8298 + $0x14] sm:$0xf]
          %v8305 = vld [vmem:[%s8298 + $0x18] sm:$0xf]
          %v8306 = vld [vmem:[%s8298 + $0x1c] sm:$0xf]
          %v8307 = vld [vmem:[%s8298 + $0x20] sm:$0xf]
          %v8308 = vld [vmem:[%s8298 + $0x24] sm:$0xf]
          %v8309 = vld [vmem:[%s8298 + $0x28] sm:$0xf]
          %v8310 = vld [vmem:[%s8298 + $0x2c] sm:$0xf]
          %v8311 = vld [vmem:[%s8298 + $0x30] sm:$0xf]
          %v8312 = vld [vmem:[%s8298 + $0x34] sm:$0xf]
          %v8313 = vld [vmem:[%s8298 + $0x38] sm:$0xf]
          %v8314 = vld [vmem:[%s8298 + $0x3c] sm:$0xf]
          %v8331 = vunpack.c.l.b16 %v8299
          %v8332 = vunpack.c.l.b16 %v8300
          %v8333 = vunpack.c.l.b16 %v8301
          %v8334 = vunpack.c.l.b16 %v8302
          %v8335 = vunpack.c.l.b16 %v8303
          %v8336 = vunpack.c.l.b16 %v8304
          %v8337 = vunpack.c.l.b16 %v8305
          %v8338 = vunpack.c.l.b16 %v8306
          %v8339 = vunpack.c.l.b16 %v8307
          %v8340 = vunpack.c.l.b16 %v8308
          %v8341 = vunpack.c.l.b16 %v8309
          %v8342 = vunpack.c.l.b16 %v8310
          %v8343 = vunpack.c.l.b16 %v8311
          %v8344 = vunpack.c.l.b16 %v8312
          %v8345 = vunpack.c.l.b16 %v8313
          %v8346 = vunpack.c.l.b16 %v8314
          %v8347 = vpack.c.b16 %v8332, %v8331
          %v8348 = vpack.c.b16 %v8334, %v8333
          %v8349 = vpack.c.b16 %v8336, %v8335
          %v8350 = vpack.c.b16 %v8338, %v8337
          %v8351 = vpack.c.b16 %v8340, %v8339
          %v8352 = vpack.c.b16 %v8342, %v8341
          %v8353 = vpack.c.b16 %v8344, %v8343
          %v8354 = vpack.c.b16 %v8346, %v8345
          %8363 = vmatprep.subr.bf16.mxu0 0
          %8364 = vmatpush1.bf16.msra.mxu0 %v8354
          %8365 = vmatprep.subr.bf16.mxu0 0
          %8366 = vmatpush1.bf16.msra.mxu0 %v8353
          %8367 = vmatprep.subr.bf16.mxu0 0
          %8368 = vmatpush1.bf16.msra.mxu0 %v8352
          %8369 = vmatprep.subr.bf16.mxu0 0
          %8370 = vmatpush1.bf16.msra.mxu0 %v8351
          %8371 = vmatprep.subr.bf16.mxu0 0
          %8372 = vmatpush1.bf16.msra.mxu0 %v8350
          %8373 = vmatprep.subr.bf16.mxu0 0
          %8374 = vmatpush1.bf16.msra.mxu0 %v8349
          %8375 = vmatprep.subr.bf16.mxu0 0
          %8376 = vmatpush1.bf16.msra.mxu0 %v8348
          %8377 = vmatprep.subr.bf16.mxu0 0
          %8378 = vmatpush1.bf16.msra.mxu0 %v8347
          %8379 = vmatprep.subr.bf16.mxu0 0
          %8380 = vmatpush2.bf16.msra.mxu0 0
          %8381 = vmatprep.subr.bf16.mxu0 0
          %8382 = vmatpush2.bf16.msra.mxu0 0
          %8383 = vmatprep.subr.bf16.mxu0 0
          %8384 = vmatpush2.bf16.msra.mxu0 0
          %8385 = vmatprep.subr.bf16.mxu0 0
          %8386 = vmatpush2.bf16.msra.mxu0 0
          %8387 = vmatprep.subr.bf16.mxu0 0
          %8388 = vmatpush2.bf16.msra.mxu0 0
          %8389 = vmatprep.subr.bf16.mxu0 0
          %8390 = vmatpush2.bf16.msra.mxu0 0
          %8391 = vmatprep.subr.bf16.mxu0 0
          %8392 = vmatpush2.bf16.msra.mxu0 0
          %8393 = vmatprep.subr.bf16.mxu0 0
          %8394 = vmatpush2.bf16.msra.mxu0 0
          %8395 = vmatprep.mubr.bf16.mxu0 0
          %8396 = vmatmul.mubr.bf16.gmra.mxu0 %v8297
          %v8397 = vpop.f32.mrf.mxu0
          %v8398 = vadd.f32 0.0, %v8397
          %v8399 = vpop.f32.mrf.mxu0
          %v8400 = vpop.f32.mrf.mxu0
          %v8401 = vpop.f32.mrf.mxu0
          %8402 = vdwg.mxu0
          %v8403 = vadd.f32 %v8292, %v8398
          %v8404 = vld [vmem:[%s8295 + $0x1] sm:$0xf]
          %v8405 = vpack.c.bf16 %v8404, %v8404
          %s8406 = scalar_lea.vmem %s19, 448
          %v8407 = vld [vmem:[%s8406] sm:$0xf]
          %v8408 = vld [vmem:[%s8406 + $0x4] sm:$0xf]
          %v8409 = vld [vmem:[%s8406 + $0x8] sm:$0xf]
          %v8410 = vld [vmem:[%s8406 + $0xc] sm:$0xf]
          %v8411 = vld [vmem:[%s8406 + $0x10] sm:$0xf]
          %v8412 = vld [vmem:[%s8406 + $0x14] sm:$0xf]
          %v8413 = vld [vmem:[%s8406 + $0x18] sm:$0xf]
          %v8414 = vld [vmem:[%s8406 + $0x1c] sm:$0xf]
          %v8415 = vld [vmem:[%s8406 + $0x20] sm:$0xf]
          %v8416 = vld [vmem:[%s8406 + $0x24] sm:$0xf]
          %v8417 = vld [vmem:[%s8406 + $0x28] sm:$0xf]
          %v8418 = vld [vmem:[%s8406 + $0x2c] sm:$0xf]
          %v8419 = vld [vmem:[%s8406 + $0x30] sm:$0xf]
          %v8420 = vld [vmem:[%s8406 + $0x34] sm:$0xf]
          %v8421 = vld [vmem:[%s8406 + $0x38] sm:$0xf]
          %v8422 = vld [vmem:[%s8406 + $0x3c] sm:$0xf]
          %v8439 = vunpack.c.l.b16 %v8407
          %v8440 = vunpack.c.l.b16 %v8408
          %v8441 = vunpack.c.l.b16 %v8409
          %v8442 = vunpack.c.l.b16 %v8410
          %v8443 = vunpack.c.l.b16 %v8411
          %v8444 = vunpack.c.l.b16 %v8412
          %v8445 = vunpack.c.l.b16 %v8413
          %v8446 = vunpack.c.l.b16 %v8414
          %v8447 = vunpack.c.l.b16 %v8415
          %v8448 = vunpack.c.l.b16 %v8416
          %v8449 = vunpack.c.l.b16 %v8417
          %v8450 = vunpack.c.l.b16 %v8418
          %v8451 = vunpack.c.l.b16 %v8419
          %v8452 = vunpack.c.l.b16 %v8420
          %v8453 = vunpack.c.l.b16 %v8421
          %v8454 = vunpack.c.l.b16 %v8422
          %v8455 = vpack.c.b16 %v8440, %v8439
          %v8456 = vpack.c.b16 %v8442, %v8441
          %v8457 = vpack.c.b16 %v8444, %v8443
          %v8458 = vpack.c.b16 %v8446, %v8445
          %v8459 = vpack.c.b16 %v8448, %v8447
          %v8460 = vpack.c.b16 %v8450, %v8449
          %v8461 = vpack.c.b16 %v8452, %v8451
          %v8462 = vpack.c.b16 %v8454, %v8453
          %8471 = vmatprep.subr.bf16.mxu0 0
          %8472 = vmatpush1.bf16.msra.mxu0 %v8462
          %8473 = vmatprep.subr.bf16.mxu0 0
          %8474 = vmatpush1.bf16.msra.mxu0 %v8461
          %8475 = vmatprep.subr.bf16.mxu0 0
          %8476 = vmatpush1.bf16.msra.mxu0 %v8460
          %8477 = vmatprep.subr.bf16.mxu0 0
          %8478 = vmatpush1.bf16.msra.mxu0 %v8459
          %8479 = vmatprep.subr.bf16.mxu0 0
          %8480 = vmatpush1.bf16.msra.mxu0 %v8458
          %8481 = vmatprep.subr.bf16.mxu0 0
          %8482 = vmatpush1.bf16.msra.mxu0 %v8457
          %8483 = vmatprep.subr.bf16.mxu0 0
          %8484 = vmatpush1.bf16.msra.mxu0 %v8456
          %8485 = vmatprep.subr.bf16.mxu0 0
          %8486 = vmatpush1.bf16.msra.mxu0 %v8455
          %8487 = vmatprep.subr.bf16.mxu0 0
          %8488 = vmatpush2.bf16.msra.mxu0 0
          %8489 = vmatprep.subr.bf16.mxu0 0
          %8490 = vmatpush2.bf16.msra.mxu0 0
          %8491 = vmatprep.subr.bf16.mxu0 0
          %8492 = vmatpush2.bf16.msra.mxu0 0
          %8493 = vmatprep.subr.bf16.mxu0 0
          %8494 = vmatpush2.bf16.msra.mxu0 0
          %8495 = vmatprep.subr.bf16.mxu0 0
          %8496 = vmatpush2.bf16.msra.mxu0 0
          %8497 = vmatprep.subr.bf16.mxu0 0
          %8498 = vmatpush2.bf16.msra.mxu0 0
          %8499 = vmatprep.subr.bf16.mxu0 0
          %8500 = vmatpush2.bf16.msra.mxu0 0
          %8501 = vmatprep.subr.bf16.mxu0 0
          %8502 = vmatpush2.bf16.msra.mxu0 0
          %8503 = vmatprep.mubr.bf16.mxu0 0
          %8504 = vmatmul.mubr.bf16.gmra.mxu0 %v8405
          %v8505 = vpop.f32.mrf.mxu0
          %v8506 = vadd.f32 0.0, %v8505
          %v8507 = vpop.f32.mrf.mxu0
          %v8508 = vpop.f32.mrf.mxu0
          %v8509 = vpop.f32.mrf.mxu0
          %8510 = vdwg.mxu0
          %v8511 = vadd.f32 %v8403, %v8506
          %v8512 = vld [vmem:[%s8295 + $0x2] sm:$0xf]
          %v8513 = vpack.c.bf16 %v8512, %v8512
          %s8514 = scalar_lea.vmem %s19, 512
          %v8515 = vld [vmem:[%s8514] sm:$0xf]
          %v8516 = vld [vmem:[%s8514 + $0x4] sm:$0xf]
          %v8517 = vld [vmem:[%s8514 + $0x8] sm:$0xf]
          %v8518 = vld [vmem:[%s8514 + $0xc] sm:$0xf]
          %v8519 = vld [vmem:[%s8514 + $0x10] sm:$0xf]
          %v8520 = vld [vmem:[%s8514 + $0x14] sm:$0xf]
          %v8521 = vld [vmem:[%s8514 + $0x18] sm:$0xf]
          %v8522 = vld [vmem:[%s8514 + $0x1c] sm:$0xf]
          %v8523 = vld [vmem:[%s8514 + $0x20] sm:$0xf]
          %v8524 = vld [vmem:[%s8514 + $0x24] sm:$0xf]
          %v8525 = vld [vmem:[%s8514 + $0x28] sm:$0xf]
          %v8526 = vld [vmem:[%s8514 + $0x2c] sm:$0xf]
          %v8527 = vld [vmem:[%s8514 + $0x30] sm:$0xf]
          %v8528 = vld [vmem:[%s8514 + $0x34] sm:$0xf]
          %v8529 = vld [vmem:[%s8514 + $0x38] sm:$0xf]
          %v8530 = vld [vmem:[%s8514 + $0x3c] sm:$0xf]
          %v8547 = vunpack.c.l.b16 %v8515
          %v8548 = vunpack.c.l.b16 %v8516
          %v8549 = vunpack.c.l.b16 %v8517
          %v8550 = vunpack.c.l.b16 %v8518
          %v8551 = vunpack.c.l.b16 %v8519
          %v8552 = vunpack.c.l.b16 %v8520
          %v8553 = vunpack.c.l.b16 %v8521
          %v8554 = vunpack.c.l.b16 %v8522
          %v8555 = vunpack.c.l.b16 %v8523
          %v8556 = vunpack.c.l.b16 %v8524
          %v8557 = vunpack.c.l.b16 %v8525
          %v8558 = vunpack.c.l.b16 %v8526
          %v8559 = vunpack.c.l.b16 %v8527
          %v8560 = vunpack.c.l.b16 %v8528
          %v8561 = vunpack.c.l.b16 %v8529
          %v8562 = vunpack.c.l.b16 %v8530
          %v8563 = vpack.c.b16 %v8548, %v8547
          %v8564 = vpack.c.b16 %v8550, %v8549
          %v8565 = vpack.c.b16 %v8552, %v8551
          %v8566 = vpack.c.b16 %v8554, %v8553
          %v8567 = vpack.c.b16 %v8556, %v8555
          %v8568 = vpack.c.b16 %v8558, %v8557
          %v8569 = vpack.c.b16 %v8560, %v8559
          %v8570 = vpack.c.b16 %v8562, %v8561
          %8579 = vmatprep.subr.bf16.mxu0 0
          %8580 = vmatpush1.bf16.msra.mxu0 %v8570
          %8581 = vmatprep.subr.bf16.mxu0 0
          %8582 = vmatpush1.bf16.msra.mxu0 %v8569
          %8583 = vmatprep.subr.bf16.mxu0 0
          %8584 = vmatpush1.bf16.msra.mxu0 %v8568
          %8585 = vmatprep.subr.bf16.mxu0 0
          %8586 = vmatpush1.bf16.msra.mxu0 %v8567
          %8587 = vmatprep.subr.bf16.mxu0 0
          %8588 = vmatpush1.bf16.msra.mxu0 %v8566
          %8589 = vmatprep.subr.bf16.mxu0 0
          %8590 = vmatpush1.bf16.msra.mxu0 %v8565
          %8591 = vmatprep.subr.bf16.mxu0 0
          %8592 = vmatpush1.bf16.msra.mxu0 %v8564
          %8593 = vmatprep.subr.bf16.mxu0 0
          %8594 = vmatpush1.bf16.msra.mxu0 %v8563
          %8595 = vmatprep.subr.bf16.mxu0 0
          %8596 = vmatpush2.bf16.msra.mxu0 0
          %8597 = vmatprep.subr.bf16.mxu0 0
          %8598 = vmatpush2.bf16.msra.mxu0 0
          %8599 = vmatprep.subr.bf16.mxu0 0
          %8600 = vmatpush2.bf16.msra.mxu0 0
          %8601 = vmatprep.subr.bf16.mxu0 0
          %8602 = vmatpush2.bf16.msra.mxu0 0
          %8603 = vmatprep.subr.bf16.mxu0 0
          %8604 = vmatpush2.bf16.msra.mxu0 0
          %8605 = vmatprep.subr.bf16.mxu0 0
          %8606 = vmatpush2.bf16.msra.mxu0 0
          %8607 = vmatprep.subr.bf16.mxu0 0
          %8608 = vmatpush2.bf16.msra.mxu0 0
          %8609 = vmatprep.subr.bf16.mxu0 0
          %8610 = vmatpush2.bf16.msra.mxu0 0
          %8611 = vmatprep.mubr.bf16.mxu0 0
          %8612 = vmatmul.mubr.bf16.gmra.mxu0 %v8513
          %v8613 = vpop.f32.mrf.mxu0
          %v8614 = vadd.f32 0.0, %v8613
          %v8615 = vpop.f32.mrf.mxu0
          %v8616 = vpop.f32.mrf.mxu0
          %v8617 = vpop.f32.mrf.mxu0
          %8618 = vdwg.mxu0
          %v8619 = vadd.f32 %v8511, %v8614
          %v8621 = vlaneseq
          %v8622 = vshrl.u32 %v8621, 7
          %v8623 = vsub.s32 0, %v8622
          %v8624 = vrot.slane %v7636, %v8623
          %v8626 = vadd.f32 %v8619, %v8624
          %s8627 = scalar_lea.vmem [#allocation8], %s7967
          %v8628 = vld [vmem:[%s8627 + $0x1] sm:$0xf]
          %v8629 = vadd.f32 %v8626, %v8628
          %v8630 = vmax.f32 %v8629, 0.0
          %8631 = vst [vmem:[%s8627 + $0x1] sm:$0xf] %v8630
        $region180: #{model_forward.1} parent=111 // loop_footer
          %s7642 = sadd.s32 1, %s7638
        $region181: #{model_forward.1} parent=111 // loop_footer_branch
          %7637 = sbr.rel target = $region177
        $region182: #{model_forward.1} parent=111 // loop_exit
          _
        %s8632 = scalar_lea.vmem [#allocation8], 8
        %v8633 = vld [vmem:[%s8632 + $0x1] sm:$0xf]
        %vm8634 = vcmask 1043456
        %v8635 = vsel %vm8634, %v8633, 0.0
        %v8636 = vrot.slane %v8635, 4
        %v8637 = vadd.f32 %v8635, %v8636
        %v8638 = vrot.slane %v8637, 2
        %v8639 = vadd.f32 %v8637, %v8638
        %v8640 = vrot.slane %v8639, 1
        %v8641 = vadd.f32 %v8639, %v8640
        %v8642 = vadd.f32 %v8641, 0.0
        %s8643 = scalar_lea.vmem [#allocation8], 16
        %v8644 = vld [vmem:[%s8643 + $0x1] sm:$0xf]
        %v8645 = vsel %vm8634, %v8644, 0.0
        %v8646 = vrot.slane %v8645, 4
        %v8647 = vadd.f32 %v8645, %v8646
        %v8648 = vrot.slane %v8647, 2
        %v8649 = vadd.f32 %v8647, %v8648
        %v8650 = vrot.slane %v8649, 1
        %v8651 = vadd.f32 %v8649, %v8650
        %v8652 = vadd.f32 %v8642, %v8651
        %s8653 = scalar_lea.vmem [#allocation8], 24
        %v8654 = vld [vmem:[%s8653 + $0x1] sm:$0xf]
        %v8655 = vsel %vm8634, %v8654, 0.0
        %v8656 = vrot.slane %v8655, 4
        %v8657 = vadd.f32 %v8655, %v8656
        %v8658 = vrot.slane %v8657, 2
        %v8659 = vadd.f32 %v8657, %v8658
        %v8660 = vrot.slane %v8659, 1
        %v8661 = vadd.f32 %v8659, %v8660
        %v8662 = vadd.f32 %v8652, %v8661
        %s8663 = scalar_lea.vmem [#allocation8], 32
        %v8664 = vld [vmem:[%s8663 + $0x1] sm:$0xf]
        %v8665 = vsel %vm8634, %v8664, 0.0
        %v8666 = vrot.slane %v8665, 4
        %v8667 = vadd.f32 %v8665, %v8666
        %v8668 = vrot.slane %v8667, 2
        %v8669 = vadd.f32 %v8667, %v8668
        %v8670 = vrot.slane %v8669, 1
        %v8671 = vadd.f32 %v8669, %v8670
        %v8672 = vadd.f32 %v8662, %v8671
        %v8673 = vmul.f32 %v8672, 0.0625
        %v8674 = vpack.c.bf16 %v8673, %v8673
        %v8675 = vld [vmem:[%s21] sm:$0xf]
        %v8676 = vld [vmem:[%s21 + $0x4] sm:$0xf]
        %v8677 = vld [vmem:[%s21 + $0x8] sm:$0xf]
        %v8678 = vld [vmem:[%s21 + $0xc] sm:$0xf]
        %v8679 = vld [vmem:[%s21 + $0x10] sm:$0xf]
        %v8680 = vld [vmem:[%s21 + $0x14] sm:$0xf]
        %v8681 = vld [vmem:[%s21 + $0x18] sm:$0xf]
        %v8682 = vld [vmem:[%s21 + $0x1c] sm:$0xf]
        %v8683 = vld [vmem:[%s21 + $0x20] sm:$0xf]
        %v8684 = vld [vmem:[%s21 + $0x24] sm:$0xf]
        %v8685 = vld [vmem:[%s21 + $0x28] sm:$0xf]
        %v8686 = vld [vmem:[%s21 + $0x2c] sm:$0xf]
        %v8687 = vld [vmem:[%s21 + $0x30] sm:$0xf]
        %v8688 = vld [vmem:[%s21 + $0x34] sm:$0xf]
        %v8689 = vld [vmem:[%s21 + $0x38] sm:$0xf]
        %v8690 = vld [vmem:[%s21 + $0x3c] sm:$0xf]
        %v8691 = vld [vmem:[%s22] sm:$0x1]
        %v8708 = vunpack.c.l.b16 %v8675
        %v8709 = vunpack.c.l.b16 %v8676
        %v8710 = vunpack.c.l.b16 %v8677
        %v8711 = vunpack.c.l.b16 %v8678
        %v8712 = vunpack.c.l.b16 %v8679
        %v8713 = vunpack.c.l.b16 %v8680
        %v8714 = vunpack.c.l.b16 %v8681
        %v8715 = vunpack.c.l.b16 %v8682
        %v8716 = vunpack.c.l.b16 %v8683
        %v8717 = vunpack.c.l.b16 %v8684
        %v8718 = vunpack.c.l.b16 %v8685
        %v8719 = vunpack.c.l.b16 %v8686
        %v8720 = vunpack.c.l.b16 %v8687
        %v8721 = vunpack.c.l.b16 %v8688
        %v8722 = vunpack.c.l.b16 %v8689
        %v8723 = vunpack.c.l.b16 %v8690
        %v8724 = vpack.c.b16 %v8709, %v8708
        %v8725 = vpack.c.b16 %v8711, %v8710
        %v8726 = vpack.c.b16 %v8713, %v8712
        %v8727 = vpack.c.b16 %v8715, %v8714
        %v8728 = vpack.c.b16 %v8717, %v8716
        %v8729 = vpack.c.b16 %v8719, %v8718
        %v8730 = vpack.c.b16 %v8721, %v8720
        %v8731 = vpack.c.b16 %v8723, %v8722
        %8740 = vmatprep.subr.bf16.mxu0 0
        %8741 = vmatpush1.bf16.msra.mxu0 %v8731
        %8742 = vmatprep.subr.bf16.mxu0 0
        %8743 = vmatpush1.bf16.msra.mxu0 %v8730
        %8744 = vmatprep.subr.bf16.mxu0 0
        %8745 = vmatpush1.bf16.msra.mxu0 %v8729
        %8746 = vmatprep.subr.bf16.mxu0 0
        %8747 = vmatpush1.bf16.msra.mxu0 %v8728
        %8748 = vmatprep.subr.bf16.mxu0 0
        %8749 = vmatpush1.bf16.msra.mxu0 %v8727
        %8750 = vmatprep.subr.bf16.mxu0 0
        %8751 = vmatpush1.bf16.msra.mxu0 %v8726
        %8752 = vmatprep.subr.bf16.mxu0 0
        %8753 = vmatpush1.bf16.msra.mxu0 %v8725
        %8754 = vmatprep.subr.bf16.mxu0 0
        %8755 = vmatpush1.bf16.msra.mxu0 %v8724
        %8756 = vmatprep.subr.bf16.mxu0 0
        %8757 = vmatpush2.bf16.msra.mxu0 0
        %8758 = vmatprep.subr.bf16.mxu0 0
        %8759 = vmatpush2.bf16.msra.mxu0 0
        %8760 = vmatprep.subr.bf16.mxu0 0
        %8761 = vmatpush2.bf16.msra.mxu0 0
        %8762 = vmatprep.subr.bf16.mxu0 0
        %8763 = vmatpush2.bf16.msra.mxu0 0
        %8764 = vmatprep.subr.bf16.mxu0 0
        %8765 = vmatpush2.bf16.msra.mxu0 0
        %8766 = vmatprep.subr.bf16.mxu0 0
        %8767 = vmatpush2.bf16.msra.mxu0 0
        %8768 = vmatprep.subr.bf16.mxu0 0
        %8769 = vmatpush2.bf16.msra.mxu0 0
        %8770 = vmatprep.subr.bf16.mxu0 0
        %8771 = vmatpush2.bf16.msra.mxu0 0
        %8772 = vmatprep.mubr.bf16.mxu0 0
        %8773 = vmatmul.mubr.bf16.gmra.mxu0 %v8674
        %v8774 = vpop.f32.mrf.mxu0
        %v8775 = vadd.f32 %v8691, %v8774
        %v8776 = vpop.f32.mrf.mxu0
        %v8777 = vpop.f32.mrf.mxu0
        %v8778 = vpop.f32.mrf.mxu0
        %8779 = vdwg.mxu0
        %8780 = vst [vmem:[%s702] sm:$0x1] %v8775
        %s8781 = sand.u32 %s533, 1
        %s8782 = scalar_lea.sflag [#allocation10], %s8781
        %s8783 = sand.u32 %s533, 1
        %s8784 = scalar_lea.vmem [#allocation9], %s8783
        // Predicated region
        $region183: #{model_forward.1} parent=111 // pred_check
          %p8785 = pneg %p543
        $region184: #{model_forward.1} parent=111 // pred_check_branch
          %8787 = sbr.rel (%p8785) target = $region186
        $region185: #{model_forward.1} parent=111 // pred_region
          %s8789 = ssub.s32 16, 16
          %8790 = vsyncadd %s8782, %s8789
          %s8791 = smul.addr %s37, 16
          %s8792 = scalar_lea.hbm %s23, %s8791
          %s8794 = sshll.u32 %s8784, 4
          %s8795 = int_to_ptr.vmem [resolvable:$true] %s8794
          %8797 = dma.vmem_to_hbm [thread:$0]  %s8795, 16, %s8792, %s8782
        $region186: #{model_forward.1} parent=111 // pred_fallthru
          _
      $region112: #{model_forward.1} parent=5 // pred_fallthru
        _
      %p8798 = scmp.le.s32.totalorder 2, %s32
      // Predicated region
      $region187: #{model_forward.1} parent=5 // pred_check
        %p8799 = pneg %p8798
      $region188: #{model_forward.1} parent=5 // pred_check_branch
        %8801 = sbr.rel (%p8799) target = $region190
      $region189: #{model_forward.1} parent=5 // pred_region
        %s8802 = ssub.s32 %s32, 2
        // Predicated region
        $region191: #{model_forward.1} parent=189 // pred_check
          %p8803 = pneg %p549
        $region192: #{model_forward.1} parent=189 // pred_check_branch
          %8805 = sbr.rel (%p8803) target = $region194
        $region193: #{model_forward.1} parent=189 // pred_region
          %s8806 = sand.u32 %s534, 1
          %s8807 = scalar_lea.sflag [#allocation10], %s8806
          %s8808 = sand.u32 %s534, 1
          %s8809 = scalar_lea.vmem [#allocation9], %s8808
          %8810 = dma.done %s8807, 16
        $region194: #{model_forward.1} parent=189 // pred_fallthru
          _
      $region190: #{model_forward.1} parent=5 // pred_fallthru
        _
    $region6: #{model_forward.1} parent=1 // loop_footer
      %s36 = sadd.s32 1, %s32
    $region7: #{model_forward.1} parent=1 // loop_footer_branch
      %31 = sbr.rel target = $region3
    $region8: #{model_forward.1} parent=1 // loop_exit
      _
    %8811 = vsyncpa [#allocation10], 1
    %s8812 = scalar_lea.sflag [#allocation10], 1
    %8813 = vsyncpa %s8812, 1

</llo_original>
